<compile_context>
chip_gen: v5e
topology: v5e:2x2
jax: 0.10.0
libtpu: 0.0.40
codegen_flags: <defaults>
</compile_context>

<pallas_src>
import functools
import math

import jax
import jax.numpy as jnp
from jax import lax
from jax.experimental import pallas as pl
from jax.experimental.pallas import tpu as pltpu


# ----------------------------------------------------------------------------
# Small in-kernel helpers
# ----------------------------------------------------------------------------
def _layer_norm(v, g, b, eps=1e-5):
    mu = jnp.mean(v, axis=-1, keepdims=True)
    var = jnp.mean((v - mu) ** 2, axis=-1, keepdims=True)
    return (v - mu) * lax.rsqrt(var + eps) * g + b


def _gelu_tanh(x):
    # tanh-approx GELU: lowers to one EUP tanh (otherwise-idle slot) instead of
    # ~a dozen VALU ops + a true divide per element on the [M, FF] activation.
    # ~1e-3-level deviation from ESM-2's exact (erf) GELU.
    c = math.sqrt(2.0 / math.pi)
    return 0.5 * x * (1.0 + jnp.tanh(c * (x + 0.044715 * x * x * x)))


# ----------------------------------------------------------------------------
# Fused encoder kernel: grid = (batch_blocks, layer)
# ----------------------------------------------------------------------------
def _encoder_kernel(lens_ref,                          # VMEM [TB, 1, 1] int32
                    x_ref,                             # VMEM [TB, S, D] bf16 (token emb)
                    ln1_g, ln1_b, wqkv, bqkv, wo, bo,  # per-layer weight blocks
                    ln2_g, ln2_b, w1, b1, w2, b2,
                    lnf_g, lnf_b,                      # final layer norm
                    out_ref,                           # VMEM [TB, 1, D] pooled output
                    x_sc,                              # VMEM scratch [TB*S, D] f32
                    *, num_heads):
    l = pl.program_id(1)
    n_layers = pl.num_programs(1)

    TB, S, D = x_ref.shape
    M = TB * S                                         # MXU M-dim (all rows of the block)
    H = num_heads
    Dh = D // H
    G = TB * H                                         # batched (batch, head) attention

    lens = lens_ref[...]                               # [TB, 1, 1] valid lengths

    # Load embeddings into the resident activation scratch at the first layer;
    # activations never round-trip HBM between layers.  Padded rows are zeroed
    # once here so they stay bounded across layers (they attend over valid
    # keys but are excluded from pooling).
    @pl.when(l == 0)
    def _():
        pos = lax.broadcasted_iota(jnp.int32, (TB, S, 1), 1)
        valid = pos < lens
        x0 = jnp.where(valid, x_ref[...].astype(jnp.float32), 0.0)
        x_sc[...] = x0.reshape(M, D)

    x = x_sc[...]                                      # [M, D] f32 residual stream

    # ---- self-attention block (pre-LN, residual) ---------------------------
    xn = _layer_norm(x, ln1_g[0], ln1_b[0]).astype(jnp.bfloat16)
    # fused QKV projection: one [M, D] @ [D, 3D] MXU matmul (bf16 in, f32 acc);
    # the 1/sqrt(Dh) softmax scale is pre-folded into the Q columns host-side.
    qkv = jnp.dot(xn, wqkv[0], preferred_element_type=jnp.float32) + bqkv[0]
    qkvb = qkv.astype(jnp.bfloat16)                    # cast once, before head split

    def split_heads(t):                                # [M, D] bf16 -> [G, S, Dh]
        parts = [t[:, h * Dh:(h + 1) * Dh].reshape(TB, S, Dh) for h in range(H)]
        return jnp.stack(parts, axis=1).reshape(G, S, Dh)

    q3 = split_heads(qkvb[:, 0:D])
    k3 = split_heads(qkvb[:, D:2 * D])
    v3 = split_heads(qkvb[:, 2 * D:3 * D])

    # all-(batch,head) scores in one batched matmul: [G, S, S]
    sc = jnp.einsum('gqd,gkd->gqk', q3, k3, preferred_element_type=jnp.float32)
    # broadcastable key-padding bias: (TB,1,1,S), ~KB instead of (H,S,S)
    key_pos = lax.broadcasted_iota(jnp.int32, (1, 1, 1, S), 3)
    kbias = jnp.where(key_pos < lens.reshape(TB, 1, 1, 1), 0.0, -1e30)
    sc = sc + jnp.broadcast_to(kbias, (TB, H, 1, S)).reshape(G, 1, S)

    m = jnp.max(sc, axis=-1, keepdims=True)
    e = jnp.exp(sc - m)
    p = e * pl.reciprocal(jnp.sum(e, axis=-1, keepdims=True), approx=True)
    # all-(batch,head) context in one batched matmul: [G, S, Dh]
    ctx = jnp.einsum('gqk,gkd->gqd', p.astype(jnp.bfloat16), v3,
                     preferred_element_type=jnp.float32)
    ctx4 = ctx.reshape(TB, H, S, Dh)

    # output projection: MXU sums over heads (wo pre-reshaped to [H, Dh, D]);
    # no ctx re-pack scratch, no masked sub-lane stores.
    attn = None
    for h in range(H):
        ctx_h = ctx4[:, h].reshape(M, Dh).astype(jnp.bfloat16)
        d = jnp.dot(ctx_h, wo[0, h], preferred_element_type=jnp.float32)
        attn = d if attn is None else attn + d
    x = x + attn + bo[0]

    # ---- feed-forward block (pre-LN, residual) ------------------------------
    xn2 = _layer_norm(x, ln2_g[0], ln2_b[0]).astype(jnp.bfloat16)
    h1 = jnp.dot(xn2, w1[0], preferred_element_type=jnp.float32) + b1[0]
    h1 = _gelu_tanh(h1)
    h2 = jnp.dot(h1.astype(jnp.bfloat16), w2[0],
                 preferred_element_type=jnp.float32) + b2[0]
    x = x + h2
    x_sc[...] = x

    # ---- final layer norm + masked mean pool over positions [1, L-1) --------
    @pl.when(l == n_layers - 1)
    def _():
        xf = _layer_norm(x, lnf_g[...], lnf_b[...]).reshape(TB, S, D)
        pos = lax.broadcasted_iota(jnp.int32, (1, S, 1), 1)
        pmask = (pos >= 1) & (pos < (lens - 1))        # drop BOS, EOS, padding
        s = jnp.sum(jnp.where(pmask, xf, 0.0), axis=1, keepdims=True)   # [TB,1,D]
        denom = jnp.maximum(lens - 2, 1).astype(jnp.float32)            # L<=2 guard
        out_ref[...] = s / denom


# ----------------------------------------------------------------------------
# Wrappers
# ----------------------------------------------------------------------------
_STACKED_KEYS = ("ln1_g", "ln1_b", "wqkv", "bqkv", "wo", "bo",
                 "ln2_g", "ln2_b", "w1", "b1", "w2", "b2")


def esm_encoder_pool(x, lens, params, num_heads, batch_block=None):
    """x: [B, S, D] bf16 token embeddings, lens: [B] int32. Returns [B, D] f32."""
    B, S, D = x.shape
    num_layers = params["wqkv"].shape[0]
    TB = batch_block if batch_block is not None else B
    assert B % TB == 0, "batch must be divisible by the batch block"
    lens3 = lens.astype(jnp.int32).reshape(B, 1, 1)
    stacked = [params[k] for k in _STACKED_KEYS]

    def stacked_spec(w):
        nd = w.ndim
        return pl.BlockSpec((1,) + tuple(w.shape[1:]),
                            lambda b, l, _nd=nd: (l,) + (0,) * (_nd - 1))

    in_specs = [pl.BlockSpec((TB, 1, 1), lambda b, l: (b, 0, 0)),    # lens
                pl.BlockSpec((TB, S, D), lambda b, l: (b, 0, 0))]    # embeddings (bf16)
    in_specs += [stacked_spec(w) for w in stacked]
    in_specs += [pl.BlockSpec(tuple(params["ln_f_g"].shape), lambda b, l: (0, 0)),
                 pl.BlockSpec(tuple(params["ln_f_b"].shape), lambda b, l: (0, 0))]

    out = pl.pallas_call(
        functools.partial(_encoder_kernel, num_heads=num_heads),
        out_shape=jax.ShapeDtypeStruct((B, 1, D), jnp.float32),
        grid_spec=pltpu.PrefetchScalarGridSpec(
            num_scalar_prefetch=0,
            grid=(B // TB, num_layers),
            in_specs=in_specs,
            out_specs=pl.BlockSpec((TB, 1, D), lambda b, l: (b, 0, 0)),
            scratch_shapes=[pltpu.VMEM((TB * S, D), jnp.float32)],  # residual stream
        ),
        compiler_params=pltpu.CompilerParams(
            dimension_semantics=("parallel", "arbitrary"),
            # explicit scoped-VMEM budget (double-buffered weight blocks +
            # resident activations + scores); toy shapes use ~1 MiB.
            vmem_limit_bytes=64 * 1024 * 1024),
    )(lens3, x, *stacked, params["ln_f_g"], params["ln_f_b"])
    return out[:, 0, :]


def esm_embedding_forward(tokens, lens, params, num_heads, batch_block=None):
    """tokens: [B, S] int32, lens: [B] int32 (# non-pad tokens incl BOS/EOS)."""
    # glue: embedding lookup in plain JAX; embeddings enter the kernel as bf16
    x = jnp.take(params["emb"], tokens, axis=0).astype(jnp.bfloat16)  # [B, S, D]
    return esm_encoder_pool(x, lens, params, num_heads, batch_block)


# ----------------------------------------------------------------------------
# Deterministic parameter init (bf16 weights, f32 norms/biases)
# ----------------------------------------------------------------------------
def init_params(key, vocab, D, FF, num_layers, num_heads):
    Dh = D // num_heads
    scale = 1.0 / math.sqrt(Dh)

    def normal(k, shape):
        return 0.02 * jax.random.normal(k, shape, dtype=jnp.float32)

    k = jax.random.split(key, 5)
    wqkv = normal(k[1], (num_layers, D, 3 * D))
    wqkv = wqkv.at[:, :, :D].multiply(scale)            # fold 1/sqrt(Dh) into Q cols
    bqkv = jnp.zeros((num_layers, 1, 3 * D), jnp.float32)
    bqkv = bqkv.at[:, :, :D].multiply(scale)            # (no-op here; kept for generality)
    wo = normal(k[2], (num_layers, D, D)).reshape(num_layers, num_heads, Dh, D)

    return {
        "emb": normal(k[0], (vocab, D)).astype(jnp.float32),
        "ln_f_g": jnp.ones((1, D), jnp.float32),
        "ln_f_b": jnp.zeros((1, D), jnp.float32),
        "ln1_g": jnp.ones((num_layers, 1, D), jnp.float32),
        "ln1_b": jnp.zeros((num_layers, 1, D), jnp.float32),
        "wqkv": wqkv.astype(jnp.bfloat16),
        "bqkv": bqkv,
        "wo": wo.astype(jnp.bfloat16),                  # [L, H, Dh, D]
        "bo": jnp.zeros((num_layers, 1, D), jnp.float32),
        "ln2_g": jnp.ones((num_layers, 1, D), jnp.float32),
        "ln2_b": jnp.zeros((num_layers, 1, D), jnp.float32),
        "w1": normal(k[3], (num_layers, D, FF)).astype(jnp.bfloat16),
        "b1": jnp.zeros((num_layers, 1, FF), jnp.float32),
        "w2": normal(k[4], (num_layers, FF, D)).astype(jnp.bfloat16),
        "b2": jnp.zeros((num_layers, 1, D), jnp.float32),
    }


# ----------------------------------------------------------------------------
if __name__ == "__main__":
    # small, lane-dense shapes: seq=8, hidden=128 (4 heads), ffn=256.
    # batch=32 with a batch block of 16 so each grid step feeds the MXU with
    # M = TB*S = 128 rows and each layer's weights are streamed once per block.
    B, TB, S, D, H, FF = 32, 16, 8, 128, 4, 256
    VOCAB, NUM_LAYERS = 33, 2            # ESM alphabet size / truncated depth
    CLS, PAD, EOS = 0, 1, 2

    key = jax.random.PRNGKey(0)
    k_params, k_tok, k_len = jax.random.split(key, 3)
    params = init_params(k_params, VOCAB, D, FF, NUM_LAYERS, H)

    # pre-tokenized sequences: [CLS, residues..., EOS, PAD...]
    lens = jax.random.randint(k_len, (B,), 4, S + 1, dtype=jnp.int32)  # incl BOS/EOS
    residues = jax.random.randint(k_tok, (B, S), 4, VOCAB, dtype=jnp.int32)
    pos = jnp.arange(S)[None, :]
    tokens = jnp.where(pos == 0, CLS, residues)
    tokens = jnp.where(pos == (lens[:, None] - 1), EOS, tokens)
    tokens = jnp.where(pos >= lens[:, None], PAD, tokens).astype(jnp.int32)

    out = esm_embedding_forward(tokens, lens, params, num_heads=H, batch_block=TB)
    out = jax.block_until_ready(out)
    assert out.shape == (B, D) and out.dtype == jnp.float32
    assert bool(jnp.all(jnp.isfinite(out)))
    print("KERNEL_OK")
</pallas_src>

<mosaic_0001>
module attributes {stable_mosaic.version = 11 : i64} {
  func.func @_encoder_kernel(%arg0: i32, %arg1: i32, %arg2: memref<16x1x1xi32, #tpu.memory_space<vmem>>, %arg3: memref<16x8x128xbf16, #tpu.memory_space<vmem>>, %arg4: memref<1x1x128xf32, #tpu.memory_space<vmem>>, %arg5: memref<1x1x128xf32, #tpu.memory_space<vmem>>, %arg6: memref<1x128x384xbf16, #tpu.memory_space<vmem>>, %arg7: memref<1x1x384xf32, #tpu.memory_space<vmem>>, %arg8: memref<1x4x32x128xbf16, #tpu.memory_space<vmem>>, %arg9: memref<1x1x128xf32, #tpu.memory_space<vmem>>, %arg10: memref<1x1x128xf32, #tpu.memory_space<vmem>>, %arg11: memref<1x1x128xf32, #tpu.memory_space<vmem>>, %arg12: memref<1x128x256xbf16, #tpu.memory_space<vmem>>, %arg13: memref<1x1x256xf32, #tpu.memory_space<vmem>>, %arg14: memref<1x256x128xbf16, #tpu.memory_space<vmem>>, %arg15: memref<1x1x128xf32, #tpu.memory_space<vmem>>, %arg16: memref<1x128xf32, #tpu.memory_space<vmem>>, %arg17: memref<1x128xf32, #tpu.memory_space<vmem>>, %arg18: memref<16x1x128xf32, #tpu.memory_space<vmem>>, %arg19: memref<128x128xf32, #tpu.memory_space<vmem>>) attributes {dimension_semantics = [#tpu.dimension_semantics<parallel>, #tpu.dimension_semantics<arbitrary>], iteration_bounds = array<i64: 2, 2>, scalar_prefetch = 0 : i64, scratch_operands = 1 : i64, tpu.core_type = #tpu.core_type<tc>, window_params = [{transform_indices = @transform_0, window_bounds = array<i64: 16, 1, 1>}, {transform_indices = @transform_1, window_bounds = array<i64: 16, 8, 128>}, {transform_indices = @transform_2, window_bounds = array<i64: 1, 1, 128>}, {transform_indices = @transform_3, window_bounds = array<i64: 1, 1, 128>}, {transform_indices = @transform_4, window_bounds = array<i64: 1, 128, 384>}, {transform_indices = @transform_5, window_bounds = array<i64: 1, 1, 384>}, {transform_indices = @transform_6, window_bounds = array<i64: 1, 4, 32, 128>}, {transform_indices = @transform_7, window_bounds = array<i64: 1, 1, 128>}, {transform_indices = @transform_8, window_bounds = array<i64: 1, 1, 128>}, {transform_indices = @transform_9, window_bounds = array<i64: 1, 1, 128>}, {transform_indices = @transform_10, window_bounds = array<i64: 1, 128, 256>}, {transform_indices = @transform_11, window_bounds = array<i64: 1, 1, 256>}, {transform_indices = @transform_12, window_bounds = array<i64: 1, 256, 128>}, {transform_indices = @transform_13, window_bounds = array<i64: 1, 1, 128>}, {pipeline_mode = #tpu.pipeline_mode<synchronous>, transform_indices = @transform_14, window_bounds = array<i64: 1, 128>}, {pipeline_mode = #tpu.pipeline_mode<synchronous>, transform_indices = @transform_15, window_bounds = array<i64: 1, 128>}, {transform_indices = @transform_16, window_bounds = array<i64: 16, 1, 128>}]} {
    %c0 = arith.constant 0 : index
    %c0_0 = arith.constant 0 : index
    %c0_1 = arith.constant 0 : index
    %0 = vector.load %arg2[%c0, %c0_0, %c0_1] : memref<16x1x1xi32, #tpu.memory_space<vmem>>, vector<16x1x1xi32>
    %c0_i32 = arith.constant 0 : i32
    %1 = arith.cmpi eq, %arg1, %c0_i32 : i32
    %2 = arith.extui %1 : i1 to i32
    %c0_i32_2 = arith.constant 0 : i32
    %3 = arith.cmpi ne, %2, %c0_i32_2 : i32
    scf.if %3 {
      %208 = tpu.iota {dimensions = array<i32: 1>} : vector<16x8x1xi32>
      %209 = vector.broadcast %0 : vector<16x1x1xi32> to vector<16x8x1xi32>
      %210 = arith.cmpi slt, %208, %209 : vector<16x8x1xi32>
      %c0_80 = arith.constant 0 : index
      %c0_81 = arith.constant 0 : index
      %c0_82 = arith.constant 0 : index
      %211 = vector.load %arg3[%c0_80, %c0_81, %c0_82] : memref<16x8x128xbf16, #tpu.memory_space<vmem>>, vector<16x8x128xbf16>
      %212 = arith.extf %211 : vector<16x8x128xbf16> to vector<16x8x128xf32>
      %cst_83 = arith.constant 0.000000e+00 : f32
      %213 = vector.shape_cast %210 : vector<16x8x1xi1> to vector<16x8x1xi1>
      %214 = vector.broadcast %213 : vector<16x8x1xi1> to vector<16x8x128xi1>
      %215 = vector.broadcast %cst_83 : f32 to vector<16x8x128xf32>
      %216 = arith.select %214, %212, %215 : vector<16x8x128xi1>, vector<16x8x128xf32>
      %217 = vector.shape_cast %216 : vector<16x8x128xf32> to vector<128x128xf32>
      %c0_84 = arith.constant 0 : index
      %c0_85 = arith.constant 0 : index
      %218 = vector.load %arg19[%c0_84, %c0_85] : memref<128x128xf32, #tpu.memory_space<vmem>>, vector<128x128xf32>
      tpu.vector_store %arg19[%c0_84, %c0_85], %217 {strides = array<i32>} : memref<128x128xf32, #tpu.memory_space<vmem>>, vector<128x128xf32>,
    } else {
    }
    %c0_3 = arith.constant 0 : index
    %c0_4 = arith.constant 0 : index
    %4 = vector.load %arg19[%c0_3, %c0_4] : memref<128x128xf32, #tpu.memory_space<vmem>>, vector<128x128xf32>
    %c0_5 = arith.constant 0 : index
    %c0_6 = arith.constant 0 : index
    %c0_7 = arith.constant 0 : index
    %5 = vector.load %arg4[%c0_5, %c0_6, %c0_7] : memref<1x1x128xf32, #tpu.memory_space<vmem>>, vector<1x1x128xf32>
    %6 = vector.shape_cast %5 : vector<1x1x128xf32> to vector<1x128xf32>
    %c0_8 = arith.constant 0 : index
    %c0_9 = arith.constant 0 : index
    %c0_10 = arith.constant 0 : index
    %7 = vector.load %arg5[%c0_8, %c0_9, %c0_10] : memref<1x1x128xf32, #tpu.memory_space<vmem>>, vector<1x1x128xf32>
    %8 = vector.shape_cast %7 : vector<1x1x128xf32> to vector<1x128xf32>
    %cst = arith.constant dense<0.000000e+00> : vector<128xf32>
    %9 = vector.multi_reduction <add>, %4, %cst [1] : vector<128x128xf32> to vector<128xf32>
    %10 = vector.shape_cast %9 : vector<128xf32> to vector<128x1xf32>
    %cst_11 = arith.constant 1.280000e+02 : f32
    %11 = vector.broadcast %cst_11 : f32 to vector<128x1xf32>
    %12 = arith.divf %10, %11 : vector<128x1xf32>
    %13 = vector.broadcast %12 : vector<128x1xf32> to vector<128x128xf32>
    %14 = arith.subf %4, %13 : vector<128x128xf32>
    %15 = arith.mulf %14, %14 : vector<128x128xf32>
    %cst_12 = arith.constant dense<0.000000e+00> : vector<128xf32>
    %16 = vector.multi_reduction <add>, %15, %cst_12 [1] : vector<128x128xf32> to vector<128xf32>
    %17 = vector.shape_cast %16 : vector<128xf32> to vector<128x1xf32>
    %cst_13 = arith.constant 1.280000e+02 : f32
    %18 = vector.broadcast %cst_13 : f32 to vector<128x1xf32>
    %19 = arith.divf %17, %18 : vector<128x1xf32>
    %20 = vector.broadcast %12 : vector<128x1xf32> to vector<128x128xf32>
    %21 = arith.subf %4, %20 : vector<128x128xf32>
    %cst_14 = arith.constant 9.99999974E-6 : f32
    %22 = vector.broadcast %cst_14 : f32 to vector<128x1xf32>
    %23 = arith.addf %19, %22 : vector<128x1xf32>
    %24 = math.rsqrt %23 : vector<128x1xf32>
    %25 = vector.broadcast %24 : vector<128x1xf32> to vector<128x128xf32>
    %26 = arith.mulf %21, %25 : vector<128x128xf32>
    %27 = vector.broadcast %6 : vector<1x128xf32> to vector<128x128xf32>
    %28 = arith.mulf %26, %27 : vector<128x128xf32>
    %29 = vector.broadcast %8 : vector<1x128xf32> to vector<128x128xf32>
    %30 = arith.addf %28, %29 : vector<128x128xf32>
    %31 = arith.truncf %30 : vector<128x128xf32> to vector<128x128xbf16>
    %c0_15 = arith.constant 0 : index
    %c0_16 = arith.constant 0 : index
    %c0_17 = arith.constant 0 : index
    %32 = vector.load %arg6[%c0_15, %c0_16, %c0_17] : memref<1x128x384xbf16, #tpu.memory_space<vmem>>, vector<1x128x384xbf16>
    %33 = vector.shape_cast %32 : vector<1x128x384xbf16> to vector<128x384xbf16>
    %cst_18 = arith.constant dense<0.000000e+00> : vector<128x384xf32>
    %34 = tpu.matmul %31, %33, %cst_18 {dimension_numbers = #tpu.dot_dimension_numbers<[1], [0], [0], [1], [0, 0, 1, 1], [], []>} : vector<128x128xbf16>, vector<128x384xbf16>, vector<128x384xf32> -> vector<128x384xf32>
    %c0_19 = arith.constant 0 : index
    %c0_20 = arith.constant 0 : index
    %c0_21 = arith.constant 0 : index
    %35 = vector.load %arg7[%c0_19, %c0_20, %c0_21] : memref<1x1x384xf32, #tpu.memory_space<vmem>>, vector<1x1x384xf32>
    %36 = vector.shape_cast %35 : vector<1x1x384xf32> to vector<1x384xf32>
    %37 = vector.broadcast %36 : vector<1x384xf32> to vector<128x384xf32>
    %38 = arith.addf %34, %37 : vector<128x384xf32>
    %39 = arith.truncf %38 : vector<128x384xf32> to vector<128x384xbf16>
    %40 = vector.extract_strided_slice %39 {offsets = [0, 0], sizes = [128, 128], strides = [1, 1]} : vector<128x384xbf16> to vector<128x128xbf16>
    %41 = vector.extract_strided_slice %40 {offsets = [0, 0], sizes = [128, 32], strides = [1, 1]} : vector<128x128xbf16> to vector<128x32xbf16>
    %42 = vector.shape_cast %41 : vector<128x32xbf16> to vector<16x8x32xbf16>
    %43 = vector.extract_strided_slice %40 {offsets = [0, 32], sizes = [128, 32], strides = [1, 1]} : vector<128x128xbf16> to vector<128x32xbf16>
    %44 = vector.shape_cast %43 : vector<128x32xbf16> to vector<16x8x32xbf16>
    %45 = vector.extract_strided_slice %40 {offsets = [0, 64], sizes = [128, 32], strides = [1, 1]} : vector<128x128xbf16> to vector<128x32xbf16>
    %46 = vector.shape_cast %45 : vector<128x32xbf16> to vector<16x8x32xbf16>
    %47 = vector.extract_strided_slice %40 {offsets = [0, 96], sizes = [128, 32], strides = [1, 1]} : vector<128x128xbf16> to vector<128x32xbf16>
    %48 = vector.shape_cast %47 : vector<128x32xbf16> to vector<16x8x32xbf16>
    %49 = vector.shape_cast %42 : vector<16x8x32xbf16> to vector<16x1x8x32xbf16>
    %50 = vector.shape_cast %44 : vector<16x8x32xbf16> to vector<16x1x8x32xbf16>
    %51 = vector.shape_cast %46 : vector<16x8x32xbf16> to vector<16x1x8x32xbf16>
    %52 = vector.shape_cast %48 : vector<16x8x32xbf16> to vector<16x1x8x32xbf16>
    %53 = tpu.concatenate %49, %50, %51, %52 in 1 : vector<16x1x8x32xbf16>, vector<16x1x8x32xbf16>, vector<16x1x8x32xbf16>, vector<16x1x8x32xbf16> -> vector<16x4x8x32xbf16>
    %54 = vector.shape_cast %53 : vector<16x4x8x32xbf16> to vector<64x8x32xbf16>
    %55 = vector.extract_strided_slice %39 {offsets = [0, 128], sizes = [128, 128], strides = [1, 1]} : vector<128x384xbf16> to vector<128x128xbf16>
    %56 = vector.extract_strided_slice %55 {offsets = [0, 0], sizes = [128, 32], strides = [1, 1]} : vector<128x128xbf16> to vector<128x32xbf16>
    %57 = vector.shape_cast %56 : vector<128x32xbf16> to vector<16x8x32xbf16>
    %58 = vector.extract_strided_slice %55 {offsets = [0, 32], sizes = [128, 32], strides = [1, 1]} : vector<128x128xbf16> to vector<128x32xbf16>
    %59 = vector.shape_cast %58 : vector<128x32xbf16> to vector<16x8x32xbf16>
    %60 = vector.extract_strided_slice %55 {offsets = [0, 64], sizes = [128, 32], strides = [1, 1]} : vector<128x128xbf16> to vector<128x32xbf16>
    %61 = vector.shape_cast %60 : vector<128x32xbf16> to vector<16x8x32xbf16>
    %62 = vector.extract_strided_slice %55 {offsets = [0, 96], sizes = [128, 32], strides = [1, 1]} : vector<128x128xbf16> to vector<128x32xbf16>
    %63 = vector.shape_cast %62 : vector<128x32xbf16> to vector<16x8x32xbf16>
    %64 = vector.shape_cast %57 : vector<16x8x32xbf16> to vector<16x1x8x32xbf16>
    %65 = vector.shape_cast %59 : vector<16x8x32xbf16> to vector<16x1x8x32xbf16>
    %66 = vector.shape_cast %61 : vector<16x8x32xbf16> to vector<16x1x8x32xbf16>
    %67 = vector.shape_cast %63 : vector<16x8x32xbf16> to vector<16x1x8x32xbf16>
    %68 = tpu.concatenate %64, %65, %66, %67 in 1 : vector<16x1x8x32xbf16>, vector<16x1x8x32xbf16>, vector<16x1x8x32xbf16>, vector<16x1x8x32xbf16> -> vector<16x4x8x32xbf16>
    %69 = vector.shape_cast %68 : vector<16x4x8x32xbf16> to vector<64x8x32xbf16>
    %70 = vector.extract_strided_slice %39 {offsets = [0, 256], sizes = [128, 128], strides = [1, 1]} : vector<128x384xbf16> to vector<128x128xbf16>
    %71 = vector.extract_strided_slice %70 {offsets = [0, 0], sizes = [128, 32], strides = [1, 1]} : vector<128x128xbf16> to vector<128x32xbf16>
    %72 = vector.shape_cast %71 : vector<128x32xbf16> to vector<16x8x32xbf16>
    %73 = vector.extract_strided_slice %70 {offsets = [0, 32], sizes = [128, 32], strides = [1, 1]} : vector<128x128xbf16> to vector<128x32xbf16>
    %74 = vector.shape_cast %73 : vector<128x32xbf16> to vector<16x8x32xbf16>
    %75 = vector.extract_strided_slice %70 {offsets = [0, 64], sizes = [128, 32], strides = [1, 1]} : vector<128x128xbf16> to vector<128x32xbf16>
    %76 = vector.shape_cast %75 : vector<128x32xbf16> to vector<16x8x32xbf16>
    %77 = vector.extract_strided_slice %70 {offsets = [0, 96], sizes = [128, 32], strides = [1, 1]} : vector<128x128xbf16> to vector<128x32xbf16>
    %78 = vector.shape_cast %77 : vector<128x32xbf16> to vector<16x8x32xbf16>
    %79 = vector.shape_cast %72 : vector<16x8x32xbf16> to vector<16x1x8x32xbf16>
    %80 = vector.shape_cast %74 : vector<16x8x32xbf16> to vector<16x1x8x32xbf16>
    %81 = vector.shape_cast %76 : vector<16x8x32xbf16> to vector<16x1x8x32xbf16>
    %82 = vector.shape_cast %78 : vector<16x8x32xbf16> to vector<16x1x8x32xbf16>
    %83 = tpu.concatenate %79, %80, %81, %82 in 1 : vector<16x1x8x32xbf16>, vector<16x1x8x32xbf16>, vector<16x1x8x32xbf16>, vector<16x1x8x32xbf16> -> vector<16x4x8x32xbf16>
    %84 = vector.shape_cast %83 : vector<16x4x8x32xbf16> to vector<64x8x32xbf16>
    "tpu.trace_start"() <{level = 10 : i32, message = "gqd,gkd->gqk"}> : () -> ()
    %cst_22 = arith.constant dense<0.000000e+00> : vector<64x8x8xf32>
    %85 = tpu.matmul %54, %69, %cst_22 {dimension_numbers = #tpu.dot_dimension_numbers<[2], [2], [1], [1], [0, 0, 0, 1, 1, 1], [0], [0]>} : vector<64x8x32xbf16>, vector<64x8x32xbf16>, vector<64x8x8xf32> -> vector<64x8x8xf32>
    "tpu.trace_stop"() : () -> ()
    %86 = tpu.iota {dimensions = array<i32: 3>} : vector<1x1x1x8xi32>
    %87 = vector.shape_cast %0 : vector<16x1x1xi32> to vector<16x1x1x1xi32>
    %88 = vector.broadcast %86 : vector<1x1x1x8xi32> to vector<16x1x1x8xi32>
    %89 = vector.broadcast %87 : vector<16x1x1x1xi32> to vector<16x1x1x8xi32>
    %90 = arith.cmpi slt, %88, %89 : vector<16x1x1x8xi32>
    %cst_23 = arith.constant 0.000000e+00 : f32
    %cst_24 = arith.constant -1.000000e+30 : f32
    %91 = vector.broadcast %cst_23 : f32 to vector<16x1x1x8xf32>
    %92 = vector.broadcast %cst_24 : f32 to vector<16x1x1x8xf32>
    %93 = arith.select %90, %91, %92 : vector<16x1x1x8xi1>, vector<16x1x1x8xf32>
    %94 = vector.shape_cast %93 : vector<16x1x1x8xf32> to vector<16x1x1x8xf32>
    %95 = vector.broadcast %94 : vector<16x1x1x8xf32> to vector<16x4x1x8xf32>
    %96 = vector.shape_cast %95 : vector<16x4x1x8xf32> to vector<64x1x8xf32>
    %97 = vector.broadcast %96 : vector<64x1x8xf32> to vector<64x8x8xf32>
    %98 = arith.addf %85, %97 : vector<64x8x8xf32>
    %cst_25 = arith.constant dense<0xFF800000> : vector<64x8xf32>
    %99 = vector.multi_reduction <maximumf>, %98, %cst_25 [2] : vector<64x8x8xf32> to vector<64x8xf32>
    %100 = vector.shape_cast %99 : vector<64x8xf32> to vector<64x8x1xf32>
    %101 = vector.broadcast %100 : vector<64x8x1xf32> to vector<64x8x8xf32>
    %102 = arith.subf %98, %101 : vector<64x8x8xf32>
    %103 = math.exp %102 : vector<64x8x8xf32>
    %cst_26 = arith.constant dense<0.000000e+00> : vector<64x8xf32>
    %104 = vector.multi_reduction <add>, %103, %cst_26 [2] : vector<64x8x8xf32> to vector<64x8xf32>
    %105 = vector.shape_cast %104 : vector<64x8xf32> to vector<64x8x1xf32>
    %106 = tpu.reciprocal %105 {approx = true} : vector<64x8x1xf32> -> vector<64x8x1xf32>
    %107 = vector.broadcast %106 : vector<64x8x1xf32> to vector<64x8x8xf32>
    %108 = arith.mulf %103, %107 : vector<64x8x8xf32>
    %109 = arith.truncf %108 : vector<64x8x8xf32> to vector<64x8x8xbf16>
    "tpu.trace_start"() <{level = 10 : i32, message = "gqk,gkd->gqd"}> : () -> ()
    %cst_27 = arith.constant dense<0.000000e+00> : vector<64x8x32xf32>
    %110 = tpu.matmul %109, %84, %cst_27 {dimension_numbers = #tpu.dot_dimension_numbers<[2], [1], [1], [2], [0, 0, 0, 1, 1, 2], [0], [0]>} : vector<64x8x8xbf16>, vector<64x8x32xbf16>, vector<64x8x32xf32> -> vector<64x8x32xf32>
    "tpu.trace_stop"() : () -> ()
    %111 = vector.shape_cast %110 : vector<64x8x32xf32> to vector<16x4x8x32xf32>
    %112 = vector.extract_strided_slice %111 {offsets = [0, 0, 0, 0], sizes = [16, 1, 8, 32], strides = [1, 1, 1, 1]} : vector<16x4x8x32xf32> to vector<16x1x8x32xf32>
    %113 = vector.shape_cast %112 : vector<16x1x8x32xf32> to vector<16x8x32xf32>
    %114 = vector.shape_cast %113 : vector<16x8x32xf32> to vector<128x32xf32>
    %115 = arith.truncf %114 : vector<128x32xf32> to vector<128x32xbf16>
    %c0_28 = arith.constant 0 : index
    %c0_29 = arith.constant 0 : index
    %c0_30 = arith.constant 0 : index
    %c0_31 = arith.constant 0 : index
    %116 = vector.load %arg8[%c0_28, %c0_29, %c0_30, %c0_31] : memref<1x4x32x128xbf16, #tpu.memory_space<vmem>>, vector<1x1x32x128xbf16>
    %117 = vector.shape_cast %116 : vector<1x1x32x128xbf16> to vector<32x128xbf16>
    %cst_32 = arith.constant dense<0.000000e+00> : vector<128x128xf32>
    %118 = tpu.matmul %115, %117, %cst_32 {dimension_numbers = #tpu.dot_dimension_numbers<[1], [0], [0], [1], [0, 0, 1, 1], [], []>} : vector<128x32xbf16>, vector<32x128xbf16>, vector<128x128xf32> -> vector<128x128xf32>
    %119 = vector.extract_strided_slice %111 {offsets = [0, 1, 0, 0], sizes = [16, 1, 8, 32], strides = [1, 1, 1, 1]} : vector<16x4x8x32xf32> to vector<16x1x8x32xf32>
    %120 = vector.shape_cast %119 : vector<16x1x8x32xf32> to vector<16x8x32xf32>
    %121 = vector.shape_cast %120 : vector<16x8x32xf32> to vector<128x32xf32>
    %122 = arith.truncf %121 : vector<128x32xf32> to vector<128x32xbf16>
    %c0_33 = arith.constant 0 : index
    %c1 = arith.constant 1 : index
    %c0_34 = arith.constant 0 : index
    %c0_35 = arith.constant 0 : index
    %123 = vector.load %arg8[%c0_33, %c1, %c0_34, %c0_35] : memref<1x4x32x128xbf16, #tpu.memory_space<vmem>>, vector<1x1x32x128xbf16>
    %124 = vector.shape_cast %123 : vector<1x1x32x128xbf16> to vector<32x128xbf16>
    %cst_36 = arith.constant dense<0.000000e+00> : vector<128x128xf32>
    %125 = tpu.matmul %122, %124, %cst_36 {dimension_numbers = #tpu.dot_dimension_numbers<[1], [0], [0], [1], [0, 0, 1, 1], [], []>} : vector<128x32xbf16>, vector<32x128xbf16>, vector<128x128xf32> -> vector<128x128xf32>
    %126 = arith.addf %118, %125 : vector<128x128xf32>
    %127 = vector.extract_strided_slice %111 {offsets = [0, 2, 0, 0], sizes = [16, 1, 8, 32], strides = [1, 1, 1, 1]} : vector<16x4x8x32xf32> to vector<16x1x8x32xf32>
    %128 = vector.shape_cast %127 : vector<16x1x8x32xf32> to vector<16x8x32xf32>
    %129 = vector.shape_cast %128 : vector<16x8x32xf32> to vector<128x32xf32>
    %130 = arith.truncf %129 : vector<128x32xf32> to vector<128x32xbf16>
    %c0_37 = arith.constant 0 : index
    %c2 = arith.constant 2 : index
    %c0_38 = arith.constant 0 : index
    %c0_39 = arith.constant 0 : index
    %131 = vector.load %arg8[%c0_37, %c2, %c0_38, %c0_39] : memref<1x4x32x128xbf16, #tpu.memory_space<vmem>>, vector<1x1x32x128xbf16>
    %132 = vector.shape_cast %131 : vector<1x1x32x128xbf16> to vector<32x128xbf16>
    %cst_40 = arith.constant dense<0.000000e+00> : vector<128x128xf32>
    %133 = tpu.matmul %130, %132, %cst_40 {dimension_numbers = #tpu.dot_dimension_numbers<[1], [0], [0], [1], [0, 0, 1, 1], [], []>} : vector<128x32xbf16>, vector<32x128xbf16>, vector<128x128xf32> -> vector<128x128xf32>
    %134 = arith.addf %126, %133 : vector<128x128xf32>
    %135 = vector.extract_strided_slice %111 {offsets = [0, 3, 0, 0], sizes = [16, 1, 8, 32], strides = [1, 1, 1, 1]} : vector<16x4x8x32xf32> to vector<16x1x8x32xf32>
    %136 = vector.shape_cast %135 : vector<16x1x8x32xf32> to vector<16x8x32xf32>
    %137 = vector.shape_cast %136 : vector<16x8x32xf32> to vector<128x32xf32>
    %138 = arith.truncf %137 : vector<128x32xf32> to vector<128x32xbf16>
    %c0_41 = arith.constant 0 : index
    %c3 = arith.constant 3 : index
    %c0_42 = arith.constant 0 : index
    %c0_43 = arith.constant 0 : index
    %139 = vector.load %arg8[%c0_41, %c3, %c0_42, %c0_43] : memref<1x4x32x128xbf16, #tpu.memory_space<vmem>>, vector<1x1x32x128xbf16>
    %140 = vector.shape_cast %139 : vector<1x1x32x128xbf16> to vector<32x128xbf16>
    %cst_44 = arith.constant dense<0.000000e+00> : vector<128x128xf32>
    %141 = tpu.matmul %138, %140, %cst_44 {dimension_numbers = #tpu.dot_dimension_numbers<[1], [0], [0], [1], [0, 0, 1, 1], [], []>} : vector<128x32xbf16>, vector<32x128xbf16>, vector<128x128xf32> -> vector<128x128xf32>
    %142 = arith.addf %134, %141 : vector<128x128xf32>
    %143 = arith.addf %4, %142 : vector<128x128xf32>
    %c0_45 = arith.constant 0 : index
    %c0_46 = arith.constant 0 : index
    %c0_47 = arith.constant 0 : index
    %144 = vector.load %arg9[%c0_45, %c0_46, %c0_47] : memref<1x1x128xf32, #tpu.memory_space<vmem>>, vector<1x1x128xf32>
    %145 = vector.shape_cast %144 : vector<1x1x128xf32> to vector<1x128xf32>
    %146 = vector.broadcast %145 : vector<1x128xf32> to vector<128x128xf32>
    %147 = arith.addf %143, %146 : vector<128x128xf32>
    %c0_48 = arith.constant 0 : index
    %c0_49 = arith.constant 0 : index
    %c0_50 = arith.constant 0 : index
    %148 = vector.load %arg10[%c0_48, %c0_49, %c0_50] : memref<1x1x128xf32, #tpu.memory_space<vmem>>, vector<1x1x128xf32>
    %149 = vector.shape_cast %148 : vector<1x1x128xf32> to vector<1x128xf32>
    %c0_51 = arith.constant 0 : index
    %c0_52 = arith.constant 0 : index
    %c0_53 = arith.constant 0 : index
    %150 = vector.load %arg11[%c0_51, %c0_52, %c0_53] : memref<1x1x128xf32, #tpu.memory_space<vmem>>, vector<1x1x128xf32>
    %151 = vector.shape_cast %150 : vector<1x1x128xf32> to vector<1x128xf32>
    %cst_54 = arith.constant dense<0.000000e+00> : vector<128xf32>
    %152 = vector.multi_reduction <add>, %147, %cst_54 [1] : vector<128x128xf32> to vector<128xf32>
    %153 = vector.shape_cast %152 : vector<128xf32> to vector<128x1xf32>
    %cst_55 = arith.constant 1.280000e+02 : f32
    %154 = vector.broadcast %cst_55 : f32 to vector<128x1xf32>
    %155 = arith.divf %153, %154 : vector<128x1xf32>
    %156 = vector.broadcast %155 : vector<128x1xf32> to vector<128x128xf32>
    %157 = arith.subf %147, %156 : vector<128x128xf32>
    %158 = arith.mulf %157, %157 : vector<128x128xf32>
    %cst_56 = arith.constant dense<0.000000e+00> : vector<128xf32>
    %159 = vector.multi_reduction <add>, %158, %cst_56 [1] : vector<128x128xf32> to vector<128xf32>
    %160 = vector.shape_cast %159 : vector<128xf32> to vector<128x1xf32>
    %cst_57 = arith.constant 1.280000e+02 : f32
    %161 = vector.broadcast %cst_57 : f32 to vector<128x1xf32>
    %162 = arith.divf %160, %161 : vector<128x1xf32>
    %163 = vector.broadcast %155 : vector<128x1xf32> to vector<128x128xf32>
    %164 = arith.subf %147, %163 : vector<128x128xf32>
    %cst_58 = arith.constant 9.99999974E-6 : f32
    %165 = vector.broadcast %cst_58 : f32 to vector<128x1xf32>
    %166 = arith.addf %162, %165 : vector<128x1xf32>
    %167 = math.rsqrt %166 : vector<128x1xf32>
    %168 = vector.broadcast %167 : vector<128x1xf32> to vector<128x128xf32>
    %169 = arith.mulf %164, %168 : vector<128x128xf32>
    %170 = vector.broadcast %149 : vector<1x128xf32> to vector<128x128xf32>
    %171 = arith.mulf %169, %170 : vector<128x128xf32>
    %172 = vector.broadcast %151 : vector<1x128xf32> to vector<128x128xf32>
    %173 = arith.addf %171, %172 : vector<128x128xf32>
    %174 = arith.truncf %173 : vector<128x128xf32> to vector<128x128xbf16>
    %c0_59 = arith.constant 0 : index
    %c0_60 = arith.constant 0 : index
    %c0_61 = arith.constant 0 : index
    %175 = vector.load %arg12[%c0_59, %c0_60, %c0_61] : memref<1x128x256xbf16, #tpu.memory_space<vmem>>, vector<1x128x256xbf16>
    %176 = vector.shape_cast %175 : vector<1x128x256xbf16> to vector<128x256xbf16>
    %cst_62 = arith.constant dense<0.000000e+00> : vector<128x256xf32>
    %177 = tpu.matmul %174, %176, %cst_62 {dimension_numbers = #tpu.dot_dimension_numbers<[1], [0], [0], [1], [0, 0, 1, 1], [], []>} : vector<128x128xbf16>, vector<128x256xbf16>, vector<128x256xf32> -> vector<128x256xf32>
    %c0_63 = arith.constant 0 : index
    %c0_64 = arith.constant 0 : index
    %c0_65 = arith.constant 0 : index
    %178 = vector.load %arg13[%c0_63, %c0_64, %c0_65] : memref<1x1x256xf32, #tpu.memory_space<vmem>>, vector<1x1x256xf32>
    %179 = vector.shape_cast %178 : vector<1x1x256xf32> to vector<1x256xf32>
    %180 = vector.broadcast %179 : vector<1x256xf32> to vector<128x256xf32>
    %181 = arith.addf %177, %180 : vector<128x256xf32>
    %cst_66 = arith.constant 5.000000e-01 : f32
    %182 = vector.broadcast %cst_66 : f32 to vector<128x256xf32>
    %183 = arith.mulf %182, %181 : vector<128x256xf32>
    %cst_67 = arith.constant 4.471500e-02 : f32
    %184 = vector.broadcast %cst_67 : f32 to vector<128x256xf32>
    %185 = arith.mulf %184, %181 : vector<128x256xf32>
    %186 = arith.mulf %185, %181 : vector<128x256xf32>
    %187 = arith.mulf %186, %181 : vector<128x256xf32>
    %188 = arith.addf %181, %187 : vector<128x256xf32>
    %cst_68 = arith.constant 0.797884583 : f32
    %189 = vector.broadcast %cst_68 : f32 to vector<128x256xf32>
    %190 = arith.mulf %189, %188 : vector<128x256xf32>
    %191 = math.tanh %190 : vector<128x256xf32>
    %cst_69 = arith.constant 1.000000e+00 : f32
    %192 = vector.broadcast %cst_69 : f32 to vector<128x256xf32>
    %193 = arith.addf %192, %191 : vector<128x256xf32>
    %194 = arith.mulf %183, %193 : vector<128x256xf32>
    %195 = arith.truncf %194 : vector<128x256xf32> to vector<128x256xbf16>
    %c0_70 = arith.constant 0 : index
    %c0_71 = arith.constant 0 : index
    %c0_72 = arith.constant 0 : index
    %196 = vector.load %arg14[%c0_70, %c0_71, %c0_72] : memref<1x256x128xbf16, #tpu.memory_space<vmem>>, vector<1x256x128xbf16>
    %197 = vector.shape_cast %196 : vector<1x256x128xbf16> to vector<256x128xbf16>
    %cst_73 = arith.constant dense<0.000000e+00> : vector<128x128xf32>
    %198 = tpu.matmul %195, %197, %cst_73 {dimension_numbers = #tpu.dot_dimension_numbers<[1], [0], [0], [1], [0, 0, 1, 1], [], []>} : vector<128x256xbf16>, vector<256x128xbf16>, vector<128x128xf32> -> vector<128x128xf32>
    %c0_74 = arith.constant 0 : index
    %c0_75 = arith.constant 0 : index
    %c0_76 = arith.constant 0 : index
    %199 = vector.load %arg15[%c0_74, %c0_75, %c0_76] : memref<1x1x128xf32, #tpu.memory_space<vmem>>, vector<1x1x128xf32>
    %200 = vector.shape_cast %199 : vector<1x1x128xf32> to vector<1x128xf32>
    %201 = vector.broadcast %200 : vector<1x128xf32> to vector<128x128xf32>
    %202 = arith.addf %198, %201 : vector<128x128xf32>
    %203 = arith.addf %147, %202 : vector<128x128xf32>
    %c0_77 = arith.constant 0 : index
    %c0_78 = arith.constant 0 : index
    %204 = vector.load %arg19[%c0_77, %c0_78] : memref<128x128xf32, #tpu.memory_space<vmem>>, vector<128x128xf32>
    tpu.vector_store %arg19[%c0_77, %c0_78], %203 {strides = array<i32>} : memref<128x128xf32, #tpu.memory_space<vmem>>, vector<128x128xf32>,
    %c1_i32 = arith.constant 1 : i32
    %205 = arith.cmpi eq, %arg1, %c1_i32 : i32
    %206 = arith.extui %205 : i1 to i32
    %c0_i32_79 = arith.constant 0 : i32
    %207 = arith.cmpi ne, %206, %c0_i32_79 : i32
    scf.if %207 {
      %c0_80 = arith.constant 0 : index
      %c0_81 = arith.constant 0 : index
      %208 = vector.load %arg16[%c0_80, %c0_81] : memref<1x128xf32, #tpu.memory_space<vmem>>, vector<1x128xf32>
      %c0_82 = arith.constant 0 : index
      %c0_83 = arith.constant 0 : index
      %209 = vector.load %arg17[%c0_82, %c0_83] : memref<1x128xf32, #tpu.memory_space<vmem>>, vector<1x128xf32>
      %cst_84 = arith.constant dense<0.000000e+00> : vector<128xf32>
      %210 = vector.multi_reduction <add>, %203, %cst_84 [1] : vector<128x128xf32> to vector<128xf32>
      %211 = vector.shape_cast %210 : vector<128xf32> to vector<128x1xf32>
      %cst_85 = arith.constant 1.280000e+02 : f32
      %212 = vector.broadcast %cst_85 : f32 to vector<128x1xf32>
      %213 = arith.divf %211, %212 : vector<128x1xf32>
      %214 = vector.broadcast %213 : vector<128x1xf32> to vector<128x128xf32>
      %215 = arith.subf %203, %214 : vector<128x128xf32>
      %216 = arith.mulf %215, %215 : vector<128x128xf32>
      %cst_86 = arith.constant dense<0.000000e+00> : vector<128xf32>
      %217 = vector.multi_reduction <add>, %216, %cst_86 [1] : vector<128x128xf32> to vector<128xf32>
      %218 = vector.shape_cast %217 : vector<128xf32> to vector<128x1xf32>
      %cst_87 = arith.constant 1.280000e+02 : f32
      %219 = vector.broadcast %cst_87 : f32 to vector<128x1xf32>
      %220 = arith.divf %218, %219 : vector<128x1xf32>
      %221 = vector.broadcast %213 : vector<128x1xf32> to vector<128x128xf32>
      %222 = arith.subf %203, %221 : vector<128x128xf32>
      %cst_88 = arith.constant 9.99999974E-6 : f32
      %223 = vector.broadcast %cst_88 : f32 to vector<128x1xf32>
      %224 = arith.addf %220, %223 : vector<128x1xf32>
      %225 = math.rsqrt %224 : vector<128x1xf32>
      %226 = vector.broadcast %225 : vector<128x1xf32> to vector<128x128xf32>
      %227 = arith.mulf %222, %226 : vector<128x128xf32>
      %228 = vector.broadcast %208 : vector<1x128xf32> to vector<128x128xf32>
      %229 = arith.mulf %227, %228 : vector<128x128xf32>
      %230 = vector.broadcast %209 : vector<1x128xf32> to vector<128x128xf32>
      %231 = arith.addf %229, %230 : vector<128x128xf32>
      %232 = vector.shape_cast %231 : vector<128x128xf32> to vector<16x8x128xf32>
      %233 = tpu.iota {dimensions = array<i32: 1>} : vector<1x8x1xi32>
      %c1_i32_89 = arith.constant 1 : i32
      %234 = vector.broadcast %c1_i32_89 : i32 to vector<1x8x1xi32>
      %235 = arith.cmpi sge, %233, %234 : vector<1x8x1xi32>
      %c1_i32_90 = arith.constant 1 : i32
      %236 = vector.broadcast %c1_i32_90 : i32 to vector<16x1x1xi32>
      %237 = arith.subi %0, %236 : vector<16x1x1xi32>
      %238 = vector.broadcast %233 : vector<1x8x1xi32> to vector<16x8x1xi32>
      %239 = vector.broadcast %237 : vector<16x1x1xi32> to vector<16x8x1xi32>
      %240 = arith.cmpi slt, %238, %239 : vector<16x8x1xi32>
      %241 = vector.broadcast %235 : vector<1x8x1xi1> to vector<16x8x1xi1>
      %242 = arith.andi %241, %240 : vector<16x8x1xi1>
      %cst_91 = arith.constant 0.000000e+00 : f32
      %243 = vector.shape_cast %242 : vector<16x8x1xi1> to vector<16x8x1xi1>
      %244 = vector.broadcast %243 : vector<16x8x1xi1> to vector<16x8x128xi1>
      %245 = vector.broadcast %cst_91 : f32 to vector<16x8x128xf32>
      %246 = arith.select %244, %232, %245 : vector<16x8x128xi1>, vector<16x8x128xf32>
      %cst_92 = arith.constant dense<0.000000e+00> : vector<16x128xf32>
      %247 = vector.multi_reduction <add>, %246, %cst_92 [1] : vector<16x8x128xf32> to vector<16x128xf32>
      %248 = vector.shape_cast %247 : vector<16x128xf32> to vector<16x1x128xf32>
      %c2_i32 = arith.constant 2 : i32
      %249 = vector.broadcast %c2_i32 : i32 to vector<16x1x1xi32>
      %250 = arith.subi %0, %249 : vector<16x1x1xi32>
      %c1_i32_93 = arith.constant 1 : i32
      %251 = vector.broadcast %c1_i32_93 : i32 to vector<16x1x1xi32>
      %252 = arith.maxsi %250, %251 : vector<16x1x1xi32>
      %253 = arith.sitofp %252 : vector<16x1x1xi32> to vector<16x1x1xf32>
      %254 = vector.broadcast %253 : vector<16x1x1xf32> to vector<16x1x128xf32>
      %255 = arith.divf %248, %254 : vector<16x1x128xf32>
      %c0_94 = arith.constant 0 : index
      %c0_95 = arith.constant 0 : index
      %c0_96 = arith.constant 0 : index
      %256 = vector.load %arg18[%c0_94, %c0_95, %c0_96] : memref<16x1x128xf32, #tpu.memory_space<vmem>>, vector<16x1x128xf32>
      tpu.vector_store %arg18[%c0_94, %c0_95, %c0_96], %255 {strides = array<i32>} : memref<16x1x128xf32, #tpu.memory_space<vmem>>, vector<16x1x128xf32>,
    } else {
    }
    return
  }
  func.func @transform_0(%arg0: i32, %arg1: i32) -> (i32, i32, i32) {
    %c0_i32 = arith.constant 0 : i32
    %c0_i32_0 = arith.constant 0 : i32
    %c0_i32_1 = arith.constant 0 : i32
    return %arg0, %c0_i32, %c0_i32_0 : i32, i32, i32
  }
  func.func @transform_1(%arg0: i32, %arg1: i32) -> (i32, i32, i32) {
    %c0_i32 = arith.constant 0 : i32
    %c0_i32_0 = arith.constant 0 : i32
    %c0_i32_1 = arith.constant 0 : i32
    return %arg0, %c0_i32, %c0_i32_0 : i32, i32, i32
  }
  func.func @transform_2(%arg0: i32, %arg1: i32) -> (i32, i32, i32) {
    %c0_i32 = arith.constant 0 : i32
    %c0_i32_0 = arith.constant 0 : i32
    %c0_i32_1 = arith.constant 0 : i32
    return %arg1, %c0_i32, %c0_i32_0 : i32, i32, i32
  }
  func.func @transform_3(%arg0: i32, %arg1: i32) -> (i32, i32, i32) {
    %c0_i32 = arith.constant 0 : i32
    %c0_i32_0 = arith.constant 0 : i32
    %c0_i32_1 = arith.constant 0 : i32
    return %arg1, %c0_i32, %c0_i32_0 : i32, i32, i32
  }
  func.func @transform_4(%arg0: i32, %arg1: i32) -> (i32, i32, i32) {
    %c0_i32 = arith.constant 0 : i32
    %c0_i32_0 = arith.constant 0 : i32
    %c0_i32_1 = arith.constant 0 : i32
    return %arg1, %c0_i32, %c0_i32_0 : i32, i32, i32
  }
  func.func @transform_5(%arg0: i32, %arg1: i32) -> (i32, i32, i32) {
    %c0_i32 = arith.constant 0 : i32
    %c0_i32_0 = arith.constant 0 : i32
    %c0_i32_1 = arith.constant 0 : i32
    return %arg1, %c0_i32, %c0_i32_0 : i32, i32, i32
  }
  func.func @transform_6(%arg0: i32, %arg1: i32) -> (i32, i32, i32, i32) {
    %c0_i32 = arith.constant 0 : i32
    %c0_i32_0 = arith.constant 0 : i32
    %c0_i32_1 = arith.constant 0 : i32
    %c0_i32_2 = arith.constant 0 : i32
    return %arg1, %c0_i32, %c0_i32_0, %c0_i32_1 : i32, i32, i32, i32
  }
  func.func @transform_7(%arg0: i32, %arg1: i32) -> (i32, i32, i32) {
    %c0_i32 = arith.constant 0 : i32
    %c0_i32_0 = arith.constant 0 : i32
    %c0_i32_1 = arith.constant 0 : i32
    return %arg1, %c0_i32, %c0_i32_0 : i32, i32, i32
  }
  func.func @transform_8(%arg0: i32, %arg1: i32) -> (i32, i32, i32) {
    %c0_i32 = arith.constant 0 : i32
    %c0_i32_0 = arith.constant 0 : i32
    %c0_i32_1 = arith.constant 0 : i32
    return %arg1, %c0_i32, %c0_i32_0 : i32, i32, i32
  }
  func.func @transform_9(%arg0: i32, %arg1: i32) -> (i32, i32, i32) {
    %c0_i32 = arith.constant 0 : i32
    %c0_i32_0 = arith.constant 0 : i32
    %c0_i32_1 = arith.constant 0 : i32
    return %arg1, %c0_i32, %c0_i32_0 : i32, i32, i32
  }
  func.func @transform_10(%arg0: i32, %arg1: i32) -> (i32, i32, i32) {
    %c0_i32 = arith.constant 0 : i32
    %c0_i32_0 = arith.constant 0 : i32
    %c0_i32_1 = arith.constant 0 : i32
    return %arg1, %c0_i32, %c0_i32_0 : i32, i32, i32
  }
  func.func @transform_11(%arg0: i32, %arg1: i32) -> (i32, i32, i32) {
    %c0_i32 = arith.constant 0 : i32
    %c0_i32_0 = arith.constant 0 : i32
    %c0_i32_1 = arith.constant 0 : i32
    return %arg1, %c0_i32, %c0_i32_0 : i32, i32, i32
  }
  func.func @transform_12(%arg0: i32, %arg1: i32) -> (i32, i32, i32) {
    %c0_i32 = arith.constant 0 : i32
    %c0_i32_0 = arith.constant 0 : i32
    %c0_i32_1 = arith.constant 0 : i32
    return %arg1, %c0_i32, %c0_i32_0 : i32, i32, i32
  }
  func.func @transform_13(%arg0: i32, %arg1: i32) -> (i32, i32, i32) {
    %c0_i32 = arith.constant 0 : i32
    %c0_i32_0 = arith.constant 0 : i32
    %c0_i32_1 = arith.constant 0 : i32
    return %arg1, %c0_i32, %c0_i32_0 : i32, i32, i32
  }
  func.func @transform_14(%arg0: i32, %arg1: i32) -> (i32, i32) {
    %c0_i32 = arith.constant 0 : i32
    %c0_i32_0 = arith.constant 0 : i32
    %c0_i32_1 = arith.constant 0 : i32
    return %c0_i32, %c0_i32_0 : i32, i32
  }
  func.func @transform_15(%arg0: i32, %arg1: i32) -> (i32, i32) {
    %c0_i32 = arith.constant 0 : i32
    %c0_i32_0 = arith.constant 0 : i32
    %c0_i32_1 = arith.constant 0 : i32
    return %c0_i32, %c0_i32_0 : i32, i32
  }
  func.func @transform_16(%arg0: i32, %arg1: i32) -> (i32, i32, i32) {
    %c0_i32 = arith.constant 0 : i32
    %c0_i32_0 = arith.constant 0 : i32
    %c0_i32_1 = arith.constant 0 : i32
    return %arg0, %c0_i32, %c0_i32_0 : i32, i32, i32
  }
}

</mosaic_0001>

<llo_original>
// kernel: tpu_custom_call.1
$region0: #{tpu_custom_call.1}
  #allocation0 [shape = 'u32[]', space=smem, size = 0x4, offset = 0x4, fixed_abs, tag = 'smem constant byte address 0x4 - core index']
  #allocation1 [shape = 'u32[72,128]{1,0:T(1,128)}', space=vmem, size = 0x9000, scoped, tag = 'internal scratch']
  #allocation2 [shape = 'f32[128,128]{1,0:T(8,128)}', space=vmem, size = 0x10000, scoped, tag = 'scratch operand']
  %s0 = inlined_call_operand.vmem [shape: s32[32,1,1], index: 0, kind: input, shape index: {}]
  %s1 = inlined_call_operand.hbm [shape: bf16[32,8,128], index: 1, kind: input, shape index: {}]
  %s2 = inlined_call_operand.vmem [shape: f32[2,1,128], index: 2, kind: input, shape index: {}]
  %s3 = inlined_call_operand.vmem [shape: f32[2,1,128], index: 3, kind: input, shape index: {}]
  %s4 = inlined_call_operand.hbm [shape: bf16[2,128,384], index: 4, kind: input, shape index: {}]
  %s5 = inlined_call_operand.vmem [shape: f32[2,1,384], index: 5, kind: input, shape index: {}]
  %s6 = inlined_call_operand.hbm [shape: bf16[2,4,32,128], index: 6, kind: input, shape index: {}]
  %s7 = inlined_call_operand.vmem [shape: f32[2,1,128], index: 7, kind: input, shape index: {}]
  %s8 = inlined_call_operand.vmem [shape: f32[2,1,128], index: 8, kind: input, shape index: {}]
  %s9 = inlined_call_operand.vmem [shape: f32[2,1,128], index: 9, kind: input, shape index: {}]
  %s10 = inlined_call_operand.hbm [shape: bf16[2,128,256], index: 10, kind: input, shape index: {}]
  %s11 = inlined_call_operand.vmem [shape: f32[2,1,256], index: 11, kind: input, shape index: {}]
  %s12 = inlined_call_operand.hbm [shape: bf16[2,256,128], index: 12, kind: input, shape index: {}]
  %s13 = inlined_call_operand.vmem [shape: f32[2,1,128], index: 13, kind: input, shape index: {}]
  %s14 = inlined_call_operand.vmem [shape: f32[1,128], index: 14, kind: input, shape index: {}]
  %s15 = inlined_call_operand.vmem [shape: f32[1,128], index: 15, kind: input, shape index: {}]
  %s16 = inlined_call_operand.hbm [shape: f32[32,1,128], index: 16, kind: output, shape index: {}]
  %s17 = sld [smem:[#allocation0]]
  $region125: #{tpu_custom_call.1} parent=0
    _
  %s19 = ssub.s32 1, %s17
  %s20 = scalar_select 0, %s19, %s17
  $region1: #{tpu_custom_call.1} parent=0
    #allocation3 [shape = 'u8[65536]{0}', space=vmem, size = 0x10000, scoped, tag = 'input window, operand 1']
    #allocation4 [shape = 's32[2]{0}', space=sflag, size = 0x8, scoped, tag = 'scoped memory for tpu_custom_call.1']
    #allocation5 [shape = 's32[2]{0}', space=sflag, size = 0x8, scoped, tag = 'scoped memory for tpu_custom_call.1']
    #allocation6 [shape = 'u8[196608]{0}', space=vmem, size = 0x30000, scoped, tag = 'input window, operand 4']
    #allocation7 [shape = 's32[2]{0}', space=sflag, size = 0x8, scoped, tag = 'scoped memory for tpu_custom_call.1']
    #allocation8 [shape = 'u8[65536]{0}', space=vmem, size = 0x10000, scoped, tag = 'input window, operand 6']
    #allocation9 [shape = 'u8[131072]{0}', space=vmem, size = 0x20000, scoped, tag = 'input window, operand 10']
    #allocation10 [shape = 's32[2]{0}', space=sflag, size = 0x8, scoped, tag = 'scoped memory for tpu_custom_call.1']
    #allocation11 [shape = 'u8[131072]{0}', space=vmem, size = 0x20000, scoped, tag = 'input window, operand 12']
    #allocation12 [shape = 'u8[16384]{0}', space=vmem, size = 0x4000, scoped, tag = 'output window, operand 0']
    %21 = vsyncpa [#allocation4], 0
    %s22 = scalar_lea.sflag [#allocation4], 1
    %23 = vsyncpa %s22, 0
    %24 = vsyncpa [#allocation7], 0
    %s25 = scalar_lea.sflag [#allocation7], 1
    %26 = vsyncpa %s25, 0
    %27 = vsyncpa [#allocation10], 0
    %s28 = scalar_lea.sflag [#allocation10], 1
    %29 = vsyncpa %s28, 0
    %30 = vsyncpa [#allocation5], 0
    %s31 = scalar_lea.sflag [#allocation5], 1
    %32 = vsyncpa %s31, 0
    loop: start=0, step=1, limit=6
    $region2: #{tpu_custom_call.1} parent=1 // loop_pre_header
      _
    $region3: #{tpu_custom_call.1} parent=1 // loop_header
      %s34 = sphi 0, %s38
      %p35 = scmp.ge.s32.totalorder %s34, 6
      %s41 = sphi 0, %s53
      %s42 = sphi 0, %s49
      %s43 = sphi 0, %s41
      %s44 = sphi 0, %s42
      %s45 = sphi 0, %s43
      %s46 = sphi 0, %s44
      %s56 = sphi 0, %s58
      %s59 = sphi 0, %s56
      %s60 = sphi 0, %s59
      %s76 = sphi 0, %s60
      %s82 = sphi 0, %s84
      %s85 = sphi 0, %s82
      %s86 = sphi 0, %s85
      %s102 = sphi 0, %s86
      %s108 = sphi 0, %s110
      %s111 = sphi 0, %s108
      %s112 = sphi 0, %s111
      %s128 = sphi 0, %s112
      %s134 = sphi 0, %s136
      %s137 = sphi 0, %s134
      %s138 = sphi 0, %s137
      %s154 = sphi 0, %s138
      %s160 = sphi 0, %s162
      %s163 = sphi 0, %s160
      %s164 = sphi 0, %s163
      %s180 = sphi 0, %s164
      %s186 = sphi 0, %s188
      %s189 = sphi 0, %s186
      %s190 = sphi 0, %s189
      %s206 = sphi 0, %s190
      %s212 = sphi 0, %s214
      %s215 = sphi 0, %s212
      %s216 = sphi 0, %s215
      %s232 = sphi 0, %s216
      %s238 = sphi 0, %s240
      %s241 = sphi 0, %s238
      %s242 = sphi 0, %s241
      %s258 = sphi 0, %s242
      %s264 = sphi 0, %s266
      %s267 = sphi 0, %s264
      %s268 = sphi 0, %s267
      %s284 = sphi 0, %s268
      %s290 = sphi 0, %s292
      %s293 = sphi 0, %s290
      %s294 = sphi 0, %s293
      %s310 = sphi 0, %s294
      %s316 = sphi 0, %s318
      %s319 = sphi 0, %s316
      %s320 = sphi 0, %s319
      %s336 = sphi 0, %s320
      %s342 = sphi 0, %s344
      %s345 = sphi 0, %s342
      %s346 = sphi 0, %s345
      %s362 = sphi 0, %s346
      %s368 = sphi 0, %s370
      %s371 = sphi 0, %s368
      %s372 = sphi 0, %s371
      %s388 = sphi 0, %s372
      %s394 = sphi 0, %s396
      %s397 = sphi 0, %s394
      %s398 = sphi 0, %s397
      %s414 = sphi 0, %s398
      %s418 = sphi 0, %s418
      %s420 = sphi 0, %s418
      %s421 = sphi 0, %s420
      %s435 = sphi 0, %s421
      %s439 = sphi 0, %s439
      %s441 = sphi 0, %s439
      %s442 = sphi 0, %s441
      %s456 = sphi 0, %s442
      %s462 = sphi 0, %s464
      %s465 = sphi 0, %s462
      %s466 = sphi 0, %s465
      %s482 = sphi 0, %s466
    $region4: #{tpu_custom_call.1} parent=1 // loop_header_branch
      %37 = sbr.rel (%p35) target = $region8
    $region5: #{tpu_custom_call.1} parent=1 // loop_body
      %s39 = ssub.s32 %s34, 1
      %s40 = ssub.s32 %s34, 2
      %s47 = sadd.s32 1, %s42
      %p48 = scmp.ge.s32.totalorder %s47, 2
      %s49 = scalar_select %p48, 0, %s47
      %s50 = sadd.s32 1, %s41
      %s51 = scalar_select %p48, %s50, %s41
      %p52 = scmp.ge.s32.totalorder %s51, 2
      %s53 = scalar_select %p52, 0, %s51
      %s54 = ssub.s32 %s41, %s53
      %p55 = scmp.eq.s32.totalorder %s54, 0
      %s57 = sadd.s32 %s56, 1
      %s58 = scalar_select %p55, %s56, %s57
      %p61 = pneg %p55
      %p62 = scmp.eq.s32.totalorder %s34, 3
      %p63 = por %p61, %p62
      %p64 = scmp.ne.s32.totalorder %s56, %s59
      %p65 = scmp.eq.s32.totalorder %s34, 0
      %p66 = por %p64, %p65
      %p67 = scmp.ne.s32.totalorder %s56, %s59
      %p68 = scmp.eq.s32.totalorder %s39, 3
      %p69 = por %p67, %p68
      %p70 = scmp.ne.s32.totalorder %s59, %s60
      %p71 = scmp.eq.s32.totalorder %s39, 0
      %p72 = por %p70, %p71
      %p73 = scmp.ne.s32.totalorder %s59, %s60
      %p74 = scmp.eq.s32.totalorder %s40, 3
      %p75 = por %p73, %p74
      %p77 = scmp.ne.s32.totalorder %s60, %s76
      %p78 = scmp.eq.s32.totalorder %s40, 0
      %p79 = por %p77, %p78
      %s80 = ssub.s32 %s41, %s53
      %p81 = scmp.eq.s32.totalorder %s80, 0
      %s83 = sadd.s32 %s82, 1
      %s84 = scalar_select %p81, %s82, %s83
      %p87 = pneg %p81
      %p88 = scmp.eq.s32.totalorder %s34, 3
      %p89 = por %p87, %p88
      %p90 = scmp.ne.s32.totalorder %s82, %s85
      %p91 = scmp.eq.s32.totalorder %s34, 0
      %p92 = por %p90, %p91
      %p93 = scmp.ne.s32.totalorder %s82, %s85
      %p94 = scmp.eq.s32.totalorder %s39, 3
      %p95 = por %p93, %p94
      %p96 = scmp.ne.s32.totalorder %s85, %s86
      %p97 = scmp.eq.s32.totalorder %s39, 0
      %p98 = por %p96, %p97
      %p99 = scmp.ne.s32.totalorder %s85, %s86
      %p100 = scmp.eq.s32.totalorder %s40, 3
      %p101 = por %p99, %p100
      %p103 = scmp.ne.s32.totalorder %s86, %s102
      %p104 = scmp.eq.s32.totalorder %s40, 0
      %p105 = por %p103, %p104
      %s106 = ssub.s32 %s42, %s49
      %p107 = scmp.eq.s32.totalorder %s106, 0
      %s109 = sadd.s32 %s108, 1
      %s110 = scalar_select %p107, %s108, %s109
      %p113 = pneg %p107
      %p114 = scmp.eq.s32.totalorder %s34, 3
      %p115 = por %p113, %p114
      %p116 = scmp.ne.s32.totalorder %s108, %s111
      %p117 = scmp.eq.s32.totalorder %s34, 0
      %p118 = por %p116, %p117
      %p119 = scmp.ne.s32.totalorder %s108, %s111
      %p120 = scmp.eq.s32.totalorder %s39, 3
      %p121 = por %p119, %p120
      %p122 = scmp.ne.s32.totalorder %s111, %s112
      %p123 = scmp.eq.s32.totalorder %s39, 0
      %p124 = por %p122, %p123
      %p125 = scmp.ne.s32.totalorder %s111, %s112
      %p126 = scmp.eq.s32.totalorder %s40, 3
      %p127 = por %p125, %p126
      %p129 = scmp.ne.s32.totalorder %s112, %s128
      %p130 = scmp.eq.s32.totalorder %s40, 0
      %p131 = por %p129, %p130
      %s132 = ssub.s32 %s42, %s49
      %p133 = scmp.eq.s32.totalorder %s132, 0
      %s135 = sadd.s32 %s134, 1
      %s136 = scalar_select %p133, %s134, %s135
      %p139 = pneg %p133
      %p140 = scmp.eq.s32.totalorder %s34, 3
      %p141 = por %p139, %p140
      %p142 = scmp.ne.s32.totalorder %s134, %s137
      %p143 = scmp.eq.s32.totalorder %s34, 0
      %p144 = por %p142, %p143
      %p145 = scmp.ne.s32.totalorder %s134, %s137
      %p146 = scmp.eq.s32.totalorder %s39, 3
      %p147 = por %p145, %p146
      %p148 = scmp.ne.s32.totalorder %s137, %s138
      %p149 = scmp.eq.s32.totalorder %s39, 0
      %p150 = por %p148, %p149
      %p151 = scmp.ne.s32.totalorder %s137, %s138
      %p152 = scmp.eq.s32.totalorder %s40, 3
      %p153 = por %p151, %p152
      %p155 = scmp.ne.s32.totalorder %s138, %s154
      %p156 = scmp.eq.s32.totalorder %s40, 0
      %p157 = por %p155, %p156
      %s158 = ssub.s32 %s42, %s49
      %p159 = scmp.eq.s32.totalorder %s158, 0
      %s161 = sadd.s32 %s160, 1
      %s162 = scalar_select %p159, %s160, %s161
      %p165 = pneg %p159
      %p166 = scmp.eq.s32.totalorder %s34, 3
      %p167 = por %p165, %p166
      %p168 = scmp.ne.s32.totalorder %s160, %s163
      %p169 = scmp.eq.s32.totalorder %s34, 0
      %p170 = por %p168, %p169
      %p171 = scmp.ne.s32.totalorder %s160, %s163
      %p172 = scmp.eq.s32.totalorder %s39, 3
      %p173 = por %p171, %p172
      %p174 = scmp.ne.s32.totalorder %s163, %s164
      %p175 = scmp.eq.s32.totalorder %s39, 0
      %p176 = por %p174, %p175
      %p177 = scmp.ne.s32.totalorder %s163, %s164
      %p178 = scmp.eq.s32.totalorder %s40, 3
      %p179 = por %p177, %p178
      %p181 = scmp.ne.s32.totalorder %s164, %s180
      %p182 = scmp.eq.s32.totalorder %s40, 0
      %p183 = por %p181, %p182
      %s184 = ssub.s32 %s42, %s49
      %p185 = scmp.eq.s32.totalorder %s184, 0
      %s187 = sadd.s32 %s186, 1
      %s188 = scalar_select %p185, %s186, %s187
      %p191 = pneg %p185
      %p192 = scmp.eq.s32.totalorder %s34, 3
      %p193 = por %p191, %p192
      %p194 = scmp.ne.s32.totalorder %s186, %s189
      %p195 = scmp.eq.s32.totalorder %s34, 0
      %p196 = por %p194, %p195
      %p197 = scmp.ne.s32.totalorder %s186, %s189
      %p198 = scmp.eq.s32.totalorder %s39, 3
      %p199 = por %p197, %p198
      %p200 = scmp.ne.s32.totalorder %s189, %s190
      %p201 = scmp.eq.s32.totalorder %s39, 0
      %p202 = por %p200, %p201
      %p203 = scmp.ne.s32.totalorder %s189, %s190
      %p204 = scmp.eq.s32.totalorder %s40, 3
      %p205 = por %p203, %p204
      %p207 = scmp.ne.s32.totalorder %s190, %s206
      %p208 = scmp.eq.s32.totalorder %s40, 0
      %p209 = por %p207, %p208
      %s210 = ssub.s32 %s42, %s49
      %p211 = scmp.eq.s32.totalorder %s210, 0
      %s213 = sadd.s32 %s212, 1
      %s214 = scalar_select %p211, %s212, %s213
      %p217 = pneg %p211
      %p218 = scmp.eq.s32.totalorder %s34, 3
      %p219 = por %p217, %p218
      %p220 = scmp.ne.s32.totalorder %s212, %s215
      %p221 = scmp.eq.s32.totalorder %s34, 0
      %p222 = por %p220, %p221
      %p223 = scmp.ne.s32.totalorder %s212, %s215
      %p224 = scmp.eq.s32.totalorder %s39, 3
      %p225 = por %p223, %p224
      %p226 = scmp.ne.s32.totalorder %s215, %s216
      %p227 = scmp.eq.s32.totalorder %s39, 0
      %p228 = por %p226, %p227
      %p229 = scmp.ne.s32.totalorder %s215, %s216
      %p230 = scmp.eq.s32.totalorder %s40, 3
      %p231 = por %p229, %p230
      %p233 = scmp.ne.s32.totalorder %s216, %s232
      %p234 = scmp.eq.s32.totalorder %s40, 0
      %p235 = por %p233, %p234
      %s236 = ssub.s32 %s42, %s49
      %p237 = scmp.eq.s32.totalorder %s236, 0
      %s239 = sadd.s32 %s238, 1
      %s240 = scalar_select %p237, %s238, %s239
      %p243 = pneg %p237
      %p244 = scmp.eq.s32.totalorder %s34, 3
      %p245 = por %p243, %p244
      %p246 = scmp.ne.s32.totalorder %s238, %s241
      %p247 = scmp.eq.s32.totalorder %s34, 0
      %p248 = por %p246, %p247
      %p249 = scmp.ne.s32.totalorder %s238, %s241
      %p250 = scmp.eq.s32.totalorder %s39, 3
      %p251 = por %p249, %p250
      %p252 = scmp.ne.s32.totalorder %s241, %s242
      %p253 = scmp.eq.s32.totalorder %s39, 0
      %p254 = por %p252, %p253
      %p255 = scmp.ne.s32.totalorder %s241, %s242
      %p256 = scmp.eq.s32.totalorder %s40, 3
      %p257 = por %p255, %p256
      %p259 = scmp.ne.s32.totalorder %s242, %s258
      %p260 = scmp.eq.s32.totalorder %s40, 0
      %p261 = por %p259, %p260
      %s262 = ssub.s32 %s42, %s49
      %p263 = scmp.eq.s32.totalorder %s262, 0
      %s265 = sadd.s32 %s264, 1
      %s266 = scalar_select %p263, %s264, %s265
      %p269 = pneg %p263
      %p270 = scmp.eq.s32.totalorder %s34, 3
      %p271 = por %p269, %p270
      %p272 = scmp.ne.s32.totalorder %s264, %s267
      %p273 = scmp.eq.s32.totalorder %s34, 0
      %p274 = por %p272, %p273
      %p275 = scmp.ne.s32.totalorder %s264, %s267
      %p276 = scmp.eq.s32.totalorder %s39, 3
      %p277 = por %p275, %p276
      %p278 = scmp.ne.s32.totalorder %s267, %s268
      %p279 = scmp.eq.s32.totalorder %s39, 0
      %p280 = por %p278, %p279
      %p281 = scmp.ne.s32.totalorder %s267, %s268
      %p282 = scmp.eq.s32.totalorder %s40, 3
      %p283 = por %p281, %p282
      %p285 = scmp.ne.s32.totalorder %s268, %s284
      %p286 = scmp.eq.s32.totalorder %s40, 0
      %p287 = por %p285, %p286
      %s288 = ssub.s32 %s42, %s49
      %p289 = scmp.eq.s32.totalorder %s288, 0
      %s291 = sadd.s32 %s290, 1
      %s292 = scalar_select %p289, %s290, %s291
      %p295 = pneg %p289
      %p296 = scmp.eq.s32.totalorder %s34, 3
      %p297 = por %p295, %p296
      %p298 = scmp.ne.s32.totalorder %s290, %s293
      %p299 = scmp.eq.s32.totalorder %s34, 0
      %p300 = por %p298, %p299
      %p301 = scmp.ne.s32.totalorder %s290, %s293
      %p302 = scmp.eq.s32.totalorder %s39, 3
      %p303 = por %p301, %p302
      %p304 = scmp.ne.s32.totalorder %s293, %s294
      %p305 = scmp.eq.s32.totalorder %s39, 0
      %p306 = por %p304, %p305
      %p307 = scmp.ne.s32.totalorder %s293, %s294
      %p308 = scmp.eq.s32.totalorder %s40, 3
      %p309 = por %p307, %p308
      %p311 = scmp.ne.s32.totalorder %s294, %s310
      %p312 = scmp.eq.s32.totalorder %s40, 0
      %p313 = por %p311, %p312
      %s314 = ssub.s32 %s42, %s49
      %p315 = scmp.eq.s32.totalorder %s314, 0
      %s317 = sadd.s32 %s316, 1
      %s318 = scalar_select %p315, %s316, %s317
      %p321 = pneg %p315
      %p322 = scmp.eq.s32.totalorder %s34, 3
      %p323 = por %p321, %p322
      %p324 = scmp.ne.s32.totalorder %s316, %s319
      %p325 = scmp.eq.s32.totalorder %s34, 0
      %p326 = por %p324, %p325
      %p327 = scmp.ne.s32.totalorder %s316, %s319
      %p328 = scmp.eq.s32.totalorder %s39, 3
      %p329 = por %p327, %p328
      %p330 = scmp.ne.s32.totalorder %s319, %s320
      %p331 = scmp.eq.s32.totalorder %s39, 0
      %p332 = por %p330, %p331
      %p333 = scmp.ne.s32.totalorder %s319, %s320
      %p334 = scmp.eq.s32.totalorder %s40, 3
      %p335 = por %p333, %p334
      %p337 = scmp.ne.s32.totalorder %s320, %s336
      %p338 = scmp.eq.s32.totalorder %s40, 0
      %p339 = por %p337, %p338
      %s340 = ssub.s32 %s42, %s49
      %p341 = scmp.eq.s32.totalorder %s340, 0
      %s343 = sadd.s32 %s342, 1
      %s344 = scalar_select %p341, %s342, %s343
      %p347 = pneg %p341
      %p348 = scmp.eq.s32.totalorder %s34, 3
      %p349 = por %p347, %p348
      %p350 = scmp.ne.s32.totalorder %s342, %s345
      %p351 = scmp.eq.s32.totalorder %s34, 0
      %p352 = por %p350, %p351
      %p353 = scmp.ne.s32.totalorder %s342, %s345
      %p354 = scmp.eq.s32.totalorder %s39, 3
      %p355 = por %p353, %p354
      %p356 = scmp.ne.s32.totalorder %s345, %s346
      %p357 = scmp.eq.s32.totalorder %s39, 0
      %p358 = por %p356, %p357
      %p359 = scmp.ne.s32.totalorder %s345, %s346
      %p360 = scmp.eq.s32.totalorder %s40, 3
      %p361 = por %p359, %p360
      %p363 = scmp.ne.s32.totalorder %s346, %s362
      %p364 = scmp.eq.s32.totalorder %s40, 0
      %p365 = por %p363, %p364
      %s366 = ssub.s32 %s42, %s49
      %p367 = scmp.eq.s32.totalorder %s366, 0
      %s369 = sadd.s32 %s368, 1
      %s370 = scalar_select %p367, %s368, %s369
      %p373 = pneg %p367
      %p374 = scmp.eq.s32.totalorder %s34, 3
      %p375 = por %p373, %p374
      %p376 = scmp.ne.s32.totalorder %s368, %s371
      %p377 = scmp.eq.s32.totalorder %s34, 0
      %p378 = por %p376, %p377
      %p379 = scmp.ne.s32.totalorder %s368, %s371
      %p380 = scmp.eq.s32.totalorder %s39, 3
      %p381 = por %p379, %p380
      %p382 = scmp.ne.s32.totalorder %s371, %s372
      %p383 = scmp.eq.s32.totalorder %s39, 0
      %p384 = por %p382, %p383
      %p385 = scmp.ne.s32.totalorder %s371, %s372
      %p386 = scmp.eq.s32.totalorder %s40, 3
      %p387 = por %p385, %p386
      %p389 = scmp.ne.s32.totalorder %s372, %s388
      %p390 = scmp.eq.s32.totalorder %s40, 0
      %p391 = por %p389, %p390
      %s392 = ssub.s32 %s42, %s49
      %p393 = scmp.eq.s32.totalorder %s392, 0
      %s395 = sadd.s32 %s394, 1
      %s396 = scalar_select %p393, %s394, %s395
      %p399 = pneg %p393
      %p400 = scmp.eq.s32.totalorder %s34, 3
      %p401 = por %p399, %p400
      %p402 = scmp.ne.s32.totalorder %s394, %s397
      %p403 = scmp.eq.s32.totalorder %s34, 0
      %p404 = por %p402, %p403
      %p405 = scmp.ne.s32.totalorder %s394, %s397
      %p406 = scmp.eq.s32.totalorder %s39, 3
      %p407 = por %p405, %p406
      %p408 = scmp.ne.s32.totalorder %s397, %s398
      %p409 = scmp.eq.s32.totalorder %s39, 0
      %p410 = por %p408, %p409
      %p411 = scmp.ne.s32.totalorder %s397, %s398
      %p412 = scmp.eq.s32.totalorder %s40, 3
      %p413 = por %p411, %p412
      %p415 = scmp.ne.s32.totalorder %s398, %s414
      %p416 = scmp.eq.s32.totalorder %s40, 0
      %p417 = por %p415, %p416
      %s419 = sadd.s32 %s418, 1
      %p422 = scmp.eq.s32.totalorder %s34, 3
      %p423 = scmp.ne.s32.totalorder %s418, %s420
      %p424 = scmp.eq.s32.totalorder %s34, 0
      %p425 = por %p423, %p424
      %p426 = scmp.ne.s32.totalorder %s418, %s420
      %p427 = scmp.eq.s32.totalorder %s39, 3
      %p428 = por %p426, %p427
      %p429 = scmp.ne.s32.totalorder %s420, %s421
      %p430 = scmp.eq.s32.totalorder %s39, 0
      %p431 = por %p429, %p430
      %p432 = scmp.ne.s32.totalorder %s420, %s421
      %p433 = scmp.eq.s32.totalorder %s40, 3
      %p434 = por %p432, %p433
      %p436 = scmp.ne.s32.totalorder %s421, %s435
      %p437 = scmp.eq.s32.totalorder %s40, 0
      %p438 = por %p436, %p437
      %s440 = sadd.s32 %s439, 1
      %p443 = scmp.eq.s32.totalorder %s34, 3
      %p444 = scmp.ne.s32.totalorder %s439, %s441
      %p445 = scmp.eq.s32.totalorder %s34, 0
      %p446 = por %p444, %p445
      %p447 = scmp.ne.s32.totalorder %s439, %s441
      %p448 = scmp.eq.s32.totalorder %s39, 3
      %p449 = por %p447, %p448
      %p450 = scmp.ne.s32.totalorder %s441, %s442
      %p451 = scmp.eq.s32.totalorder %s39, 0
      %p452 = por %p450, %p451
      %p453 = scmp.ne.s32.totalorder %s441, %s442
      %p454 = scmp.eq.s32.totalorder %s40, 3
      %p455 = por %p453, %p454
      %p457 = scmp.ne.s32.totalorder %s442, %s456
      %p458 = scmp.eq.s32.totalorder %s40, 0
      %p459 = por %p457, %p458
      %s460 = ssub.s32 %s41, %s53
      %p461 = scmp.eq.s32.totalorder %s460, 0
      %s463 = sadd.s32 %s462, 1
      %s464 = scalar_select %p461, %s462, %s463
      %p467 = pneg %p461
      %p468 = scmp.eq.s32.totalorder %s34, 3
      %p469 = por %p467, %p468
      %p470 = scmp.ne.s32.totalorder %s462, %s465
      %p471 = scmp.eq.s32.totalorder %s34, 0
      %p472 = por %p470, %p471
      %p473 = scmp.ne.s32.totalorder %s462, %s465
      %p474 = scmp.eq.s32.totalorder %s39, 3
      %p475 = por %p473, %p474
      %p476 = scmp.ne.s32.totalorder %s465, %s466
      %p477 = scmp.eq.s32.totalorder %s39, 0
      %p478 = por %p476, %p477
      %p479 = scmp.ne.s32.totalorder %s465, %s466
      %p480 = scmp.eq.s32.totalorder %s40, 3
      %p481 = por %p479, %p480
      %p483 = scmp.ne.s32.totalorder %s466, %s482
      %p484 = scmp.eq.s32.totalorder %s40, 0
      %p485 = por %p483, %p484
      %p486 = scmp.le.s32.totalorder 1, %s34
      %p487 = scmp.lt.s32.totalorder %s34, 5
      %p488 = pnand %p486, %p487
      %p489 = pneg %p488
      // Predicated region
      $region9: #{tpu_custom_call.1} parent=5 // pred_check
        _
      $region10: #{tpu_custom_call.1} parent=5 // pred_check_branch
        %491 = sbr.rel (%p488) target = $region12
      $region11: #{tpu_custom_call.1} parent=5 // pred_region
        %s492 = ssub.s32 %s34, 1
        // Predicated region
        $region13: #{tpu_custom_call.1} parent=11 // pred_check
          %p493 = pneg %p431
        $region14: #{tpu_custom_call.1} parent=11 // pred_check_branch
          %495 = sbr.rel (%p493) target = $region16
        $region15: #{tpu_custom_call.1} parent=11 // pred_region
          _
        $region16: #{tpu_custom_call.1} parent=11 // pred_fallthru
          _
        // Predicated region
        $region17: #{tpu_custom_call.1} parent=11 // pred_check
          %p496 = pneg %p452
        $region18: #{tpu_custom_call.1} parent=11 // pred_check_branch
          %498 = sbr.rel (%p496) target = $region20
        $region19: #{tpu_custom_call.1} parent=11 // pred_region
          _
        $region20: #{tpu_custom_call.1} parent=11 // pred_fallthru
          _
      $region12: #{tpu_custom_call.1} parent=5 // pred_fallthru
        _
      %p499 = scmp.lt.s32.totalorder %s34, 4
      // Predicated region
      $region21: #{tpu_custom_call.1} parent=5 // pred_check
        %p500 = pneg %p499
      $region22: #{tpu_custom_call.1} parent=5 // pred_check_branch
        %502 = sbr.rel (%p500) target = $region24
      $region23: #{tpu_custom_call.1} parent=5 // pred_region
        // Predicated region
        $region25: #{tpu_custom_call.1} parent=23 // pred_check
          %p503 = pneg %p66
        $region26: #{tpu_custom_call.1} parent=23 // pred_check_branch
          %505 = sbr.rel (%p503) target = $region28
        $region27: #{tpu_custom_call.1} parent=23 // pred_region
          %s506 = smul.u32 16, %s41
          %p507 = scmp.lt.s32.totalorder %s506, 31
          %s508 = scalar_select %p507, %s506, 31
          %s509 = scalar_lea.vmem %s0, %s508
          %s510 = smul.u32 16, %s41
        $region28: #{tpu_custom_call.1} parent=23 // pred_fallthru
          _
        // Predicated region
        $region29: #{tpu_custom_call.1} parent=23 // pred_check
          %p511 = pneg %p92
        $region30: #{tpu_custom_call.1} parent=23 // pred_check_branch
          %513 = sbr.rel (%p511) target = $region32
        $region31: #{tpu_custom_call.1} parent=23 // pred_region
          %s514 = sand.u32 %s82, 1
          %s515 = scalar_lea.sflag [#allocation4], %s514
          %s516 = sand.u32 %s82, 1
          %s517 = smul.addr %s516, 64
          %s518 = scalar_lea.vmem [#allocation3], %s517
          %s519 = smul.u32 16, %s41
          %521 = vsyncadd %s515, 0
          %s522 = smul.addr %s519, 4
          %s523 = scalar_lea.hbm %s1, %s522
          %s524 = sshll.u32 %s523, 4
          %s525 = int_to_ptr.hbm [resolvable:$true] %s524
          %s526 = sshll.u32 %s518, 4
          %s527 = int_to_ptr.vmem [resolvable:$true] %s526
          %532 = dma.hbm_to_vmem [thread:$0]  %s525, 1024, %s527, %s515, 64, 64, 4
        $region32: #{tpu_custom_call.1} parent=23 // pred_fallthru
          _
        // Predicated region
        $region33: #{tpu_custom_call.1} parent=23 // pred_check
          %p533 = pneg %p118
        $region34: #{tpu_custom_call.1} parent=23 // pred_check_branch
          %535 = sbr.rel (%p533) target = $region36
        $region35: #{tpu_custom_call.1} parent=23 // pred_region
          %p536 = scmp.lt.s32.totalorder %s42, 1
          %s537 = scalar_select %p536, %s42, 1
          %s538 = scalar_lea.vmem %s2, %s537
        $region36: #{tpu_custom_call.1} parent=23 // pred_fallthru
          _
        // Predicated region
        $region37: #{tpu_custom_call.1} parent=23 // pred_check
          %p539 = pneg %p144
        $region38: #{tpu_custom_call.1} parent=23 // pred_check_branch
          %541 = sbr.rel (%p539) target = $region40
        $region39: #{tpu_custom_call.1} parent=23 // pred_region
          %p542 = scmp.lt.s32.totalorder %s42, 1
          %s543 = scalar_select %p542, %s42, 1
          %s544 = scalar_lea.vmem %s3, %s543
        $region40: #{tpu_custom_call.1} parent=23 // pred_fallthru
          _
        // Predicated region
        $region41: #{tpu_custom_call.1} parent=23 // pred_check
          %p545 = pneg %p170
        $region42: #{tpu_custom_call.1} parent=23 // pred_check_branch
          %547 = sbr.rel (%p545) target = $region44
        $region43: #{tpu_custom_call.1} parent=23 // pred_region
          %s548 = sand.u32 %s34, 1
          %s549 = scalar_lea.sflag [#allocation7], %s548
          %s550 = sand.u32 %s160, 1
          %s551 = smul.addr %s550, 192
          %s552 = scalar_lea.vmem [#allocation6], %s551
          %554 = vsyncadd %s549, 0
          %s555 = smul.addr %s42, 48
          %s556 = smul.addr %s555, 4
          %s557 = scalar_lea.hbm %s4, %s556
          %s558 = sshll.u32 %s557, 4
          %s559 = int_to_ptr.hbm [resolvable:$true] %s558
          %s560 = sshll.u32 %s552, 4
          %s561 = int_to_ptr.vmem [resolvable:$true] %s560
          %566 = dma.hbm_to_vmem [thread:$0]  %s559, 3072, %s561, %s549, 192, 192, 12
        $region44: #{tpu_custom_call.1} parent=23 // pred_fallthru
          _
        // Predicated region
        $region45: #{tpu_custom_call.1} parent=23 // pred_check
          %p567 = pneg %p196
        $region46: #{tpu_custom_call.1} parent=23 // pred_check_branch
          %569 = sbr.rel (%p567) target = $region48
        $region47: #{tpu_custom_call.1} parent=23 // pred_region
          %p570 = scmp.lt.s32.totalorder %s42, 1
          %s571 = scalar_select %p570, %s42, 1
          %s572 = smul.addr %s571, 3
          %s573 = scalar_lea.vmem %s5, %s572
        $region48: #{tpu_custom_call.1} parent=23 // pred_fallthru
          _
        // Predicated region
        $region49: #{tpu_custom_call.1} parent=23 // pred_check
          %p574 = pneg %p222
        $region50: #{tpu_custom_call.1} parent=23 // pred_check_branch
          %576 = sbr.rel (%p574) target = $region52
        $region51: #{tpu_custom_call.1} parent=23 // pred_region
          %s577 = sand.u32 %s34, 1
          %s578 = scalar_lea.sflag [#allocation7], %s577
          %s579 = sand.u32 %s212, 1
          %s580 = smul.addr %s579, 64
          %s581 = scalar_lea.vmem [#allocation8], %s580
          %583 = vsyncadd %s578, 0
          %s584 = smul.addr %s42, 16
          %s585 = smul.addr %s584, 4
          %s586 = scalar_lea.hbm %s6, %s585
          %s587 = sshll.u32 %s586, 4
          %s588 = int_to_ptr.hbm [resolvable:$true] %s587
          %s589 = sshll.u32 %s581, 4
          %s590 = int_to_ptr.vmem [resolvable:$true] %s589
          %595 = dma.hbm_to_vmem [thread:$0]  %s588, 1024, %s590, %s578, 64, 64, 4
        $region52: #{tpu_custom_call.1} parent=23 // pred_fallthru
          _
        // Predicated region
        $region53: #{tpu_custom_call.1} parent=23 // pred_check
          %p596 = pneg %p248
        $region54: #{tpu_custom_call.1} parent=23 // pred_check_branch
          %598 = sbr.rel (%p596) target = $region56
        $region55: #{tpu_custom_call.1} parent=23 // pred_region
          %p599 = scmp.lt.s32.totalorder %s42, 1
          %s600 = scalar_select %p599, %s42, 1
          %s601 = scalar_lea.vmem %s7, %s600
        $region56: #{tpu_custom_call.1} parent=23 // pred_fallthru
          _
        // Predicated region
        $region57: #{tpu_custom_call.1} parent=23 // pred_check
          %p602 = pneg %p274
        $region58: #{tpu_custom_call.1} parent=23 // pred_check_branch
          %604 = sbr.rel (%p602) target = $region60
        $region59: #{tpu_custom_call.1} parent=23 // pred_region
          %p605 = scmp.lt.s32.totalorder %s42, 1
          %s606 = scalar_select %p605, %s42, 1
          %s607 = scalar_lea.vmem %s8, %s606
        $region60: #{tpu_custom_call.1} parent=23 // pred_fallthru
          _
        // Predicated region
        $region61: #{tpu_custom_call.1} parent=23 // pred_check
          %p608 = pneg %p300
        $region62: #{tpu_custom_call.1} parent=23 // pred_check_branch
          %610 = sbr.rel (%p608) target = $region64
        $region63: #{tpu_custom_call.1} parent=23 // pred_region
          %p611 = scmp.lt.s32.totalorder %s42, 1
          %s612 = scalar_select %p611, %s42, 1
          %s613 = scalar_lea.vmem %s9, %s612
        $region64: #{tpu_custom_call.1} parent=23 // pred_fallthru
          _
        // Predicated region
        $region65: #{tpu_custom_call.1} parent=23 // pred_check
          %p614 = pneg %p326
        $region66: #{tpu_custom_call.1} parent=23 // pred_check_branch
          %616 = sbr.rel (%p614) target = $region68
        $region67: #{tpu_custom_call.1} parent=23 // pred_region
          %s617 = sand.u32 %s34, 1
          %s618 = scalar_lea.sflag [#allocation10], %s617
          %s619 = sand.u32 %s316, 1
          %s620 = smul.addr %s619, 128
          %s621 = scalar_lea.vmem [#allocation9], %s620
          %623 = vsyncadd %s618, 0
          %s624 = smul.addr %s42, 32
          %s625 = smul.addr %s624, 4
          %s626 = scalar_lea.hbm %s10, %s625
          %s627 = sshll.u32 %s626, 4
          %s628 = int_to_ptr.hbm [resolvable:$true] %s627
          %s629 = sshll.u32 %s621, 4
          %s630 = int_to_ptr.vmem [resolvable:$true] %s629
          %635 = dma.hbm_to_vmem [thread:$0]  %s628, 2048, %s630, %s618, 128, 128, 8
        $region68: #{tpu_custom_call.1} parent=23 // pred_fallthru
          _
        // Predicated region
        $region69: #{tpu_custom_call.1} parent=23 // pred_check
          %p636 = pneg %p352
        $region70: #{tpu_custom_call.1} parent=23 // pred_check_branch
          %638 = sbr.rel (%p636) target = $region72
        $region71: #{tpu_custom_call.1} parent=23 // pred_region
          %p639 = scmp.lt.s32.totalorder %s42, 1
          %s640 = scalar_select %p639, %s42, 1
          %s641 = smul.addr %s640, 2
          %s642 = scalar_lea.vmem %s11, %s641
        $region72: #{tpu_custom_call.1} parent=23 // pred_fallthru
          _
        // Predicated region
        $region73: #{tpu_custom_call.1} parent=23 // pred_check
          %p643 = pneg %p378
        $region74: #{tpu_custom_call.1} parent=23 // pred_check_branch
          %645 = sbr.rel (%p643) target = $region76
        $region75: #{tpu_custom_call.1} parent=23 // pred_region
          %s646 = sand.u32 %s34, 1
          %s647 = scalar_lea.sflag [#allocation10], %s646
          %s648 = sand.u32 %s368, 1
          %s649 = smul.addr %s648, 128
          %s650 = scalar_lea.vmem [#allocation11], %s649
          %652 = vsyncadd %s647, 0
          %s653 = smul.addr %s42, 32
          %s654 = smul.addr %s653, 4
          %s655 = scalar_lea.hbm %s12, %s654
          %s656 = sshll.u32 %s655, 4
          %s657 = int_to_ptr.hbm [resolvable:$true] %s656
          %s658 = sshll.u32 %s650, 4
          %s659 = int_to_ptr.vmem [resolvable:$true] %s658
          %664 = dma.hbm_to_vmem [thread:$0]  %s657, 2048, %s659, %s647, 64, 64, 4
        $region76: #{tpu_custom_call.1} parent=23 // pred_fallthru
          _
        // Predicated region
        $region77: #{tpu_custom_call.1} parent=23 // pred_check
          %p665 = pneg %p404
        $region78: #{tpu_custom_call.1} parent=23 // pred_check_branch
          %667 = sbr.rel (%p665) target = $region80
        $region79: #{tpu_custom_call.1} parent=23 // pred_region
          %p668 = scmp.lt.s32.totalorder %s42, 1
          %s669 = scalar_select %p668, %s42, 1
          %s670 = scalar_lea.vmem %s13, %s669
        $region80: #{tpu_custom_call.1} parent=23 // pred_fallthru
          _
      $region24: #{tpu_custom_call.1} parent=5 // pred_fallthru
        _
      %p671 = scmp.le.s32.totalorder 1, %s34
      %p672 = scmp.lt.s32.totalorder %s34, 5
      %p673 = pnand %p671, %p672
      %p674 = pneg %p673
      // Predicated region
      $region81: #{tpu_custom_call.1} parent=5 // pred_check
        _
      $region82: #{tpu_custom_call.1} parent=5 // pred_check_branch
        %676 = sbr.rel (%p673) target = $region84
      $region83: #{tpu_custom_call.1} parent=5 // pred_region
        %s677 = ssub.s32 %s34, 1
        %s678 = sand.u32 %s85, 1
        %s679 = scalar_lea.sflag [#allocation4], %s678
        %s680 = sand.u32 %s85, 1
        %s681 = smul.addr %s680, 64
        %s682 = scalar_lea.vmem [#allocation3], %s681
        // Predicated region
        $region85: #{tpu_custom_call.1} parent=83 // pred_check
          %p683 = pneg %p98
        $region86: #{tpu_custom_call.1} parent=83 // pred_check_branch
          %685 = sbr.rel (%p683) target = $region88
        $region87: #{tpu_custom_call.1} parent=83 // pred_region
          %687 = dma.done %s679, 1024
        $region88: #{tpu_custom_call.1} parent=83 // pred_fallthru
          _
        %s688 = sand.u32 %s39, 1
        %s689 = scalar_lea.sflag [#allocation7], %s688
        %s690 = sand.u32 %s163, 1
        %s691 = smul.addr %s690, 192
        %s692 = scalar_lea.vmem [#allocation6], %s691
        // Predicated region
        $region89: #{tpu_custom_call.1} parent=83 // pred_check
          %p693 = pneg %p176
        $region90: #{tpu_custom_call.1} parent=83 // pred_check_branch
          %695 = sbr.rel (%p693) target = $region92
        $region91: #{tpu_custom_call.1} parent=83 // pred_region
          %697 = dma.done %s689, 3072
        $region92: #{tpu_custom_call.1} parent=83 // pred_fallthru
          _
        %s698 = sand.u32 %s39, 1
        %s699 = scalar_lea.sflag [#allocation7], %s698
        %s700 = sand.u32 %s215, 1
        %s701 = smul.addr %s700, 64
        %s702 = scalar_lea.vmem [#allocation8], %s701
        // Predicated region
        $region93: #{tpu_custom_call.1} parent=83 // pred_check
          %p703 = pneg %p228
        $region94: #{tpu_custom_call.1} parent=83 // pred_check_branch
          %705 = sbr.rel (%p703) target = $region96
        $region95: #{tpu_custom_call.1} parent=83 // pred_region
          %707 = dma.done %s699, 1024
        $region96: #{tpu_custom_call.1} parent=83 // pred_fallthru
          _
        %s708 = sand.u32 %s39, 1
        %s709 = scalar_lea.sflag [#allocation10], %s708
        %s710 = sand.u32 %s319, 1
        %s711 = smul.addr %s710, 128
        %s712 = scalar_lea.vmem [#allocation9], %s711
        // Predicated region
        $region97: #{tpu_custom_call.1} parent=83 // pred_check
          %p713 = pneg %p332
        $region98: #{tpu_custom_call.1} parent=83 // pred_check_branch
          %715 = sbr.rel (%p713) target = $region100
        $region99: #{tpu_custom_call.1} parent=83 // pred_region
          %717 = dma.done %s709, 2048
        $region100: #{tpu_custom_call.1} parent=83 // pred_fallthru
          _
        %s718 = sand.u32 %s39, 1
        %s719 = scalar_lea.sflag [#allocation10], %s718
        %s720 = sand.u32 %s371, 1
        %s721 = smul.addr %s720, 128
        %s722 = scalar_lea.vmem [#allocation11], %s721
        // Predicated region
        $region101: #{tpu_custom_call.1} parent=83 // pred_check
          %p723 = pneg %p384
        $region102: #{tpu_custom_call.1} parent=83 // pred_check_branch
          %725 = sbr.rel (%p723) target = $region104
        $region103: #{tpu_custom_call.1} parent=83 // pred_region
          %727 = dma.done %s719, 2048
        $region104: #{tpu_custom_call.1} parent=83 // pred_fallthru
          _
        %s728 = smul.u32 16, %s43
        %p729 = scmp.lt.s32.totalorder %s728, 31
        %s730 = scalar_select %p729, %s728, 31
        %s731 = scalar_lea.vmem %s0, %s730
        %p732 = pneg %p72
        %p733 = pneg %p69
        %s734 = sand.u32 %s85, 1
        %s735 = scalar_lea.sflag [#allocation4], %s734
        %s736 = sand.u32 %s85, 1
        %s737 = smul.addr %s736, 64
        %s738 = scalar_lea.vmem [#allocation3], %s737
        %p739 = pneg %p98
        %p740 = pneg %p95
        %p741 = scmp.lt.s32.totalorder %s44, 1
        %s742 = scalar_select %p741, %s44, 1
        %s743 = scalar_lea.vmem %s2, %s742
        %p744 = pneg %p124
        %p745 = pneg %p121
        %p746 = scmp.lt.s32.totalorder %s44, 1
        %s747 = scalar_select %p746, %s44, 1
        %s748 = scalar_lea.vmem %s3, %s747
        %p749 = pneg %p150
        %p750 = pneg %p147
        %s751 = sand.u32 %s39, 1
        %s752 = scalar_lea.sflag [#allocation7], %s751
        %s753 = sand.u32 %s163, 1
        %s754 = smul.addr %s753, 192
        %s755 = scalar_lea.vmem [#allocation6], %s754
        %p756 = pneg %p176
        %p757 = pneg %p173
        %p758 = scmp.lt.s32.totalorder %s44, 1
        %s759 = scalar_select %p758, %s44, 1
        %s760 = smul.addr %s759, 3
        %s761 = scalar_lea.vmem %s5, %s760
        %p762 = pneg %p202
        %p763 = pneg %p199
        %s764 = sand.u32 %s39, 1
        %s765 = scalar_lea.sflag [#allocation7], %s764
        %s766 = sand.u32 %s215, 1
        %s767 = smul.addr %s766, 64
        %s768 = scalar_lea.vmem [#allocation8], %s767
        %p769 = pneg %p228
        %p770 = pneg %p225
        %p771 = scmp.lt.s32.totalorder %s44, 1
        %s772 = scalar_select %p771, %s44, 1
        %s773 = scalar_lea.vmem %s7, %s772
        %p774 = pneg %p254
        %p775 = pneg %p251
        %p776 = scmp.lt.s32.totalorder %s44, 1
        %s777 = scalar_select %p776, %s44, 1
        %s778 = scalar_lea.vmem %s8, %s777
        %p779 = pneg %p280
        %p780 = pneg %p277
        %p781 = scmp.lt.s32.totalorder %s44, 1
        %s782 = scalar_select %p781, %s44, 1
        %s783 = scalar_lea.vmem %s9, %s782
        %p784 = pneg %p306
        %p785 = pneg %p303
        %s786 = sand.u32 %s39, 1
        %s787 = scalar_lea.sflag [#allocation10], %s786
        %s788 = sand.u32 %s319, 1
        %s789 = smul.addr %s788, 128
        %s790 = scalar_lea.vmem [#allocation9], %s789
        %p791 = pneg %p332
        %p792 = pneg %p329
        %p793 = scmp.lt.s32.totalorder %s44, 1
        %s794 = scalar_select %p793, %s44, 1
        %s795 = smul.addr %s794, 2
        %s796 = scalar_lea.vmem %s11, %s795
        %p797 = pneg %p358
        %p798 = pneg %p355
        %s799 = sand.u32 %s39, 1
        %s800 = scalar_lea.sflag [#allocation10], %s799
        %s801 = sand.u32 %s371, 1
        %s802 = smul.addr %s801, 128
        %s803 = scalar_lea.vmem [#allocation11], %s802
        %p804 = pneg %p384
        %p805 = pneg %p381
        %p806 = scmp.lt.s32.totalorder %s44, 1
        %s807 = scalar_select %p806, %s44, 1
        %s808 = scalar_lea.vmem %s13, %s807
        %p809 = pneg %p410
        %p810 = pneg %p407
        %p811 = pneg %p431
        %p812 = pneg %p428
        %p813 = pneg %p452
        %p814 = pneg %p449
        %p815 = pneg %p478
        %p816 = pneg %p475
        %s817 = sand.u32 %s465, 1
        %s818 = scalar_lea.sflag [#allocation5], %s817
        %s819 = sand.u32 %s465, 1
        %s820 = smul.addr %s819, 16
        %s821 = scalar_lea.vmem [#allocation12], %s820
        %s822 = smul.u32 16, %s43
        %p823 = scmp.lt.s32.totalorder %s822, 31
        %s824 = scalar_select %p823, %s822, 31
        %s825 = scalar_lea.vmem %s0, %s824
        %s826 = smul.u32 16, %s43
        %s827 = smul.u32 16, %s43
        %p828 = scmp.lt.s32.totalorder %s44, 1
        %s829 = scalar_select %p828, %s44, 1
        %s830 = scalar_lea.vmem %s2, %s829
        %p831 = scmp.lt.s32.totalorder %s44, 1
        %s832 = scalar_select %p831, %s44, 1
        %s833 = scalar_lea.vmem %s3, %s832
        %p834 = scmp.lt.s32.totalorder %s44, 1
        %s835 = scalar_select %p834, %s44, 1
        %s836 = smul.addr %s835, 3
        %s837 = scalar_lea.vmem %s5, %s836
        %p838 = scmp.lt.s32.totalorder %s44, 1
        %s839 = scalar_select %p838, %s44, 1
        %s840 = scalar_lea.vmem %s7, %s839
        %p841 = scmp.lt.s32.totalorder %s44, 1
        %s842 = scalar_select %p841, %s44, 1
        %s843 = scalar_lea.vmem %s8, %s842
        %p844 = scmp.lt.s32.totalorder %s44, 1
        %s845 = scalar_select %p844, %s44, 1
        %s846 = scalar_lea.vmem %s9, %s845
        %p847 = scmp.lt.s32.totalorder %s44, 1
        %s848 = scalar_select %p847, %s44, 1
        %s849 = smul.addr %s848, 2
        %s850 = scalar_lea.vmem %s11, %s849
        %p851 = scmp.lt.s32.totalorder %s44, 1
        %s852 = scalar_select %p851, %s44, 1
        %s853 = scalar_lea.vmem %s13, %s852
        %s854 = smul.u32 16, %s43
        %v856 = vld [vmem:[%s825] sm:$0x1]
        %v857 = vld [vmem:[%s825 + $0x1] sm:$0x1]
        %v858 = vld [vmem:[%s825 + $0x2] sm:$0x1]
        %v859 = vld [vmem:[%s825 + $0x3] sm:$0x1]
        %v860 = vld [vmem:[%s825 + $0x4] sm:$0x1]
        %v861 = vld [vmem:[%s825 + $0x5] sm:$0x1]
        %v862 = vld [vmem:[%s825 + $0x6] sm:$0x1]
        %v863 = vld [vmem:[%s825 + $0x7] sm:$0x1]
        %v864 = vld [vmem:[%s825 + $0x8] sm:$0x1]
        %v865 = vld [vmem:[%s825 + $0x9] sm:$0x1]
        %v866 = vld [vmem:[%s825 + $0xa] sm:$0x1]
        %v867 = vld [vmem:[%s825 + $0xb] sm:$0x1]
        %v868 = vld [vmem:[%s825 + $0xc] sm:$0x1]
        %v869 = vld [vmem:[%s825 + $0xd] sm:$0x1]
        %v870 = vld [vmem:[%s825 + $0xe] sm:$0x1]
        %v871 = vld [vmem:[%s825 + $0xf] sm:$0x1]
        %p872 = scmp.eq.s32.totalorder %s44, 0
        // Predicated region
        $region105: #{tpu_custom_call.1} parent=83 // pred_check
          %p873 = pneg %p872
        $region106: #{tpu_custom_call.1} parent=83 // pred_check_branch
          %875 = sbr.rel (%p873) target = $region108
        $region107: #{tpu_custom_call.1} parent=83 // pred_region
          %v876 = vlaneseq
          %v877 = vshrl.u32 %v876, 7
          %v878 = vperm.slane %v856, 0
          %v879 = vperm.slane %v857, 0
          %v880 = vperm.slane %v858, 0
          %v881 = vperm.slane %v859, 0
          %v882 = vperm.slane %v860, 0
          %v883 = vperm.slane %v861, 0
          %v884 = vperm.slane %v862, 0
          %v885 = vperm.slane %v863, 0
          %v886 = vperm.slane %v864, 0
          %v887 = vperm.slane %v865, 0
          %v888 = vperm.slane %v866, 0
          %v889 = vperm.slane %v867, 0
          %v890 = vperm.slane %v868, 0
          %v891 = vperm.slane %v869, 0
          %v892 = vperm.slane %v870, 0
          %v893 = vperm.slane %v871, 0
          %vm894 = vcmp.lt.s32.totalorder %v877, %v878
          %vm895 = vcmp.lt.s32.totalorder %v877, %v879
          %vm896 = vcmp.lt.s32.totalorder %v877, %v880
          %vm897 = vcmp.lt.s32.totalorder %v877, %v881
          %vm898 = vcmp.lt.s32.totalorder %v877, %v882
          %vm899 = vcmp.lt.s32.totalorder %v877, %v883
          %vm900 = vcmp.lt.s32.totalorder %v877, %v884
          %vm901 = vcmp.lt.s32.totalorder %v877, %v885
          %vm902 = vcmp.lt.s32.totalorder %v877, %v886
          %vm903 = vcmp.lt.s32.totalorder %v877, %v887
          %vm904 = vcmp.lt.s32.totalorder %v877, %v888
          %vm905 = vcmp.lt.s32.totalorder %v877, %v889
          %vm906 = vcmp.lt.s32.totalorder %v877, %v890
          %vm907 = vcmp.lt.s32.totalorder %v877, %v891
          %vm908 = vcmp.lt.s32.totalorder %v877, %v892
          %vm909 = vcmp.lt.s32.totalorder %v877, %v893
          %v910 = vld [vmem:[%s682] sm:$0xf]
          %v911 = vld [vmem:[%s682 + $0x4] sm:$0xf]
          %v912 = vld [vmem:[%s682 + $0x8] sm:$0xf]
          %v913 = vld [vmem:[%s682 + $0xc] sm:$0xf]
          %v914 = vld [vmem:[%s682 + $0x10] sm:$0xf]
          %v915 = vld [vmem:[%s682 + $0x14] sm:$0xf]
          %v916 = vld [vmem:[%s682 + $0x18] sm:$0xf]
          %v917 = vld [vmem:[%s682 + $0x1c] sm:$0xf]
          %v918 = vld [vmem:[%s682 + $0x20] sm:$0xf]
          %v919 = vld [vmem:[%s682 + $0x24] sm:$0xf]
          %v920 = vld [vmem:[%s682 + $0x28] sm:$0xf]
          %v921 = vld [vmem:[%s682 + $0x2c] sm:$0xf]
          %v922 = vld [vmem:[%s682 + $0x30] sm:$0xf]
          %v923 = vld [vmem:[%s682 + $0x34] sm:$0xf]
          %v924 = vld [vmem:[%s682 + $0x38] sm:$0xf]
          %v925 = vld [vmem:[%s682 + $0x3c] sm:$0xf]
          %v926 = vunpack.c.l.bf16 %v910
          %v927 = vunpack.c.l.bf16 %v911
          %v928 = vunpack.c.l.bf16 %v912
          %v929 = vunpack.c.l.bf16 %v913
          %v930 = vunpack.c.l.bf16 %v914
          %v931 = vunpack.c.l.bf16 %v915
          %v932 = vunpack.c.l.bf16 %v916
          %v933 = vunpack.c.l.bf16 %v917
          %v934 = vunpack.c.l.bf16 %v918
          %v935 = vunpack.c.l.bf16 %v919
          %v936 = vunpack.c.l.bf16 %v920
          %v937 = vunpack.c.l.bf16 %v921
          %v938 = vunpack.c.l.bf16 %v922
          %v939 = vunpack.c.l.bf16 %v923
          %v940 = vunpack.c.l.bf16 %v924
          %v941 = vunpack.c.l.bf16 %v925
          %v942 = vsel %vm894, 1, 0
          %v943 = vsel %vm895, 1, 0
          %v944 = vsel %vm896, 1, 0
          %v945 = vsel %vm897, 1, 0
          %v946 = vsel %vm898, 1, 0
          %v947 = vsel %vm899, 1, 0
          %v948 = vsel %vm900, 1, 0
          %v949 = vsel %vm901, 1, 0
          %v950 = vsel %vm902, 1, 0
          %v951 = vsel %vm903, 1, 0
          %v952 = vsel %vm904, 1, 0
          %v953 = vsel %vm905, 1, 0
          %v954 = vsel %vm906, 1, 0
          %v955 = vsel %vm907, 1, 0
          %v956 = vsel %vm908, 1, 0
          %v957 = vsel %vm909, 1, 0
          %958 = vset.pattern.permute.xlu0 0
          %959 = vperm.xlu0 %958, %v942
          %v960 = vpop.permute.xlu0 %959
          %961 = vset.pattern.permute.xlu0 0
          %962 = vperm.xlu0 %961, %v943
          %v963 = vpop.permute.xlu0 %962
          %964 = vset.pattern.permute.xlu0 0
          %965 = vperm.xlu0 %964, %v944
          %v966 = vpop.permute.xlu0 %965
          %967 = vset.pattern.permute.xlu0 0
          %968 = vperm.xlu0 %967, %v945
          %v969 = vpop.permute.xlu0 %968
          %970 = vset.pattern.permute.xlu0 0
          %971 = vperm.xlu0 %970, %v946
          %v972 = vpop.permute.xlu0 %971
          %973 = vset.pattern.permute.xlu0 0
          %974 = vperm.xlu0 %973, %v947
          %v975 = vpop.permute.xlu0 %974
          %976 = vset.pattern.permute.xlu0 0
          %977 = vperm.xlu0 %976, %v948
          %v978 = vpop.permute.xlu0 %977
          %979 = vset.pattern.permute.xlu0 0
          %980 = vperm.xlu0 %979, %v949
          %v981 = vpop.permute.xlu0 %980
          %982 = vset.pattern.permute.xlu0 0
          %983 = vperm.xlu0 %982, %v950
          %v984 = vpop.permute.xlu0 %983
          %985 = vset.pattern.permute.xlu0 0
          %986 = vperm.xlu0 %985, %v951
          %v987 = vpop.permute.xlu0 %986
          %988 = vset.pattern.permute.xlu0 0
          %989 = vperm.xlu0 %988, %v952
          %v990 = vpop.permute.xlu0 %989
          %991 = vset.pattern.permute.xlu0 0
          %992 = vperm.xlu0 %991, %v953
          %v993 = vpop.permute.xlu0 %992
          %994 = vset.pattern.permute.xlu0 0
          %995 = vperm.xlu0 %994, %v954
          %v996 = vpop.permute.xlu0 %995
          %997 = vset.pattern.permute.xlu0 0
          %998 = vperm.xlu0 %997, %v955
          %v999 = vpop.permute.xlu0 %998
          %1000 = vset.pattern.permute.xlu0 0
          %1001 = vperm.xlu0 %1000, %v956
          %v1002 = vpop.permute.xlu0 %1001
          %1003 = vset.pattern.permute.xlu0 0
          %1004 = vperm.xlu0 %1003, %v957
          %v1005 = vpop.permute.xlu0 %1004
          %vm1006 = vcmp.eq.s32.totalorder %v960, 1
          %vm1007 = vcmp.eq.s32.totalorder %v963, 1
          %vm1008 = vcmp.eq.s32.totalorder %v966, 1
          %vm1009 = vcmp.eq.s32.totalorder %v969, 1
          %vm1010 = vcmp.eq.s32.totalorder %v972, 1
          %vm1011 = vcmp.eq.s32.totalorder %v975, 1
          %vm1012 = vcmp.eq.s32.totalorder %v978, 1
          %vm1013 = vcmp.eq.s32.totalorder %v981, 1
          %vm1014 = vcmp.eq.s32.totalorder %v984, 1
          %vm1015 = vcmp.eq.s32.totalorder %v987, 1
          %vm1016 = vcmp.eq.s32.totalorder %v990, 1
          %vm1017 = vcmp.eq.s32.totalorder %v993, 1
          %vm1018 = vcmp.eq.s32.totalorder %v996, 1
          %vm1019 = vcmp.eq.s32.totalorder %v999, 1
          %vm1020 = vcmp.eq.s32.totalorder %v1002, 1
          %vm1021 = vcmp.eq.s32.totalorder %v1005, 1
          %v1022 = vsel %vm1006, %v926, 0.0
          %v1023 = vsel %vm1007, %v927, 0.0
          %v1024 = vsel %vm1008, %v928, 0.0
          %v1025 = vsel %vm1009, %v929, 0.0
          %v1026 = vsel %vm1010, %v930, 0.0
          %v1027 = vsel %vm1011, %v931, 0.0
          %v1028 = vsel %vm1012, %v932, 0.0
          %v1029 = vsel %vm1013, %v933, 0.0
          %v1030 = vsel %vm1014, %v934, 0.0
          %v1031 = vsel %vm1015, %v935, 0.0
          %v1032 = vsel %vm1016, %v936, 0.0
          %v1033 = vsel %vm1017, %v937, 0.0
          %v1034 = vsel %vm1018, %v938, 0.0
          %v1035 = vsel %vm1019, %v939, 0.0
          %v1036 = vsel %vm1020, %v940, 0.0
          %v1037 = vsel %vm1021, %v941, 0.0
          %1038 = vst [vmem:[#allocation2] sm:$0xff] %v1022
          %1039 = vst [vmem:[#allocation2 + $0x8] sm:$0xff] %v1023
          %1040 = vst [vmem:[#allocation2 + $0x10] sm:$0xff] %v1024
          %1041 = vst [vmem:[#allocation2 + $0x18] sm:$0xff] %v1025
          %1042 = vst [vmem:[#allocation2 + $0x20] sm:$0xff] %v1026
          %1043 = vst [vmem:[#allocation2 + $0x28] sm:$0xff] %v1027
          %1044 = vst [vmem:[#allocation2 + $0x30] sm:$0xff] %v1028
          %1045 = vst [vmem:[#allocation2 + $0x38] sm:$0xff] %v1029
          %1046 = vst [vmem:[#allocation2 + $0x40] sm:$0xff] %v1030
          %1047 = vst [vmem:[#allocation2 + $0x48] sm:$0xff] %v1031
          %1048 = vst [vmem:[#allocation2 + $0x50] sm:$0xff] %v1032
          %1049 = vst [vmem:[#allocation2 + $0x58] sm:$0xff] %v1033
          %1050 = vst [vmem:[#allocation2 + $0x60] sm:$0xff] %v1034
          %1051 = vst [vmem:[#allocation2 + $0x68] sm:$0xff] %v1035
          %1052 = vst [vmem:[#allocation2 + $0x70] sm:$0xff] %v1036
          %1053 = vst [vmem:[#allocation2 + $0x78] sm:$0xff] %v1037
        $region108: #{tpu_custom_call.1} parent=83 // pred_fallthru
          _
        %v1054 = vld [vmem:[#allocation2] sm:$0xff]
        %v1055 = vld [vmem:[#allocation2 + $0x8] sm:$0xff]
        %v1056 = vld [vmem:[#allocation2 + $0x10] sm:$0xff]
        %v1057 = vld [vmem:[#allocation2 + $0x18] sm:$0xff]
        %v1058 = vld [vmem:[#allocation2 + $0x20] sm:$0xff]
        %v1059 = vld [vmem:[#allocation2 + $0x28] sm:$0xff]
        %v1060 = vld [vmem:[#allocation2 + $0x30] sm:$0xff]
        %v1061 = vld [vmem:[#allocation2 + $0x38] sm:$0xff]
        %v1062 = vld [vmem:[#allocation2 + $0x40] sm:$0xff]
        %v1063 = vld [vmem:[#allocation2 + $0x48] sm:$0xff]
        %v1064 = vld [vmem:[#allocation2 + $0x50] sm:$0xff]
        %v1065 = vld [vmem:[#allocation2 + $0x58] sm:$0xff]
        %v1066 = vld [vmem:[#allocation2 + $0x60] sm:$0xff]
        %v1067 = vld [vmem:[#allocation2 + $0x68] sm:$0xff]
        %v1068 = vld [vmem:[#allocation2 + $0x70] sm:$0xff]
        %v1069 = vld [vmem:[#allocation2 + $0x78] sm:$0xff]
        %v1070 = vld [vmem:[%s830] sm:$0x1]
        %v1071 = vld [vmem:[%s833] sm:$0x1]
        %1072 = vadd.xlane.f32.xlu0 %v1054
        %v1073 = vpop.xlane.xlu0 %1072
        %1074 = vadd.xlane.f32.xlu0 %v1055
        %v1075 = vpop.xlane.xlu0 %1074
        %1076 = vadd.xlane.f32.xlu0 %v1056
        %v1077 = vpop.xlane.xlu0 %1076
        %1078 = vadd.xlane.f32.xlu0 %v1057
        %v1079 = vpop.xlane.xlu0 %1078
        %1080 = vadd.xlane.f32.xlu0 %v1058
        %v1081 = vpop.xlane.xlu0 %1080
        %1082 = vadd.xlane.f32.xlu0 %v1059
        %v1083 = vpop.xlane.xlu0 %1082
        %1084 = vadd.xlane.f32.xlu0 %v1060
        %v1085 = vpop.xlane.xlu0 %1084
        %1086 = vadd.xlane.f32.xlu0 %v1061
        %v1087 = vpop.xlane.xlu0 %1086
        %1088 = vadd.xlane.f32.xlu0 %v1062
        %v1089 = vpop.xlane.xlu0 %1088
        %1090 = vadd.xlane.f32.xlu0 %v1063
        %v1091 = vpop.xlane.xlu0 %1090
        %1092 = vadd.xlane.f32.xlu0 %v1064
        %v1093 = vpop.xlane.xlu0 %1092
        %1094 = vadd.xlane.f32.xlu0 %v1065
        %v1095 = vpop.xlane.xlu0 %1094
        %1096 = vadd.xlane.f32.xlu0 %v1066
        %v1097 = vpop.xlane.xlu0 %1096
        %1098 = vadd.xlane.f32.xlu0 %v1067
        %v1099 = vpop.xlane.xlu0 %1098
        %1100 = vadd.xlane.f32.xlu0 %v1068
        %v1101 = vpop.xlane.xlu0 %1100
        %1102 = vadd.xlane.f32.xlu0 %v1069
        %v1103 = vpop.xlane.xlu0 %1102
        %v1104 = vrcp.pop 128.0
        %v1105 = vmul.f32 128.0, %v1104
        %v1106 = vsub.f32 1.0, %v1105
        %v1107 = vmul.f32 %v1104, %v1106
        %v1108 = vadd.f32 %v1104, %v1107
        %vm1109 = vweird.f32 %v1104
        %v1110 = vsel %vm1109, %v1104, %v1108
        %v1111 = vmul.f32 %v1073, %v1110
        %v1112 = vmul.f32 %v1075, %v1110
        %v1113 = vmul.f32 %v1077, %v1110
        %v1114 = vmul.f32 %v1079, %v1110
        %v1115 = vmul.f32 %v1081, %v1110
        %v1116 = vmul.f32 %v1083, %v1110
        %v1117 = vmul.f32 %v1085, %v1110
        %v1118 = vmul.f32 %v1087, %v1110
        %v1119 = vmul.f32 %v1089, %v1110
        %v1120 = vmul.f32 %v1091, %v1110
        %v1121 = vmul.f32 %v1093, %v1110
        %v1122 = vmul.f32 %v1095, %v1110
        %v1123 = vmul.f32 %v1097, %v1110
        %v1124 = vmul.f32 %v1099, %v1110
        %v1125 = vmul.f32 %v1101, %v1110
        %v1126 = vmul.f32 %v1103, %v1110
        %v1127 = vsub.f32 %v1054, %v1111
        %v1128 = vsub.f32 %v1055, %v1112
        %v1129 = vsub.f32 %v1056, %v1113
        %v1130 = vsub.f32 %v1057, %v1114
        %v1131 = vsub.f32 %v1058, %v1115
        %v1132 = vsub.f32 %v1059, %v1116
        %v1133 = vsub.f32 %v1060, %v1117
        %v1134 = vsub.f32 %v1061, %v1118
        %v1135 = vsub.f32 %v1062, %v1119
        %v1136 = vsub.f32 %v1063, %v1120
        %v1137 = vsub.f32 %v1064, %v1121
        %v1138 = vsub.f32 %v1065, %v1122
        %v1139 = vsub.f32 %v1066, %v1123
        %v1140 = vsub.f32 %v1067, %v1124
        %v1141 = vsub.f32 %v1068, %v1125
        %v1142 = vsub.f32 %v1069, %v1126
        %v1143 = vmul.f32 %v1127, %v1127
        %v1144 = vmul.f32 %v1128, %v1128
        %v1145 = vmul.f32 %v1129, %v1129
        %v1146 = vmul.f32 %v1130, %v1130
        %v1147 = vmul.f32 %v1131, %v1131
        %v1148 = vmul.f32 %v1132, %v1132
        %v1149 = vmul.f32 %v1133, %v1133
        %v1150 = vmul.f32 %v1134, %v1134
        %v1151 = vmul.f32 %v1135, %v1135
        %v1152 = vmul.f32 %v1136, %v1136
        %v1153 = vmul.f32 %v1137, %v1137
        %v1154 = vmul.f32 %v1138, %v1138
        %v1155 = vmul.f32 %v1139, %v1139
        %v1156 = vmul.f32 %v1140, %v1140
        %v1157 = vmul.f32 %v1141, %v1141
        %v1158 = vmul.f32 %v1142, %v1142
        %1159 = vadd.xlane.f32.xlu0 %v1143
        %v1160 = vpop.xlane.xlu0 %1159
        %1161 = vadd.xlane.f32.xlu0 %v1144
        %v1162 = vpop.xlane.xlu0 %1161
        %1163 = vadd.xlane.f32.xlu0 %v1145
        %v1164 = vpop.xlane.xlu0 %1163
        %1165 = vadd.xlane.f32.xlu0 %v1146
        %v1166 = vpop.xlane.xlu0 %1165
        %1167 = vadd.xlane.f32.xlu0 %v1147
        %v1168 = vpop.xlane.xlu0 %1167
        %1169 = vadd.xlane.f32.xlu0 %v1148
        %v1170 = vpop.xlane.xlu0 %1169
        %1171 = vadd.xlane.f32.xlu0 %v1149
        %v1172 = vpop.xlane.xlu0 %1171
        %1173 = vadd.xlane.f32.xlu0 %v1150
        %v1174 = vpop.xlane.xlu0 %1173
        %1175 = vadd.xlane.f32.xlu0 %v1151
        %v1176 = vpop.xlane.xlu0 %1175
        %1177 = vadd.xlane.f32.xlu0 %v1152
        %v1178 = vpop.xlane.xlu0 %1177
        %1179 = vadd.xlane.f32.xlu0 %v1153
        %v1180 = vpop.xlane.xlu0 %1179
        %1181 = vadd.xlane.f32.xlu0 %v1154
        %v1182 = vpop.xlane.xlu0 %1181
        %1183 = vadd.xlane.f32.xlu0 %v1155
        %v1184 = vpop.xlane.xlu0 %1183
        %1185 = vadd.xlane.f32.xlu0 %v1156
        %v1186 = vpop.xlane.xlu0 %1185
        %1187 = vadd.xlane.f32.xlu0 %v1157
        %v1188 = vpop.xlane.xlu0 %1187
        %1189 = vadd.xlane.f32.xlu0 %v1158
        %v1190 = vpop.xlane.xlu0 %1189
        %v1191 = vmul.f32 %v1160, %v1110
        %v1192 = vmul.f32 %v1162, %v1110
        %v1193 = vmul.f32 %v1164, %v1110
        %v1194 = vmul.f32 %v1166, %v1110
        %v1195 = vmul.f32 %v1168, %v1110
        %v1196 = vmul.f32 %v1170, %v1110
        %v1197 = vmul.f32 %v1172, %v1110
        %v1198 = vmul.f32 %v1174, %v1110
        %v1199 = vmul.f32 %v1176, %v1110
        %v1200 = vmul.f32 %v1178, %v1110
        %v1201 = vmul.f32 %v1180, %v1110
        %v1202 = vmul.f32 %v1182, %v1110
        %v1203 = vmul.f32 %v1184, %v1110
        %v1204 = vmul.f32 %v1186, %v1110
        %v1205 = vmul.f32 %v1188, %v1110
        %v1206 = vmul.f32 %v1190, %v1110
        %v1207 = vadd.f32 %v1191, 1e-05
        %v1208 = vadd.f32 %v1192, 1e-05
        %v1209 = vadd.f32 %v1193, 1e-05
        %v1210 = vadd.f32 %v1194, 1e-05
        %v1211 = vadd.f32 %v1195, 1e-05
        %v1212 = vadd.f32 %v1196, 1e-05
        %v1213 = vadd.f32 %v1197, 1e-05
        %v1214 = vadd.f32 %v1198, 1e-05
        %v1215 = vadd.f32 %v1199, 1e-05
        %v1216 = vadd.f32 %v1200, 1e-05
        %v1217 = vadd.f32 %v1201, 1e-05
        %v1218 = vadd.f32 %v1202, 1e-05
        %v1219 = vadd.f32 %v1203, 1e-05
        %v1220 = vadd.f32 %v1204, 1e-05
        %v1221 = vadd.f32 %v1205, 1e-05
        %v1222 = vadd.f32 %v1206, 1e-05
        %v1223 = vrsqrt.pop %v1207
        %v1224 = vmul.f32 %v1223, %v1207
        %v1225 = vmul.f32 %v1224, %v1223
        %v1226 = vmul.f32 0.5, %v1225
        %v1227 = vsub.f32 1.5, %v1226
        %v1228 = vmul.f32 %v1223, %v1227
        %vm1229 = vweird.f32 %v1207
        %vm1230 = vweird.f32 %v1223
        %vm1231 = vmor %vm1229, %vm1230
        %v1232 = vsel %vm1231, %v1223, %v1228
        %v1233 = vrsqrt.pop %v1208
        %v1234 = vmul.f32 %v1233, %v1208
        %v1235 = vmul.f32 %v1234, %v1233
        %v1236 = vmul.f32 0.5, %v1235
        %v1237 = vsub.f32 1.5, %v1236
        %v1238 = vmul.f32 %v1233, %v1237
        %vm1239 = vweird.f32 %v1208
        %vm1240 = vweird.f32 %v1233
        %vm1241 = vmor %vm1239, %vm1240
        %v1242 = vsel %vm1241, %v1233, %v1238
        %v1243 = vrsqrt.pop %v1209
        %v1244 = vmul.f32 %v1243, %v1209
        %v1245 = vmul.f32 %v1244, %v1243
        %v1246 = vmul.f32 0.5, %v1245
        %v1247 = vsub.f32 1.5, %v1246
        %v1248 = vmul.f32 %v1243, %v1247
        %vm1249 = vweird.f32 %v1209
        %vm1250 = vweird.f32 %v1243
        %vm1251 = vmor %vm1249, %vm1250
        %v1252 = vsel %vm1251, %v1243, %v1248
        %v1253 = vrsqrt.pop %v1210
        %v1254 = vmul.f32 %v1253, %v1210
        %v1255 = vmul.f32 %v1254, %v1253
        %v1256 = vmul.f32 0.5, %v1255
        %v1257 = vsub.f32 1.5, %v1256
        %v1258 = vmul.f32 %v1253, %v1257
        %vm1259 = vweird.f32 %v1210
        %vm1260 = vweird.f32 %v1253
        %vm1261 = vmor %vm1259, %vm1260
        %v1262 = vsel %vm1261, %v1253, %v1258
        %v1263 = vrsqrt.pop %v1211
        %v1264 = vmul.f32 %v1263, %v1211
        %v1265 = vmul.f32 %v1264, %v1263
        %v1266 = vmul.f32 0.5, %v1265
        %v1267 = vsub.f32 1.5, %v1266
        %v1268 = vmul.f32 %v1263, %v1267
        %vm1269 = vweird.f32 %v1211
        %vm1270 = vweird.f32 %v1263
        %vm1271 = vmor %vm1269, %vm1270
        %v1272 = vsel %vm1271, %v1263, %v1268
        %v1273 = vrsqrt.pop %v1212
        %v1274 = vmul.f32 %v1273, %v1212
        %v1275 = vmul.f32 %v1274, %v1273
        %v1276 = vmul.f32 0.5, %v1275
        %v1277 = vsub.f32 1.5, %v1276
        %v1278 = vmul.f32 %v1273, %v1277
        %vm1279 = vweird.f32 %v1212
        %vm1280 = vweird.f32 %v1273
        %vm1281 = vmor %vm1279, %vm1280
        %v1282 = vsel %vm1281, %v1273, %v1278
        %v1283 = vrsqrt.pop %v1213
        %v1284 = vmul.f32 %v1283, %v1213
        %v1285 = vmul.f32 %v1284, %v1283
        %v1286 = vmul.f32 0.5, %v1285
        %v1287 = vsub.f32 1.5, %v1286
        %v1288 = vmul.f32 %v1283, %v1287
        %vm1289 = vweird.f32 %v1213
        %vm1290 = vweird.f32 %v1283
        %vm1291 = vmor %vm1289, %vm1290
        %v1292 = vsel %vm1291, %v1283, %v1288
        %v1293 = vrsqrt.pop %v1214
        %v1294 = vmul.f32 %v1293, %v1214
        %v1295 = vmul.f32 %v1294, %v1293
        %v1296 = vmul.f32 0.5, %v1295
        %v1297 = vsub.f32 1.5, %v1296
        %v1298 = vmul.f32 %v1293, %v1297
        %vm1299 = vweird.f32 %v1214
        %vm1300 = vweird.f32 %v1293
        %vm1301 = vmor %vm1299, %vm1300
        %v1302 = vsel %vm1301, %v1293, %v1298
        %v1303 = vrsqrt.pop %v1215
        %v1304 = vmul.f32 %v1303, %v1215
        %v1305 = vmul.f32 %v1304, %v1303
        %v1306 = vmul.f32 0.5, %v1305
        %v1307 = vsub.f32 1.5, %v1306
        %v1308 = vmul.f32 %v1303, %v1307
        %vm1309 = vweird.f32 %v1215
        %vm1310 = vweird.f32 %v1303
        %vm1311 = vmor %vm1309, %vm1310
        %v1312 = vsel %vm1311, %v1303, %v1308
        %v1313 = vrsqrt.pop %v1216
        %v1314 = vmul.f32 %v1313, %v1216
        %v1315 = vmul.f32 %v1314, %v1313
        %v1316 = vmul.f32 0.5, %v1315
        %v1317 = vsub.f32 1.5, %v1316
        %v1318 = vmul.f32 %v1313, %v1317
        %vm1319 = vweird.f32 %v1216
        %vm1320 = vweird.f32 %v1313
        %vm1321 = vmor %vm1319, %vm1320
        %v1322 = vsel %vm1321, %v1313, %v1318
        %v1323 = vrsqrt.pop %v1217
        %v1324 = vmul.f32 %v1323, %v1217
        %v1325 = vmul.f32 %v1324, %v1323
        %v1326 = vmul.f32 0.5, %v1325
        %v1327 = vsub.f32 1.5, %v1326
        %v1328 = vmul.f32 %v1323, %v1327
        %vm1329 = vweird.f32 %v1217
        %vm1330 = vweird.f32 %v1323
        %vm1331 = vmor %vm1329, %vm1330
        %v1332 = vsel %vm1331, %v1323, %v1328
        %v1333 = vrsqrt.pop %v1218
        %v1334 = vmul.f32 %v1333, %v1218
        %v1335 = vmul.f32 %v1334, %v1333
        %v1336 = vmul.f32 0.5, %v1335
        %v1337 = vsub.f32 1.5, %v1336
        %v1338 = vmul.f32 %v1333, %v1337
        %vm1339 = vweird.f32 %v1218
        %vm1340 = vweird.f32 %v1333
        %vm1341 = vmor %vm1339, %vm1340
        %v1342 = vsel %vm1341, %v1333, %v1338
        %v1343 = vrsqrt.pop %v1219
        %v1344 = vmul.f32 %v1343, %v1219
        %v1345 = vmul.f32 %v1344, %v1343
        %v1346 = vmul.f32 0.5, %v1345
        %v1347 = vsub.f32 1.5, %v1346
        %v1348 = vmul.f32 %v1343, %v1347
        %vm1349 = vweird.f32 %v1219
        %vm1350 = vweird.f32 %v1343
        %vm1351 = vmor %vm1349, %vm1350
        %v1352 = vsel %vm1351, %v1343, %v1348
        %v1353 = vrsqrt.pop %v1220
        %v1354 = vmul.f32 %v1353, %v1220
        %v1355 = vmul.f32 %v1354, %v1353
        %v1356 = vmul.f32 0.5, %v1355
        %v1357 = vsub.f32 1.5, %v1356
        %v1358 = vmul.f32 %v1353, %v1357
        %vm1359 = vweird.f32 %v1220
        %vm1360 = vweird.f32 %v1353
        %vm1361 = vmor %vm1359, %vm1360
        %v1362 = vsel %vm1361, %v1353, %v1358
        %v1363 = vrsqrt.pop %v1221
        %v1364 = vmul.f32 %v1363, %v1221
        %v1365 = vmul.f32 %v1364, %v1363
        %v1366 = vmul.f32 0.5, %v1365
        %v1367 = vsub.f32 1.5, %v1366
        %v1368 = vmul.f32 %v1363, %v1367
        %vm1369 = vweird.f32 %v1221
        %vm1370 = vweird.f32 %v1363
        %vm1371 = vmor %vm1369, %vm1370
        %v1372 = vsel %vm1371, %v1363, %v1368
        %v1373 = vrsqrt.pop %v1222
        %v1374 = vmul.f32 %v1373, %v1222
        %v1375 = vmul.f32 %v1374, %v1373
        %v1376 = vmul.f32 0.5, %v1375
        %v1377 = vsub.f32 1.5, %v1376
        %v1378 = vmul.f32 %v1373, %v1377
        %vm1379 = vweird.f32 %v1222
        %vm1380 = vweird.f32 %v1373
        %vm1381 = vmor %vm1379, %vm1380
        %v1382 = vsel %vm1381, %v1373, %v1378
        %v1383 = vmul.f32 %v1127, %v1232
        %v1384 = vmul.f32 %v1128, %v1242
        %v1385 = vmul.f32 %v1129, %v1252
        %v1386 = vmul.f32 %v1130, %v1262
        %v1387 = vmul.f32 %v1131, %v1272
        %v1388 = vmul.f32 %v1132, %v1282
        %v1389 = vmul.f32 %v1133, %v1292
        %v1390 = vmul.f32 %v1134, %v1302
        %v1391 = vmul.f32 %v1135, %v1312
        %v1392 = vmul.f32 %v1136, %v1322
        %v1393 = vmul.f32 %v1137, %v1332
        %v1394 = vmul.f32 %v1138, %v1342
        %v1395 = vmul.f32 %v1139, %v1352
        %v1396 = vmul.f32 %v1140, %v1362
        %v1397 = vmul.f32 %v1141, %v1372
        %v1398 = vmul.f32 %v1142, %v1382
        %v1400 = vperm.slane %v1070, 0
        %v1402 = vmul.f32 %v1383, %v1400
        %v1403 = vmul.f32 %v1384, %v1400
        %v1404 = vmul.f32 %v1385, %v1400
        %v1405 = vmul.f32 %v1386, %v1400
        %v1406 = vmul.f32 %v1387, %v1400
        %v1407 = vmul.f32 %v1388, %v1400
        %v1408 = vmul.f32 %v1389, %v1400
        %v1409 = vmul.f32 %v1390, %v1400
        %v1410 = vmul.f32 %v1391, %v1400
        %v1411 = vmul.f32 %v1392, %v1400
        %v1412 = vmul.f32 %v1393, %v1400
        %v1413 = vmul.f32 %v1394, %v1400
        %v1414 = vmul.f32 %v1395, %v1400
        %v1415 = vmul.f32 %v1396, %v1400
        %v1416 = vmul.f32 %v1397, %v1400
        %v1417 = vmul.f32 %v1398, %v1400
        %v1419 = vperm.slane %v1071, 0
        %v1421 = vadd.f32 %v1402, %v1419
        %v1422 = vadd.f32 %v1403, %v1419
        %v1423 = vadd.f32 %v1404, %v1419
        %v1424 = vadd.f32 %v1405, %v1419
        %v1425 = vadd.f32 %v1406, %v1419
        %v1426 = vadd.f32 %v1407, %v1419
        %v1427 = vadd.f32 %v1408, %v1419
        %v1428 = vadd.f32 %v1409, %v1419
        %v1429 = vadd.f32 %v1410, %v1419
        %v1430 = vadd.f32 %v1411, %v1419
        %v1431 = vadd.f32 %v1412, %v1419
        %v1432 = vadd.f32 %v1413, %v1419
        %v1433 = vadd.f32 %v1414, %v1419
        %v1434 = vadd.f32 %v1415, %v1419
        %v1435 = vadd.f32 %v1416, %v1419
        %v1436 = vadd.f32 %v1417, %v1419
        %v1437 = vpack.c.bf16 %v1422, %v1421
        %v1438 = vpack.c.bf16 %v1424, %v1423
        %v1439 = vpack.c.bf16 %v1426, %v1425
        %v1440 = vpack.c.bf16 %v1428, %v1427
        %v1441 = vpack.c.bf16 %v1430, %v1429
        %v1442 = vpack.c.bf16 %v1432, %v1431
        %v1443 = vpack.c.bf16 %v1434, %v1433
        %v1444 = vpack.c.bf16 %v1436, %v1435
        %v1445 = vld [vmem:[%s692] sm:$0xff]
        %v1446 = vld [vmem:[%s692 + $0x8] sm:$0xf]
        %v1447 = vld [vmem:[%s692 + $0xc] sm:$0xff]
        %v1448 = vld [vmem:[%s692 + $0x14] sm:$0xf]
        %v1449 = vld [vmem:[%s692 + $0x18] sm:$0xff]
        %v1450 = vld [vmem:[%s692 + $0x20] sm:$0xf]
        %v1451 = vld [vmem:[%s692 + $0x24] sm:$0xff]
        %v1452 = vld [vmem:[%s692 + $0x2c] sm:$0xf]
        %v1453 = vld [vmem:[%s692 + $0x30] sm:$0xff]
        %v1454 = vld [vmem:[%s692 + $0x38] sm:$0xf]
        %v1455 = vld [vmem:[%s692 + $0x3c] sm:$0xff]
        %v1456 = vld [vmem:[%s692 + $0x44] sm:$0xf]
        %v1457 = vld [vmem:[%s692 + $0x48] sm:$0xff]
        %v1458 = vld [vmem:[%s692 + $0x50] sm:$0xf]
        %v1459 = vld [vmem:[%s692 + $0x54] sm:$0xff]
        %v1460 = vld [vmem:[%s692 + $0x5c] sm:$0xf]
        %v1461 = vld [vmem:[%s692 + $0x60] sm:$0xff]
        %v1462 = vld [vmem:[%s692 + $0x68] sm:$0xf]
        %v1463 = vld [vmem:[%s692 + $0x6c] sm:$0xff]
        %v1464 = vld [vmem:[%s692 + $0x74] sm:$0xf]
        %v1465 = vld [vmem:[%s692 + $0x78] sm:$0xff]
        %v1466 = vld [vmem:[%s692 + $0x80] sm:$0xf]
        %v1467 = vld [vmem:[%s692 + $0x84] sm:$0xff]
        %v1468 = vld [vmem:[%s692 + $0x8c] sm:$0xf]
        %v1469 = vld [vmem:[%s692 + $0x90] sm:$0xff]
        %v1470 = vld [vmem:[%s692 + $0x98] sm:$0xf]
        %v1471 = vld [vmem:[%s692 + $0x9c] sm:$0xff]
        %v1472 = vld [vmem:[%s692 + $0xa4] sm:$0xf]
        %v1473 = vld [vmem:[%s692 + $0xa8] sm:$0xff]
        %v1474 = vld [vmem:[%s692 + $0xb0] sm:$0xf]
        %v1475 = vld [vmem:[%s692 + $0xb4] sm:$0xff]
        %v1476 = vld [vmem:[%s692 + $0xbc] sm:$0xf]
        %v1477 = vld [vmem:[%s837] sm:$0x7]
        %v1479 = vperm.slane %v1477, 0
        %v1480 = vperm.slane %v1477, 1
        %v1481 = vperm.slane %v1477, 2
        %v1517 = vunpack.c.l.b16 %v1445
        %v1518 = vunpack.c.h.b16 %v1445
        %v1519 = vunpack.c.l.b16 %v1446
        %v1520 = vunpack.c.l.b16 %v1447
        %v1521 = vunpack.c.h.b16 %v1447
        %v1522 = vunpack.c.l.b16 %v1448
        %v1523 = vunpack.c.l.b16 %v1449
        %v1524 = vunpack.c.h.b16 %v1449
        %v1525 = vunpack.c.l.b16 %v1450
        %v1526 = vunpack.c.l.b16 %v1451
        %v1527 = vunpack.c.h.b16 %v1451
        %v1528 = vunpack.c.l.b16 %v1452
        %v1529 = vunpack.c.l.b16 %v1453
        %v1530 = vunpack.c.h.b16 %v1453
        %v1531 = vunpack.c.l.b16 %v1454
        %v1532 = vunpack.c.l.b16 %v1455
        %v1533 = vunpack.c.h.b16 %v1455
        %v1534 = vunpack.c.l.b16 %v1456
        %v1535 = vunpack.c.l.b16 %v1457
        %v1536 = vunpack.c.h.b16 %v1457
        %v1537 = vunpack.c.l.b16 %v1458
        %v1538 = vunpack.c.l.b16 %v1459
        %v1539 = vunpack.c.h.b16 %v1459
        %v1540 = vunpack.c.l.b16 %v1460
        %v1541 = vunpack.c.l.b16 %v1461
        %v1542 = vunpack.c.h.b16 %v1461
        %v1543 = vunpack.c.l.b16 %v1462
        %v1544 = vunpack.c.l.b16 %v1463
        %v1545 = vunpack.c.h.b16 %v1463
        %v1546 = vunpack.c.l.b16 %v1464
        %v1547 = vunpack.c.l.b16 %v1465
        %v1548 = vunpack.c.h.b16 %v1465
        %v1549 = vunpack.c.l.b16 %v1466
        %v1550 = vunpack.c.l.b16 %v1467
        %v1551 = vunpack.c.h.b16 %v1467
        %v1552 = vunpack.c.l.b16 %v1468
        %v1553 = vunpack.c.l.b16 %v1469
        %v1554 = vunpack.c.h.b16 %v1469
        %v1555 = vunpack.c.l.b16 %v1470
        %v1556 = vunpack.c.l.b16 %v1471
        %v1557 = vunpack.c.h.b16 %v1471
        %v1558 = vunpack.c.l.b16 %v1472
        %v1559 = vunpack.c.l.b16 %v1473
        %v1560 = vunpack.c.h.b16 %v1473
        %v1561 = vunpack.c.l.b16 %v1474
        %v1562 = vunpack.c.l.b16 %v1475
        %v1563 = vunpack.c.h.b16 %v1475
        %v1564 = vunpack.c.l.b16 %v1476
        %v1565 = vpack.c.b16 %v1520, %v1517
        %v1566 = vpack.c.b16 %v1521, %v1518
        %v1567 = vpack.c.b16 %v1522, %v1519
        %v1568 = vpack.c.b16 %v1526, %v1523
        %v1569 = vpack.c.b16 %v1527, %v1524
        %v1570 = vpack.c.b16 %v1528, %v1525
        %v1571 = vpack.c.b16 %v1532, %v1529
        %v1572 = vpack.c.b16 %v1533, %v1530
        %v1573 = vpack.c.b16 %v1534, %v1531
        %v1574 = vpack.c.b16 %v1538, %v1535
        %v1575 = vpack.c.b16 %v1539, %v1536
        %v1576 = vpack.c.b16 %v1540, %v1537
        %v1577 = vpack.c.b16 %v1544, %v1541
        %v1578 = vpack.c.b16 %v1545, %v1542
        %v1579 = vpack.c.b16 %v1546, %v1543
        %v1580 = vpack.c.b16 %v1550, %v1547
        %v1581 = vpack.c.b16 %v1551, %v1548
        %v1582 = vpack.c.b16 %v1552, %v1549
        %v1583 = vpack.c.b16 %v1556, %v1553
        %v1584 = vpack.c.b16 %v1557, %v1554
        %v1585 = vpack.c.b16 %v1558, %v1555
        %v1586 = vpack.c.b16 %v1562, %v1559
        %v1587 = vpack.c.b16 %v1563, %v1560
        %v1588 = vpack.c.b16 %v1564, %v1561
        %1613 = vmatpush.bf16.msra.mxu0 %v1586
        %1614 = vmatpush.bf16.msra.mxu0 %v1583
        %1615 = vmatpush.bf16.msra.mxu0 %v1580
        %1616 = vmatpush.bf16.msra.mxu0 %v1577
        %1617 = vmatpush.bf16.msra.mxu0 %v1574
        %1618 = vmatpush.bf16.msra.mxu0 %v1571
        %1619 = vmatpush.bf16.msra.mxu0 %v1568
        %1620 = vmatpush.bf16.msra.mxu0 %v1565
        %1621 = vmatmul.bf16.gmra.mxu0 %v1437
        %v1622 = vpop.f32.mrf.mxu0
        %v1623 = vadd.f32 %v1479, %v1622
        %v1624 = vpop.f32.mrf.mxu0
        %v1625 = vadd.f32 %v1479, %v1624
        %1626 = vmatmul.bf16.gmra.mxu0 %v1438
        %v1627 = vpop.f32.mrf.mxu0
        %v1628 = vadd.f32 %v1479, %v1627
        %v1629 = vpop.f32.mrf.mxu0
        %v1630 = vadd.f32 %v1479, %v1629
        %1631 = vmatmul.bf16.gmra.mxu0 %v1439
        %v1632 = vpop.f32.mrf.mxu0
        %v1633 = vadd.f32 %v1479, %v1632
        %v1634 = vpop.f32.mrf.mxu0
        %v1635 = vadd.f32 %v1479, %v1634
        %1636 = vmatmul.bf16.gmra.mxu0 %v1440
        %v1637 = vpop.f32.mrf.mxu0
        %v1638 = vadd.f32 %v1479, %v1637
        %v1639 = vpop.f32.mrf.mxu0
        %v1640 = vadd.f32 %v1479, %v1639
        %1641 = vmatmul.bf16.gmra.mxu0 %v1441
        %v1642 = vpop.f32.mrf.mxu0
        %v1643 = vadd.f32 %v1479, %v1642
        %v1644 = vpop.f32.mrf.mxu0
        %v1645 = vadd.f32 %v1479, %v1644
        %1646 = vmatmul.bf16.gmra.mxu0 %v1442
        %v1647 = vpop.f32.mrf.mxu0
        %v1648 = vadd.f32 %v1479, %v1647
        %v1649 = vpop.f32.mrf.mxu0
        %v1650 = vadd.f32 %v1479, %v1649
        %1651 = vmatmul.bf16.gmra.mxu0 %v1443
        %v1652 = vpop.f32.mrf.mxu0
        %v1653 = vadd.f32 %v1479, %v1652
        %v1654 = vpop.f32.mrf.mxu0
        %v1655 = vadd.f32 %v1479, %v1654
        %1656 = vmatmul.bf16.gmra.mxu0 %v1444
        %v1657 = vpop.f32.mrf.mxu0
        %v1658 = vadd.f32 %v1479, %v1657
        %v1659 = vpop.f32.mrf.mxu0
        %v1660 = vadd.f32 %v1479, %v1659
        %1661 = vdwg.mxu0
        %1662 = vmatpush.bf16.msra.mxu0 %v1587
        %1663 = vmatpush.bf16.msra.mxu0 %v1584
        %1664 = vmatpush.bf16.msra.mxu0 %v1581
        %1665 = vmatpush.bf16.msra.mxu0 %v1578
        %1666 = vmatpush.bf16.msra.mxu0 %v1575
        %1667 = vmatpush.bf16.msra.mxu0 %v1572
        %1668 = vmatpush.bf16.msra.mxu0 %v1569
        %1669 = vmatpush.bf16.msra.mxu0 %v1566
        %1670 = vmatmul.bf16.gmra.mxu0 %v1437
        %v1671 = vpop.f32.mrf.mxu0
        %v1672 = vadd.f32 %v1480, %v1671
        %v1673 = vpop.f32.mrf.mxu0
        %v1674 = vadd.f32 %v1480, %v1673
        %1675 = vmatmul.bf16.gmra.mxu0 %v1438
        %v1676 = vpop.f32.mrf.mxu0
        %v1677 = vadd.f32 %v1480, %v1676
        %v1678 = vpop.f32.mrf.mxu0
        %v1679 = vadd.f32 %v1480, %v1678
        %1680 = vmatmul.bf16.gmra.mxu0 %v1439
        %v1681 = vpop.f32.mrf.mxu0
        %v1682 = vadd.f32 %v1480, %v1681
        %v1683 = vpop.f32.mrf.mxu0
        %v1684 = vadd.f32 %v1480, %v1683
        %1685 = vmatmul.bf16.gmra.mxu0 %v1440
        %v1686 = vpop.f32.mrf.mxu0
        %v1687 = vadd.f32 %v1480, %v1686
        %v1688 = vpop.f32.mrf.mxu0
        %v1689 = vadd.f32 %v1480, %v1688
        %1690 = vmatmul.bf16.gmra.mxu0 %v1441
        %v1691 = vpop.f32.mrf.mxu0
        %v1692 = vadd.f32 %v1480, %v1691
        %v1693 = vpop.f32.mrf.mxu0
        %v1694 = vadd.f32 %v1480, %v1693
        %1695 = vmatmul.bf16.gmra.mxu0 %v1442
        %v1696 = vpop.f32.mrf.mxu0
        %v1697 = vadd.f32 %v1480, %v1696
        %v1698 = vpop.f32.mrf.mxu0
        %v1699 = vadd.f32 %v1480, %v1698
        %1700 = vmatmul.bf16.gmra.mxu0 %v1443
        %v1701 = vpop.f32.mrf.mxu0
        %v1702 = vadd.f32 %v1480, %v1701
        %v1703 = vpop.f32.mrf.mxu0
        %v1704 = vadd.f32 %v1480, %v1703
        %1705 = vmatmul.bf16.gmra.mxu0 %v1444
        %v1706 = vpop.f32.mrf.mxu0
        %v1707 = vadd.f32 %v1480, %v1706
        %v1708 = vpop.f32.mrf.mxu0
        %v1709 = vadd.f32 %v1480, %v1708
        %1710 = vdwg.mxu0
        %1711 = vmatpush.bf16.msra.mxu0 %v1588
        %1712 = vmatpush.bf16.msra.mxu0 %v1585
        %1713 = vmatpush.bf16.msra.mxu0 %v1582
        %1714 = vmatpush.bf16.msra.mxu0 %v1579
        %1715 = vmatpush.bf16.msra.mxu0 %v1576
        %1716 = vmatpush.bf16.msra.mxu0 %v1573
        %1717 = vmatpush.bf16.msra.mxu0 %v1570
        %1718 = vmatpush.bf16.msra.mxu0 %v1567
        %1719 = vmatmul.bf16.gmra.mxu0 %v1437
        %v1720 = vpop.f32.mrf.mxu0
        %v1721 = vadd.f32 %v1481, %v1720
        %v1722 = vpop.f32.mrf.mxu0
        %v1723 = vadd.f32 %v1481, %v1722
        %1724 = vmatmul.bf16.gmra.mxu0 %v1438
        %v1725 = vpop.f32.mrf.mxu0
        %v1726 = vadd.f32 %v1481, %v1725
        %v1727 = vpop.f32.mrf.mxu0
        %v1728 = vadd.f32 %v1481, %v1727
        %1729 = vmatmul.bf16.gmra.mxu0 %v1439
        %v1730 = vpop.f32.mrf.mxu0
        %v1731 = vadd.f32 %v1481, %v1730
        %v1732 = vpop.f32.mrf.mxu0
        %v1733 = vadd.f32 %v1481, %v1732
        %1734 = vmatmul.bf16.gmra.mxu0 %v1440
        %v1735 = vpop.f32.mrf.mxu0
        %v1736 = vadd.f32 %v1481, %v1735
        %v1737 = vpop.f32.mrf.mxu0
        %v1738 = vadd.f32 %v1481, %v1737
        %1739 = vmatmul.bf16.gmra.mxu0 %v1441
        %v1740 = vpop.f32.mrf.mxu0
        %v1741 = vadd.f32 %v1481, %v1740
        %v1742 = vpop.f32.mrf.mxu0
        %v1743 = vadd.f32 %v1481, %v1742
        %1744 = vmatmul.bf16.gmra.mxu0 %v1442
        %v1745 = vpop.f32.mrf.mxu0
        %v1746 = vadd.f32 %v1481, %v1745
        %v1747 = vpop.f32.mrf.mxu0
        %v1748 = vadd.f32 %v1481, %v1747
        %1749 = vmatmul.bf16.gmra.mxu0 %v1443
        %v1750 = vpop.f32.mrf.mxu0
        %v1751 = vadd.f32 %v1481, %v1750
        %v1752 = vpop.f32.mrf.mxu0
        %v1753 = vadd.f32 %v1481, %v1752
        %1754 = vmatmul.bf16.gmra.mxu0 %v1444
        %v1755 = vpop.f32.mrf.mxu0
        %v1756 = vadd.f32 %v1481, %v1755
        %v1757 = vpop.f32.mrf.mxu0
        %v1758 = vadd.f32 %v1481, %v1757
        %1759 = vdwg.mxu0
        %v1760 = vpack.c.bf16 %v1672, %v1623
        %v1761 = vpack.c.bf16 %v1721, %v1721
        %v1762 = vpack.c.bf16 %v1674, %v1625
        %v1763 = vpack.c.bf16 %v1723, %v1723
        %v1764 = vpack.c.bf16 %v1677, %v1628
        %v1765 = vpack.c.bf16 %v1726, %v1726
        %v1766 = vpack.c.bf16 %v1679, %v1630
        %v1767 = vpack.c.bf16 %v1728, %v1728
        %v1768 = vpack.c.bf16 %v1682, %v1633
        %v1769 = vpack.c.bf16 %v1731, %v1731
        %v1770 = vpack.c.bf16 %v1684, %v1635
        %v1771 = vpack.c.bf16 %v1733, %v1733
        %v1772 = vpack.c.bf16 %v1687, %v1638
        %v1773 = vpack.c.bf16 %v1736, %v1736
        %v1774 = vpack.c.bf16 %v1689, %v1640
        %v1775 = vpack.c.bf16 %v1738, %v1738
        %v1776 = vpack.c.bf16 %v1692, %v1643
        %v1777 = vpack.c.bf16 %v1741, %v1741
        %v1778 = vpack.c.bf16 %v1694, %v1645
        %v1779 = vpack.c.bf16 %v1743, %v1743
        %v1780 = vpack.c.bf16 %v1697, %v1648
        %v1781 = vpack.c.bf16 %v1746, %v1746
        %v1782 = vpack.c.bf16 %v1699, %v1650
        %v1783 = vpack.c.bf16 %v1748, %v1748
        %v1784 = vpack.c.bf16 %v1702, %v1653
        %v1785 = vpack.c.bf16 %v1751, %v1751
        %v1786 = vpack.c.bf16 %v1704, %v1655
        %v1787 = vpack.c.bf16 %v1753, %v1753
        %v1788 = vpack.c.bf16 %v1707, %v1658
        %v1789 = vpack.c.bf16 %v1756, %v1756
        %v1790 = vpack.c.bf16 %v1709, %v1660
        %v1791 = vpack.c.bf16 %v1758, %v1758
        %1808 = vrot.lane.b32.xlu0 %v1760, 96
        %v1809 = vpop.permute.xlu0 %1808
        %1810 = vrot.lane.b32.xlu0 %v1762, 96
        %v1811 = vpop.permute.xlu0 %1810
        %1812 = vrot.lane.b32.xlu0 %v1764, 96
        %v1813 = vpop.permute.xlu0 %1812
        %1814 = vrot.lane.b32.xlu0 %v1766, 96
        %v1815 = vpop.permute.xlu0 %1814
        %1816 = vrot.lane.b32.xlu0 %v1768, 96
        %v1817 = vpop.permute.xlu0 %1816
        %1818 = vrot.lane.b32.xlu0 %v1770, 96
        %v1819 = vpop.permute.xlu0 %1818
        %1820 = vrot.lane.b32.xlu0 %v1772, 96
        %v1821 = vpop.permute.xlu0 %1820
        %1822 = vrot.lane.b32.xlu0 %v1774, 96
        %v1823 = vpop.permute.xlu0 %1822
        %1824 = vrot.lane.b32.xlu0 %v1776, 96
        %v1825 = vpop.permute.xlu0 %1824
        %1826 = vrot.lane.b32.xlu0 %v1778, 96
        %v1827 = vpop.permute.xlu0 %1826
        %1828 = vrot.lane.b32.xlu0 %v1780, 96
        %v1829 = vpop.permute.xlu0 %1828
        %1830 = vrot.lane.b32.xlu0 %v1782, 96
        %v1831 = vpop.permute.xlu0 %1830
        %1832 = vrot.lane.b32.xlu0 %v1784, 96
        %v1833 = vpop.permute.xlu0 %1832
        %1834 = vrot.lane.b32.xlu0 %v1786, 96
        %v1835 = vpop.permute.xlu0 %1834
        %1836 = vrot.lane.b32.xlu0 %v1788, 96
        %v1837 = vpop.permute.xlu0 %1836
        %1838 = vrot.lane.b32.xlu0 %v1790, 96
        %v1839 = vpop.permute.xlu0 %1838
        %1840 = vrot.lane.b32.xlu0 %v1760, 64
        %v1841 = vpop.permute.xlu0 %1840
        %1842 = vrot.lane.b32.xlu0 %v1762, 64
        %v1843 = vpop.permute.xlu0 %1842
        %1844 = vrot.lane.b32.xlu0 %v1764, 64
        %v1845 = vpop.permute.xlu0 %1844
        %1846 = vrot.lane.b32.xlu0 %v1766, 64
        %v1847 = vpop.permute.xlu0 %1846
        %1848 = vrot.lane.b32.xlu0 %v1768, 64
        %v1849 = vpop.permute.xlu0 %1848
        %1850 = vrot.lane.b32.xlu0 %v1770, 64
        %v1851 = vpop.permute.xlu0 %1850
        %1852 = vrot.lane.b32.xlu0 %v1772, 64
        %v1853 = vpop.permute.xlu0 %1852
        %1854 = vrot.lane.b32.xlu0 %v1774, 64
        %v1855 = vpop.permute.xlu0 %1854
        %1856 = vrot.lane.b32.xlu0 %v1776, 64
        %v1857 = vpop.permute.xlu0 %1856
        %1858 = vrot.lane.b32.xlu0 %v1778, 64
        %v1859 = vpop.permute.xlu0 %1858
        %1860 = vrot.lane.b32.xlu0 %v1780, 64
        %v1861 = vpop.permute.xlu0 %1860
        %1862 = vrot.lane.b32.xlu0 %v1782, 64
        %v1863 = vpop.permute.xlu0 %1862
        %1864 = vrot.lane.b32.xlu0 %v1784, 64
        %v1865 = vpop.permute.xlu0 %1864
        %1866 = vrot.lane.b32.xlu0 %v1786, 64
        %v1867 = vpop.permute.xlu0 %1866
        %1868 = vrot.lane.b32.xlu0 %v1788, 64
        %v1869 = vpop.permute.xlu0 %1868
        %1870 = vrot.lane.b32.xlu0 %v1790, 64
        %v1871 = vpop.permute.xlu0 %1870
        %1872 = vrot.lane.b32.xlu0 %v1760, 32
        %v1873 = vpop.permute.xlu0 %1872
        %1874 = vrot.lane.b32.xlu0 %v1762, 32
        %v1875 = vpop.permute.xlu0 %1874
        %1876 = vrot.lane.b32.xlu0 %v1764, 32
        %v1877 = vpop.permute.xlu0 %1876
        %1878 = vrot.lane.b32.xlu0 %v1766, 32
        %v1879 = vpop.permute.xlu0 %1878
        %1880 = vrot.lane.b32.xlu0 %v1768, 32
        %v1881 = vpop.permute.xlu0 %1880
        %1882 = vrot.lane.b32.xlu0 %v1770, 32
        %v1883 = vpop.permute.xlu0 %1882
        %1884 = vrot.lane.b32.xlu0 %v1772, 32
        %v1885 = vpop.permute.xlu0 %1884
        %1886 = vrot.lane.b32.xlu0 %v1774, 32
        %v1887 = vpop.permute.xlu0 %1886
        %1888 = vrot.lane.b32.xlu0 %v1776, 32
        %v1889 = vpop.permute.xlu0 %1888
        %1890 = vrot.lane.b32.xlu0 %v1778, 32
        %v1891 = vpop.permute.xlu0 %1890
        %1892 = vrot.lane.b32.xlu0 %v1780, 32
        %v1893 = vpop.permute.xlu0 %1892
        %1894 = vrot.lane.b32.xlu0 %v1782, 32
        %v1895 = vpop.permute.xlu0 %1894
        %1896 = vrot.lane.b32.xlu0 %v1784, 32
        %v1897 = vpop.permute.xlu0 %1896
        %1898 = vrot.lane.b32.xlu0 %v1786, 32
        %v1899 = vpop.permute.xlu0 %1898
        %1900 = vrot.lane.b32.xlu0 %v1788, 32
        %v1901 = vpop.permute.xlu0 %1900
        %1902 = vrot.lane.b32.xlu0 %v1790, 32
        %v1903 = vpop.permute.xlu0 %1902
        %v1904 = vrot.slane %v1760, 4
        %v1905 = vrot.slane %v1762, 4
        %v1906 = vrot.slane %v1764, 4
        %v1907 = vrot.slane %v1766, 4
        %v1908 = vrot.slane %v1768, 4
        %v1909 = vrot.slane %v1770, 4
        %v1910 = vrot.slane %v1772, 4
        %v1911 = vrot.slane %v1774, 4
        %v1912 = vrot.slane %v1776, 4
        %v1913 = vrot.slane %v1778, 4
        %v1914 = vrot.slane %v1780, 4
        %v1915 = vrot.slane %v1782, 4
        %v1916 = vrot.slane %v1784, 4
        %v1917 = vrot.slane %v1786, 4
        %v1918 = vrot.slane %v1788, 4
        %v1919 = vrot.slane %v1790, 4
        %v1920 = vrot.slane %v1809, 4
        %v1921 = vrot.slane %v1811, 4
        %v1922 = vrot.slane %v1813, 4
        %v1923 = vrot.slane %v1815, 4
        %v1924 = vrot.slane %v1817, 4
        %v1925 = vrot.slane %v1819, 4
        %v1926 = vrot.slane %v1821, 4
        %v1927 = vrot.slane %v1823, 4
        %v1928 = vrot.slane %v1825, 4
        %v1929 = vrot.slane %v1827, 4
        %v1930 = vrot.slane %v1829, 4
        %v1931 = vrot.slane %v1831, 4
        %v1932 = vrot.slane %v1833, 4
        %v1933 = vrot.slane %v1835, 4
        %v1934 = vrot.slane %v1837, 4
        %v1935 = vrot.slane %v1839, 4
        %v1936 = vrot.slane %v1841, 4
        %v1937 = vrot.slane %v1843, 4
        %v1938 = vrot.slane %v1845, 4
        %v1939 = vrot.slane %v1847, 4
        %v1940 = vrot.slane %v1849, 4
        %v1941 = vrot.slane %v1851, 4
        %v1942 = vrot.slane %v1853, 4
        %v1943 = vrot.slane %v1855, 4
        %v1944 = vrot.slane %v1857, 4
        %v1945 = vrot.slane %v1859, 4
        %v1946 = vrot.slane %v1861, 4
        %v1947 = vrot.slane %v1863, 4
        %v1948 = vrot.slane %v1865, 4
        %v1949 = vrot.slane %v1867, 4
        %v1950 = vrot.slane %v1869, 4
        %v1951 = vrot.slane %v1871, 4
        %v1952 = vrot.slane %v1873, 4
        %v1953 = vrot.slane %v1875, 4
        %v1954 = vrot.slane %v1877, 4
        %v1955 = vrot.slane %v1879, 4
        %v1956 = vrot.slane %v1881, 4
        %v1957 = vrot.slane %v1883, 4
        %v1958 = vrot.slane %v1885, 4
        %v1959 = vrot.slane %v1887, 4
        %v1960 = vrot.slane %v1889, 4
        %v1961 = vrot.slane %v1891, 4
        %v1962 = vrot.slane %v1893, 4
        %v1963 = vrot.slane %v1895, 4
        %v1964 = vrot.slane %v1897, 4
        %v1965 = vrot.slane %v1899, 4
        %v1966 = vrot.slane %v1901, 4
        %v1967 = vrot.slane %v1903, 4
        %1984 = vrot.lane.b32.xlu0 %v1761, 96
        %v1985 = vpop.permute.xlu0 %1984
        %1986 = vrot.lane.b32.xlu0 %v1763, 96
        %v1987 = vpop.permute.xlu0 %1986
        %1988 = vrot.lane.b32.xlu0 %v1765, 96
        %v1989 = vpop.permute.xlu0 %1988
        %1990 = vrot.lane.b32.xlu0 %v1767, 96
        %v1991 = vpop.permute.xlu0 %1990
        %1992 = vrot.lane.b32.xlu0 %v1769, 96
        %v1993 = vpop.permute.xlu0 %1992
        %1994 = vrot.lane.b32.xlu0 %v1771, 96
        %v1995 = vpop.permute.xlu0 %1994
        %1996 = vrot.lane.b32.xlu0 %v1773, 96
        %v1997 = vpop.permute.xlu0 %1996
        %1998 = vrot.lane.b32.xlu0 %v1775, 96
        %v1999 = vpop.permute.xlu0 %1998
        %2000 = vrot.lane.b32.xlu0 %v1777, 96
        %v2001 = vpop.permute.xlu0 %2000
        %2002 = vrot.lane.b32.xlu0 %v1779, 96
        %v2003 = vpop.permute.xlu0 %2002
        %2004 = vrot.lane.b32.xlu0 %v1781, 96
        %v2005 = vpop.permute.xlu0 %2004
        %2006 = vrot.lane.b32.xlu0 %v1783, 96
        %v2007 = vpop.permute.xlu0 %2006
        %2008 = vrot.lane.b32.xlu0 %v1785, 96
        %v2009 = vpop.permute.xlu0 %2008
        %2010 = vrot.lane.b32.xlu0 %v1787, 96
        %v2011 = vpop.permute.xlu0 %2010
        %2012 = vrot.lane.b32.xlu0 %v1789, 96
        %v2013 = vpop.permute.xlu0 %2012
        %2014 = vrot.lane.b32.xlu0 %v1791, 96
        %v2015 = vpop.permute.xlu0 %2014
        %2016 = vrot.lane.b32.xlu0 %v1761, 64
        %v2017 = vpop.permute.xlu0 %2016
        %2018 = vrot.lane.b32.xlu0 %v1763, 64
        %v2019 = vpop.permute.xlu0 %2018
        %2020 = vrot.lane.b32.xlu0 %v1765, 64
        %v2021 = vpop.permute.xlu0 %2020
        %2022 = vrot.lane.b32.xlu0 %v1767, 64
        %v2023 = vpop.permute.xlu0 %2022
        %2024 = vrot.lane.b32.xlu0 %v1769, 64
        %v2025 = vpop.permute.xlu0 %2024
        %2026 = vrot.lane.b32.xlu0 %v1771, 64
        %v2027 = vpop.permute.xlu0 %2026
        %2028 = vrot.lane.b32.xlu0 %v1773, 64
        %v2029 = vpop.permute.xlu0 %2028
        %2030 = vrot.lane.b32.xlu0 %v1775, 64
        %v2031 = vpop.permute.xlu0 %2030
        %2032 = vrot.lane.b32.xlu0 %v1777, 64
        %v2033 = vpop.permute.xlu0 %2032
        %2034 = vrot.lane.b32.xlu0 %v1779, 64
        %v2035 = vpop.permute.xlu0 %2034
        %2036 = vrot.lane.b32.xlu0 %v1781, 64
        %v2037 = vpop.permute.xlu0 %2036
        %2038 = vrot.lane.b32.xlu0 %v1783, 64
        %v2039 = vpop.permute.xlu0 %2038
        %2040 = vrot.lane.b32.xlu0 %v1785, 64
        %v2041 = vpop.permute.xlu0 %2040
        %2042 = vrot.lane.b32.xlu0 %v1787, 64
        %v2043 = vpop.permute.xlu0 %2042
        %2044 = vrot.lane.b32.xlu0 %v1789, 64
        %v2045 = vpop.permute.xlu0 %2044
        %2046 = vrot.lane.b32.xlu0 %v1791, 64
        %v2047 = vpop.permute.xlu0 %2046
        %2048 = vrot.lane.b32.xlu0 %v1761, 32
        %v2049 = vpop.permute.xlu0 %2048
        %2050 = vrot.lane.b32.xlu0 %v1763, 32
        %v2051 = vpop.permute.xlu0 %2050
        %2052 = vrot.lane.b32.xlu0 %v1765, 32
        %v2053 = vpop.permute.xlu0 %2052
        %2054 = vrot.lane.b32.xlu0 %v1767, 32
        %v2055 = vpop.permute.xlu0 %2054
        %2056 = vrot.lane.b32.xlu0 %v1769, 32
        %v2057 = vpop.permute.xlu0 %2056
        %2058 = vrot.lane.b32.xlu0 %v1771, 32
        %v2059 = vpop.permute.xlu0 %2058
        %2060 = vrot.lane.b32.xlu0 %v1773, 32
        %v2061 = vpop.permute.xlu0 %2060
        %2062 = vrot.lane.b32.xlu0 %v1775, 32
        %v2063 = vpop.permute.xlu0 %2062
        %2064 = vrot.lane.b32.xlu0 %v1777, 32
        %v2065 = vpop.permute.xlu0 %2064
        %2066 = vrot.lane.b32.xlu0 %v1779, 32
        %v2067 = vpop.permute.xlu0 %2066
        %2068 = vrot.lane.b32.xlu0 %v1781, 32
        %v2069 = vpop.permute.xlu0 %2068
        %2070 = vrot.lane.b32.xlu0 %v1783, 32
        %v2071 = vpop.permute.xlu0 %2070
        %2072 = vrot.lane.b32.xlu0 %v1785, 32
        %v2073 = vpop.permute.xlu0 %2072
        %2074 = vrot.lane.b32.xlu0 %v1787, 32
        %v2075 = vpop.permute.xlu0 %2074
        %2076 = vrot.lane.b32.xlu0 %v1789, 32
        %v2077 = vpop.permute.xlu0 %2076
        %2078 = vrot.lane.b32.xlu0 %v1791, 32
        %v2079 = vpop.permute.xlu0 %2078
        %v2080 = vlaneseq
        %v2081 = vand.u32 %v2080, 127
        %2082 = vset.pattern.permute.xlu0 0
        %2083 = vperm.xlu0 %2082, %v856
        %v2084 = vpop.permute.xlu0 %2083
        %v2085 = vperm.slane %v2084, 0
        %2086 = vset.pattern.permute.xlu0 0
        %2087 = vperm.xlu0 %2086, %v857
        %v2088 = vpop.permute.xlu0 %2087
        %v2089 = vperm.slane %v2088, 0
        %2090 = vset.pattern.permute.xlu0 0
        %2091 = vperm.xlu0 %2090, %v858
        %v2092 = vpop.permute.xlu0 %2091
        %v2093 = vperm.slane %v2092, 0
        %2094 = vset.pattern.permute.xlu0 0
        %2095 = vperm.xlu0 %2094, %v859
        %v2096 = vpop.permute.xlu0 %2095
        %v2097 = vperm.slane %v2096, 0
        %2098 = vset.pattern.permute.xlu0 0
        %2099 = vperm.xlu0 %2098, %v860
        %v2100 = vpop.permute.xlu0 %2099
        %v2101 = vperm.slane %v2100, 0
        %2102 = vset.pattern.permute.xlu0 0
        %2103 = vperm.xlu0 %2102, %v861
        %v2104 = vpop.permute.xlu0 %2103
        %v2105 = vperm.slane %v2104, 0
        %2106 = vset.pattern.permute.xlu0 0
        %2107 = vperm.xlu0 %2106, %v862
        %v2108 = vpop.permute.xlu0 %2107
        %v2109 = vperm.slane %v2108, 0
        %2110 = vset.pattern.permute.xlu0 0
        %2111 = vperm.xlu0 %2110, %v863
        %v2112 = vpop.permute.xlu0 %2111
        %v2113 = vperm.slane %v2112, 0
        %2114 = vset.pattern.permute.xlu0 0
        %2115 = vperm.xlu0 %2114, %v864
        %v2116 = vpop.permute.xlu0 %2115
        %v2117 = vperm.slane %v2116, 0
        %2118 = vset.pattern.permute.xlu0 0
        %2119 = vperm.xlu0 %2118, %v865
        %v2120 = vpop.permute.xlu0 %2119
        %v2121 = vperm.slane %v2120, 0
        %2122 = vset.pattern.permute.xlu0 0
        %2123 = vperm.xlu0 %2122, %v866
        %v2124 = vpop.permute.xlu0 %2123
        %v2125 = vperm.slane %v2124, 0
        %2126 = vset.pattern.permute.xlu0 0
        %2127 = vperm.xlu0 %2126, %v867
        %v2128 = vpop.permute.xlu0 %2127
        %v2129 = vperm.slane %v2128, 0
        %2130 = vset.pattern.permute.xlu0 0
        %2131 = vperm.xlu0 %2130, %v868
        %v2132 = vpop.permute.xlu0 %2131
        %v2133 = vperm.slane %v2132, 0
        %2134 = vset.pattern.permute.xlu0 0
        %2135 = vperm.xlu0 %2134, %v869
        %v2136 = vpop.permute.xlu0 %2135
        %v2137 = vperm.slane %v2136, 0
        %2138 = vset.pattern.permute.xlu0 0
        %2139 = vperm.xlu0 %2138, %v870
        %v2140 = vpop.permute.xlu0 %2139
        %v2141 = vperm.slane %v2140, 0
        %2142 = vset.pattern.permute.xlu0 0
        %2143 = vperm.xlu0 %2142, %v871
        %v2144 = vpop.permute.xlu0 %2143
        %v2145 = vperm.slane %v2144, 0
        %vm2146 = vcmp.lt.s32.totalorder %v2081, %v2085
        %vm2147 = vcmp.lt.s32.totalorder %v2081, %v2089
        %vm2148 = vcmp.lt.s32.totalorder %v2081, %v2093
        %vm2149 = vcmp.lt.s32.totalorder %v2081, %v2097
        %vm2150 = vcmp.lt.s32.totalorder %v2081, %v2101
        %vm2151 = vcmp.lt.s32.totalorder %v2081, %v2105
        %vm2152 = vcmp.lt.s32.totalorder %v2081, %v2109
        %vm2153 = vcmp.lt.s32.totalorder %v2081, %v2113
        %vm2154 = vcmp.lt.s32.totalorder %v2081, %v2117
        %vm2155 = vcmp.lt.s32.totalorder %v2081, %v2121
        %vm2156 = vcmp.lt.s32.totalorder %v2081, %v2125
        %vm2157 = vcmp.lt.s32.totalorder %v2081, %v2129
        %vm2158 = vcmp.lt.s32.totalorder %v2081, %v2133
        %vm2159 = vcmp.lt.s32.totalorder %v2081, %v2137
        %vm2160 = vcmp.lt.s32.totalorder %v2081, %v2141
        %vm2161 = vcmp.lt.s32.totalorder %v2081, %v2145
        %v2162 = vsel %vm2146, 0.0, -1e+30
        %v2163 = vsel %vm2147, 0.0, -1e+30
        %v2164 = vsel %vm2148, 0.0, -1e+30
        %v2165 = vsel %vm2149, 0.0, -1e+30
        %v2166 = vsel %vm2150, 0.0, -1e+30
        %v2167 = vsel %vm2151, 0.0, -1e+30
        %v2168 = vsel %vm2152, 0.0, -1e+30
        %v2169 = vsel %vm2153, 0.0, -1e+30
        %v2170 = vsel %vm2154, 0.0, -1e+30
        %v2171 = vsel %vm2155, 0.0, -1e+30
        %v2172 = vsel %vm2156, 0.0, -1e+30
        %v2173 = vsel %vm2157, 0.0, -1e+30
        %v2174 = vsel %vm2158, 0.0, -1e+30
        %v2175 = vsel %vm2159, 0.0, -1e+30
        %v2176 = vsel %vm2160, 0.0, -1e+30
        %v2177 = vsel %vm2161, 0.0, -1e+30
        %vm2178 = vcmask 261120
        %v2180 = vsel %vm2178, %v1760, 0
        %v2183 = vsel %vm2178, %v1904, 0
        %2185 = vmatpush.bf16.xpose.msra.mxu0 0
        %2186 = vmatpush.bf16.xpose.msra.mxu0 0
        %2187 = vmatpush.bf16.xpose.msra.mxu0 0
        %2188 = vmatpush.bf16.xpose.msra.mxu0 0
        %2189 = vmatpush.bf16.xpose.msra.mxu0 0
        %2190 = vmatpush.bf16.xpose.msra.mxu0 0
        %2191 = vmatpush.bf16.xpose.msra.mxu0 0
        %2192 = vmatpush.bf16.xpose.msra.mxu0 %v2183
        %2193 = vmatmul.bf16.gmra.mxu0 %v2180
        %v2194 = vpop.f32.mrf.mxu0
        %v2195 = vadd.f32 %v2162, %v2194
        %v2196 = vpop.f32.mrf.mxu0
        %2197 = vdwg.mxu0
        %v2199 = vsel %vm2178, %v1809, 0
        %v2202 = vsel %vm2178, %v1920, 0
        %2204 = vmatpush.bf16.xpose.msra.mxu0 0
        %2205 = vmatpush.bf16.xpose.msra.mxu0 0
        %2206 = vmatpush.bf16.xpose.msra.mxu0 0
        %2207 = vmatpush.bf16.xpose.msra.mxu0 0
        %2208 = vmatpush.bf16.xpose.msra.mxu0 0
        %2209 = vmatpush.bf16.xpose.msra.mxu0 0
        %2210 = vmatpush.bf16.xpose.msra.mxu0 0
        %2211 = vmatpush.bf16.xpose.msra.mxu0 %v2202
        %2212 = vmatmul.bf16.gmra.mxu0 %v2199
        %v2213 = vpop.f32.mrf.mxu0
        %v2214 = vadd.f32 %v2162, %v2213
        %v2215 = vpop.f32.mrf.mxu0
        %2216 = vdwg.mxu0
        %v2218 = vsel %vm2178, %v1841, 0
        %v2221 = vsel %vm2178, %v1936, 0
        %2223 = vmatpush.bf16.xpose.msra.mxu0 0
        %2224 = vmatpush.bf16.xpose.msra.mxu0 0
        %2225 = vmatpush.bf16.xpose.msra.mxu0 0
        %2226 = vmatpush.bf16.xpose.msra.mxu0 0
        %2227 = vmatpush.bf16.xpose.msra.mxu0 0
        %2228 = vmatpush.bf16.xpose.msra.mxu0 0
        %2229 = vmatpush.bf16.xpose.msra.mxu0 0
        %2230 = vmatpush.bf16.xpose.msra.mxu0 %v2221
        %2231 = vmatmul.bf16.gmra.mxu0 %v2218
        %v2232 = vpop.f32.mrf.mxu0
        %v2233 = vadd.f32 %v2162, %v2232
        %v2234 = vpop.f32.mrf.mxu0
        %2235 = vdwg.mxu0
        %v2237 = vsel %vm2178, %v1873, 0
        %v2240 = vsel %vm2178, %v1952, 0
        %2242 = vmatpush.bf16.xpose.msra.mxu0 0
        %2243 = vmatpush.bf16.xpose.msra.mxu0 0
        %2244 = vmatpush.bf16.xpose.msra.mxu0 0
        %2245 = vmatpush.bf16.xpose.msra.mxu0 0
        %2246 = vmatpush.bf16.xpose.msra.mxu0 0
        %2247 = vmatpush.bf16.xpose.msra.mxu0 0
        %2248 = vmatpush.bf16.xpose.msra.mxu0 0
        %2249 = vmatpush.bf16.xpose.msra.mxu0 %v2240
        %2250 = vmatmul.bf16.gmra.mxu0 %v2237
        %v2251 = vpop.f32.mrf.mxu0
        %v2252 = vadd.f32 %v2162, %v2251
        %v2253 = vpop.f32.mrf.mxu0
        %2254 = vdwg.mxu0
        %v2256 = vsel %vm2178, %v1762, 0
        %v2259 = vsel %vm2178, %v1905, 0
        %2261 = vmatpush.bf16.xpose.msra.mxu0 0
        %2262 = vmatpush.bf16.xpose.msra.mxu0 0
        %2263 = vmatpush.bf16.xpose.msra.mxu0 0
        %2264 = vmatpush.bf16.xpose.msra.mxu0 0
        %2265 = vmatpush.bf16.xpose.msra.mxu0 0
        %2266 = vmatpush.bf16.xpose.msra.mxu0 0
        %2267 = vmatpush.bf16.xpose.msra.mxu0 0
        %2268 = vmatpush.bf16.xpose.msra.mxu0 %v2259
        %2269 = vmatmul.bf16.gmra.mxu0 %v2256
        %v2270 = vpop.f32.mrf.mxu0
        %v2271 = vadd.f32 %v2163, %v2270
        %v2272 = vpop.f32.mrf.mxu0
        %2273 = vdwg.mxu0
        %v2275 = vsel %vm2178, %v1811, 0
        %v2278 = vsel %vm2178, %v1921, 0
        %2280 = vmatpush.bf16.xpose.msra.mxu0 0
        %2281 = vmatpush.bf16.xpose.msra.mxu0 0
        %2282 = vmatpush.bf16.xpose.msra.mxu0 0
        %2283 = vmatpush.bf16.xpose.msra.mxu0 0
        %2284 = vmatpush.bf16.xpose.msra.mxu0 0
        %2285 = vmatpush.bf16.xpose.msra.mxu0 0
        %2286 = vmatpush.bf16.xpose.msra.mxu0 0
        %2287 = vmatpush.bf16.xpose.msra.mxu0 %v2278
        %2288 = vmatmul.bf16.gmra.mxu0 %v2275
        %v2289 = vpop.f32.mrf.mxu0
        %v2290 = vadd.f32 %v2163, %v2289
        %v2291 = vpop.f32.mrf.mxu0
        %2292 = vdwg.mxu0
        %v2294 = vsel %vm2178, %v1843, 0
        %v2297 = vsel %vm2178, %v1937, 0
        %2299 = vmatpush.bf16.xpose.msra.mxu0 0
        %2300 = vmatpush.bf16.xpose.msra.mxu0 0
        %2301 = vmatpush.bf16.xpose.msra.mxu0 0
        %2302 = vmatpush.bf16.xpose.msra.mxu0 0
        %2303 = vmatpush.bf16.xpose.msra.mxu0 0
        %2304 = vmatpush.bf16.xpose.msra.mxu0 0
        %2305 = vmatpush.bf16.xpose.msra.mxu0 0
        %2306 = vmatpush.bf16.xpose.msra.mxu0 %v2297
        %2307 = vmatmul.bf16.gmra.mxu0 %v2294
        %v2308 = vpop.f32.mrf.mxu0
        %v2309 = vadd.f32 %v2163, %v2308
        %v2310 = vpop.f32.mrf.mxu0
        %2311 = vdwg.mxu0
        %v2313 = vsel %vm2178, %v1875, 0
        %v2316 = vsel %vm2178, %v1953, 0
        %2318 = vmatpush.bf16.xpose.msra.mxu0 0
        %2319 = vmatpush.bf16.xpose.msra.mxu0 0
        %2320 = vmatpush.bf16.xpose.msra.mxu0 0
        %2321 = vmatpush.bf16.xpose.msra.mxu0 0
        %2322 = vmatpush.bf16.xpose.msra.mxu0 0
        %2323 = vmatpush.bf16.xpose.msra.mxu0 0
        %2324 = vmatpush.bf16.xpose.msra.mxu0 0
        %2325 = vmatpush.bf16.xpose.msra.mxu0 %v2316
        %2326 = vmatmul.bf16.gmra.mxu0 %v2313
        %v2327 = vpop.f32.mrf.mxu0
        %v2328 = vadd.f32 %v2163, %v2327
        %v2329 = vpop.f32.mrf.mxu0
        %2330 = vdwg.mxu0
        %v2332 = vsel %vm2178, %v1764, 0
        %v2335 = vsel %vm2178, %v1906, 0
        %2337 = vmatpush.bf16.xpose.msra.mxu0 0
        %2338 = vmatpush.bf16.xpose.msra.mxu0 0
        %2339 = vmatpush.bf16.xpose.msra.mxu0 0
        %2340 = vmatpush.bf16.xpose.msra.mxu0 0
        %2341 = vmatpush.bf16.xpose.msra.mxu0 0
        %2342 = vmatpush.bf16.xpose.msra.mxu0 0
        %2343 = vmatpush.bf16.xpose.msra.mxu0 0
        %2344 = vmatpush.bf16.xpose.msra.mxu0 %v2335
        %2345 = vmatmul.bf16.gmra.mxu0 %v2332
        %v2346 = vpop.f32.mrf.mxu0
        %v2347 = vadd.f32 %v2164, %v2346
        %v2348 = vpop.f32.mrf.mxu0
        %2349 = vdwg.mxu0
        %v2351 = vsel %vm2178, %v1813, 0
        %v2354 = vsel %vm2178, %v1922, 0
        %2356 = vmatpush.bf16.xpose.msra.mxu0 0
        %2357 = vmatpush.bf16.xpose.msra.mxu0 0
        %2358 = vmatpush.bf16.xpose.msra.mxu0 0
        %2359 = vmatpush.bf16.xpose.msra.mxu0 0
        %2360 = vmatpush.bf16.xpose.msra.mxu0 0
        %2361 = vmatpush.bf16.xpose.msra.mxu0 0
        %2362 = vmatpush.bf16.xpose.msra.mxu0 0
        %2363 = vmatpush.bf16.xpose.msra.mxu0 %v2354
        %2364 = vmatmul.bf16.gmra.mxu0 %v2351
        %v2365 = vpop.f32.mrf.mxu0
        %v2366 = vadd.f32 %v2164, %v2365
        %v2367 = vpop.f32.mrf.mxu0
        %2368 = vdwg.mxu0
        %v2370 = vsel %vm2178, %v1845, 0
        %v2373 = vsel %vm2178, %v1938, 0
        %2375 = vmatpush.bf16.xpose.msra.mxu0 0
        %2376 = vmatpush.bf16.xpose.msra.mxu0 0
        %2377 = vmatpush.bf16.xpose.msra.mxu0 0
        %2378 = vmatpush.bf16.xpose.msra.mxu0 0
        %2379 = vmatpush.bf16.xpose.msra.mxu0 0
        %2380 = vmatpush.bf16.xpose.msra.mxu0 0
        %2381 = vmatpush.bf16.xpose.msra.mxu0 0
        %2382 = vmatpush.bf16.xpose.msra.mxu0 %v2373
        %2383 = vmatmul.bf16.gmra.mxu0 %v2370
        %v2384 = vpop.f32.mrf.mxu0
        %v2385 = vadd.f32 %v2164, %v2384
        %v2386 = vpop.f32.mrf.mxu0
        %2387 = vdwg.mxu0
        %v2389 = vsel %vm2178, %v1877, 0
        %v2392 = vsel %vm2178, %v1954, 0
        %2394 = vmatpush.bf16.xpose.msra.mxu0 0
        %2395 = vmatpush.bf16.xpose.msra.mxu0 0
        %2396 = vmatpush.bf16.xpose.msra.mxu0 0
        %2397 = vmatpush.bf16.xpose.msra.mxu0 0
        %2398 = vmatpush.bf16.xpose.msra.mxu0 0
        %2399 = vmatpush.bf16.xpose.msra.mxu0 0
        %2400 = vmatpush.bf16.xpose.msra.mxu0 0
        %2401 = vmatpush.bf16.xpose.msra.mxu0 %v2392
        %2402 = vmatmul.bf16.gmra.mxu0 %v2389
        %v2403 = vpop.f32.mrf.mxu0
        %v2404 = vadd.f32 %v2164, %v2403
        %v2405 = vpop.f32.mrf.mxu0
        %2406 = vdwg.mxu0
        %v2408 = vsel %vm2178, %v1766, 0
        %v2411 = vsel %vm2178, %v1907, 0
        %2413 = vmatpush.bf16.xpose.msra.mxu0 0
        %2414 = vmatpush.bf16.xpose.msra.mxu0 0
        %2415 = vmatpush.bf16.xpose.msra.mxu0 0
        %2416 = vmatpush.bf16.xpose.msra.mxu0 0
        %2417 = vmatpush.bf16.xpose.msra.mxu0 0
        %2418 = vmatpush.bf16.xpose.msra.mxu0 0
        %2419 = vmatpush.bf16.xpose.msra.mxu0 0
        %2420 = vmatpush.bf16.xpose.msra.mxu0 %v2411
        %2421 = vmatmul.bf16.gmra.mxu0 %v2408
        %v2422 = vpop.f32.mrf.mxu0
        %v2423 = vadd.f32 %v2165, %v2422
        %v2424 = vpop.f32.mrf.mxu0
        %2425 = vdwg.mxu0
        %v2427 = vsel %vm2178, %v1815, 0
        %v2430 = vsel %vm2178, %v1923, 0
        %2432 = vmatpush.bf16.xpose.msra.mxu0 0
        %2433 = vmatpush.bf16.xpose.msra.mxu0 0
        %2434 = vmatpush.bf16.xpose.msra.mxu0 0
        %2435 = vmatpush.bf16.xpose.msra.mxu0 0
        %2436 = vmatpush.bf16.xpose.msra.mxu0 0
        %2437 = vmatpush.bf16.xpose.msra.mxu0 0
        %2438 = vmatpush.bf16.xpose.msra.mxu0 0
        %2439 = vmatpush.bf16.xpose.msra.mxu0 %v2430
        %2440 = vmatmul.bf16.gmra.mxu0 %v2427
        %v2441 = vpop.f32.mrf.mxu0
        %v2442 = vadd.f32 %v2165, %v2441
        %v2443 = vpop.f32.mrf.mxu0
        %2444 = vdwg.mxu0
        %v2446 = vsel %vm2178, %v1847, 0
        %v2449 = vsel %vm2178, %v1939, 0
        %2451 = vmatpush.bf16.xpose.msra.mxu0 0
        %2452 = vmatpush.bf16.xpose.msra.mxu0 0
        %2453 = vmatpush.bf16.xpose.msra.mxu0 0
        %2454 = vmatpush.bf16.xpose.msra.mxu0 0
        %2455 = vmatpush.bf16.xpose.msra.mxu0 0
        %2456 = vmatpush.bf16.xpose.msra.mxu0 0
        %2457 = vmatpush.bf16.xpose.msra.mxu0 0
        %2458 = vmatpush.bf16.xpose.msra.mxu0 %v2449
        %2459 = vmatmul.bf16.gmra.mxu0 %v2446
        %v2460 = vpop.f32.mrf.mxu0
        %v2461 = vadd.f32 %v2165, %v2460
        %v2462 = vpop.f32.mrf.mxu0
        %2463 = vdwg.mxu0
        %v2465 = vsel %vm2178, %v1879, 0
        %v2468 = vsel %vm2178, %v1955, 0
        %2470 = vmatpush.bf16.xpose.msra.mxu0 0
        %2471 = vmatpush.bf16.xpose.msra.mxu0 0
        %2472 = vmatpush.bf16.xpose.msra.mxu0 0
        %2473 = vmatpush.bf16.xpose.msra.mxu0 0
        %2474 = vmatpush.bf16.xpose.msra.mxu0 0
        %2475 = vmatpush.bf16.xpose.msra.mxu0 0
        %2476 = vmatpush.bf16.xpose.msra.mxu0 0
        %2477 = vmatpush.bf16.xpose.msra.mxu0 %v2468
        %2478 = vmatmul.bf16.gmra.mxu0 %v2465
        %v2479 = vpop.f32.mrf.mxu0
        %v2480 = vadd.f32 %v2165, %v2479
        %v2481 = vpop.f32.mrf.mxu0
        %2482 = vdwg.mxu0
        %v2484 = vsel %vm2178, %v1768, 0
        %v2487 = vsel %vm2178, %v1908, 0
        %2489 = vmatpush.bf16.xpose.msra.mxu0 0
        %2490 = vmatpush.bf16.xpose.msra.mxu0 0
        %2491 = vmatpush.bf16.xpose.msra.mxu0 0
        %2492 = vmatpush.bf16.xpose.msra.mxu0 0
        %2493 = vmatpush.bf16.xpose.msra.mxu0 0
        %2494 = vmatpush.bf16.xpose.msra.mxu0 0
        %2495 = vmatpush.bf16.xpose.msra.mxu0 0
        %2496 = vmatpush.bf16.xpose.msra.mxu0 %v2487
        %2497 = vmatmul.bf16.gmra.mxu0 %v2484
        %v2498 = vpop.f32.mrf.mxu0
        %v2499 = vadd.f32 %v2166, %v2498
        %v2500 = vpop.f32.mrf.mxu0
        %2501 = vdwg.mxu0
        %v2503 = vsel %vm2178, %v1817, 0
        %v2506 = vsel %vm2178, %v1924, 0
        %2508 = vmatpush.bf16.xpose.msra.mxu0 0
        %2509 = vmatpush.bf16.xpose.msra.mxu0 0
        %2510 = vmatpush.bf16.xpose.msra.mxu0 0
        %2511 = vmatpush.bf16.xpose.msra.mxu0 0
        %2512 = vmatpush.bf16.xpose.msra.mxu0 0
        %2513 = vmatpush.bf16.xpose.msra.mxu0 0
        %2514 = vmatpush.bf16.xpose.msra.mxu0 0
        %2515 = vmatpush.bf16.xpose.msra.mxu0 %v2506
        %2516 = vmatmul.bf16.gmra.mxu0 %v2503
        %v2517 = vpop.f32.mrf.mxu0
        %v2518 = vadd.f32 %v2166, %v2517
        %v2519 = vpop.f32.mrf.mxu0
        %2520 = vdwg.mxu0
        %v2522 = vsel %vm2178, %v1849, 0
        %v2525 = vsel %vm2178, %v1940, 0
        %2527 = vmatpush.bf16.xpose.msra.mxu0 0
        %2528 = vmatpush.bf16.xpose.msra.mxu0 0
        %2529 = vmatpush.bf16.xpose.msra.mxu0 0
        %2530 = vmatpush.bf16.xpose.msra.mxu0 0
        %2531 = vmatpush.bf16.xpose.msra.mxu0 0
        %2532 = vmatpush.bf16.xpose.msra.mxu0 0
        %2533 = vmatpush.bf16.xpose.msra.mxu0 0
        %2534 = vmatpush.bf16.xpose.msra.mxu0 %v2525
        %2535 = vmatmul.bf16.gmra.mxu0 %v2522
        %v2536 = vpop.f32.mrf.mxu0
        %v2537 = vadd.f32 %v2166, %v2536
        %v2538 = vpop.f32.mrf.mxu0
        %2539 = vdwg.mxu0
        %v2541 = vsel %vm2178, %v1881, 0
        %v2544 = vsel %vm2178, %v1956, 0
        %2546 = vmatpush.bf16.xpose.msra.mxu0 0
        %2547 = vmatpush.bf16.xpose.msra.mxu0 0
        %2548 = vmatpush.bf16.xpose.msra.mxu0 0
        %2549 = vmatpush.bf16.xpose.msra.mxu0 0
        %2550 = vmatpush.bf16.xpose.msra.mxu0 0
        %2551 = vmatpush.bf16.xpose.msra.mxu0 0
        %2552 = vmatpush.bf16.xpose.msra.mxu0 0
        %2553 = vmatpush.bf16.xpose.msra.mxu0 %v2544
        %2554 = vmatmul.bf16.gmra.mxu0 %v2541
        %v2555 = vpop.f32.mrf.mxu0
        %v2556 = vadd.f32 %v2166, %v2555
        %v2557 = vpop.f32.mrf.mxu0
        %2558 = vdwg.mxu0
        %v2560 = vsel %vm2178, %v1770, 0
        %v2563 = vsel %vm2178, %v1909, 0
        %2565 = vmatpush.bf16.xpose.msra.mxu0 0
        %2566 = vmatpush.bf16.xpose.msra.mxu0 0
        %2567 = vmatpush.bf16.xpose.msra.mxu0 0
        %2568 = vmatpush.bf16.xpose.msra.mxu0 0
        %2569 = vmatpush.bf16.xpose.msra.mxu0 0
        %2570 = vmatpush.bf16.xpose.msra.mxu0 0
        %2571 = vmatpush.bf16.xpose.msra.mxu0 0
        %2572 = vmatpush.bf16.xpose.msra.mxu0 %v2563
        %2573 = vmatmul.bf16.gmra.mxu0 %v2560
        %v2574 = vpop.f32.mrf.mxu0
        %v2575 = vadd.f32 %v2167, %v2574
        %v2576 = vpop.f32.mrf.mxu0
        %2577 = vdwg.mxu0
        %v2579 = vsel %vm2178, %v1819, 0
        %v2582 = vsel %vm2178, %v1925, 0
        %2584 = vmatpush.bf16.xpose.msra.mxu0 0
        %2585 = vmatpush.bf16.xpose.msra.mxu0 0
        %2586 = vmatpush.bf16.xpose.msra.mxu0 0
        %2587 = vmatpush.bf16.xpose.msra.mxu0 0
        %2588 = vmatpush.bf16.xpose.msra.mxu0 0
        %2589 = vmatpush.bf16.xpose.msra.mxu0 0
        %2590 = vmatpush.bf16.xpose.msra.mxu0 0
        %2591 = vmatpush.bf16.xpose.msra.mxu0 %v2582
        %2592 = vmatmul.bf16.gmra.mxu0 %v2579
        %v2593 = vpop.f32.mrf.mxu0
        %v2594 = vadd.f32 %v2167, %v2593
        %v2595 = vpop.f32.mrf.mxu0
        %2596 = vdwg.mxu0
        %v2598 = vsel %vm2178, %v1851, 0
        %v2601 = vsel %vm2178, %v1941, 0
        %2603 = vmatpush.bf16.xpose.msra.mxu0 0
        %2604 = vmatpush.bf16.xpose.msra.mxu0 0
        %2605 = vmatpush.bf16.xpose.msra.mxu0 0
        %2606 = vmatpush.bf16.xpose.msra.mxu0 0
        %2607 = vmatpush.bf16.xpose.msra.mxu0 0
        %2608 = vmatpush.bf16.xpose.msra.mxu0 0
        %2609 = vmatpush.bf16.xpose.msra.mxu0 0
        %2610 = vmatpush.bf16.xpose.msra.mxu0 %v2601
        %2611 = vmatmul.bf16.gmra.mxu0 %v2598
        %v2612 = vpop.f32.mrf.mxu0
        %v2613 = vadd.f32 %v2167, %v2612
        %v2614 = vpop.f32.mrf.mxu0
        %2615 = vdwg.mxu0
        %v2617 = vsel %vm2178, %v1883, 0
        %v2620 = vsel %vm2178, %v1957, 0
        %2622 = vmatpush.bf16.xpose.msra.mxu0 0
        %2623 = vmatpush.bf16.xpose.msra.mxu0 0
        %2624 = vmatpush.bf16.xpose.msra.mxu0 0
        %2625 = vmatpush.bf16.xpose.msra.mxu0 0
        %2626 = vmatpush.bf16.xpose.msra.mxu0 0
        %2627 = vmatpush.bf16.xpose.msra.mxu0 0
        %2628 = vmatpush.bf16.xpose.msra.mxu0 0
        %2629 = vmatpush.bf16.xpose.msra.mxu0 %v2620
        %2630 = vmatmul.bf16.gmra.mxu0 %v2617
        %v2631 = vpop.f32.mrf.mxu0
        %v2632 = vadd.f32 %v2167, %v2631
        %v2633 = vpop.f32.mrf.mxu0
        %2634 = vdwg.mxu0
        %v2636 = vsel %vm2178, %v1772, 0
        %v2639 = vsel %vm2178, %v1910, 0
        %2641 = vmatpush.bf16.xpose.msra.mxu0 0
        %2642 = vmatpush.bf16.xpose.msra.mxu0 0
        %2643 = vmatpush.bf16.xpose.msra.mxu0 0
        %2644 = vmatpush.bf16.xpose.msra.mxu0 0
        %2645 = vmatpush.bf16.xpose.msra.mxu0 0
        %2646 = vmatpush.bf16.xpose.msra.mxu0 0
        %2647 = vmatpush.bf16.xpose.msra.mxu0 0
        %2648 = vmatpush.bf16.xpose.msra.mxu0 %v2639
        %2649 = vmatmul.bf16.gmra.mxu0 %v2636
        %v2650 = vpop.f32.mrf.mxu0
        %v2651 = vadd.f32 %v2168, %v2650
        %v2652 = vpop.f32.mrf.mxu0
        %2653 = vdwg.mxu0
        %v2655 = vsel %vm2178, %v1821, 0
        %v2658 = vsel %vm2178, %v1926, 0
        %2660 = vmatpush.bf16.xpose.msra.mxu0 0
        %2661 = vmatpush.bf16.xpose.msra.mxu0 0
        %2662 = vmatpush.bf16.xpose.msra.mxu0 0
        %2663 = vmatpush.bf16.xpose.msra.mxu0 0
        %2664 = vmatpush.bf16.xpose.msra.mxu0 0
        %2665 = vmatpush.bf16.xpose.msra.mxu0 0
        %2666 = vmatpush.bf16.xpose.msra.mxu0 0
        %2667 = vmatpush.bf16.xpose.msra.mxu0 %v2658
        %2668 = vmatmul.bf16.gmra.mxu0 %v2655
        %v2669 = vpop.f32.mrf.mxu0
        %v2670 = vadd.f32 %v2168, %v2669
        %v2671 = vpop.f32.mrf.mxu0
        %2672 = vdwg.mxu0
        %v2674 = vsel %vm2178, %v1853, 0
        %v2677 = vsel %vm2178, %v1942, 0
        %2679 = vmatpush.bf16.xpose.msra.mxu0 0
        %2680 = vmatpush.bf16.xpose.msra.mxu0 0
        %2681 = vmatpush.bf16.xpose.msra.mxu0 0
        %2682 = vmatpush.bf16.xpose.msra.mxu0 0
        %2683 = vmatpush.bf16.xpose.msra.mxu0 0
        %2684 = vmatpush.bf16.xpose.msra.mxu0 0
        %2685 = vmatpush.bf16.xpose.msra.mxu0 0
        %2686 = vmatpush.bf16.xpose.msra.mxu0 %v2677
        %2687 = vmatmul.bf16.gmra.mxu0 %v2674
        %v2688 = vpop.f32.mrf.mxu0
        %v2689 = vadd.f32 %v2168, %v2688
        %v2690 = vpop.f32.mrf.mxu0
        %2691 = vdwg.mxu0
        %v2693 = vsel %vm2178, %v1885, 0
        %v2696 = vsel %vm2178, %v1958, 0
        %2698 = vmatpush.bf16.xpose.msra.mxu0 0
        %2699 = vmatpush.bf16.xpose.msra.mxu0 0
        %2700 = vmatpush.bf16.xpose.msra.mxu0 0
        %2701 = vmatpush.bf16.xpose.msra.mxu0 0
        %2702 = vmatpush.bf16.xpose.msra.mxu0 0
        %2703 = vmatpush.bf16.xpose.msra.mxu0 0
        %2704 = vmatpush.bf16.xpose.msra.mxu0 0
        %2705 = vmatpush.bf16.xpose.msra.mxu0 %v2696
        %2706 = vmatmul.bf16.gmra.mxu0 %v2693
        %v2707 = vpop.f32.mrf.mxu0
        %v2708 = vadd.f32 %v2168, %v2707
        %v2709 = vpop.f32.mrf.mxu0
        %2710 = vdwg.mxu0
        %v2712 = vsel %vm2178, %v1774, 0
        %v2715 = vsel %vm2178, %v1911, 0
        %2717 = vmatpush.bf16.xpose.msra.mxu0 0
        %2718 = vmatpush.bf16.xpose.msra.mxu0 0
        %2719 = vmatpush.bf16.xpose.msra.mxu0 0
        %2720 = vmatpush.bf16.xpose.msra.mxu0 0
        %2721 = vmatpush.bf16.xpose.msra.mxu0 0
        %2722 = vmatpush.bf16.xpose.msra.mxu0 0
        %2723 = vmatpush.bf16.xpose.msra.mxu0 0
        %2724 = vmatpush.bf16.xpose.msra.mxu0 %v2715
        %2725 = vmatmul.bf16.gmra.mxu0 %v2712
        %v2726 = vpop.f32.mrf.mxu0
        %v2727 = vadd.f32 %v2169, %v2726
        %v2728 = vpop.f32.mrf.mxu0
        %2729 = vdwg.mxu0
        %v2731 = vsel %vm2178, %v1823, 0
        %v2734 = vsel %vm2178, %v1927, 0
        %2736 = vmatpush.bf16.xpose.msra.mxu0 0
        %2737 = vmatpush.bf16.xpose.msra.mxu0 0
        %2738 = vmatpush.bf16.xpose.msra.mxu0 0
        %2739 = vmatpush.bf16.xpose.msra.mxu0 0
        %2740 = vmatpush.bf16.xpose.msra.mxu0 0
        %2741 = vmatpush.bf16.xpose.msra.mxu0 0
        %2742 = vmatpush.bf16.xpose.msra.mxu0 0
        %2743 = vmatpush.bf16.xpose.msra.mxu0 %v2734
        %2744 = vmatmul.bf16.gmra.mxu0 %v2731
        %v2745 = vpop.f32.mrf.mxu0
        %v2746 = vadd.f32 %v2169, %v2745
        %v2747 = vpop.f32.mrf.mxu0
        %2748 = vdwg.mxu0
        %v2750 = vsel %vm2178, %v1855, 0
        %v2753 = vsel %vm2178, %v1943, 0
        %2755 = vmatpush.bf16.xpose.msra.mxu0 0
        %2756 = vmatpush.bf16.xpose.msra.mxu0 0
        %2757 = vmatpush.bf16.xpose.msra.mxu0 0
        %2758 = vmatpush.bf16.xpose.msra.mxu0 0
        %2759 = vmatpush.bf16.xpose.msra.mxu0 0
        %2760 = vmatpush.bf16.xpose.msra.mxu0 0
        %2761 = vmatpush.bf16.xpose.msra.mxu0 0
        %2762 = vmatpush.bf16.xpose.msra.mxu0 %v2753
        %2763 = vmatmul.bf16.gmra.mxu0 %v2750
        %v2764 = vpop.f32.mrf.mxu0
        %v2765 = vadd.f32 %v2169, %v2764
        %v2766 = vpop.f32.mrf.mxu0
        %2767 = vdwg.mxu0
        %v2769 = vsel %vm2178, %v1887, 0
        %v2772 = vsel %vm2178, %v1959, 0
        %2774 = vmatpush.bf16.xpose.msra.mxu0 0
        %2775 = vmatpush.bf16.xpose.msra.mxu0 0
        %2776 = vmatpush.bf16.xpose.msra.mxu0 0
        %2777 = vmatpush.bf16.xpose.msra.mxu0 0
        %2778 = vmatpush.bf16.xpose.msra.mxu0 0
        %2779 = vmatpush.bf16.xpose.msra.mxu0 0
        %2780 = vmatpush.bf16.xpose.msra.mxu0 0
        %2781 = vmatpush.bf16.xpose.msra.mxu0 %v2772
        %2782 = vmatmul.bf16.gmra.mxu0 %v2769
        %v2783 = vpop.f32.mrf.mxu0
        %v2784 = vadd.f32 %v2169, %v2783
        %v2785 = vpop.f32.mrf.mxu0
        %2786 = vdwg.mxu0
        %v2788 = vsel %vm2178, %v1776, 0
        %v2791 = vsel %vm2178, %v1912, 0
        %2793 = vmatpush.bf16.xpose.msra.mxu0 0
        %2794 = vmatpush.bf16.xpose.msra.mxu0 0
        %2795 = vmatpush.bf16.xpose.msra.mxu0 0
        %2796 = vmatpush.bf16.xpose.msra.mxu0 0
        %2797 = vmatpush.bf16.xpose.msra.mxu0 0
        %2798 = vmatpush.bf16.xpose.msra.mxu0 0
        %2799 = vmatpush.bf16.xpose.msra.mxu0 0
        %2800 = vmatpush.bf16.xpose.msra.mxu0 %v2791
        %2801 = vmatmul.bf16.gmra.mxu0 %v2788
        %v2802 = vpop.f32.mrf.mxu0
        %v2803 = vadd.f32 %v2170, %v2802
        %v2804 = vpop.f32.mrf.mxu0
        %2805 = vdwg.mxu0
        %v2807 = vsel %vm2178, %v1825, 0
        %v2810 = vsel %vm2178, %v1928, 0
        %2812 = vmatpush.bf16.xpose.msra.mxu0 0
        %2813 = vmatpush.bf16.xpose.msra.mxu0 0
        %2814 = vmatpush.bf16.xpose.msra.mxu0 0
        %2815 = vmatpush.bf16.xpose.msra.mxu0 0
        %2816 = vmatpush.bf16.xpose.msra.mxu0 0
        %2817 = vmatpush.bf16.xpose.msra.mxu0 0
        %2818 = vmatpush.bf16.xpose.msra.mxu0 0
        %2819 = vmatpush.bf16.xpose.msra.mxu0 %v2810
        %2820 = vmatmul.bf16.gmra.mxu0 %v2807
        %v2821 = vpop.f32.mrf.mxu0
        %v2822 = vadd.f32 %v2170, %v2821
        %v2823 = vpop.f32.mrf.mxu0
        %2824 = vdwg.mxu0
        %v2826 = vsel %vm2178, %v1857, 0
        %v2829 = vsel %vm2178, %v1944, 0
        %2831 = vmatpush.bf16.xpose.msra.mxu0 0
        %2832 = vmatpush.bf16.xpose.msra.mxu0 0
        %2833 = vmatpush.bf16.xpose.msra.mxu0 0
        %2834 = vmatpush.bf16.xpose.msra.mxu0 0
        %2835 = vmatpush.bf16.xpose.msra.mxu0 0
        %2836 = vmatpush.bf16.xpose.msra.mxu0 0
        %2837 = vmatpush.bf16.xpose.msra.mxu0 0
        %2838 = vmatpush.bf16.xpose.msra.mxu0 %v2829
        %2839 = vmatmul.bf16.gmra.mxu0 %v2826
        %v2840 = vpop.f32.mrf.mxu0
        %v2841 = vadd.f32 %v2170, %v2840
        %v2842 = vpop.f32.mrf.mxu0
        %2843 = vdwg.mxu0
        %v2845 = vsel %vm2178, %v1889, 0
        %v2848 = vsel %vm2178, %v1960, 0
        %2850 = vmatpush.bf16.xpose.msra.mxu0 0
        %2851 = vmatpush.bf16.xpose.msra.mxu0 0
        %2852 = vmatpush.bf16.xpose.msra.mxu0 0
        %2853 = vmatpush.bf16.xpose.msra.mxu0 0
        %2854 = vmatpush.bf16.xpose.msra.mxu0 0
        %2855 = vmatpush.bf16.xpose.msra.mxu0 0
        %2856 = vmatpush.bf16.xpose.msra.mxu0 0
        %2857 = vmatpush.bf16.xpose.msra.mxu0 %v2848
        %2858 = vmatmul.bf16.gmra.mxu0 %v2845
        %v2859 = vpop.f32.mrf.mxu0
        %v2860 = vadd.f32 %v2170, %v2859
        %v2861 = vpop.f32.mrf.mxu0
        %2862 = vdwg.mxu0
        %v2864 = vsel %vm2178, %v1778, 0
        %v2867 = vsel %vm2178, %v1913, 0
        %2869 = vmatpush.bf16.xpose.msra.mxu0 0
        %2870 = vmatpush.bf16.xpose.msra.mxu0 0
        %2871 = vmatpush.bf16.xpose.msra.mxu0 0
        %2872 = vmatpush.bf16.xpose.msra.mxu0 0
        %2873 = vmatpush.bf16.xpose.msra.mxu0 0
        %2874 = vmatpush.bf16.xpose.msra.mxu0 0
        %2875 = vmatpush.bf16.xpose.msra.mxu0 0
        %2876 = vmatpush.bf16.xpose.msra.mxu0 %v2867
        %2877 = vmatmul.bf16.gmra.mxu0 %v2864
        %v2878 = vpop.f32.mrf.mxu0
        %v2879 = vadd.f32 %v2171, %v2878
        %v2880 = vpop.f32.mrf.mxu0
        %2881 = vdwg.mxu0
        %v2883 = vsel %vm2178, %v1827, 0
        %v2886 = vsel %vm2178, %v1929, 0
        %2888 = vmatpush.bf16.xpose.msra.mxu0 0
        %2889 = vmatpush.bf16.xpose.msra.mxu0 0
        %2890 = vmatpush.bf16.xpose.msra.mxu0 0
        %2891 = vmatpush.bf16.xpose.msra.mxu0 0
        %2892 = vmatpush.bf16.xpose.msra.mxu0 0
        %2893 = vmatpush.bf16.xpose.msra.mxu0 0
        %2894 = vmatpush.bf16.xpose.msra.mxu0 0
        %2895 = vmatpush.bf16.xpose.msra.mxu0 %v2886
        %2896 = vmatmul.bf16.gmra.mxu0 %v2883
        %v2897 = vpop.f32.mrf.mxu0
        %v2898 = vadd.f32 %v2171, %v2897
        %v2899 = vpop.f32.mrf.mxu0
        %2900 = vdwg.mxu0
        %v2902 = vsel %vm2178, %v1859, 0
        %v2905 = vsel %vm2178, %v1945, 0
        %2907 = vmatpush.bf16.xpose.msra.mxu0 0
        %2908 = vmatpush.bf16.xpose.msra.mxu0 0
        %2909 = vmatpush.bf16.xpose.msra.mxu0 0
        %2910 = vmatpush.bf16.xpose.msra.mxu0 0
        %2911 = vmatpush.bf16.xpose.msra.mxu0 0
        %2912 = vmatpush.bf16.xpose.msra.mxu0 0
        %2913 = vmatpush.bf16.xpose.msra.mxu0 0
        %2914 = vmatpush.bf16.xpose.msra.mxu0 %v2905
        %2915 = vmatmul.bf16.gmra.mxu0 %v2902
        %v2916 = vpop.f32.mrf.mxu0
        %v2917 = vadd.f32 %v2171, %v2916
        %v2918 = vpop.f32.mrf.mxu0
        %2919 = vdwg.mxu0
        %v2921 = vsel %vm2178, %v1891, 0
        %v2924 = vsel %vm2178, %v1961, 0
        %2926 = vmatpush.bf16.xpose.msra.mxu0 0
        %2927 = vmatpush.bf16.xpose.msra.mxu0 0
        %2928 = vmatpush.bf16.xpose.msra.mxu0 0
        %2929 = vmatpush.bf16.xpose.msra.mxu0 0
        %2930 = vmatpush.bf16.xpose.msra.mxu0 0
        %2931 = vmatpush.bf16.xpose.msra.mxu0 0
        %2932 = vmatpush.bf16.xpose.msra.mxu0 0
        %2933 = vmatpush.bf16.xpose.msra.mxu0 %v2924
        %2934 = vmatmul.bf16.gmra.mxu0 %v2921
        %v2935 = vpop.f32.mrf.mxu0
        %v2936 = vadd.f32 %v2171, %v2935
        %v2937 = vpop.f32.mrf.mxu0
        %2938 = vdwg.mxu0
        %v2940 = vsel %vm2178, %v1780, 0
        %v2943 = vsel %vm2178, %v1914, 0
        %2945 = vmatpush.bf16.xpose.msra.mxu0 0
        %2946 = vmatpush.bf16.xpose.msra.mxu0 0
        %2947 = vmatpush.bf16.xpose.msra.mxu0 0
        %2948 = vmatpush.bf16.xpose.msra.mxu0 0
        %2949 = vmatpush.bf16.xpose.msra.mxu0 0
        %2950 = vmatpush.bf16.xpose.msra.mxu0 0
        %2951 = vmatpush.bf16.xpose.msra.mxu0 0
        %2952 = vmatpush.bf16.xpose.msra.mxu0 %v2943
        %2953 = vmatmul.bf16.gmra.mxu0 %v2940
        %v2954 = vpop.f32.mrf.mxu0
        %v2955 = vadd.f32 %v2172, %v2954
        %v2956 = vpop.f32.mrf.mxu0
        %2957 = vdwg.mxu0
        %v2959 = vsel %vm2178, %v1829, 0
        %v2962 = vsel %vm2178, %v1930, 0
        %2964 = vmatpush.bf16.xpose.msra.mxu0 0
        %2965 = vmatpush.bf16.xpose.msra.mxu0 0
        %2966 = vmatpush.bf16.xpose.msra.mxu0 0
        %2967 = vmatpush.bf16.xpose.msra.mxu0 0
        %2968 = vmatpush.bf16.xpose.msra.mxu0 0
        %2969 = vmatpush.bf16.xpose.msra.mxu0 0
        %2970 = vmatpush.bf16.xpose.msra.mxu0 0
        %2971 = vmatpush.bf16.xpose.msra.mxu0 %v2962
        %2972 = vmatmul.bf16.gmra.mxu0 %v2959
        %v2973 = vpop.f32.mrf.mxu0
        %v2974 = vadd.f32 %v2172, %v2973
        %v2975 = vpop.f32.mrf.mxu0
        %2976 = vdwg.mxu0
        %v2978 = vsel %vm2178, %v1861, 0
        %v2981 = vsel %vm2178, %v1946, 0
        %2983 = vmatpush.bf16.xpose.msra.mxu0 0
        %2984 = vmatpush.bf16.xpose.msra.mxu0 0
        %2985 = vmatpush.bf16.xpose.msra.mxu0 0
        %2986 = vmatpush.bf16.xpose.msra.mxu0 0
        %2987 = vmatpush.bf16.xpose.msra.mxu0 0
        %2988 = vmatpush.bf16.xpose.msra.mxu0 0
        %2989 = vmatpush.bf16.xpose.msra.mxu0 0
        %2990 = vmatpush.bf16.xpose.msra.mxu0 %v2981
        %2991 = vmatmul.bf16.gmra.mxu0 %v2978
        %v2992 = vpop.f32.mrf.mxu0
        %v2993 = vadd.f32 %v2172, %v2992
        %v2994 = vpop.f32.mrf.mxu0
        %2995 = vdwg.mxu0
        %v2997 = vsel %vm2178, %v1893, 0
        %v3000 = vsel %vm2178, %v1962, 0
        %3002 = vmatpush.bf16.xpose.msra.mxu0 0
        %3003 = vmatpush.bf16.xpose.msra.mxu0 0
        %3004 = vmatpush.bf16.xpose.msra.mxu0 0
        %3005 = vmatpush.bf16.xpose.msra.mxu0 0
        %3006 = vmatpush.bf16.xpose.msra.mxu0 0
        %3007 = vmatpush.bf16.xpose.msra.mxu0 0
        %3008 = vmatpush.bf16.xpose.msra.mxu0 0
        %3009 = vmatpush.bf16.xpose.msra.mxu0 %v3000
        %3010 = vmatmul.bf16.gmra.mxu0 %v2997
        %v3011 = vpop.f32.mrf.mxu0
        %v3012 = vadd.f32 %v2172, %v3011
        %v3013 = vpop.f32.mrf.mxu0
        %3014 = vdwg.mxu0
        %v3016 = vsel %vm2178, %v1782, 0
        %v3019 = vsel %vm2178, %v1915, 0
        %3021 = vmatpush.bf16.xpose.msra.mxu0 0
        %3022 = vmatpush.bf16.xpose.msra.mxu0 0
        %3023 = vmatpush.bf16.xpose.msra.mxu0 0
        %3024 = vmatpush.bf16.xpose.msra.mxu0 0
        %3025 = vmatpush.bf16.xpose.msra.mxu0 0
        %3026 = vmatpush.bf16.xpose.msra.mxu0 0
        %3027 = vmatpush.bf16.xpose.msra.mxu0 0
        %3028 = vmatpush.bf16.xpose.msra.mxu0 %v3019
        %3029 = vmatmul.bf16.gmra.mxu0 %v3016
        %v3030 = vpop.f32.mrf.mxu0
        %v3031 = vadd.f32 %v2173, %v3030
        %v3032 = vpop.f32.mrf.mxu0
        %3033 = vdwg.mxu0
        %v3035 = vsel %vm2178, %v1831, 0
        %v3038 = vsel %vm2178, %v1931, 0
        %3040 = vmatpush.bf16.xpose.msra.mxu0 0
        %3041 = vmatpush.bf16.xpose.msra.mxu0 0
        %3042 = vmatpush.bf16.xpose.msra.mxu0 0
        %3043 = vmatpush.bf16.xpose.msra.mxu0 0
        %3044 = vmatpush.bf16.xpose.msra.mxu0 0
        %3045 = vmatpush.bf16.xpose.msra.mxu0 0
        %3046 = vmatpush.bf16.xpose.msra.mxu0 0
        %3047 = vmatpush.bf16.xpose.msra.mxu0 %v3038
        %3048 = vmatmul.bf16.gmra.mxu0 %v3035
        %v3049 = vpop.f32.mrf.mxu0
        %v3050 = vadd.f32 %v2173, %v3049
        %v3051 = vpop.f32.mrf.mxu0
        %3052 = vdwg.mxu0
        %v3054 = vsel %vm2178, %v1863, 0
        %v3057 = vsel %vm2178, %v1947, 0
        %3059 = vmatpush.bf16.xpose.msra.mxu0 0
        %3060 = vmatpush.bf16.xpose.msra.mxu0 0
        %3061 = vmatpush.bf16.xpose.msra.mxu0 0
        %3062 = vmatpush.bf16.xpose.msra.mxu0 0
        %3063 = vmatpush.bf16.xpose.msra.mxu0 0
        %3064 = vmatpush.bf16.xpose.msra.mxu0 0
        %3065 = vmatpush.bf16.xpose.msra.mxu0 0
        %3066 = vmatpush.bf16.xpose.msra.mxu0 %v3057
        %3067 = vmatmul.bf16.gmra.mxu0 %v3054
        %v3068 = vpop.f32.mrf.mxu0
        %v3069 = vadd.f32 %v2173, %v3068
        %v3070 = vpop.f32.mrf.mxu0
        %3071 = vdwg.mxu0
        %v3073 = vsel %vm2178, %v1895, 0
        %v3076 = vsel %vm2178, %v1963, 0
        %3078 = vmatpush.bf16.xpose.msra.mxu0 0
        %3079 = vmatpush.bf16.xpose.msra.mxu0 0
        %3080 = vmatpush.bf16.xpose.msra.mxu0 0
        %3081 = vmatpush.bf16.xpose.msra.mxu0 0
        %3082 = vmatpush.bf16.xpose.msra.mxu0 0
        %3083 = vmatpush.bf16.xpose.msra.mxu0 0
        %3084 = vmatpush.bf16.xpose.msra.mxu0 0
        %3085 = vmatpush.bf16.xpose.msra.mxu0 %v3076
        %3086 = vmatmul.bf16.gmra.mxu0 %v3073
        %v3087 = vpop.f32.mrf.mxu0
        %v3088 = vadd.f32 %v2173, %v3087
        %v3089 = vpop.f32.mrf.mxu0
        %3090 = vdwg.mxu0
        %v3092 = vsel %vm2178, %v1784, 0
        %v3095 = vsel %vm2178, %v1916, 0
        %3097 = vmatpush.bf16.xpose.msra.mxu0 0
        %3098 = vmatpush.bf16.xpose.msra.mxu0 0
        %3099 = vmatpush.bf16.xpose.msra.mxu0 0
        %3100 = vmatpush.bf16.xpose.msra.mxu0 0
        %3101 = vmatpush.bf16.xpose.msra.mxu0 0
        %3102 = vmatpush.bf16.xpose.msra.mxu0 0
        %3103 = vmatpush.bf16.xpose.msra.mxu0 0
        %3104 = vmatpush.bf16.xpose.msra.mxu0 %v3095
        %3105 = vmatmul.bf16.gmra.mxu0 %v3092
        %v3106 = vpop.f32.mrf.mxu0
        %v3107 = vadd.f32 %v2174, %v3106
        %v3108 = vpop.f32.mrf.mxu0
        %3109 = vdwg.mxu0
        %v3111 = vsel %vm2178, %v1833, 0
        %v3114 = vsel %vm2178, %v1932, 0
        %3116 = vmatpush.bf16.xpose.msra.mxu0 0
        %3117 = vmatpush.bf16.xpose.msra.mxu0 0
        %3118 = vmatpush.bf16.xpose.msra.mxu0 0
        %3119 = vmatpush.bf16.xpose.msra.mxu0 0
        %3120 = vmatpush.bf16.xpose.msra.mxu0 0
        %3121 = vmatpush.bf16.xpose.msra.mxu0 0
        %3122 = vmatpush.bf16.xpose.msra.mxu0 0
        %3123 = vmatpush.bf16.xpose.msra.mxu0 %v3114
        %3124 = vmatmul.bf16.gmra.mxu0 %v3111
        %v3125 = vpop.f32.mrf.mxu0
        %v3126 = vadd.f32 %v2174, %v3125
        %v3127 = vpop.f32.mrf.mxu0
        %3128 = vdwg.mxu0
        %v3130 = vsel %vm2178, %v1865, 0
        %v3133 = vsel %vm2178, %v1948, 0
        %3135 = vmatpush.bf16.xpose.msra.mxu0 0
        %3136 = vmatpush.bf16.xpose.msra.mxu0 0
        %3137 = vmatpush.bf16.xpose.msra.mxu0 0
        %3138 = vmatpush.bf16.xpose.msra.mxu0 0
        %3139 = vmatpush.bf16.xpose.msra.mxu0 0
        %3140 = vmatpush.bf16.xpose.msra.mxu0 0
        %3141 = vmatpush.bf16.xpose.msra.mxu0 0
        %3142 = vmatpush.bf16.xpose.msra.mxu0 %v3133
        %3143 = vmatmul.bf16.gmra.mxu0 %v3130
        %v3144 = vpop.f32.mrf.mxu0
        %v3145 = vadd.f32 %v2174, %v3144
        %v3146 = vpop.f32.mrf.mxu0
        %3147 = vdwg.mxu0
        %v3149 = vsel %vm2178, %v1897, 0
        %v3152 = vsel %vm2178, %v1964, 0
        %3154 = vmatpush.bf16.xpose.msra.mxu0 0
        %3155 = vmatpush.bf16.xpose.msra.mxu0 0
        %3156 = vmatpush.bf16.xpose.msra.mxu0 0
        %3157 = vmatpush.bf16.xpose.msra.mxu0 0
        %3158 = vmatpush.bf16.xpose.msra.mxu0 0
        %3159 = vmatpush.bf16.xpose.msra.mxu0 0
        %3160 = vmatpush.bf16.xpose.msra.mxu0 0
        %3161 = vmatpush.bf16.xpose.msra.mxu0 %v3152
        %3162 = vmatmul.bf16.gmra.mxu0 %v3149
        %v3163 = vpop.f32.mrf.mxu0
        %v3164 = vadd.f32 %v2174, %v3163
        %v3165 = vpop.f32.mrf.mxu0
        %3166 = vdwg.mxu0
        %v3168 = vsel %vm2178, %v1786, 0
        %v3171 = vsel %vm2178, %v1917, 0
        %3173 = vmatpush.bf16.xpose.msra.mxu0 0
        %3174 = vmatpush.bf16.xpose.msra.mxu0 0
        %3175 = vmatpush.bf16.xpose.msra.mxu0 0
        %3176 = vmatpush.bf16.xpose.msra.mxu0 0
        %3177 = vmatpush.bf16.xpose.msra.mxu0 0
        %3178 = vmatpush.bf16.xpose.msra.mxu0 0
        %3179 = vmatpush.bf16.xpose.msra.mxu0 0
        %3180 = vmatpush.bf16.xpose.msra.mxu0 %v3171
        %3181 = vmatmul.bf16.gmra.mxu0 %v3168
        %v3182 = vpop.f32.mrf.mxu0
        %v3183 = vadd.f32 %v2175, %v3182
        %v3184 = vpop.f32.mrf.mxu0
        %3185 = vdwg.mxu0
        %v3187 = vsel %vm2178, %v1835, 0
        %v3190 = vsel %vm2178, %v1933, 0
        %3192 = vmatpush.bf16.xpose.msra.mxu0 0
        %3193 = vmatpush.bf16.xpose.msra.mxu0 0
        %3194 = vmatpush.bf16.xpose.msra.mxu0 0
        %3195 = vmatpush.bf16.xpose.msra.mxu0 0
        %3196 = vmatpush.bf16.xpose.msra.mxu0 0
        %3197 = vmatpush.bf16.xpose.msra.mxu0 0
        %3198 = vmatpush.bf16.xpose.msra.mxu0 0
        %3199 = vmatpush.bf16.xpose.msra.mxu0 %v3190
        %3200 = vmatmul.bf16.gmra.mxu0 %v3187
        %v3201 = vpop.f32.mrf.mxu0
        %v3202 = vadd.f32 %v2175, %v3201
        %v3203 = vpop.f32.mrf.mxu0
        %3204 = vdwg.mxu0
        %v3206 = vsel %vm2178, %v1867, 0
        %v3209 = vsel %vm2178, %v1949, 0
        %3211 = vmatpush.bf16.xpose.msra.mxu0 0
        %3212 = vmatpush.bf16.xpose.msra.mxu0 0
        %3213 = vmatpush.bf16.xpose.msra.mxu0 0
        %3214 = vmatpush.bf16.xpose.msra.mxu0 0
        %3215 = vmatpush.bf16.xpose.msra.mxu0 0
        %3216 = vmatpush.bf16.xpose.msra.mxu0 0
        %3217 = vmatpush.bf16.xpose.msra.mxu0 0
        %3218 = vmatpush.bf16.xpose.msra.mxu0 %v3209
        %3219 = vmatmul.bf16.gmra.mxu0 %v3206
        %v3220 = vpop.f32.mrf.mxu0
        %v3221 = vadd.f32 %v2175, %v3220
        %v3222 = vpop.f32.mrf.mxu0
        %3223 = vdwg.mxu0
        %v3225 = vsel %vm2178, %v1899, 0
        %v3228 = vsel %vm2178, %v1965, 0
        %3230 = vmatpush.bf16.xpose.msra.mxu0 0
        %3231 = vmatpush.bf16.xpose.msra.mxu0 0
        %3232 = vmatpush.bf16.xpose.msra.mxu0 0
        %3233 = vmatpush.bf16.xpose.msra.mxu0 0
        %3234 = vmatpush.bf16.xpose.msra.mxu0 0
        %3235 = vmatpush.bf16.xpose.msra.mxu0 0
        %3236 = vmatpush.bf16.xpose.msra.mxu0 0
        %3237 = vmatpush.bf16.xpose.msra.mxu0 %v3228
        %3238 = vmatmul.bf16.gmra.mxu0 %v3225
        %v3239 = vpop.f32.mrf.mxu0
        %v3240 = vadd.f32 %v2175, %v3239
        %v3241 = vpop.f32.mrf.mxu0
        %3242 = vdwg.mxu0
        %v3244 = vsel %vm2178, %v1788, 0
        %v3247 = vsel %vm2178, %v1918, 0
        %3249 = vmatpush.bf16.xpose.msra.mxu0 0
        %3250 = vmatpush.bf16.xpose.msra.mxu0 0
        %3251 = vmatpush.bf16.xpose.msra.mxu0 0
        %3252 = vmatpush.bf16.xpose.msra.mxu0 0
        %3253 = vmatpush.bf16.xpose.msra.mxu0 0
        %3254 = vmatpush.bf16.xpose.msra.mxu0 0
        %3255 = vmatpush.bf16.xpose.msra.mxu0 0
        %3256 = vmatpush.bf16.xpose.msra.mxu0 %v3247
        %3257 = vmatmul.bf16.gmra.mxu0 %v3244
        %v3258 = vpop.f32.mrf.mxu0
        %v3259 = vadd.f32 %v2176, %v3258
        %v3260 = vpop.f32.mrf.mxu0
        %3261 = vdwg.mxu0
        %v3263 = vsel %vm2178, %v1837, 0
        %v3266 = vsel %vm2178, %v1934, 0
        %3268 = vmatpush.bf16.xpose.msra.mxu0 0
        %3269 = vmatpush.bf16.xpose.msra.mxu0 0
        %3270 = vmatpush.bf16.xpose.msra.mxu0 0
        %3271 = vmatpush.bf16.xpose.msra.mxu0 0
        %3272 = vmatpush.bf16.xpose.msra.mxu0 0
        %3273 = vmatpush.bf16.xpose.msra.mxu0 0
        %3274 = vmatpush.bf16.xpose.msra.mxu0 0
        %3275 = vmatpush.bf16.xpose.msra.mxu0 %v3266
        %3276 = vmatmul.bf16.gmra.mxu0 %v3263
        %v3277 = vpop.f32.mrf.mxu0
        %v3278 = vadd.f32 %v2176, %v3277
        %v3279 = vpop.f32.mrf.mxu0
        %3280 = vdwg.mxu0
        %v3282 = vsel %vm2178, %v1869, 0
        %v3285 = vsel %vm2178, %v1950, 0
        %3287 = vmatpush.bf16.xpose.msra.mxu0 0
        %3288 = vmatpush.bf16.xpose.msra.mxu0 0
        %3289 = vmatpush.bf16.xpose.msra.mxu0 0
        %3290 = vmatpush.bf16.xpose.msra.mxu0 0
        %3291 = vmatpush.bf16.xpose.msra.mxu0 0
        %3292 = vmatpush.bf16.xpose.msra.mxu0 0
        %3293 = vmatpush.bf16.xpose.msra.mxu0 0
        %3294 = vmatpush.bf16.xpose.msra.mxu0 %v3285
        %3295 = vmatmul.bf16.gmra.mxu0 %v3282
        %v3296 = vpop.f32.mrf.mxu0
        %v3297 = vadd.f32 %v2176, %v3296
        %v3298 = vpop.f32.mrf.mxu0
        %3299 = vdwg.mxu0
        %v3301 = vsel %vm2178, %v1901, 0
        %v3304 = vsel %vm2178, %v1966, 0
        %3306 = vmatpush.bf16.xpose.msra.mxu0 0
        %3307 = vmatpush.bf16.xpose.msra.mxu0 0
        %3308 = vmatpush.bf16.xpose.msra.mxu0 0
        %3309 = vmatpush.bf16.xpose.msra.mxu0 0
        %3310 = vmatpush.bf16.xpose.msra.mxu0 0
        %3311 = vmatpush.bf16.xpose.msra.mxu0 0
        %3312 = vmatpush.bf16.xpose.msra.mxu0 0
        %3313 = vmatpush.bf16.xpose.msra.mxu0 %v3304
        %3314 = vmatmul.bf16.gmra.mxu0 %v3301
        %v3315 = vpop.f32.mrf.mxu0
        %v3316 = vadd.f32 %v2176, %v3315
        %v3317 = vpop.f32.mrf.mxu0
        %3318 = vdwg.mxu0
        %v3320 = vsel %vm2178, %v1790, 0
        %v3323 = vsel %vm2178, %v1919, 0
        %3325 = vmatpush.bf16.xpose.msra.mxu0 0
        %3326 = vmatpush.bf16.xpose.msra.mxu0 0
        %3327 = vmatpush.bf16.xpose.msra.mxu0 0
        %3328 = vmatpush.bf16.xpose.msra.mxu0 0
        %3329 = vmatpush.bf16.xpose.msra.mxu0 0
        %3330 = vmatpush.bf16.xpose.msra.mxu0 0
        %3331 = vmatpush.bf16.xpose.msra.mxu0 0
        %3332 = vmatpush.bf16.xpose.msra.mxu0 %v3323
        %3333 = vmatmul.bf16.gmra.mxu0 %v3320
        %v3334 = vpop.f32.mrf.mxu0
        %v3335 = vadd.f32 %v2177, %v3334
        %v3336 = vpop.f32.mrf.mxu0
        %3337 = vdwg.mxu0
        %v3339 = vsel %vm2178, %v1839, 0
        %v3342 = vsel %vm2178, %v1935, 0
        %3344 = vmatpush.bf16.xpose.msra.mxu0 0
        %3345 = vmatpush.bf16.xpose.msra.mxu0 0
        %3346 = vmatpush.bf16.xpose.msra.mxu0 0
        %3347 = vmatpush.bf16.xpose.msra.mxu0 0
        %3348 = vmatpush.bf16.xpose.msra.mxu0 0
        %3349 = vmatpush.bf16.xpose.msra.mxu0 0
        %3350 = vmatpush.bf16.xpose.msra.mxu0 0
        %3351 = vmatpush.bf16.xpose.msra.mxu0 %v3342
        %3352 = vmatmul.bf16.gmra.mxu0 %v3339
        %v3353 = vpop.f32.mrf.mxu0
        %v3354 = vadd.f32 %v2177, %v3353
        %v3355 = vpop.f32.mrf.mxu0
        %3356 = vdwg.mxu0
        %v3358 = vsel %vm2178, %v1871, 0
        %v3361 = vsel %vm2178, %v1951, 0
        %3363 = vmatpush.bf16.xpose.msra.mxu0 0
        %3364 = vmatpush.bf16.xpose.msra.mxu0 0
        %3365 = vmatpush.bf16.xpose.msra.mxu0 0
        %3366 = vmatpush.bf16.xpose.msra.mxu0 0
        %3367 = vmatpush.bf16.xpose.msra.mxu0 0
        %3368 = vmatpush.bf16.xpose.msra.mxu0 0
        %3369 = vmatpush.bf16.xpose.msra.mxu0 0
        %3370 = vmatpush.bf16.xpose.msra.mxu0 %v3361
        %3371 = vmatmul.bf16.gmra.mxu0 %v3358
        %v3372 = vpop.f32.mrf.mxu0
        %v3373 = vadd.f32 %v2177, %v3372
        %v3374 = vpop.f32.mrf.mxu0
        %3375 = vdwg.mxu0
        %v3377 = vsel %vm2178, %v1903, 0
        %v3380 = vsel %vm2178, %v1967, 0
        %3382 = vmatpush.bf16.xpose.msra.mxu0 0
        %3383 = vmatpush.bf16.xpose.msra.mxu0 0
        %3384 = vmatpush.bf16.xpose.msra.mxu0 0
        %3385 = vmatpush.bf16.xpose.msra.mxu0 0
        %3386 = vmatpush.bf16.xpose.msra.mxu0 0
        %3387 = vmatpush.bf16.xpose.msra.mxu0 0
        %3388 = vmatpush.bf16.xpose.msra.mxu0 0
        %3389 = vmatpush.bf16.xpose.msra.mxu0 %v3380
        %3390 = vmatmul.bf16.gmra.mxu0 %v3377
        %v3391 = vpop.f32.mrf.mxu0
        %v3392 = vadd.f32 %v2177, %v3391
        %v3393 = vpop.f32.mrf.mxu0
        %3394 = vdwg.mxu0
        %vm3395 = vcmask 64512
        %v3396 = vsel %vm3395, %v2195, -inf
        %3397 = vmax.xlane.f32.xlu0 %v3396
        %v3398 = vpop.xlane.xlu0 %3397
        %v3399 = vsel %vm3395, %v2214, -inf
        %3400 = vmax.xlane.f32.xlu0 %v3399
        %v3401 = vpop.xlane.xlu0 %3400
        %v3402 = vsel %vm3395, %v2233, -inf
        %3403 = vmax.xlane.f32.xlu0 %v3402
        %v3404 = vpop.xlane.xlu0 %3403
        %v3405 = vsel %vm3395, %v2252, -inf
        %3406 = vmax.xlane.f32.xlu0 %v3405
        %v3407 = vpop.xlane.xlu0 %3406
        %v3408 = vsel %vm3395, %v2271, -inf
        %3409 = vmax.xlane.f32.xlu0 %v3408
        %v3410 = vpop.xlane.xlu0 %3409
        %v3411 = vsel %vm3395, %v2290, -inf
        %3412 = vmax.xlane.f32.xlu0 %v3411
        %v3413 = vpop.xlane.xlu0 %3412
        %v3414 = vsel %vm3395, %v2309, -inf
        %3415 = vmax.xlane.f32.xlu0 %v3414
        %v3416 = vpop.xlane.xlu0 %3415
        %v3417 = vsel %vm3395, %v2328, -inf
        %3418 = vmax.xlane.f32.xlu0 %v3417
        %v3419 = vpop.xlane.xlu0 %3418
        %v3420 = vsel %vm3395, %v2347, -inf
        %3421 = vmax.xlane.f32.xlu0 %v3420
        %v3422 = vpop.xlane.xlu0 %3421
        %v3423 = vsel %vm3395, %v2366, -inf
        %3424 = vmax.xlane.f32.xlu0 %v3423
        %v3425 = vpop.xlane.xlu0 %3424
        %v3426 = vsel %vm3395, %v2385, -inf
        %3427 = vmax.xlane.f32.xlu0 %v3426
        %v3428 = vpop.xlane.xlu0 %3427
        %v3429 = vsel %vm3395, %v2404, -inf
        %3430 = vmax.xlane.f32.xlu0 %v3429
        %v3431 = vpop.xlane.xlu0 %3430
        %v3432 = vsel %vm3395, %v2423, -inf
        %3433 = vmax.xlane.f32.xlu0 %v3432
        %v3434 = vpop.xlane.xlu0 %3433
        %v3435 = vsel %vm3395, %v2442, -inf
        %3436 = vmax.xlane.f32.xlu0 %v3435
        %v3437 = vpop.xlane.xlu0 %3436
        %v3438 = vsel %vm3395, %v2461, -inf
        %3439 = vmax.xlane.f32.xlu0 %v3438
        %v3440 = vpop.xlane.xlu0 %3439
        %v3441 = vsel %vm3395, %v2480, -inf
        %3442 = vmax.xlane.f32.xlu0 %v3441
        %v3443 = vpop.xlane.xlu0 %3442
        %v3444 = vsel %vm3395, %v2499, -inf
        %3445 = vmax.xlane.f32.xlu0 %v3444
        %v3446 = vpop.xlane.xlu0 %3445
        %v3447 = vsel %vm3395, %v2518, -inf
        %3448 = vmax.xlane.f32.xlu0 %v3447
        %v3449 = vpop.xlane.xlu0 %3448
        %v3450 = vsel %vm3395, %v2537, -inf
        %3451 = vmax.xlane.f32.xlu0 %v3450
        %v3452 = vpop.xlane.xlu0 %3451
        %v3453 = vsel %vm3395, %v2556, -inf
        %3454 = vmax.xlane.f32.xlu0 %v3453
        %v3455 = vpop.xlane.xlu0 %3454
        %v3456 = vsel %vm3395, %v2575, -inf
        %3457 = vmax.xlane.f32.xlu0 %v3456
        %v3458 = vpop.xlane.xlu0 %3457
        %v3459 = vsel %vm3395, %v2594, -inf
        %3460 = vmax.xlane.f32.xlu0 %v3459
        %v3461 = vpop.xlane.xlu0 %3460
        %v3462 = vsel %vm3395, %v2613, -inf
        %3463 = vmax.xlane.f32.xlu0 %v3462
        %v3464 = vpop.xlane.xlu0 %3463
        %v3465 = vsel %vm3395, %v2632, -inf
        %3466 = vmax.xlane.f32.xlu0 %v3465
        %v3467 = vpop.xlane.xlu0 %3466
        %v3468 = vsel %vm3395, %v2651, -inf
        %3469 = vmax.xlane.f32.xlu0 %v3468
        %v3470 = vpop.xlane.xlu0 %3469
        %v3471 = vsel %vm3395, %v2670, -inf
        %3472 = vmax.xlane.f32.xlu0 %v3471
        %v3473 = vpop.xlane.xlu0 %3472
        %v3474 = vsel %vm3395, %v2689, -inf
        %3475 = vmax.xlane.f32.xlu0 %v3474
        %v3476 = vpop.xlane.xlu0 %3475
        %v3477 = vsel %vm3395, %v2708, -inf
        %3478 = vmax.xlane.f32.xlu0 %v3477
        %v3479 = vpop.xlane.xlu0 %3478
        %v3480 = vsel %vm3395, %v2727, -inf
        %3481 = vmax.xlane.f32.xlu0 %v3480
        %v3482 = vpop.xlane.xlu0 %3481
        %v3483 = vsel %vm3395, %v2746, -inf
        %3484 = vmax.xlane.f32.xlu0 %v3483
        %v3485 = vpop.xlane.xlu0 %3484
        %v3486 = vsel %vm3395, %v2765, -inf
        %3487 = vmax.xlane.f32.xlu0 %v3486
        %v3488 = vpop.xlane.xlu0 %3487
        %v3489 = vsel %vm3395, %v2784, -inf
        %3490 = vmax.xlane.f32.xlu0 %v3489
        %v3491 = vpop.xlane.xlu0 %3490
        %v3492 = vsel %vm3395, %v2803, -inf
        %3493 = vmax.xlane.f32.xlu0 %v3492
        %v3494 = vpop.xlane.xlu0 %3493
        %v3495 = vsel %vm3395, %v2822, -inf
        %3496 = vmax.xlane.f32.xlu0 %v3495
        %v3497 = vpop.xlane.xlu0 %3496
        %v3498 = vsel %vm3395, %v2841, -inf
        %3499 = vmax.xlane.f32.xlu0 %v3498
        %v3500 = vpop.xlane.xlu0 %3499
        %v3501 = vsel %vm3395, %v2860, -inf
        %3502 = vmax.xlane.f32.xlu0 %v3501
        %v3503 = vpop.xlane.xlu0 %3502
        %v3504 = vsel %vm3395, %v2879, -inf
        %3505 = vmax.xlane.f32.xlu0 %v3504
        %v3506 = vpop.xlane.xlu0 %3505
        %v3507 = vsel %vm3395, %v2898, -inf
        %3508 = vmax.xlane.f32.xlu0 %v3507
        %v3509 = vpop.xlane.xlu0 %3508
        %v3510 = vsel %vm3395, %v2917, -inf
        %3511 = vmax.xlane.f32.xlu0 %v3510
        %v3512 = vpop.xlane.xlu0 %3511
        %v3513 = vsel %vm3395, %v2936, -inf
        %3514 = vmax.xlane.f32.xlu0 %v3513
        %v3515 = vpop.xlane.xlu0 %3514
        %v3516 = vsel %vm3395, %v2955, -inf
        %3517 = vmax.xlane.f32.xlu0 %v3516
        %v3518 = vpop.xlane.xlu0 %3517
        %v3519 = vsel %vm3395, %v2974, -inf
        %3520 = vmax.xlane.f32.xlu0 %v3519
        %v3521 = vpop.xlane.xlu0 %3520
        %v3522 = vsel %vm3395, %v2993, -inf
        %3523 = vmax.xlane.f32.xlu0 %v3522
        %v3524 = vpop.xlane.xlu0 %3523
        %v3525 = vsel %vm3395, %v3012, -inf
        %3526 = vmax.xlane.f32.xlu0 %v3525
        %v3527 = vpop.xlane.xlu0 %3526
        %v3528 = vsel %vm3395, %v3031, -inf
        %3529 = vmax.xlane.f32.xlu0 %v3528
        %v3530 = vpop.xlane.xlu0 %3529
        %v3531 = vsel %vm3395, %v3050, -inf
        %3532 = vmax.xlane.f32.xlu0 %v3531
        %v3533 = vpop.xlane.xlu0 %3532
        %v3534 = vsel %vm3395, %v3069, -inf
        %3535 = vmax.xlane.f32.xlu0 %v3534
        %v3536 = vpop.xlane.xlu0 %3535
        %v3537 = vsel %vm3395, %v3088, -inf
        %3538 = vmax.xlane.f32.xlu0 %v3537
        %v3539 = vpop.xlane.xlu0 %3538
        %v3540 = vsel %vm3395, %v3107, -inf
        %3541 = vmax.xlane.f32.xlu0 %v3540
        %v3542 = vpop.xlane.xlu0 %3541
        %v3543 = vsel %vm3395, %v3126, -inf
        %3544 = vmax.xlane.f32.xlu0 %v3543
        %v3545 = vpop.xlane.xlu0 %3544
        %v3546 = vsel %vm3395, %v3145, -inf
        %3547 = vmax.xlane.f32.xlu0 %v3546
        %v3548 = vpop.xlane.xlu0 %3547
        %v3549 = vsel %vm3395, %v3164, -inf
        %3550 = vmax.xlane.f32.xlu0 %v3549
        %v3551 = vpop.xlane.xlu0 %3550
        %v3552 = vsel %vm3395, %v3183, -inf
        %3553 = vmax.xlane.f32.xlu0 %v3552
        %v3554 = vpop.xlane.xlu0 %3553
        %v3555 = vsel %vm3395, %v3202, -inf
        %3556 = vmax.xlane.f32.xlu0 %v3555
        %v3557 = vpop.xlane.xlu0 %3556
        %v3558 = vsel %vm3395, %v3221, -inf
        %3559 = vmax.xlane.f32.xlu0 %v3558
        %v3560 = vpop.xlane.xlu0 %3559
        %v3561 = vsel %vm3395, %v3240, -inf
        %3562 = vmax.xlane.f32.xlu0 %v3561
        %v3563 = vpop.xlane.xlu0 %3562
        %v3564 = vsel %vm3395, %v3259, -inf
        %3565 = vmax.xlane.f32.xlu0 %v3564
        %v3566 = vpop.xlane.xlu0 %3565
        %v3567 = vsel %vm3395, %v3278, -inf
        %3568 = vmax.xlane.f32.xlu0 %v3567
        %v3569 = vpop.xlane.xlu0 %3568
        %v3570 = vsel %vm3395, %v3297, -inf
        %3571 = vmax.xlane.f32.xlu0 %v3570
        %v3572 = vpop.xlane.xlu0 %3571
        %v3573 = vsel %vm3395, %v3316, -inf
        %3574 = vmax.xlane.f32.xlu0 %v3573
        %v3575 = vpop.xlane.xlu0 %3574
        %v3576 = vsel %vm3395, %v3335, -inf
        %3577 = vmax.xlane.f32.xlu0 %v3576
        %v3578 = vpop.xlane.xlu0 %3577
        %v3579 = vsel %vm3395, %v3354, -inf
        %3580 = vmax.xlane.f32.xlu0 %v3579
        %v3581 = vpop.xlane.xlu0 %3580
        %v3582 = vsel %vm3395, %v3373, -inf
        %3583 = vmax.xlane.f32.xlu0 %v3582
        %v3584 = vpop.xlane.xlu0 %3583
        %v3585 = vsel %vm3395, %v3392, -inf
        %3586 = vmax.xlane.f32.xlu0 %v3585
        %v3587 = vpop.xlane.xlu0 %3586
        %v3588 = vsub.f32 %v2195, %v3398
        %v3589 = vsub.f32 %v2214, %v3401
        %v3590 = vsub.f32 %v2233, %v3404
        %v3591 = vsub.f32 %v2252, %v3407
        %v3592 = vsub.f32 %v2271, %v3410
        %v3593 = vsub.f32 %v2290, %v3413
        %v3594 = vsub.f32 %v2309, %v3416
        %v3595 = vsub.f32 %v2328, %v3419
        %v3596 = vsub.f32 %v2347, %v3422
        %v3597 = vsub.f32 %v2366, %v3425
        %v3598 = vsub.f32 %v2385, %v3428
        %v3599 = vsub.f32 %v2404, %v3431
        %v3600 = vsub.f32 %v2423, %v3434
        %v3601 = vsub.f32 %v2442, %v3437
        %v3602 = vsub.f32 %v2461, %v3440
        %v3603 = vsub.f32 %v2480, %v3443
        %v3604 = vsub.f32 %v2499, %v3446
        %v3605 = vsub.f32 %v2518, %v3449
        %v3606 = vsub.f32 %v2537, %v3452
        %v3607 = vsub.f32 %v2556, %v3455
        %v3608 = vsub.f32 %v2575, %v3458
        %v3609 = vsub.f32 %v2594, %v3461
        %v3610 = vsub.f32 %v2613, %v3464
        %v3611 = vsub.f32 %v2632, %v3467
        %v3612 = vsub.f32 %v2651, %v3470
        %v3613 = vsub.f32 %v2670, %v3473
        %v3614 = vsub.f32 %v2689, %v3476
        %v3615 = vsub.f32 %v2708, %v3479
        %v3616 = vsub.f32 %v2727, %v3482
        %v3617 = vsub.f32 %v2746, %v3485
        %v3618 = vsub.f32 %v2765, %v3488
        %v3619 = vsub.f32 %v2784, %v3491
        %v3620 = vsub.f32 %v2803, %v3494
        %v3621 = vsub.f32 %v2822, %v3497
        %v3622 = vsub.f32 %v2841, %v3500
        %v3623 = vsub.f32 %v2860, %v3503
        %v3624 = vsub.f32 %v2879, %v3506
        %v3625 = vsub.f32 %v2898, %v3509
        %v3626 = vsub.f32 %v2917, %v3512
        %v3627 = vsub.f32 %v2936, %v3515
        %v3628 = vsub.f32 %v2955, %v3518
        %v3629 = vsub.f32 %v2974, %v3521
        %v3630 = vsub.f32 %v2993, %v3524
        %v3631 = vsub.f32 %v3012, %v3527
        %v3632 = vsub.f32 %v3031, %v3530
        %v3633 = vsub.f32 %v3050, %v3533
        %v3634 = vsub.f32 %v3069, %v3536
        %v3635 = vsub.f32 %v3088, %v3539
        %v3636 = vsub.f32 %v3107, %v3542
        %v3637 = vsub.f32 %v3126, %v3545
        %v3638 = vsub.f32 %v3145, %v3548
        %v3639 = vsub.f32 %v3164, %v3551
        %v3640 = vsub.f32 %v3183, %v3554
        %v3641 = vsub.f32 %v3202, %v3557
        %v3642 = vsub.f32 %v3221, %v3560
        %v3643 = vsub.f32 %v3240, %v3563
        %v3644 = vsub.f32 %v3259, %v3566
        %v3645 = vsub.f32 %v3278, %v3569
        %v3646 = vsub.f32 %v3297, %v3572
        %v3647 = vsub.f32 %v3316, %v3575
        %v3648 = vsub.f32 %v3335, %v3578
        %v3649 = vsub.f32 %v3354, %v3581
        %v3650 = vsub.f32 %v3373, %v3584
        %v3651 = vsub.f32 %v3392, %v3587
        %v3652 = vmul.f32 %v3588, 1.442695
        %v3653 = vpow.pop %v3652
        %v3654 = vmul.f32 %v3589, 1.442695
        %v3655 = vpow.pop %v3654
        %v3656 = vmul.f32 %v3590, 1.442695
        %v3657 = vpow.pop %v3656
        %v3658 = vmul.f32 %v3591, 1.442695
        %v3659 = vpow.pop %v3658
        %v3660 = vmul.f32 %v3592, 1.442695
        %v3661 = vpow.pop %v3660
        %v3662 = vmul.f32 %v3593, 1.442695
        %v3663 = vpow.pop %v3662
        %v3664 = vmul.f32 %v3594, 1.442695
        %v3665 = vpow.pop %v3664
        %v3666 = vmul.f32 %v3595, 1.442695
        %v3667 = vpow.pop %v3666
        %v3668 = vmul.f32 %v3596, 1.442695
        %v3669 = vpow.pop %v3668
        %v3670 = vmul.f32 %v3597, 1.442695
        %v3671 = vpow.pop %v3670
        %v3672 = vmul.f32 %v3598, 1.442695
        %v3673 = vpow.pop %v3672
        %v3674 = vmul.f32 %v3599, 1.442695
        %v3675 = vpow.pop %v3674
        %v3676 = vmul.f32 %v3600, 1.442695
        %v3677 = vpow.pop %v3676
        %v3678 = vmul.f32 %v3601, 1.442695
        %v3679 = vpow.pop %v3678
        %v3680 = vmul.f32 %v3602, 1.442695
        %v3681 = vpow.pop %v3680
        %v3682 = vmul.f32 %v3603, 1.442695
        %v3683 = vpow.pop %v3682
        %v3684 = vmul.f32 %v3604, 1.442695
        %v3685 = vpow.pop %v3684
        %v3686 = vmul.f32 %v3605, 1.442695
        %v3687 = vpow.pop %v3686
        %v3688 = vmul.f32 %v3606, 1.442695
        %v3689 = vpow.pop %v3688
        %v3690 = vmul.f32 %v3607, 1.442695
        %v3691 = vpow.pop %v3690
        %v3692 = vmul.f32 %v3608, 1.442695
        %v3693 = vpow.pop %v3692
        %v3694 = vmul.f32 %v3609, 1.442695
        %v3695 = vpow.pop %v3694
        %v3696 = vmul.f32 %v3610, 1.442695
        %v3697 = vpow.pop %v3696
        %v3698 = vmul.f32 %v3611, 1.442695
        %v3699 = vpow.pop %v3698
        %v3700 = vmul.f32 %v3612, 1.442695
        %v3701 = vpow.pop %v3700
        %v3702 = vmul.f32 %v3613, 1.442695
        %v3703 = vpow.pop %v3702
        %v3704 = vmul.f32 %v3614, 1.442695
        %v3705 = vpow.pop %v3704
        %v3706 = vmul.f32 %v3615, 1.442695
        %v3707 = vpow.pop %v3706
        %v3708 = vmul.f32 %v3616, 1.442695
        %v3709 = vpow.pop %v3708
        %v3710 = vmul.f32 %v3617, 1.442695
        %v3711 = vpow.pop %v3710
        %v3712 = vmul.f32 %v3618, 1.442695
        %v3713 = vpow.pop %v3712
        %v3714 = vmul.f32 %v3619, 1.442695
        %v3715 = vpow.pop %v3714
        %v3716 = vmul.f32 %v3620, 1.442695
        %v3717 = vpow.pop %v3716
        %v3718 = vmul.f32 %v3621, 1.442695
        %v3719 = vpow.pop %v3718
        %v3720 = vmul.f32 %v3622, 1.442695
        %v3721 = vpow.pop %v3720
        %v3722 = vmul.f32 %v3623, 1.442695
        %v3723 = vpow.pop %v3722
        %v3724 = vmul.f32 %v3624, 1.442695
        %v3725 = vpow.pop %v3724
        %v3726 = vmul.f32 %v3625, 1.442695
        %v3727 = vpow.pop %v3726
        %v3728 = vmul.f32 %v3626, 1.442695
        %v3729 = vpow.pop %v3728
        %v3730 = vmul.f32 %v3627, 1.442695
        %v3731 = vpow.pop %v3730
        %v3732 = vmul.f32 %v3628, 1.442695
        %v3733 = vpow.pop %v3732
        %v3734 = vmul.f32 %v3629, 1.442695
        %v3735 = vpow.pop %v3734
        %v3736 = vmul.f32 %v3630, 1.442695
        %v3737 = vpow.pop %v3736
        %v3738 = vmul.f32 %v3631, 1.442695
        %v3739 = vpow.pop %v3738
        %v3740 = vmul.f32 %v3632, 1.442695
        %v3741 = vpow.pop %v3740
        %v3742 = vmul.f32 %v3633, 1.442695
        %v3743 = vpow.pop %v3742
        %v3744 = vmul.f32 %v3634, 1.442695
        %v3745 = vpow.pop %v3744
        %v3746 = vmul.f32 %v3635, 1.442695
        %v3747 = vpow.pop %v3746
        %v3748 = vmul.f32 %v3636, 1.442695
        %v3749 = vpow.pop %v3748
        %v3750 = vmul.f32 %v3637, 1.442695
        %v3751 = vpow.pop %v3750
        %v3752 = vmul.f32 %v3638, 1.442695
        %v3753 = vpow.pop %v3752
        %v3754 = vmul.f32 %v3639, 1.442695
        %v3755 = vpow.pop %v3754
        %v3756 = vmul.f32 %v3640, 1.442695
        %v3757 = vpow.pop %v3756
        %v3758 = vmul.f32 %v3641, 1.442695
        %v3759 = vpow.pop %v3758
        %v3760 = vmul.f32 %v3642, 1.442695
        %v3761 = vpow.pop %v3760
        %v3762 = vmul.f32 %v3643, 1.442695
        %v3763 = vpow.pop %v3762
        %v3764 = vmul.f32 %v3644, 1.442695
        %v3765 = vpow.pop %v3764
        %v3766 = vmul.f32 %v3645, 1.442695
        %v3767 = vpow.pop %v3766
        %v3768 = vmul.f32 %v3646, 1.442695
        %v3769 = vpow.pop %v3768
        %v3770 = vmul.f32 %v3647, 1.442695
        %v3771 = vpow.pop %v3770
        %v3772 = vmul.f32 %v3648, 1.442695
        %v3773 = vpow.pop %v3772
        %v3774 = vmul.f32 %v3649, 1.442695
        %v3775 = vpow.pop %v3774
        %v3776 = vmul.f32 %v3650, 1.442695
        %v3777 = vpow.pop %v3776
        %v3778 = vmul.f32 %v3651, 1.442695
        %v3779 = vpow.pop %v3778
        %v3780 = vsel %vm3395, %v3653, 0.0
        %3781 = vadd.xlane.f32.xlu0 %v3780
        %v3782 = vpop.xlane.xlu0 %3781
        %v3783 = vsel %vm3395, %v3655, 0.0
        %3784 = vadd.xlane.f32.xlu0 %v3783
        %v3785 = vpop.xlane.xlu0 %3784
        %v3786 = vsel %vm3395, %v3657, 0.0
        %3787 = vadd.xlane.f32.xlu0 %v3786
        %v3788 = vpop.xlane.xlu0 %3787
        %v3789 = vsel %vm3395, %v3659, 0.0
        %3790 = vadd.xlane.f32.xlu0 %v3789
        %v3791 = vpop.xlane.xlu0 %3790
        %v3792 = vsel %vm3395, %v3661, 0.0
        %3793 = vadd.xlane.f32.xlu0 %v3792
        %v3794 = vpop.xlane.xlu0 %3793
        %v3795 = vsel %vm3395, %v3663, 0.0
        %3796 = vadd.xlane.f32.xlu0 %v3795
        %v3797 = vpop.xlane.xlu0 %3796
        %v3798 = vsel %vm3395, %v3665, 0.0
        %3799 = vadd.xlane.f32.xlu0 %v3798
        %v3800 = vpop.xlane.xlu0 %3799
        %v3801 = vsel %vm3395, %v3667, 0.0
        %3802 = vadd.xlane.f32.xlu0 %v3801
        %v3803 = vpop.xlane.xlu0 %3802
        %v3804 = vsel %vm3395, %v3669, 0.0
        %3805 = vadd.xlane.f32.xlu0 %v3804
        %v3806 = vpop.xlane.xlu0 %3805
        %v3807 = vsel %vm3395, %v3671, 0.0
        %3808 = vadd.xlane.f32.xlu0 %v3807
        %v3809 = vpop.xlane.xlu0 %3808
        %v3810 = vsel %vm3395, %v3673, 0.0
        %3811 = vadd.xlane.f32.xlu0 %v3810
        %v3812 = vpop.xlane.xlu0 %3811
        %v3813 = vsel %vm3395, %v3675, 0.0
        %3814 = vadd.xlane.f32.xlu0 %v3813
        %v3815 = vpop.xlane.xlu0 %3814
        %v3816 = vsel %vm3395, %v3677, 0.0
        %3817 = vadd.xlane.f32.xlu0 %v3816
        %v3818 = vpop.xlane.xlu0 %3817
        %v3819 = vsel %vm3395, %v3679, 0.0
        %3820 = vadd.xlane.f32.xlu0 %v3819
        %v3821 = vpop.xlane.xlu0 %3820
        %v3822 = vsel %vm3395, %v3681, 0.0
        %3823 = vadd.xlane.f32.xlu0 %v3822
        %v3824 = vpop.xlane.xlu0 %3823
        %v3825 = vsel %vm3395, %v3683, 0.0
        %3826 = vadd.xlane.f32.xlu0 %v3825
        %v3827 = vpop.xlane.xlu0 %3826
        %v3828 = vsel %vm3395, %v3685, 0.0
        %3829 = vadd.xlane.f32.xlu0 %v3828
        %v3830 = vpop.xlane.xlu0 %3829
        %v3831 = vsel %vm3395, %v3687, 0.0
        %3832 = vadd.xlane.f32.xlu0 %v3831
        %v3833 = vpop.xlane.xlu0 %3832
        %v3834 = vsel %vm3395, %v3689, 0.0
        %3835 = vadd.xlane.f32.xlu0 %v3834
        %v3836 = vpop.xlane.xlu0 %3835
        %v3837 = vsel %vm3395, %v3691, 0.0
        %3838 = vadd.xlane.f32.xlu0 %v3837
        %v3839 = vpop.xlane.xlu0 %3838
        %v3840 = vsel %vm3395, %v3693, 0.0
        %3841 = vadd.xlane.f32.xlu0 %v3840
        %v3842 = vpop.xlane.xlu0 %3841
        %v3843 = vsel %vm3395, %v3695, 0.0
        %3844 = vadd.xlane.f32.xlu0 %v3843
        %v3845 = vpop.xlane.xlu0 %3844
        %v3846 = vsel %vm3395, %v3697, 0.0
        %3847 = vadd.xlane.f32.xlu0 %v3846
        %v3848 = vpop.xlane.xlu0 %3847
        %v3849 = vsel %vm3395, %v3699, 0.0
        %3850 = vadd.xlane.f32.xlu0 %v3849
        %v3851 = vpop.xlane.xlu0 %3850
        %v3852 = vsel %vm3395, %v3701, 0.0
        %3853 = vadd.xlane.f32.xlu0 %v3852
        %v3854 = vpop.xlane.xlu0 %3853
        %v3855 = vsel %vm3395, %v3703, 0.0
        %3856 = vadd.xlane.f32.xlu0 %v3855
        %v3857 = vpop.xlane.xlu0 %3856
        %v3858 = vsel %vm3395, %v3705, 0.0
        %3859 = vadd.xlane.f32.xlu0 %v3858
        %v3860 = vpop.xlane.xlu0 %3859
        %v3861 = vsel %vm3395, %v3707, 0.0
        %3862 = vadd.xlane.f32.xlu0 %v3861
        %v3863 = vpop.xlane.xlu0 %3862
        %v3864 = vsel %vm3395, %v3709, 0.0
        %3865 = vadd.xlane.f32.xlu0 %v3864
        %v3866 = vpop.xlane.xlu0 %3865
        %v3867 = vsel %vm3395, %v3711, 0.0
        %3868 = vadd.xlane.f32.xlu0 %v3867
        %v3869 = vpop.xlane.xlu0 %3868
        %v3870 = vsel %vm3395, %v3713, 0.0
        %3871 = vadd.xlane.f32.xlu0 %v3870
        %v3872 = vpop.xlane.xlu0 %3871
        %v3873 = vsel %vm3395, %v3715, 0.0
        %3874 = vadd.xlane.f32.xlu0 %v3873
        %v3875 = vpop.xlane.xlu0 %3874
        %v3876 = vsel %vm3395, %v3717, 0.0
        %3877 = vadd.xlane.f32.xlu0 %v3876
        %v3878 = vpop.xlane.xlu0 %3877
        %v3879 = vsel %vm3395, %v3719, 0.0
        %3880 = vadd.xlane.f32.xlu0 %v3879
        %v3881 = vpop.xlane.xlu0 %3880
        %v3882 = vsel %vm3395, %v3721, 0.0
        %3883 = vadd.xlane.f32.xlu0 %v3882
        %v3884 = vpop.xlane.xlu0 %3883
        %v3885 = vsel %vm3395, %v3723, 0.0
        %3886 = vadd.xlane.f32.xlu0 %v3885
        %v3887 = vpop.xlane.xlu0 %3886
        %v3888 = vsel %vm3395, %v3725, 0.0
        %3889 = vadd.xlane.f32.xlu0 %v3888
        %v3890 = vpop.xlane.xlu0 %3889
        %v3891 = vsel %vm3395, %v3727, 0.0
        %3892 = vadd.xlane.f32.xlu0 %v3891
        %v3893 = vpop.xlane.xlu0 %3892
        %v3894 = vsel %vm3395, %v3729, 0.0
        %3895 = vadd.xlane.f32.xlu0 %v3894
        %v3896 = vpop.xlane.xlu0 %3895
        %v3897 = vsel %vm3395, %v3731, 0.0
        %3898 = vadd.xlane.f32.xlu0 %v3897
        %v3899 = vpop.xlane.xlu0 %3898
        %v3900 = vsel %vm3395, %v3733, 0.0
        %3901 = vadd.xlane.f32.xlu0 %v3900
        %v3902 = vpop.xlane.xlu0 %3901
        %v3903 = vsel %vm3395, %v3735, 0.0
        %3904 = vadd.xlane.f32.xlu0 %v3903
        %v3905 = vpop.xlane.xlu0 %3904
        %v3906 = vsel %vm3395, %v3737, 0.0
        %3907 = vadd.xlane.f32.xlu0 %v3906
        %v3908 = vpop.xlane.xlu0 %3907
        %v3909 = vsel %vm3395, %v3739, 0.0
        %3910 = vadd.xlane.f32.xlu0 %v3909
        %v3911 = vpop.xlane.xlu0 %3910
        %v3912 = vsel %vm3395, %v3741, 0.0
        %3913 = vadd.xlane.f32.xlu0 %v3912
        %v3914 = vpop.xlane.xlu0 %3913
        %v3915 = vsel %vm3395, %v3743, 0.0
        %3916 = vadd.xlane.f32.xlu0 %v3915
        %v3917 = vpop.xlane.xlu0 %3916
        %v3918 = vsel %vm3395, %v3745, 0.0
        %3919 = vadd.xlane.f32.xlu0 %v3918
        %v3920 = vpop.xlane.xlu0 %3919
        %v3921 = vsel %vm3395, %v3747, 0.0
        %3922 = vadd.xlane.f32.xlu0 %v3921
        %v3923 = vpop.xlane.xlu0 %3922
        %v3924 = vsel %vm3395, %v3749, 0.0
        %3925 = vadd.xlane.f32.xlu0 %v3924
        %v3926 = vpop.xlane.xlu0 %3925
        %v3927 = vsel %vm3395, %v3751, 0.0
        %3928 = vadd.xlane.f32.xlu0 %v3927
        %v3929 = vpop.xlane.xlu0 %3928
        %v3930 = vsel %vm3395, %v3753, 0.0
        %3931 = vadd.xlane.f32.xlu0 %v3930
        %v3932 = vpop.xlane.xlu0 %3931
        %v3933 = vsel %vm3395, %v3755, 0.0
        %3934 = vadd.xlane.f32.xlu0 %v3933
        %v3935 = vpop.xlane.xlu0 %3934
        %v3936 = vsel %vm3395, %v3757, 0.0
        %3937 = vadd.xlane.f32.xlu0 %v3936
        %v3938 = vpop.xlane.xlu0 %3937
        %v3939 = vsel %vm3395, %v3759, 0.0
        %3940 = vadd.xlane.f32.xlu0 %v3939
        %v3941 = vpop.xlane.xlu0 %3940
        %v3942 = vsel %vm3395, %v3761, 0.0
        %3943 = vadd.xlane.f32.xlu0 %v3942
        %v3944 = vpop.xlane.xlu0 %3943
        %v3945 = vsel %vm3395, %v3763, 0.0
        %3946 = vadd.xlane.f32.xlu0 %v3945
        %v3947 = vpop.xlane.xlu0 %3946
        %v3948 = vsel %vm3395, %v3765, 0.0
        %3949 = vadd.xlane.f32.xlu0 %v3948
        %v3950 = vpop.xlane.xlu0 %3949
        %v3951 = vsel %vm3395, %v3767, 0.0
        %3952 = vadd.xlane.f32.xlu0 %v3951
        %v3953 = vpop.xlane.xlu0 %3952
        %v3954 = vsel %vm3395, %v3769, 0.0
        %3955 = vadd.xlane.f32.xlu0 %v3954
        %v3956 = vpop.xlane.xlu0 %3955
        %v3957 = vsel %vm3395, %v3771, 0.0
        %3958 = vadd.xlane.f32.xlu0 %v3957
        %v3959 = vpop.xlane.xlu0 %3958
        %v3960 = vsel %vm3395, %v3773, 0.0
        %3961 = vadd.xlane.f32.xlu0 %v3960
        %v3962 = vpop.xlane.xlu0 %3961
        %v3963 = vsel %vm3395, %v3775, 0.0
        %3964 = vadd.xlane.f32.xlu0 %v3963
        %v3965 = vpop.xlane.xlu0 %3964
        %v3966 = vsel %vm3395, %v3777, 0.0
        %3967 = vadd.xlane.f32.xlu0 %v3966
        %v3968 = vpop.xlane.xlu0 %3967
        %v3969 = vsel %vm3395, %v3779, 0.0
        %3970 = vadd.xlane.f32.xlu0 %v3969
        %v3971 = vpop.xlane.xlu0 %3970
        %v3972 = vrcp.pop %v3782
        %v3973 = vrcp.pop %v3785
        %v3974 = vrcp.pop %v3788
        %v3975 = vrcp.pop %v3791
        %v3976 = vrcp.pop %v3794
        %v3977 = vrcp.pop %v3797
        %v3978 = vrcp.pop %v3800
        %v3979 = vrcp.pop %v3803
        %v3980 = vrcp.pop %v3806
        %v3981 = vrcp.pop %v3809
        %v3982 = vrcp.pop %v3812
        %v3983 = vrcp.pop %v3815
        %v3984 = vrcp.pop %v3818
        %v3985 = vrcp.pop %v3821
        %v3986 = vrcp.pop %v3824
        %v3987 = vrcp.pop %v3827
        %v3988 = vrcp.pop %v3830
        %v3989 = vrcp.pop %v3833
        %v3990 = vrcp.pop %v3836
        %v3991 = vrcp.pop %v3839
        %v3992 = vrcp.pop %v3842
        %v3993 = vrcp.pop %v3845
        %v3994 = vrcp.pop %v3848
        %v3995 = vrcp.pop %v3851
        %v3996 = vrcp.pop %v3854
        %v3997 = vrcp.pop %v3857
        %v3998 = vrcp.pop %v3860
        %v3999 = vrcp.pop %v3863
        %v4000 = vrcp.pop %v3866
        %v4001 = vrcp.pop %v3869
        %v4002 = vrcp.pop %v3872
        %v4003 = vrcp.pop %v3875
        %v4004 = vrcp.pop %v3878
        %v4005 = vrcp.pop %v3881
        %v4006 = vrcp.pop %v3884
        %v4007 = vrcp.pop %v3887
        %v4008 = vrcp.pop %v3890
        %v4009 = vrcp.pop %v3893
        %v4010 = vrcp.pop %v3896
        %v4011 = vrcp.pop %v3899
        %v4012 = vrcp.pop %v3902
        %v4013 = vrcp.pop %v3905
        %v4014 = vrcp.pop %v3908
        %v4015 = vrcp.pop %v3911
        %v4016 = vrcp.pop %v3914
        %v4017 = vrcp.pop %v3917
        %v4018 = vrcp.pop %v3920
        %v4019 = vrcp.pop %v3923
        %v4020 = vrcp.pop %v3926
        %v4021 = vrcp.pop %v3929
        %v4022 = vrcp.pop %v3932
        %v4023 = vrcp.pop %v3935
        %v4024 = vrcp.pop %v3938
        %v4025 = vrcp.pop %v3941
        %v4026 = vrcp.pop %v3944
        %v4027 = vrcp.pop %v3947
        %v4028 = vrcp.pop %v3950
        %v4029 = vrcp.pop %v3953
        %v4030 = vrcp.pop %v3956
        %v4031 = vrcp.pop %v3959
        %v4032 = vrcp.pop %v3962
        %v4033 = vrcp.pop %v3965
        %v4034 = vrcp.pop %v3968
        %v4035 = vrcp.pop %v3971
        %v4036 = vmul.f32 %v3653, %v3972
        %v4037 = vmul.f32 %v3655, %v3973
        %v4038 = vmul.f32 %v3657, %v3974
        %v4039 = vmul.f32 %v3659, %v3975
        %v4040 = vmul.f32 %v3661, %v3976
        %v4041 = vmul.f32 %v3663, %v3977
        %v4042 = vmul.f32 %v3665, %v3978
        %v4043 = vmul.f32 %v3667, %v3979
        %v4044 = vmul.f32 %v3669, %v3980
        %v4045 = vmul.f32 %v3671, %v3981
        %v4046 = vmul.f32 %v3673, %v3982
        %v4047 = vmul.f32 %v3675, %v3983
        %v4048 = vmul.f32 %v3677, %v3984
        %v4049 = vmul.f32 %v3679, %v3985
        %v4050 = vmul.f32 %v3681, %v3986
        %v4051 = vmul.f32 %v3683, %v3987
        %v4052 = vmul.f32 %v3685, %v3988
        %v4053 = vmul.f32 %v3687, %v3989
        %v4054 = vmul.f32 %v3689, %v3990
        %v4055 = vmul.f32 %v3691, %v3991
        %v4056 = vmul.f32 %v3693, %v3992
        %v4057 = vmul.f32 %v3695, %v3993
        %v4058 = vmul.f32 %v3697, %v3994
        %v4059 = vmul.f32 %v3699, %v3995
        %v4060 = vmul.f32 %v3701, %v3996
        %v4061 = vmul.f32 %v3703, %v3997
        %v4062 = vmul.f32 %v3705, %v3998
        %v4063 = vmul.f32 %v3707, %v3999
        %v4064 = vmul.f32 %v3709, %v4000
        %v4065 = vmul.f32 %v3711, %v4001
        %v4066 = vmul.f32 %v3713, %v4002
        %v4067 = vmul.f32 %v3715, %v4003
        %v4068 = vmul.f32 %v3717, %v4004
        %v4069 = vmul.f32 %v3719, %v4005
        %v4070 = vmul.f32 %v3721, %v4006
        %v4071 = vmul.f32 %v3723, %v4007
        %v4072 = vmul.f32 %v3725, %v4008
        %v4073 = vmul.f32 %v3727, %v4009
        %v4074 = vmul.f32 %v3729, %v4010
        %v4075 = vmul.f32 %v3731, %v4011
        %v4076 = vmul.f32 %v3733, %v4012
        %v4077 = vmul.f32 %v3735, %v4013
        %v4078 = vmul.f32 %v3737, %v4014
        %v4079 = vmul.f32 %v3739, %v4015
        %v4080 = vmul.f32 %v3741, %v4016
        %v4081 = vmul.f32 %v3743, %v4017
        %v4082 = vmul.f32 %v3745, %v4018
        %v4083 = vmul.f32 %v3747, %v4019
        %v4084 = vmul.f32 %v3749, %v4020
        %v4085 = vmul.f32 %v3751, %v4021
        %v4086 = vmul.f32 %v3753, %v4022
        %v4087 = vmul.f32 %v3755, %v4023
        %v4088 = vmul.f32 %v3757, %v4024
        %v4089 = vmul.f32 %v3759, %v4025
        %v4090 = vmul.f32 %v3761, %v4026
        %v4091 = vmul.f32 %v3763, %v4027
        %v4092 = vmul.f32 %v3765, %v4028
        %v4093 = vmul.f32 %v3767, %v4029
        %v4094 = vmul.f32 %v3769, %v4030
        %v4095 = vmul.f32 %v3771, %v4031
        %v4096 = vmul.f32 %v3773, %v4032
        %v4097 = vmul.f32 %v3775, %v4033
        %v4098 = vmul.f32 %v3777, %v4034
        %v4099 = vmul.f32 %v3779, %v4035
        %v4100 = vpack.c.bf16 %v4036, %v4036
        %v4101 = vpack.c.bf16 %v4037, %v4037
        %v4102 = vpack.c.bf16 %v4038, %v4038
        %v4103 = vpack.c.bf16 %v4039, %v4039
        %v4104 = vpack.c.bf16 %v4040, %v4040
        %v4105 = vpack.c.bf16 %v4041, %v4041
        %v4106 = vpack.c.bf16 %v4042, %v4042
        %v4107 = vpack.c.bf16 %v4043, %v4043
        %v4108 = vpack.c.bf16 %v4044, %v4044
        %v4109 = vpack.c.bf16 %v4045, %v4045
        %v4110 = vpack.c.bf16 %v4046, %v4046
        %v4111 = vpack.c.bf16 %v4047, %v4047
        %v4112 = vpack.c.bf16 %v4048, %v4048
        %v4113 = vpack.c.bf16 %v4049, %v4049
        %v4114 = vpack.c.bf16 %v4050, %v4050
        %v4115 = vpack.c.bf16 %v4051, %v4051
        %v4116 = vpack.c.bf16 %v4052, %v4052
        %v4117 = vpack.c.bf16 %v4053, %v4053
        %v4118 = vpack.c.bf16 %v4054, %v4054
        %v4119 = vpack.c.bf16 %v4055, %v4055
        %v4120 = vpack.c.bf16 %v4056, %v4056
        %v4121 = vpack.c.bf16 %v4057, %v4057
        %v4122 = vpack.c.bf16 %v4058, %v4058
        %v4123 = vpack.c.bf16 %v4059, %v4059
        %v4124 = vpack.c.bf16 %v4060, %v4060
        %v4125 = vpack.c.bf16 %v4061, %v4061
        %v4126 = vpack.c.bf16 %v4062, %v4062
        %v4127 = vpack.c.bf16 %v4063, %v4063
        %v4128 = vpack.c.bf16 %v4064, %v4064
        %v4129 = vpack.c.bf16 %v4065, %v4065
        %v4130 = vpack.c.bf16 %v4066, %v4066
        %v4131 = vpack.c.bf16 %v4067, %v4067
        %v4132 = vpack.c.bf16 %v4068, %v4068
        %v4133 = vpack.c.bf16 %v4069, %v4069
        %v4134 = vpack.c.bf16 %v4070, %v4070
        %v4135 = vpack.c.bf16 %v4071, %v4071
        %v4136 = vpack.c.bf16 %v4072, %v4072
        %v4137 = vpack.c.bf16 %v4073, %v4073
        %v4138 = vpack.c.bf16 %v4074, %v4074
        %v4139 = vpack.c.bf16 %v4075, %v4075
        %v4140 = vpack.c.bf16 %v4076, %v4076
        %v4141 = vpack.c.bf16 %v4077, %v4077
        %v4142 = vpack.c.bf16 %v4078, %v4078
        %v4143 = vpack.c.bf16 %v4079, %v4079
        %v4144 = vpack.c.bf16 %v4080, %v4080
        %v4145 = vpack.c.bf16 %v4081, %v4081
        %v4146 = vpack.c.bf16 %v4082, %v4082
        %v4147 = vpack.c.bf16 %v4083, %v4083
        %v4148 = vpack.c.bf16 %v4084, %v4084
        %v4149 = vpack.c.bf16 %v4085, %v4085
        %v4150 = vpack.c.bf16 %v4086, %v4086
        %v4151 = vpack.c.bf16 %v4087, %v4087
        %v4152 = vpack.c.bf16 %v4088, %v4088
        %v4153 = vpack.c.bf16 %v4089, %v4089
        %v4154 = vpack.c.bf16 %v4090, %v4090
        %v4155 = vpack.c.bf16 %v4091, %v4091
        %v4156 = vpack.c.bf16 %v4092, %v4092
        %v4157 = vpack.c.bf16 %v4093, %v4093
        %v4158 = vpack.c.bf16 %v4094, %v4094
        %v4159 = vpack.c.bf16 %v4095, %v4095
        %v4160 = vpack.c.bf16 %v4096, %v4096
        %v4161 = vpack.c.bf16 %v4097, %v4097
        %v4162 = vpack.c.bf16 %v4098, %v4098
        %v4163 = vpack.c.bf16 %v4099, %v4099
        %v4165 = vsel %vm3395, %v4100, 0
        %vm4167 = vcmask 1043456
        %v4169 = vsel %vm4167, %v1761, 0
        %4171 = vmatpush.bf16.msra.mxu0 0
        %4172 = vmatpush.bf16.msra.mxu0 0
        %4173 = vmatpush.bf16.msra.mxu0 0
        %4174 = vmatpush.bf16.msra.mxu0 0
        %4175 = vmatpush.bf16.msra.mxu0 0
        %4176 = vmatpush.bf16.msra.mxu0 0
        %4177 = vmatpush.bf16.msra.mxu0 0
        %4178 = vmatpush.bf16.msra.mxu0 %v4169
        %4179 = vmatmul.bf16.gmra.mxu0 %v4165
        %v4180 = vpop.f32.mrf.mxu0
        %v4181 = vadd.f32 0.0, %v4180
        %v4182 = vpop.f32.mrf.mxu0
        %4183 = vdwg.mxu0
        %v4185 = vsel %vm3395, %v4101, 0
        %v4188 = vsel %vm4167, %v1985, 0
        %4190 = vmatpush.bf16.msra.mxu0 0
        %4191 = vmatpush.bf16.msra.mxu0 0
        %4192 = vmatpush.bf16.msra.mxu0 0
        %4193 = vmatpush.bf16.msra.mxu0 0
        %4194 = vmatpush.bf16.msra.mxu0 0
        %4195 = vmatpush.bf16.msra.mxu0 0
        %4196 = vmatpush.bf16.msra.mxu0 0
        %4197 = vmatpush.bf16.msra.mxu0 %v4188
        %4198 = vmatmul.bf16.gmra.mxu0 %v4185
        %v4199 = vpop.f32.mrf.mxu0
        %v4200 = vadd.f32 0.0, %v4199
        %v4201 = vpop.f32.mrf.mxu0
        %4202 = vdwg.mxu0
        %v4204 = vsel %vm3395, %v4102, 0
        %v4207 = vsel %vm4167, %v2017, 0
        %4209 = vmatpush.bf16.msra.mxu0 0
        %4210 = vmatpush.bf16.msra.mxu0 0
        %4211 = vmatpush.bf16.msra.mxu0 0
        %4212 = vmatpush.bf16.msra.mxu0 0
        %4213 = vmatpush.bf16.msra.mxu0 0
        %4214 = vmatpush.bf16.msra.mxu0 0
        %4215 = vmatpush.bf16.msra.mxu0 0
        %4216 = vmatpush.bf16.msra.mxu0 %v4207
        %4217 = vmatmul.bf16.gmra.mxu0 %v4204
        %v4218 = vpop.f32.mrf.mxu0
        %v4219 = vadd.f32 0.0, %v4218
        %v4220 = vpop.f32.mrf.mxu0
        %4221 = vdwg.mxu0
        %v4223 = vsel %vm3395, %v4103, 0
        %v4226 = vsel %vm4167, %v2049, 0
        %4228 = vmatpush.bf16.msra.mxu0 0
        %4229 = vmatpush.bf16.msra.mxu0 0
        %4230 = vmatpush.bf16.msra.mxu0 0
        %4231 = vmatpush.bf16.msra.mxu0 0
        %4232 = vmatpush.bf16.msra.mxu0 0
        %4233 = vmatpush.bf16.msra.mxu0 0
        %4234 = vmatpush.bf16.msra.mxu0 0
        %4235 = vmatpush.bf16.msra.mxu0 %v4226
        %4236 = vmatmul.bf16.gmra.mxu0 %v4223
        %v4237 = vpop.f32.mrf.mxu0
        %v4238 = vadd.f32 0.0, %v4237
        %v4239 = vpop.f32.mrf.mxu0
        %4240 = vdwg.mxu0
        %v4242 = vsel %vm3395, %v4104, 0
        %v4245 = vsel %vm4167, %v1763, 0
        %4247 = vmatpush.bf16.msra.mxu0 0
        %4248 = vmatpush.bf16.msra.mxu0 0
        %4249 = vmatpush.bf16.msra.mxu0 0
        %4250 = vmatpush.bf16.msra.mxu0 0
        %4251 = vmatpush.bf16.msra.mxu0 0
        %4252 = vmatpush.bf16.msra.mxu0 0
        %4253 = vmatpush.bf16.msra.mxu0 0
        %4254 = vmatpush.bf16.msra.mxu0 %v4245
        %4255 = vmatmul.bf16.gmra.mxu0 %v4242
        %v4256 = vpop.f32.mrf.mxu0
        %v4257 = vadd.f32 0.0, %v4256
        %v4258 = vpop.f32.mrf.mxu0
        %4259 = vdwg.mxu0
        %v4261 = vsel %vm3395, %v4105, 0
        %v4264 = vsel %vm4167, %v1987, 0
        %4266 = vmatpush.bf16.msra.mxu0 0
        %4267 = vmatpush.bf16.msra.mxu0 0
        %4268 = vmatpush.bf16.msra.mxu0 0
        %4269 = vmatpush.bf16.msra.mxu0 0
        %4270 = vmatpush.bf16.msra.mxu0 0
        %4271 = vmatpush.bf16.msra.mxu0 0
        %4272 = vmatpush.bf16.msra.mxu0 0
        %4273 = vmatpush.bf16.msra.mxu0 %v4264
        %4274 = vmatmul.bf16.gmra.mxu0 %v4261
        %v4275 = vpop.f32.mrf.mxu0
        %v4276 = vadd.f32 0.0, %v4275
        %v4277 = vpop.f32.mrf.mxu0
        %4278 = vdwg.mxu0
        %v4280 = vsel %vm3395, %v4106, 0
        %v4283 = vsel %vm4167, %v2019, 0
        %4285 = vmatpush.bf16.msra.mxu0 0
        %4286 = vmatpush.bf16.msra.mxu0 0
        %4287 = vmatpush.bf16.msra.mxu0 0
        %4288 = vmatpush.bf16.msra.mxu0 0
        %4289 = vmatpush.bf16.msra.mxu0 0
        %4290 = vmatpush.bf16.msra.mxu0 0
        %4291 = vmatpush.bf16.msra.mxu0 0
        %4292 = vmatpush.bf16.msra.mxu0 %v4283
        %4293 = vmatmul.bf16.gmra.mxu0 %v4280
        %v4294 = vpop.f32.mrf.mxu0
        %v4295 = vadd.f32 0.0, %v4294
        %v4296 = vpop.f32.mrf.mxu0
        %4297 = vdwg.mxu0
        %v4299 = vsel %vm3395, %v4107, 0
        %v4302 = vsel %vm4167, %v2051, 0
        %4304 = vmatpush.bf16.msra.mxu0 0
        %4305 = vmatpush.bf16.msra.mxu0 0
        %4306 = vmatpush.bf16.msra.mxu0 0
        %4307 = vmatpush.bf16.msra.mxu0 0
        %4308 = vmatpush.bf16.msra.mxu0 0
        %4309 = vmatpush.bf16.msra.mxu0 0
        %4310 = vmatpush.bf16.msra.mxu0 0
        %4311 = vmatpush.bf16.msra.mxu0 %v4302
        %4312 = vmatmul.bf16.gmra.mxu0 %v4299
        %v4313 = vpop.f32.mrf.mxu0
        %v4314 = vadd.f32 0.0, %v4313
        %v4315 = vpop.f32.mrf.mxu0
        %4316 = vdwg.mxu0
        %v4318 = vsel %vm3395, %v4108, 0
        %v4321 = vsel %vm4167, %v1765, 0
        %4323 = vmatpush.bf16.msra.mxu0 0
        %4324 = vmatpush.bf16.msra.mxu0 0
        %4325 = vmatpush.bf16.msra.mxu0 0
        %4326 = vmatpush.bf16.msra.mxu0 0
        %4327 = vmatpush.bf16.msra.mxu0 0
        %4328 = vmatpush.bf16.msra.mxu0 0
        %4329 = vmatpush.bf16.msra.mxu0 0
        %4330 = vmatpush.bf16.msra.mxu0 %v4321
        %4331 = vmatmul.bf16.gmra.mxu0 %v4318
        %v4332 = vpop.f32.mrf.mxu0
        %v4333 = vadd.f32 0.0, %v4332
        %v4334 = vpop.f32.mrf.mxu0
        %4335 = vdwg.mxu0
        %v4337 = vsel %vm3395, %v4109, 0
        %v4340 = vsel %vm4167, %v1989, 0
        %4342 = vmatpush.bf16.msra.mxu0 0
        %4343 = vmatpush.bf16.msra.mxu0 0
        %4344 = vmatpush.bf16.msra.mxu0 0
        %4345 = vmatpush.bf16.msra.mxu0 0
        %4346 = vmatpush.bf16.msra.mxu0 0
        %4347 = vmatpush.bf16.msra.mxu0 0
        %4348 = vmatpush.bf16.msra.mxu0 0
        %4349 = vmatpush.bf16.msra.mxu0 %v4340
        %4350 = vmatmul.bf16.gmra.mxu0 %v4337
        %v4351 = vpop.f32.mrf.mxu0
        %v4352 = vadd.f32 0.0, %v4351
        %v4353 = vpop.f32.mrf.mxu0
        %4354 = vdwg.mxu0
        %v4356 = vsel %vm3395, %v4110, 0
        %v4359 = vsel %vm4167, %v2021, 0
        %4361 = vmatpush.bf16.msra.mxu0 0
        %4362 = vmatpush.bf16.msra.mxu0 0
        %4363 = vmatpush.bf16.msra.mxu0 0
        %4364 = vmatpush.bf16.msra.mxu0 0
        %4365 = vmatpush.bf16.msra.mxu0 0
        %4366 = vmatpush.bf16.msra.mxu0 0
        %4367 = vmatpush.bf16.msra.mxu0 0
        %4368 = vmatpush.bf16.msra.mxu0 %v4359
        %4369 = vmatmul.bf16.gmra.mxu0 %v4356
        %v4370 = vpop.f32.mrf.mxu0
        %v4371 = vadd.f32 0.0, %v4370
        %v4372 = vpop.f32.mrf.mxu0
        %4373 = vdwg.mxu0
        %v4375 = vsel %vm3395, %v4111, 0
        %v4378 = vsel %vm4167, %v2053, 0
        %4380 = vmatpush.bf16.msra.mxu0 0
        %4381 = vmatpush.bf16.msra.mxu0 0
        %4382 = vmatpush.bf16.msra.mxu0 0
        %4383 = vmatpush.bf16.msra.mxu0 0
        %4384 = vmatpush.bf16.msra.mxu0 0
        %4385 = vmatpush.bf16.msra.mxu0 0
        %4386 = vmatpush.bf16.msra.mxu0 0
        %4387 = vmatpush.bf16.msra.mxu0 %v4378
        %4388 = vmatmul.bf16.gmra.mxu0 %v4375
        %v4389 = vpop.f32.mrf.mxu0
        %v4390 = vadd.f32 0.0, %v4389
        %v4391 = vpop.f32.mrf.mxu0
        %4392 = vdwg.mxu0
        %v4394 = vsel %vm3395, %v4112, 0
        %v4397 = vsel %vm4167, %v1767, 0
        %4399 = vmatpush.bf16.msra.mxu0 0
        %4400 = vmatpush.bf16.msra.mxu0 0
        %4401 = vmatpush.bf16.msra.mxu0 0
        %4402 = vmatpush.bf16.msra.mxu0 0
        %4403 = vmatpush.bf16.msra.mxu0 0
        %4404 = vmatpush.bf16.msra.mxu0 0
        %4405 = vmatpush.bf16.msra.mxu0 0
        %4406 = vmatpush.bf16.msra.mxu0 %v4397
        %4407 = vmatmul.bf16.gmra.mxu0 %v4394
        %v4408 = vpop.f32.mrf.mxu0
        %v4409 = vadd.f32 0.0, %v4408
        %v4410 = vpop.f32.mrf.mxu0
        %4411 = vdwg.mxu0
        %v4413 = vsel %vm3395, %v4113, 0
        %v4416 = vsel %vm4167, %v1991, 0
        %4418 = vmatpush.bf16.msra.mxu0 0
        %4419 = vmatpush.bf16.msra.mxu0 0
        %4420 = vmatpush.bf16.msra.mxu0 0
        %4421 = vmatpush.bf16.msra.mxu0 0
        %4422 = vmatpush.bf16.msra.mxu0 0
        %4423 = vmatpush.bf16.msra.mxu0 0
        %4424 = vmatpush.bf16.msra.mxu0 0
        %4425 = vmatpush.bf16.msra.mxu0 %v4416
        %4426 = vmatmul.bf16.gmra.mxu0 %v4413
        %v4427 = vpop.f32.mrf.mxu0
        %v4428 = vadd.f32 0.0, %v4427
        %v4429 = vpop.f32.mrf.mxu0
        %4430 = vdwg.mxu0
        %v4432 = vsel %vm3395, %v4114, 0
        %v4435 = vsel %vm4167, %v2023, 0
        %4437 = vmatpush.bf16.msra.mxu0 0
        %4438 = vmatpush.bf16.msra.mxu0 0
        %4439 = vmatpush.bf16.msra.mxu0 0
        %4440 = vmatpush.bf16.msra.mxu0 0
        %4441 = vmatpush.bf16.msra.mxu0 0
        %4442 = vmatpush.bf16.msra.mxu0 0
        %4443 = vmatpush.bf16.msra.mxu0 0
        %4444 = vmatpush.bf16.msra.mxu0 %v4435
        %4445 = vmatmul.bf16.gmra.mxu0 %v4432
        %v4446 = vpop.f32.mrf.mxu0
        %v4447 = vadd.f32 0.0, %v4446
        %v4448 = vpop.f32.mrf.mxu0
        %4449 = vdwg.mxu0
        %v4451 = vsel %vm3395, %v4115, 0
        %v4454 = vsel %vm4167, %v2055, 0
        %4456 = vmatpush.bf16.msra.mxu0 0
        %4457 = vmatpush.bf16.msra.mxu0 0
        %4458 = vmatpush.bf16.msra.mxu0 0
        %4459 = vmatpush.bf16.msra.mxu0 0
        %4460 = vmatpush.bf16.msra.mxu0 0
        %4461 = vmatpush.bf16.msra.mxu0 0
        %4462 = vmatpush.bf16.msra.mxu0 0
        %4463 = vmatpush.bf16.msra.mxu0 %v4454
        %4464 = vmatmul.bf16.gmra.mxu0 %v4451
        %v4465 = vpop.f32.mrf.mxu0
        %v4466 = vadd.f32 0.0, %v4465
        %v4467 = vpop.f32.mrf.mxu0
        %4468 = vdwg.mxu0
        %v4470 = vsel %vm3395, %v4116, 0
        %v4473 = vsel %vm4167, %v1769, 0
        %4475 = vmatpush.bf16.msra.mxu0 0
        %4476 = vmatpush.bf16.msra.mxu0 0
        %4477 = vmatpush.bf16.msra.mxu0 0
        %4478 = vmatpush.bf16.msra.mxu0 0
        %4479 = vmatpush.bf16.msra.mxu0 0
        %4480 = vmatpush.bf16.msra.mxu0 0
        %4481 = vmatpush.bf16.msra.mxu0 0
        %4482 = vmatpush.bf16.msra.mxu0 %v4473
        %4483 = vmatmul.bf16.gmra.mxu0 %v4470
        %v4484 = vpop.f32.mrf.mxu0
        %v4485 = vadd.f32 0.0, %v4484
        %v4486 = vpop.f32.mrf.mxu0
        %4487 = vdwg.mxu0
        %v4489 = vsel %vm3395, %v4117, 0
        %v4492 = vsel %vm4167, %v1993, 0
        %4494 = vmatpush.bf16.msra.mxu0 0
        %4495 = vmatpush.bf16.msra.mxu0 0
        %4496 = vmatpush.bf16.msra.mxu0 0
        %4497 = vmatpush.bf16.msra.mxu0 0
        %4498 = vmatpush.bf16.msra.mxu0 0
        %4499 = vmatpush.bf16.msra.mxu0 0
        %4500 = vmatpush.bf16.msra.mxu0 0
        %4501 = vmatpush.bf16.msra.mxu0 %v4492
        %4502 = vmatmul.bf16.gmra.mxu0 %v4489
        %v4503 = vpop.f32.mrf.mxu0
        %v4504 = vadd.f32 0.0, %v4503
        %v4505 = vpop.f32.mrf.mxu0
        %4506 = vdwg.mxu0
        %v4508 = vsel %vm3395, %v4118, 0
        %v4511 = vsel %vm4167, %v2025, 0
        %4513 = vmatpush.bf16.msra.mxu0 0
        %4514 = vmatpush.bf16.msra.mxu0 0
        %4515 = vmatpush.bf16.msra.mxu0 0
        %4516 = vmatpush.bf16.msra.mxu0 0
        %4517 = vmatpush.bf16.msra.mxu0 0
        %4518 = vmatpush.bf16.msra.mxu0 0
        %4519 = vmatpush.bf16.msra.mxu0 0
        %4520 = vmatpush.bf16.msra.mxu0 %v4511
        %4521 = vmatmul.bf16.gmra.mxu0 %v4508
        %v4522 = vpop.f32.mrf.mxu0
        %v4523 = vadd.f32 0.0, %v4522
        %v4524 = vpop.f32.mrf.mxu0
        %4525 = vdwg.mxu0
        %v4527 = vsel %vm3395, %v4119, 0
        %v4530 = vsel %vm4167, %v2057, 0
        %4532 = vmatpush.bf16.msra.mxu0 0
        %4533 = vmatpush.bf16.msra.mxu0 0
        %4534 = vmatpush.bf16.msra.mxu0 0
        %4535 = vmatpush.bf16.msra.mxu0 0
        %4536 = vmatpush.bf16.msra.mxu0 0
        %4537 = vmatpush.bf16.msra.mxu0 0
        %4538 = vmatpush.bf16.msra.mxu0 0
        %4539 = vmatpush.bf16.msra.mxu0 %v4530
        %4540 = vmatmul.bf16.gmra.mxu0 %v4527
        %v4541 = vpop.f32.mrf.mxu0
        %v4542 = vadd.f32 0.0, %v4541
        %v4543 = vpop.f32.mrf.mxu0
        %4544 = vdwg.mxu0
        %v4546 = vsel %vm3395, %v4120, 0
        %v4549 = vsel %vm4167, %v1771, 0
        %4551 = vmatpush.bf16.msra.mxu0 0
        %4552 = vmatpush.bf16.msra.mxu0 0
        %4553 = vmatpush.bf16.msra.mxu0 0
        %4554 = vmatpush.bf16.msra.mxu0 0
        %4555 = vmatpush.bf16.msra.mxu0 0
        %4556 = vmatpush.bf16.msra.mxu0 0
        %4557 = vmatpush.bf16.msra.mxu0 0
        %4558 = vmatpush.bf16.msra.mxu0 %v4549
        %4559 = vmatmul.bf16.gmra.mxu0 %v4546
        %v4560 = vpop.f32.mrf.mxu0
        %v4561 = vadd.f32 0.0, %v4560
        %v4562 = vpop.f32.mrf.mxu0
        %4563 = vdwg.mxu0
        %v4565 = vsel %vm3395, %v4121, 0
        %v4568 = vsel %vm4167, %v1995, 0
        %4570 = vmatpush.bf16.msra.mxu0 0
        %4571 = vmatpush.bf16.msra.mxu0 0
        %4572 = vmatpush.bf16.msra.mxu0 0
        %4573 = vmatpush.bf16.msra.mxu0 0
        %4574 = vmatpush.bf16.msra.mxu0 0
        %4575 = vmatpush.bf16.msra.mxu0 0
        %4576 = vmatpush.bf16.msra.mxu0 0
        %4577 = vmatpush.bf16.msra.mxu0 %v4568
        %4578 = vmatmul.bf16.gmra.mxu0 %v4565
        %v4579 = vpop.f32.mrf.mxu0
        %v4580 = vadd.f32 0.0, %v4579
        %v4581 = vpop.f32.mrf.mxu0
        %4582 = vdwg.mxu0
        %v4584 = vsel %vm3395, %v4122, 0
        %v4587 = vsel %vm4167, %v2027, 0
        %4589 = vmatpush.bf16.msra.mxu0 0
        %4590 = vmatpush.bf16.msra.mxu0 0
        %4591 = vmatpush.bf16.msra.mxu0 0
        %4592 = vmatpush.bf16.msra.mxu0 0
        %4593 = vmatpush.bf16.msra.mxu0 0
        %4594 = vmatpush.bf16.msra.mxu0 0
        %4595 = vmatpush.bf16.msra.mxu0 0
        %4596 = vmatpush.bf16.msra.mxu0 %v4587
        %4597 = vmatmul.bf16.gmra.mxu0 %v4584
        %v4598 = vpop.f32.mrf.mxu0
        %v4599 = vadd.f32 0.0, %v4598
        %v4600 = vpop.f32.mrf.mxu0
        %4601 = vdwg.mxu0
        %v4603 = vsel %vm3395, %v4123, 0
        %v4606 = vsel %vm4167, %v2059, 0
        %4608 = vmatpush.bf16.msra.mxu0 0
        %4609 = vmatpush.bf16.msra.mxu0 0
        %4610 = vmatpush.bf16.msra.mxu0 0
        %4611 = vmatpush.bf16.msra.mxu0 0
        %4612 = vmatpush.bf16.msra.mxu0 0
        %4613 = vmatpush.bf16.msra.mxu0 0
        %4614 = vmatpush.bf16.msra.mxu0 0
        %4615 = vmatpush.bf16.msra.mxu0 %v4606
        %4616 = vmatmul.bf16.gmra.mxu0 %v4603
        %v4617 = vpop.f32.mrf.mxu0
        %v4618 = vadd.f32 0.0, %v4617
        %v4619 = vpop.f32.mrf.mxu0
        %4620 = vdwg.mxu0
        %v4622 = vsel %vm3395, %v4124, 0
        %v4625 = vsel %vm4167, %v1773, 0
        %4627 = vmatpush.bf16.msra.mxu0 0
        %4628 = vmatpush.bf16.msra.mxu0 0
        %4629 = vmatpush.bf16.msra.mxu0 0
        %4630 = vmatpush.bf16.msra.mxu0 0
        %4631 = vmatpush.bf16.msra.mxu0 0
        %4632 = vmatpush.bf16.msra.mxu0 0
        %4633 = vmatpush.bf16.msra.mxu0 0
        %4634 = vmatpush.bf16.msra.mxu0 %v4625
        %4635 = vmatmul.bf16.gmra.mxu0 %v4622
        %v4636 = vpop.f32.mrf.mxu0
        %v4637 = vadd.f32 0.0, %v4636
        %v4638 = vpop.f32.mrf.mxu0
        %4639 = vdwg.mxu0
        %v4641 = vsel %vm3395, %v4125, 0
        %v4644 = vsel %vm4167, %v1997, 0
        %4646 = vmatpush.bf16.msra.mxu0 0
        %4647 = vmatpush.bf16.msra.mxu0 0
        %4648 = vmatpush.bf16.msra.mxu0 0
        %4649 = vmatpush.bf16.msra.mxu0 0
        %4650 = vmatpush.bf16.msra.mxu0 0
        %4651 = vmatpush.bf16.msra.mxu0 0
        %4652 = vmatpush.bf16.msra.mxu0 0
        %4653 = vmatpush.bf16.msra.mxu0 %v4644
        %4654 = vmatmul.bf16.gmra.mxu0 %v4641
        %v4655 = vpop.f32.mrf.mxu0
        %v4656 = vadd.f32 0.0, %v4655
        %v4657 = vpop.f32.mrf.mxu0
        %4658 = vdwg.mxu0
        %v4660 = vsel %vm3395, %v4126, 0
        %v4663 = vsel %vm4167, %v2029, 0
        %4665 = vmatpush.bf16.msra.mxu0 0
        %4666 = vmatpush.bf16.msra.mxu0 0
        %4667 = vmatpush.bf16.msra.mxu0 0
        %4668 = vmatpush.bf16.msra.mxu0 0
        %4669 = vmatpush.bf16.msra.mxu0 0
        %4670 = vmatpush.bf16.msra.mxu0 0
        %4671 = vmatpush.bf16.msra.mxu0 0
        %4672 = vmatpush.bf16.msra.mxu0 %v4663
        %4673 = vmatmul.bf16.gmra.mxu0 %v4660
        %v4674 = vpop.f32.mrf.mxu0
        %v4675 = vadd.f32 0.0, %v4674
        %v4676 = vpop.f32.mrf.mxu0
        %4677 = vdwg.mxu0
        %v4679 = vsel %vm3395, %v4127, 0
        %v4682 = vsel %vm4167, %v2061, 0
        %4684 = vmatpush.bf16.msra.mxu0 0
        %4685 = vmatpush.bf16.msra.mxu0 0
        %4686 = vmatpush.bf16.msra.mxu0 0
        %4687 = vmatpush.bf16.msra.mxu0 0
        %4688 = vmatpush.bf16.msra.mxu0 0
        %4689 = vmatpush.bf16.msra.mxu0 0
        %4690 = vmatpush.bf16.msra.mxu0 0
        %4691 = vmatpush.bf16.msra.mxu0 %v4682
        %4692 = vmatmul.bf16.gmra.mxu0 %v4679
        %v4693 = vpop.f32.mrf.mxu0
        %v4694 = vadd.f32 0.0, %v4693
        %v4695 = vpop.f32.mrf.mxu0
        %4696 = vdwg.mxu0
        %v4698 = vsel %vm3395, %v4128, 0
        %v4701 = vsel %vm4167, %v1775, 0
        %4703 = vmatpush.bf16.msra.mxu0 0
        %4704 = vmatpush.bf16.msra.mxu0 0
        %4705 = vmatpush.bf16.msra.mxu0 0
        %4706 = vmatpush.bf16.msra.mxu0 0
        %4707 = vmatpush.bf16.msra.mxu0 0
        %4708 = vmatpush.bf16.msra.mxu0 0
        %4709 = vmatpush.bf16.msra.mxu0 0
        %4710 = vmatpush.bf16.msra.mxu0 %v4701
        %4711 = vmatmul.bf16.gmra.mxu0 %v4698
        %v4712 = vpop.f32.mrf.mxu0
        %v4713 = vadd.f32 0.0, %v4712
        %v4714 = vpop.f32.mrf.mxu0
        %4715 = vdwg.mxu0
        %v4717 = vsel %vm3395, %v4129, 0
        %v4720 = vsel %vm4167, %v1999, 0
        %4722 = vmatpush.bf16.msra.mxu0 0
        %4723 = vmatpush.bf16.msra.mxu0 0
        %4724 = vmatpush.bf16.msra.mxu0 0
        %4725 = vmatpush.bf16.msra.mxu0 0
        %4726 = vmatpush.bf16.msra.mxu0 0
        %4727 = vmatpush.bf16.msra.mxu0 0
        %4728 = vmatpush.bf16.msra.mxu0 0
        %4729 = vmatpush.bf16.msra.mxu0 %v4720
        %4730 = vmatmul.bf16.gmra.mxu0 %v4717
        %v4731 = vpop.f32.mrf.mxu0
        %v4732 = vadd.f32 0.0, %v4731
        %v4733 = vpop.f32.mrf.mxu0
        %4734 = vdwg.mxu0
        %v4736 = vsel %vm3395, %v4130, 0
        %v4739 = vsel %vm4167, %v2031, 0
        %4741 = vmatpush.bf16.msra.mxu0 0
        %4742 = vmatpush.bf16.msra.mxu0 0
        %4743 = vmatpush.bf16.msra.mxu0 0
        %4744 = vmatpush.bf16.msra.mxu0 0
        %4745 = vmatpush.bf16.msra.mxu0 0
        %4746 = vmatpush.bf16.msra.mxu0 0
        %4747 = vmatpush.bf16.msra.mxu0 0
        %4748 = vmatpush.bf16.msra.mxu0 %v4739
        %4749 = vmatmul.bf16.gmra.mxu0 %v4736
        %v4750 = vpop.f32.mrf.mxu0
        %v4751 = vadd.f32 0.0, %v4750
        %v4752 = vpop.f32.mrf.mxu0
        %4753 = vdwg.mxu0
        %v4755 = vsel %vm3395, %v4131, 0
        %v4758 = vsel %vm4167, %v2063, 0
        %4760 = vmatpush.bf16.msra.mxu0 0
        %4761 = vmatpush.bf16.msra.mxu0 0
        %4762 = vmatpush.bf16.msra.mxu0 0
        %4763 = vmatpush.bf16.msra.mxu0 0
        %4764 = vmatpush.bf16.msra.mxu0 0
        %4765 = vmatpush.bf16.msra.mxu0 0
        %4766 = vmatpush.bf16.msra.mxu0 0
        %4767 = vmatpush.bf16.msra.mxu0 %v4758
        %4768 = vmatmul.bf16.gmra.mxu0 %v4755
        %v4769 = vpop.f32.mrf.mxu0
        %v4770 = vadd.f32 0.0, %v4769
        %v4771 = vpop.f32.mrf.mxu0
        %4772 = vdwg.mxu0
        %v4774 = vsel %vm3395, %v4132, 0
        %v4777 = vsel %vm4167, %v1777, 0
        %4779 = vmatpush.bf16.msra.mxu0 0
        %4780 = vmatpush.bf16.msra.mxu0 0
        %4781 = vmatpush.bf16.msra.mxu0 0
        %4782 = vmatpush.bf16.msra.mxu0 0
        %4783 = vmatpush.bf16.msra.mxu0 0
        %4784 = vmatpush.bf16.msra.mxu0 0
        %4785 = vmatpush.bf16.msra.mxu0 0
        %4786 = vmatpush.bf16.msra.mxu0 %v4777
        %4787 = vmatmul.bf16.gmra.mxu0 %v4774
        %v4788 = vpop.f32.mrf.mxu0
        %v4789 = vadd.f32 0.0, %v4788
        %v4790 = vpop.f32.mrf.mxu0
        %4791 = vdwg.mxu0
        %v4793 = vsel %vm3395, %v4133, 0
        %v4796 = vsel %vm4167, %v2001, 0
        %4798 = vmatpush.bf16.msra.mxu0 0
        %4799 = vmatpush.bf16.msra.mxu0 0
        %4800 = vmatpush.bf16.msra.mxu0 0
        %4801 = vmatpush.bf16.msra.mxu0 0
        %4802 = vmatpush.bf16.msra.mxu0 0
        %4803 = vmatpush.bf16.msra.mxu0 0
        %4804 = vmatpush.bf16.msra.mxu0 0
        %4805 = vmatpush.bf16.msra.mxu0 %v4796
        %4806 = vmatmul.bf16.gmra.mxu0 %v4793
        %v4807 = vpop.f32.mrf.mxu0
        %v4808 = vadd.f32 0.0, %v4807
        %v4809 = vpop.f32.mrf.mxu0
        %4810 = vdwg.mxu0
        %v4812 = vsel %vm3395, %v4134, 0
        %v4815 = vsel %vm4167, %v2033, 0
        %4817 = vmatpush.bf16.msra.mxu0 0
        %4818 = vmatpush.bf16.msra.mxu0 0
        %4819 = vmatpush.bf16.msra.mxu0 0
        %4820 = vmatpush.bf16.msra.mxu0 0
        %4821 = vmatpush.bf16.msra.mxu0 0
        %4822 = vmatpush.bf16.msra.mxu0 0
        %4823 = vmatpush.bf16.msra.mxu0 0
        %4824 = vmatpush.bf16.msra.mxu0 %v4815
        %4825 = vmatmul.bf16.gmra.mxu0 %v4812
        %v4826 = vpop.f32.mrf.mxu0
        %v4827 = vadd.f32 0.0, %v4826
        %v4828 = vpop.f32.mrf.mxu0
        %4829 = vdwg.mxu0
        %v4831 = vsel %vm3395, %v4135, 0
        %v4834 = vsel %vm4167, %v2065, 0
        %4836 = vmatpush.bf16.msra.mxu0 0
        %4837 = vmatpush.bf16.msra.mxu0 0
        %4838 = vmatpush.bf16.msra.mxu0 0
        %4839 = vmatpush.bf16.msra.mxu0 0
        %4840 = vmatpush.bf16.msra.mxu0 0
        %4841 = vmatpush.bf16.msra.mxu0 0
        %4842 = vmatpush.bf16.msra.mxu0 0
        %4843 = vmatpush.bf16.msra.mxu0 %v4834
        %4844 = vmatmul.bf16.gmra.mxu0 %v4831
        %v4845 = vpop.f32.mrf.mxu0
        %v4846 = vadd.f32 0.0, %v4845
        %v4847 = vpop.f32.mrf.mxu0
        %4848 = vdwg.mxu0
        %v4850 = vsel %vm3395, %v4136, 0
        %v4853 = vsel %vm4167, %v1779, 0
        %4855 = vmatpush.bf16.msra.mxu0 0
        %4856 = vmatpush.bf16.msra.mxu0 0
        %4857 = vmatpush.bf16.msra.mxu0 0
        %4858 = vmatpush.bf16.msra.mxu0 0
        %4859 = vmatpush.bf16.msra.mxu0 0
        %4860 = vmatpush.bf16.msra.mxu0 0
        %4861 = vmatpush.bf16.msra.mxu0 0
        %4862 = vmatpush.bf16.msra.mxu0 %v4853
        %4863 = vmatmul.bf16.gmra.mxu0 %v4850
        %v4864 = vpop.f32.mrf.mxu0
        %v4865 = vadd.f32 0.0, %v4864
        %v4866 = vpop.f32.mrf.mxu0
        %4867 = vdwg.mxu0
        %v4869 = vsel %vm3395, %v4137, 0
        %v4872 = vsel %vm4167, %v2003, 0
        %4874 = vmatpush.bf16.msra.mxu0 0
        %4875 = vmatpush.bf16.msra.mxu0 0
        %4876 = vmatpush.bf16.msra.mxu0 0
        %4877 = vmatpush.bf16.msra.mxu0 0
        %4878 = vmatpush.bf16.msra.mxu0 0
        %4879 = vmatpush.bf16.msra.mxu0 0
        %4880 = vmatpush.bf16.msra.mxu0 0
        %4881 = vmatpush.bf16.msra.mxu0 %v4872
        %4882 = vmatmul.bf16.gmra.mxu0 %v4869
        %v4883 = vpop.f32.mrf.mxu0
        %v4884 = vadd.f32 0.0, %v4883
        %v4885 = vpop.f32.mrf.mxu0
        %4886 = vdwg.mxu0
        %v4888 = vsel %vm3395, %v4138, 0
        %v4891 = vsel %vm4167, %v2035, 0
        %4893 = vmatpush.bf16.msra.mxu0 0
        %4894 = vmatpush.bf16.msra.mxu0 0
        %4895 = vmatpush.bf16.msra.mxu0 0
        %4896 = vmatpush.bf16.msra.mxu0 0
        %4897 = vmatpush.bf16.msra.mxu0 0
        %4898 = vmatpush.bf16.msra.mxu0 0
        %4899 = vmatpush.bf16.msra.mxu0 0
        %4900 = vmatpush.bf16.msra.mxu0 %v4891
        %4901 = vmatmul.bf16.gmra.mxu0 %v4888
        %v4902 = vpop.f32.mrf.mxu0
        %v4903 = vadd.f32 0.0, %v4902
        %v4904 = vpop.f32.mrf.mxu0
        %4905 = vdwg.mxu0
        %v4907 = vsel %vm3395, %v4139, 0
        %v4910 = vsel %vm4167, %v2067, 0
        %4912 = vmatpush.bf16.msra.mxu0 0
        %4913 = vmatpush.bf16.msra.mxu0 0
        %4914 = vmatpush.bf16.msra.mxu0 0
        %4915 = vmatpush.bf16.msra.mxu0 0
        %4916 = vmatpush.bf16.msra.mxu0 0
        %4917 = vmatpush.bf16.msra.mxu0 0
        %4918 = vmatpush.bf16.msra.mxu0 0
        %4919 = vmatpush.bf16.msra.mxu0 %v4910
        %4920 = vmatmul.bf16.gmra.mxu0 %v4907
        %v4921 = vpop.f32.mrf.mxu0
        %v4922 = vadd.f32 0.0, %v4921
        %v4923 = vpop.f32.mrf.mxu0
        %4924 = vdwg.mxu0
        %v4926 = vsel %vm3395, %v4140, 0
        %v4929 = vsel %vm4167, %v1781, 0
        %4931 = vmatpush.bf16.msra.mxu0 0
        %4932 = vmatpush.bf16.msra.mxu0 0
        %4933 = vmatpush.bf16.msra.mxu0 0
        %4934 = vmatpush.bf16.msra.mxu0 0
        %4935 = vmatpush.bf16.msra.mxu0 0
        %4936 = vmatpush.bf16.msra.mxu0 0
        %4937 = vmatpush.bf16.msra.mxu0 0
        %4938 = vmatpush.bf16.msra.mxu0 %v4929
        %4939 = vmatmul.bf16.gmra.mxu0 %v4926
        %v4940 = vpop.f32.mrf.mxu0
        %v4941 = vadd.f32 0.0, %v4940
        %v4942 = vpop.f32.mrf.mxu0
        %4943 = vdwg.mxu0
        %v4945 = vsel %vm3395, %v4141, 0
        %v4948 = vsel %vm4167, %v2005, 0
        %4950 = vmatpush.bf16.msra.mxu0 0
        %4951 = vmatpush.bf16.msra.mxu0 0
        %4952 = vmatpush.bf16.msra.mxu0 0
        %4953 = vmatpush.bf16.msra.mxu0 0
        %4954 = vmatpush.bf16.msra.mxu0 0
        %4955 = vmatpush.bf16.msra.mxu0 0
        %4956 = vmatpush.bf16.msra.mxu0 0
        %4957 = vmatpush.bf16.msra.mxu0 %v4948
        %4958 = vmatmul.bf16.gmra.mxu0 %v4945
        %v4959 = vpop.f32.mrf.mxu0
        %v4960 = vadd.f32 0.0, %v4959
        %v4961 = vpop.f32.mrf.mxu0
        %4962 = vdwg.mxu0
        %v4964 = vsel %vm3395, %v4142, 0
        %v4967 = vsel %vm4167, %v2037, 0
        %4969 = vmatpush.bf16.msra.mxu0 0
        %4970 = vmatpush.bf16.msra.mxu0 0
        %4971 = vmatpush.bf16.msra.mxu0 0
        %4972 = vmatpush.bf16.msra.mxu0 0
        %4973 = vmatpush.bf16.msra.mxu0 0
        %4974 = vmatpush.bf16.msra.mxu0 0
        %4975 = vmatpush.bf16.msra.mxu0 0
        %4976 = vmatpush.bf16.msra.mxu0 %v4967
        %4977 = vmatmul.bf16.gmra.mxu0 %v4964
        %v4978 = vpop.f32.mrf.mxu0
        %v4979 = vadd.f32 0.0, %v4978
        %v4980 = vpop.f32.mrf.mxu0
        %4981 = vdwg.mxu0
        %v4983 = vsel %vm3395, %v4143, 0
        %v4986 = vsel %vm4167, %v2069, 0
        %4988 = vmatpush.bf16.msra.mxu0 0
        %4989 = vmatpush.bf16.msra.mxu0 0
        %4990 = vmatpush.bf16.msra.mxu0 0
        %4991 = vmatpush.bf16.msra.mxu0 0
        %4992 = vmatpush.bf16.msra.mxu0 0
        %4993 = vmatpush.bf16.msra.mxu0 0
        %4994 = vmatpush.bf16.msra.mxu0 0
        %4995 = vmatpush.bf16.msra.mxu0 %v4986
        %4996 = vmatmul.bf16.gmra.mxu0 %v4983
        %v4997 = vpop.f32.mrf.mxu0
        %v4998 = vadd.f32 0.0, %v4997
        %v4999 = vpop.f32.mrf.mxu0
        %5000 = vdwg.mxu0
        %v5002 = vsel %vm3395, %v4144, 0
        %v5005 = vsel %vm4167, %v1783, 0
        %5007 = vmatpush.bf16.msra.mxu0 0
        %5008 = vmatpush.bf16.msra.mxu0 0
        %5009 = vmatpush.bf16.msra.mxu0 0
        %5010 = vmatpush.bf16.msra.mxu0 0
        %5011 = vmatpush.bf16.msra.mxu0 0
        %5012 = vmatpush.bf16.msra.mxu0 0
        %5013 = vmatpush.bf16.msra.mxu0 0
        %5014 = vmatpush.bf16.msra.mxu0 %v5005
        %5015 = vmatmul.bf16.gmra.mxu0 %v5002
        %v5016 = vpop.f32.mrf.mxu0
        %v5017 = vadd.f32 0.0, %v5016
        %v5018 = vpop.f32.mrf.mxu0
        %5019 = vdwg.mxu0
        %v5021 = vsel %vm3395, %v4145, 0
        %v5024 = vsel %vm4167, %v2007, 0
        %5026 = vmatpush.bf16.msra.mxu0 0
        %5027 = vmatpush.bf16.msra.mxu0 0
        %5028 = vmatpush.bf16.msra.mxu0 0
        %5029 = vmatpush.bf16.msra.mxu0 0
        %5030 = vmatpush.bf16.msra.mxu0 0
        %5031 = vmatpush.bf16.msra.mxu0 0
        %5032 = vmatpush.bf16.msra.mxu0 0
        %5033 = vmatpush.bf16.msra.mxu0 %v5024
        %5034 = vmatmul.bf16.gmra.mxu0 %v5021
        %v5035 = vpop.f32.mrf.mxu0
        %v5036 = vadd.f32 0.0, %v5035
        %v5037 = vpop.f32.mrf.mxu0
        %5038 = vdwg.mxu0
        %v5040 = vsel %vm3395, %v4146, 0
        %v5043 = vsel %vm4167, %v2039, 0
        %5045 = vmatpush.bf16.msra.mxu0 0
        %5046 = vmatpush.bf16.msra.mxu0 0
        %5047 = vmatpush.bf16.msra.mxu0 0
        %5048 = vmatpush.bf16.msra.mxu0 0
        %5049 = vmatpush.bf16.msra.mxu0 0
        %5050 = vmatpush.bf16.msra.mxu0 0
        %5051 = vmatpush.bf16.msra.mxu0 0
        %5052 = vmatpush.bf16.msra.mxu0 %v5043
        %5053 = vmatmul.bf16.gmra.mxu0 %v5040
        %v5054 = vpop.f32.mrf.mxu0
        %v5055 = vadd.f32 0.0, %v5054
        %v5056 = vpop.f32.mrf.mxu0
        %5057 = vdwg.mxu0
        %v5059 = vsel %vm3395, %v4147, 0
        %v5062 = vsel %vm4167, %v2071, 0
        %5064 = vmatpush.bf16.msra.mxu0 0
        %5065 = vmatpush.bf16.msra.mxu0 0
        %5066 = vmatpush.bf16.msra.mxu0 0
        %5067 = vmatpush.bf16.msra.mxu0 0
        %5068 = vmatpush.bf16.msra.mxu0 0
        %5069 = vmatpush.bf16.msra.mxu0 0
        %5070 = vmatpush.bf16.msra.mxu0 0
        %5071 = vmatpush.bf16.msra.mxu0 %v5062
        %5072 = vmatmul.bf16.gmra.mxu0 %v5059
        %v5073 = vpop.f32.mrf.mxu0
        %v5074 = vadd.f32 0.0, %v5073
        %v5075 = vpop.f32.mrf.mxu0
        %5076 = vdwg.mxu0
        %v5078 = vsel %vm3395, %v4148, 0
        %v5081 = vsel %vm4167, %v1785, 0
        %5083 = vmatpush.bf16.msra.mxu0 0
        %5084 = vmatpush.bf16.msra.mxu0 0
        %5085 = vmatpush.bf16.msra.mxu0 0
        %5086 = vmatpush.bf16.msra.mxu0 0
        %5087 = vmatpush.bf16.msra.mxu0 0
        %5088 = vmatpush.bf16.msra.mxu0 0
        %5089 = vmatpush.bf16.msra.mxu0 0
        %5090 = vmatpush.bf16.msra.mxu0 %v5081
        %5091 = vmatmul.bf16.gmra.mxu0 %v5078
        %v5092 = vpop.f32.mrf.mxu0
        %v5093 = vadd.f32 0.0, %v5092
        %v5094 = vpop.f32.mrf.mxu0
        %5095 = vdwg.mxu0
        %v5097 = vsel %vm3395, %v4149, 0
        %v5100 = vsel %vm4167, %v2009, 0
        %5102 = vmatpush.bf16.msra.mxu0 0
        %5103 = vmatpush.bf16.msra.mxu0 0
        %5104 = vmatpush.bf16.msra.mxu0 0
        %5105 = vmatpush.bf16.msra.mxu0 0
        %5106 = vmatpush.bf16.msra.mxu0 0
        %5107 = vmatpush.bf16.msra.mxu0 0
        %5108 = vmatpush.bf16.msra.mxu0 0
        %5109 = vmatpush.bf16.msra.mxu0 %v5100
        %5110 = vmatmul.bf16.gmra.mxu0 %v5097
        %v5111 = vpop.f32.mrf.mxu0
        %v5112 = vadd.f32 0.0, %v5111
        %v5113 = vpop.f32.mrf.mxu0
        %5114 = vdwg.mxu0
        %v5116 = vsel %vm3395, %v4150, 0
        %v5119 = vsel %vm4167, %v2041, 0
        %5121 = vmatpush.bf16.msra.mxu0 0
        %5122 = vmatpush.bf16.msra.mxu0 0
        %5123 = vmatpush.bf16.msra.mxu0 0
        %5124 = vmatpush.bf16.msra.mxu0 0
        %5125 = vmatpush.bf16.msra.mxu0 0
        %5126 = vmatpush.bf16.msra.mxu0 0
        %5127 = vmatpush.bf16.msra.mxu0 0
        %5128 = vmatpush.bf16.msra.mxu0 %v5119
        %5129 = vmatmul.bf16.gmra.mxu0 %v5116
        %v5130 = vpop.f32.mrf.mxu0
        %v5131 = vadd.f32 0.0, %v5130
        %v5132 = vpop.f32.mrf.mxu0
        %5133 = vdwg.mxu0
        %v5135 = vsel %vm3395, %v4151, 0
        %v5138 = vsel %vm4167, %v2073, 0
        %5140 = vmatpush.bf16.msra.mxu0 0
        %5141 = vmatpush.bf16.msra.mxu0 0
        %5142 = vmatpush.bf16.msra.mxu0 0
        %5143 = vmatpush.bf16.msra.mxu0 0
        %5144 = vmatpush.bf16.msra.mxu0 0
        %5145 = vmatpush.bf16.msra.mxu0 0
        %5146 = vmatpush.bf16.msra.mxu0 0
        %5147 = vmatpush.bf16.msra.mxu0 %v5138
        %5148 = vmatmul.bf16.gmra.mxu0 %v5135
        %v5149 = vpop.f32.mrf.mxu0
        %v5150 = vadd.f32 0.0, %v5149
        %v5151 = vpop.f32.mrf.mxu0
        %5152 = vdwg.mxu0
        %v5154 = vsel %vm3395, %v4152, 0
        %v5157 = vsel %vm4167, %v1787, 0
        %5159 = vmatpush.bf16.msra.mxu0 0
        %5160 = vmatpush.bf16.msra.mxu0 0
        %5161 = vmatpush.bf16.msra.mxu0 0
        %5162 = vmatpush.bf16.msra.mxu0 0
        %5163 = vmatpush.bf16.msra.mxu0 0
        %5164 = vmatpush.bf16.msra.mxu0 0
        %5165 = vmatpush.bf16.msra.mxu0 0
        %5166 = vmatpush.bf16.msra.mxu0 %v5157
        %5167 = vmatmul.bf16.gmra.mxu0 %v5154
        %v5168 = vpop.f32.mrf.mxu0
        %v5169 = vadd.f32 0.0, %v5168
        %v5170 = vpop.f32.mrf.mxu0
        %5171 = vdwg.mxu0
        %v5173 = vsel %vm3395, %v4153, 0
        %v5176 = vsel %vm4167, %v2011, 0
        %5178 = vmatpush.bf16.msra.mxu0 0
        %5179 = vmatpush.bf16.msra.mxu0 0
        %5180 = vmatpush.bf16.msra.mxu0 0
        %5181 = vmatpush.bf16.msra.mxu0 0
        %5182 = vmatpush.bf16.msra.mxu0 0
        %5183 = vmatpush.bf16.msra.mxu0 0
        %5184 = vmatpush.bf16.msra.mxu0 0
        %5185 = vmatpush.bf16.msra.mxu0 %v5176
        %5186 = vmatmul.bf16.gmra.mxu0 %v5173
        %v5187 = vpop.f32.mrf.mxu0
        %v5188 = vadd.f32 0.0, %v5187
        %v5189 = vpop.f32.mrf.mxu0
        %5190 = vdwg.mxu0
        %v5192 = vsel %vm3395, %v4154, 0
        %v5195 = vsel %vm4167, %v2043, 0
        %5197 = vmatpush.bf16.msra.mxu0 0
        %5198 = vmatpush.bf16.msra.mxu0 0
        %5199 = vmatpush.bf16.msra.mxu0 0
        %5200 = vmatpush.bf16.msra.mxu0 0
        %5201 = vmatpush.bf16.msra.mxu0 0
        %5202 = vmatpush.bf16.msra.mxu0 0
        %5203 = vmatpush.bf16.msra.mxu0 0
        %5204 = vmatpush.bf16.msra.mxu0 %v5195
        %5205 = vmatmul.bf16.gmra.mxu0 %v5192
        %v5206 = vpop.f32.mrf.mxu0
        %v5207 = vadd.f32 0.0, %v5206
        %v5208 = vpop.f32.mrf.mxu0
        %5209 = vdwg.mxu0
        %v5211 = vsel %vm3395, %v4155, 0
        %v5214 = vsel %vm4167, %v2075, 0
        %5216 = vmatpush.bf16.msra.mxu0 0
        %5217 = vmatpush.bf16.msra.mxu0 0
        %5218 = vmatpush.bf16.msra.mxu0 0
        %5219 = vmatpush.bf16.msra.mxu0 0
        %5220 = vmatpush.bf16.msra.mxu0 0
        %5221 = vmatpush.bf16.msra.mxu0 0
        %5222 = vmatpush.bf16.msra.mxu0 0
        %5223 = vmatpush.bf16.msra.mxu0 %v5214
        %5224 = vmatmul.bf16.gmra.mxu0 %v5211
        %v5225 = vpop.f32.mrf.mxu0
        %v5226 = vadd.f32 0.0, %v5225
        %v5227 = vpop.f32.mrf.mxu0
        %5228 = vdwg.mxu0
        %v5230 = vsel %vm3395, %v4156, 0
        %v5233 = vsel %vm4167, %v1789, 0
        %5235 = vmatpush.bf16.msra.mxu0 0
        %5236 = vmatpush.bf16.msra.mxu0 0
        %5237 = vmatpush.bf16.msra.mxu0 0
        %5238 = vmatpush.bf16.msra.mxu0 0
        %5239 = vmatpush.bf16.msra.mxu0 0
        %5240 = vmatpush.bf16.msra.mxu0 0
        %5241 = vmatpush.bf16.msra.mxu0 0
        %5242 = vmatpush.bf16.msra.mxu0 %v5233
        %5243 = vmatmul.bf16.gmra.mxu0 %v5230
        %v5244 = vpop.f32.mrf.mxu0
        %v5245 = vadd.f32 0.0, %v5244
        %v5246 = vpop.f32.mrf.mxu0
        %5247 = vdwg.mxu0
        %v5249 = vsel %vm3395, %v4157, 0
        %v5252 = vsel %vm4167, %v2013, 0
        %5254 = vmatpush.bf16.msra.mxu0 0
        %5255 = vmatpush.bf16.msra.mxu0 0
        %5256 = vmatpush.bf16.msra.mxu0 0
        %5257 = vmatpush.bf16.msra.mxu0 0
        %5258 = vmatpush.bf16.msra.mxu0 0
        %5259 = vmatpush.bf16.msra.mxu0 0
        %5260 = vmatpush.bf16.msra.mxu0 0
        %5261 = vmatpush.bf16.msra.mxu0 %v5252
        %5262 = vmatmul.bf16.gmra.mxu0 %v5249
        %v5263 = vpop.f32.mrf.mxu0
        %v5264 = vadd.f32 0.0, %v5263
        %v5265 = vpop.f32.mrf.mxu0
        %5266 = vdwg.mxu0
        %v5268 = vsel %vm3395, %v4158, 0
        %v5271 = vsel %vm4167, %v2045, 0
        %5273 = vmatpush.bf16.msra.mxu0 0
        %5274 = vmatpush.bf16.msra.mxu0 0
        %5275 = vmatpush.bf16.msra.mxu0 0
        %5276 = vmatpush.bf16.msra.mxu0 0
        %5277 = vmatpush.bf16.msra.mxu0 0
        %5278 = vmatpush.bf16.msra.mxu0 0
        %5279 = vmatpush.bf16.msra.mxu0 0
        %5280 = vmatpush.bf16.msra.mxu0 %v5271
        %5281 = vmatmul.bf16.gmra.mxu0 %v5268
        %v5282 = vpop.f32.mrf.mxu0
        %v5283 = vadd.f32 0.0, %v5282
        %v5284 = vpop.f32.mrf.mxu0
        %5285 = vdwg.mxu0
        %v5287 = vsel %vm3395, %v4159, 0
        %v5290 = vsel %vm4167, %v2077, 0
        %5292 = vmatpush.bf16.msra.mxu0 0
        %5293 = vmatpush.bf16.msra.mxu0 0
        %5294 = vmatpush.bf16.msra.mxu0 0
        %5295 = vmatpush.bf16.msra.mxu0 0
        %5296 = vmatpush.bf16.msra.mxu0 0
        %5297 = vmatpush.bf16.msra.mxu0 0
        %5298 = vmatpush.bf16.msra.mxu0 0
        %5299 = vmatpush.bf16.msra.mxu0 %v5290
        %5300 = vmatmul.bf16.gmra.mxu0 %v5287
        %v5301 = vpop.f32.mrf.mxu0
        %v5302 = vadd.f32 0.0, %v5301
        %v5303 = vpop.f32.mrf.mxu0
        %5304 = vdwg.mxu0
        %v5306 = vsel %vm3395, %v4160, 0
        %v5309 = vsel %vm4167, %v1791, 0
        %5311 = vmatpush.bf16.msra.mxu0 0
        %5312 = vmatpush.bf16.msra.mxu0 0
        %5313 = vmatpush.bf16.msra.mxu0 0
        %5314 = vmatpush.bf16.msra.mxu0 0
        %5315 = vmatpush.bf16.msra.mxu0 0
        %5316 = vmatpush.bf16.msra.mxu0 0
        %5317 = vmatpush.bf16.msra.mxu0 0
        %5318 = vmatpush.bf16.msra.mxu0 %v5309
        %5319 = vmatmul.bf16.gmra.mxu0 %v5306
        %v5320 = vpop.f32.mrf.mxu0
        %v5321 = vadd.f32 0.0, %v5320
        %v5322 = vpop.f32.mrf.mxu0
        %5323 = vdwg.mxu0
        %v5325 = vsel %vm3395, %v4161, 0
        %v5328 = vsel %vm4167, %v2015, 0
        %5330 = vmatpush.bf16.msra.mxu0 0
        %5331 = vmatpush.bf16.msra.mxu0 0
        %5332 = vmatpush.bf16.msra.mxu0 0
        %5333 = vmatpush.bf16.msra.mxu0 0
        %5334 = vmatpush.bf16.msra.mxu0 0
        %5335 = vmatpush.bf16.msra.mxu0 0
        %5336 = vmatpush.bf16.msra.mxu0 0
        %5337 = vmatpush.bf16.msra.mxu0 %v5328
        %5338 = vmatmul.bf16.gmra.mxu0 %v5325
        %v5339 = vpop.f32.mrf.mxu0
        %v5340 = vadd.f32 0.0, %v5339
        %v5341 = vpop.f32.mrf.mxu0
        %5342 = vdwg.mxu0
        %v5344 = vsel %vm3395, %v4162, 0
        %v5347 = vsel %vm4167, %v2047, 0
        %5349 = vmatpush.bf16.msra.mxu0 0
        %5350 = vmatpush.bf16.msra.mxu0 0
        %5351 = vmatpush.bf16.msra.mxu0 0
        %5352 = vmatpush.bf16.msra.mxu0 0
        %5353 = vmatpush.bf16.msra.mxu0 0
        %5354 = vmatpush.bf16.msra.mxu0 0
        %5355 = vmatpush.bf16.msra.mxu0 0
        %5356 = vmatpush.bf16.msra.mxu0 %v5347
        %5357 = vmatmul.bf16.gmra.mxu0 %v5344
        %v5358 = vpop.f32.mrf.mxu0
        %v5359 = vadd.f32 0.0, %v5358
        %v5360 = vpop.f32.mrf.mxu0
        %5361 = vdwg.mxu0
        %v5363 = vsel %vm3395, %v4163, 0
        %v5366 = vsel %vm4167, %v2079, 0
        %5368 = vmatpush.bf16.msra.mxu0 0
        %5369 = vmatpush.bf16.msra.mxu0 0
        %5370 = vmatpush.bf16.msra.mxu0 0
        %5371 = vmatpush.bf16.msra.mxu0 0
        %5372 = vmatpush.bf16.msra.mxu0 0
        %5373 = vmatpush.bf16.msra.mxu0 0
        %5374 = vmatpush.bf16.msra.mxu0 0
        %5375 = vmatpush.bf16.msra.mxu0 %v5366
        %5376 = vmatmul.bf16.gmra.mxu0 %v5363
        %v5377 = vpop.f32.mrf.mxu0
        %v5378 = vadd.f32 0.0, %v5377
        %v5379 = vpop.f32.mrf.mxu0
        %5380 = vdwg.mxu0
        %v5381 = vpack.c.bf16 %v4257, %v4181
        %v5382 = vpack.c.bf16 %v4409, %v4333
        %v5383 = vpack.c.bf16 %v4561, %v4485
        %v5384 = vpack.c.bf16 %v4713, %v4637
        %v5385 = vpack.c.bf16 %v4865, %v4789
        %v5386 = vpack.c.bf16 %v5017, %v4941
        %v5387 = vpack.c.bf16 %v5169, %v5093
        %v5388 = vpack.c.bf16 %v5321, %v5245
        %v5389 = vld [vmem:[%s702] sm:$0xf]
        %v5390 = vld [vmem:[%s702 + $0x4] sm:$0xf]
        %v5391 = vld [vmem:[%s702 + $0x8] sm:$0xf]
        %v5392 = vld [vmem:[%s702 + $0xc] sm:$0xf]
        %v5393 = vpack.c.bf16 %v4276, %v4200
        %v5394 = vpack.c.bf16 %v4428, %v4352
        %v5395 = vpack.c.bf16 %v4580, %v4504
        %v5396 = vpack.c.bf16 %v4732, %v4656
        %v5397 = vpack.c.bf16 %v4884, %v4808
        %v5398 = vpack.c.bf16 %v5036, %v4960
        %v5399 = vpack.c.bf16 %v5188, %v5112
        %v5400 = vpack.c.bf16 %v5340, %v5264
        %s5401 = scalar_lea.vmem %s702, 16 [#allocation8]
        %v5402 = vld [vmem:[%s5401] sm:$0xf]
        %v5403 = vld [vmem:[%s5401 + $0x4] sm:$0xf]
        %v5404 = vld [vmem:[%s5401 + $0x8] sm:$0xf]
        %v5405 = vld [vmem:[%s5401 + $0xc] sm:$0xf]
        %v5410 = vunpack.c.l.b16 %v5402
        %v5411 = vunpack.c.l.b16 %v5403
        %v5412 = vunpack.c.l.b16 %v5404
        %v5413 = vunpack.c.l.b16 %v5405
        %v5414 = vpack.c.b16 %v5411, %v5410
        %v5415 = vpack.c.b16 %v5413, %v5412
        %v5419 = vsel %vm2178, %v5393, 0
        %v5422 = vsel %vm2178, %v5394, 0
        %v5425 = vsel %vm2178, %v5395, 0
        %v5428 = vsel %vm2178, %v5396, 0
        %v5431 = vsel %vm2178, %v5397, 0
        %v5434 = vsel %vm2178, %v5398, 0
        %v5437 = vsel %vm2178, %v5399, 0
        %v5440 = vsel %vm2178, %v5400, 0
        %5442 = vmatpush.bf16.msra.mxu0 0
        %5443 = vmatpush.bf16.msra.mxu0 0
        %5444 = vmatpush.bf16.msra.mxu0 0
        %5445 = vmatpush.bf16.msra.mxu0 0
        %5446 = vmatpush.bf16.msra.mxu0 0
        %5447 = vmatpush.bf16.msra.mxu0 0
        %5448 = vmatpush.bf16.msra.mxu0 %v5415
        %5449 = vmatpush.bf16.msra.mxu0 %v5414
        %5450 = vmatmul.bf16.gmra.mxu0 %v5419
        %v5451 = vpop.f32.mrf.mxu0
        %v5452 = vadd.f32 0.0, %v5451
        %v5453 = vpop.f32.mrf.mxu0
        %v5454 = vadd.f32 0.0, %v5453
        %5455 = vmatmul.bf16.gmra.mxu0 %v5422
        %v5456 = vpop.f32.mrf.mxu0
        %v5457 = vadd.f32 0.0, %v5456
        %v5458 = vpop.f32.mrf.mxu0
        %v5459 = vadd.f32 0.0, %v5458
        %5460 = vmatmul.bf16.gmra.mxu0 %v5425
        %v5461 = vpop.f32.mrf.mxu0
        %v5462 = vadd.f32 0.0, %v5461
        %v5463 = vpop.f32.mrf.mxu0
        %v5464 = vadd.f32 0.0, %v5463
        %5465 = vmatmul.bf16.gmra.mxu0 %v5428
        %v5466 = vpop.f32.mrf.mxu0
        %v5467 = vadd.f32 0.0, %v5466
        %v5468 = vpop.f32.mrf.mxu0
        %v5469 = vadd.f32 0.0, %v5468
        %5470 = vmatmul.bf16.gmra.mxu0 %v5431
        %v5471 = vpop.f32.mrf.mxu0
        %v5472 = vadd.f32 0.0, %v5471
        %v5473 = vpop.f32.mrf.mxu0
        %v5474 = vadd.f32 0.0, %v5473
        %5475 = vmatmul.bf16.gmra.mxu0 %v5434
        %v5476 = vpop.f32.mrf.mxu0
        %v5477 = vadd.f32 0.0, %v5476
        %v5478 = vpop.f32.mrf.mxu0
        %v5479 = vadd.f32 0.0, %v5478
        %5480 = vmatmul.bf16.gmra.mxu0 %v5437
        %v5481 = vpop.f32.mrf.mxu0
        %v5482 = vadd.f32 0.0, %v5481
        %v5483 = vpop.f32.mrf.mxu0
        %v5484 = vadd.f32 0.0, %v5483
        %5485 = vmatmul.bf16.gmra.mxu0 %v5440
        %v5486 = vpop.f32.mrf.mxu0
        %v5487 = vadd.f32 0.0, %v5486
        %v5488 = vpop.f32.mrf.mxu0
        %v5489 = vadd.f32 0.0, %v5488
        %5490 = vdwg.mxu0
        %v5495 = vunpack.c.l.b16 %v5389
        %v5496 = vunpack.c.l.b16 %v5390
        %v5497 = vunpack.c.l.b16 %v5391
        %v5498 = vunpack.c.l.b16 %v5392
        %v5499 = vpack.c.b16 %v5496, %v5495
        %v5500 = vpack.c.b16 %v5498, %v5497
        %v5504 = vsel %vm2178, %v5381, 0
        %v5507 = vsel %vm2178, %v5382, 0
        %v5510 = vsel %vm2178, %v5383, 0
        %v5513 = vsel %vm2178, %v5384, 0
        %v5516 = vsel %vm2178, %v5385, 0
        %v5519 = vsel %vm2178, %v5386, 0
        %v5522 = vsel %vm2178, %v5387, 0
        %v5525 = vsel %vm2178, %v5388, 0
        %5527 = vmatpush.bf16.msra.mxu0 0
        %5528 = vmatpush.bf16.msra.mxu0 0
        %5529 = vmatpush.bf16.msra.mxu0 0
        %5530 = vmatpush.bf16.msra.mxu0 0
        %5531 = vmatpush.bf16.msra.mxu0 0
        %5532 = vmatpush.bf16.msra.mxu0 0
        %5533 = vmatpush.bf16.msra.mxu0 %v5500
        %5534 = vmatpush.bf16.msra.mxu0 %v5499
        %5535 = vmatmul.bf16.gmra.mxu0 %v5504
        %v5536 = vpop.f32.mrf.mxu0
        %v5537 = vadd.f32 %v5452, %v5536
        %v5538 = vpop.f32.mrf.mxu0
        %v5539 = vadd.f32 %v5454, %v5538
        %5540 = vmatmul.bf16.gmra.mxu0 %v5507
        %v5541 = vpop.f32.mrf.mxu0
        %v5542 = vadd.f32 %v5457, %v5541
        %v5543 = vpop.f32.mrf.mxu0
        %v5544 = vadd.f32 %v5459, %v5543
        %5545 = vmatmul.bf16.gmra.mxu0 %v5510
        %v5546 = vpop.f32.mrf.mxu0
        %v5547 = vadd.f32 %v5462, %v5546
        %v5548 = vpop.f32.mrf.mxu0
        %v5549 = vadd.f32 %v5464, %v5548
        %5550 = vmatmul.bf16.gmra.mxu0 %v5513
        %v5551 = vpop.f32.mrf.mxu0
        %v5552 = vadd.f32 %v5467, %v5551
        %v5553 = vpop.f32.mrf.mxu0
        %v5554 = vadd.f32 %v5469, %v5553
        %5555 = vmatmul.bf16.gmra.mxu0 %v5516
        %v5556 = vpop.f32.mrf.mxu0
        %v5557 = vadd.f32 %v5472, %v5556
        %v5558 = vpop.f32.mrf.mxu0
        %v5559 = vadd.f32 %v5474, %v5558
        %5560 = vmatmul.bf16.gmra.mxu0 %v5519
        %v5561 = vpop.f32.mrf.mxu0
        %v5562 = vadd.f32 %v5477, %v5561
        %v5563 = vpop.f32.mrf.mxu0
        %v5564 = vadd.f32 %v5479, %v5563
        %5565 = vmatmul.bf16.gmra.mxu0 %v5522
        %v5566 = vpop.f32.mrf.mxu0
        %v5567 = vadd.f32 %v5482, %v5566
        %v5568 = vpop.f32.mrf.mxu0
        %v5569 = vadd.f32 %v5484, %v5568
        %5570 = vmatmul.bf16.gmra.mxu0 %v5525
        %v5571 = vpop.f32.mrf.mxu0
        %v5572 = vadd.f32 %v5487, %v5571
        %v5573 = vpop.f32.mrf.mxu0
        %v5574 = vadd.f32 %v5489, %v5573
        %5575 = vdwg.mxu0
        %v5576 = vpack.c.bf16 %v4295, %v4219
        %v5577 = vpack.c.bf16 %v4447, %v4371
        %v5578 = vpack.c.bf16 %v4599, %v4523
        %v5579 = vpack.c.bf16 %v4751, %v4675
        %v5580 = vpack.c.bf16 %v4903, %v4827
        %v5581 = vpack.c.bf16 %v5055, %v4979
        %v5582 = vpack.c.bf16 %v5207, %v5131
        %v5583 = vpack.c.bf16 %v5359, %v5283
        %s5584 = scalar_lea.vmem %s702, 32 [#allocation8]
        %v5585 = vld [vmem:[%s5584] sm:$0xf]
        %v5586 = vld [vmem:[%s5584 + $0x4] sm:$0xf]
        %v5587 = vld [vmem:[%s5584 + $0x8] sm:$0xf]
        %v5588 = vld [vmem:[%s5584 + $0xc] sm:$0xf]
        %v5593 = vunpack.c.l.b16 %v5585
        %v5594 = vunpack.c.l.b16 %v5586
        %v5595 = vunpack.c.l.b16 %v5587
        %v5596 = vunpack.c.l.b16 %v5588
        %v5597 = vpack.c.b16 %v5594, %v5593
        %v5598 = vpack.c.b16 %v5596, %v5595
        %v5602 = vsel %vm2178, %v5576, 0
        %v5605 = vsel %vm2178, %v5577, 0
        %v5608 = vsel %vm2178, %v5578, 0
        %v5611 = vsel %vm2178, %v5579, 0
        %v5614 = vsel %vm2178, %v5580, 0
        %v5617 = vsel %vm2178, %v5581, 0
        %v5620 = vsel %vm2178, %v5582, 0
        %v5623 = vsel %vm2178, %v5583, 0
        %5625 = vmatpush.bf16.msra.mxu0 0
        %5626 = vmatpush.bf16.msra.mxu0 0
        %5627 = vmatpush.bf16.msra.mxu0 0
        %5628 = vmatpush.bf16.msra.mxu0 0
        %5629 = vmatpush.bf16.msra.mxu0 0
        %5630 = vmatpush.bf16.msra.mxu0 0
        %5631 = vmatpush.bf16.msra.mxu0 %v5598
        %5632 = vmatpush.bf16.msra.mxu0 %v5597
        %5633 = vmatmul.bf16.gmra.mxu0 %v5602
        %v5634 = vpop.f32.mrf.mxu0
        %v5635 = vadd.f32 0.0, %v5634
        %v5636 = vpop.f32.mrf.mxu0
        %v5637 = vadd.f32 0.0, %v5636
        %5638 = vmatmul.bf16.gmra.mxu0 %v5605
        %v5639 = vpop.f32.mrf.mxu0
        %v5640 = vadd.f32 0.0, %v5639
        %v5641 = vpop.f32.mrf.mxu0
        %v5642 = vadd.f32 0.0, %v5641
        %5643 = vmatmul.bf16.gmra.mxu0 %v5608
        %v5644 = vpop.f32.mrf.mxu0
        %v5645 = vadd.f32 0.0, %v5644
        %v5646 = vpop.f32.mrf.mxu0
        %v5647 = vadd.f32 0.0, %v5646
        %5648 = vmatmul.bf16.gmra.mxu0 %v5611
        %v5649 = vpop.f32.mrf.mxu0
        %v5650 = vadd.f32 0.0, %v5649
        %v5651 = vpop.f32.mrf.mxu0
        %v5652 = vadd.f32 0.0, %v5651
        %5653 = vmatmul.bf16.gmra.mxu0 %v5614
        %v5654 = vpop.f32.mrf.mxu0
        %v5655 = vadd.f32 0.0, %v5654
        %v5656 = vpop.f32.mrf.mxu0
        %v5657 = vadd.f32 0.0, %v5656
        %5658 = vmatmul.bf16.gmra.mxu0 %v5617
        %v5659 = vpop.f32.mrf.mxu0
        %v5660 = vadd.f32 0.0, %v5659
        %v5661 = vpop.f32.mrf.mxu0
        %v5662 = vadd.f32 0.0, %v5661
        %5663 = vmatmul.bf16.gmra.mxu0 %v5620
        %v5664 = vpop.f32.mrf.mxu0
        %v5665 = vadd.f32 0.0, %v5664
        %v5666 = vpop.f32.mrf.mxu0
        %v5667 = vadd.f32 0.0, %v5666
        %5668 = vmatmul.bf16.gmra.mxu0 %v5623
        %v5669 = vpop.f32.mrf.mxu0
        %v5670 = vadd.f32 0.0, %v5669
        %v5671 = vpop.f32.mrf.mxu0
        %v5672 = vadd.f32 0.0, %v5671
        %5673 = vdwg.mxu0
        %v5674 = vadd.f32 %v5537, %v5635
        %v5675 = vadd.f32 %v5539, %v5637
        %v5676 = vadd.f32 %v5542, %v5640
        %v5677 = vadd.f32 %v5544, %v5642
        %v5678 = vadd.f32 %v5547, %v5645
        %v5679 = vadd.f32 %v5549, %v5647
        %v5680 = vadd.f32 %v5552, %v5650
        %v5681 = vadd.f32 %v5554, %v5652
        %v5682 = vadd.f32 %v5557, %v5655
        %v5683 = vadd.f32 %v5559, %v5657
        %v5684 = vadd.f32 %v5562, %v5660
        %v5685 = vadd.f32 %v5564, %v5662
        %v5686 = vadd.f32 %v5567, %v5665
        %v5687 = vadd.f32 %v5569, %v5667
        %v5688 = vadd.f32 %v5572, %v5670
        %v5689 = vadd.f32 %v5574, %v5672
        %v5690 = vpack.c.bf16 %v4314, %v4238
        %v5691 = vpack.c.bf16 %v4466, %v4390
        %v5692 = vpack.c.bf16 %v4618, %v4542
        %v5693 = vpack.c.bf16 %v4770, %v4694
        %v5694 = vpack.c.bf16 %v4922, %v4846
        %v5695 = vpack.c.bf16 %v5074, %v4998
        %v5696 = vpack.c.bf16 %v5226, %v5150
        %v5697 = vpack.c.bf16 %v5378, %v5302
        %s5698 = scalar_lea.vmem %s702, 48 [#allocation8]
        %v5699 = vld [vmem:[%s5698] sm:$0xf]
        %v5700 = vld [vmem:[%s5698 + $0x4] sm:$0xf]
        %v5701 = vld [vmem:[%s5698 + $0x8] sm:$0xf]
        %v5702 = vld [vmem:[%s5698 + $0xc] sm:$0xf]
        %v5707 = vunpack.c.l.b16 %v5699
        %v5708 = vunpack.c.l.b16 %v5700
        %v5709 = vunpack.c.l.b16 %v5701
        %v5710 = vunpack.c.l.b16 %v5702
        %v5711 = vpack.c.b16 %v5708, %v5707
        %v5712 = vpack.c.b16 %v5710, %v5709
        %v5716 = vsel %vm2178, %v5690, 0
        %v5719 = vsel %vm2178, %v5691, 0
        %v5722 = vsel %vm2178, %v5692, 0
        %v5725 = vsel %vm2178, %v5693, 0
        %v5728 = vsel %vm2178, %v5694, 0
        %v5731 = vsel %vm2178, %v5695, 0
        %v5734 = vsel %vm2178, %v5696, 0
        %v5737 = vsel %vm2178, %v5697, 0
        %5739 = vmatpush.bf16.msra.mxu0 0
        %5740 = vmatpush.bf16.msra.mxu0 0
        %5741 = vmatpush.bf16.msra.mxu0 0
        %5742 = vmatpush.bf16.msra.mxu0 0
        %5743 = vmatpush.bf16.msra.mxu0 0
        %5744 = vmatpush.bf16.msra.mxu0 0
        %5745 = vmatpush.bf16.msra.mxu0 %v5712
        %5746 = vmatpush.bf16.msra.mxu0 %v5711
        %5747 = vmatmul.bf16.gmra.mxu0 %v5716
        %v5748 = vpop.f32.mrf.mxu0
        %v5749 = vadd.f32 0.0, %v5748
        %v5750 = vpop.f32.mrf.mxu0
        %v5751 = vadd.f32 0.0, %v5750
        %5752 = vmatmul.bf16.gmra.mxu0 %v5719
        %v5753 = vpop.f32.mrf.mxu0
        %v5754 = vadd.f32 0.0, %v5753
        %v5755 = vpop.f32.mrf.mxu0
        %v5756 = vadd.f32 0.0, %v5755
        %5757 = vmatmul.bf16.gmra.mxu0 %v5722
        %v5758 = vpop.f32.mrf.mxu0
        %v5759 = vadd.f32 0.0, %v5758
        %v5760 = vpop.f32.mrf.mxu0
        %v5761 = vadd.f32 0.0, %v5760
        %5762 = vmatmul.bf16.gmra.mxu0 %v5725
        %v5763 = vpop.f32.mrf.mxu0
        %v5764 = vadd.f32 0.0, %v5763
        %v5765 = vpop.f32.mrf.mxu0
        %v5766 = vadd.f32 0.0, %v5765
        %5767 = vmatmul.bf16.gmra.mxu0 %v5728
        %v5768 = vpop.f32.mrf.mxu0
        %v5769 = vadd.f32 0.0, %v5768
        %v5770 = vpop.f32.mrf.mxu0
        %v5771 = vadd.f32 0.0, %v5770
        %5772 = vmatmul.bf16.gmra.mxu0 %v5731
        %v5773 = vpop.f32.mrf.mxu0
        %v5774 = vadd.f32 0.0, %v5773
        %v5775 = vpop.f32.mrf.mxu0
        %v5776 = vadd.f32 0.0, %v5775
        %5777 = vmatmul.bf16.gmra.mxu0 %v5734
        %v5778 = vpop.f32.mrf.mxu0
        %v5779 = vadd.f32 0.0, %v5778
        %v5780 = vpop.f32.mrf.mxu0
        %v5781 = vadd.f32 0.0, %v5780
        %5782 = vmatmul.bf16.gmra.mxu0 %v5737
        %v5783 = vpop.f32.mrf.mxu0
        %v5784 = vadd.f32 0.0, %v5783
        %v5785 = vpop.f32.mrf.mxu0
        %v5786 = vadd.f32 0.0, %v5785
        %5787 = vdwg.mxu0
        %v5788 = vadd.f32 %v5674, %v5749
        %v5789 = vadd.f32 %v5675, %v5751
        %v5790 = vadd.f32 %v5676, %v5754
        %v5791 = vadd.f32 %v5677, %v5756
        %v5792 = vadd.f32 %v5678, %v5759
        %v5793 = vadd.f32 %v5679, %v5761
        %v5794 = vadd.f32 %v5680, %v5764
        %v5795 = vadd.f32 %v5681, %v5766
        %v5796 = vadd.f32 %v5682, %v5769
        %v5797 = vadd.f32 %v5683, %v5771
        %v5798 = vadd.f32 %v5684, %v5774
        %v5799 = vadd.f32 %v5685, %v5776
        %v5800 = vadd.f32 %v5686, %v5779
        %v5801 = vadd.f32 %v5687, %v5781
        %v5802 = vadd.f32 %v5688, %v5784
        %v5803 = vadd.f32 %v5689, %v5786
        %v5804 = vadd.f32 %v1054, %v5788
        %v5805 = vadd.f32 %v1055, %v5789
        %v5806 = vadd.f32 %v1056, %v5790
        %v5807 = vadd.f32 %v1057, %v5791
        %v5808 = vadd.f32 %v1058, %v5792
        %v5809 = vadd.f32 %v1059, %v5793
        %v5810 = vadd.f32 %v1060, %v5794
        %v5811 = vadd.f32 %v1061, %v5795
        %v5812 = vadd.f32 %v1062, %v5796
        %v5813 = vadd.f32 %v1063, %v5797
        %v5814 = vadd.f32 %v1064, %v5798
        %v5815 = vadd.f32 %v1065, %v5799
        %v5816 = vadd.f32 %v1066, %v5800
        %v5817 = vadd.f32 %v1067, %v5801
        %v5818 = vadd.f32 %v1068, %v5802
        %v5819 = vadd.f32 %v1069, %v5803
        %v5820 = vld [vmem:[%s840] sm:$0x1]
        %v5822 = vperm.slane %v5820, 0
        %v5824 = vadd.f32 %v5804, %v5822
        %v5825 = vadd.f32 %v5805, %v5822
        %v5826 = vadd.f32 %v5806, %v5822
        %v5827 = vadd.f32 %v5807, %v5822
        %v5828 = vadd.f32 %v5808, %v5822
        %v5829 = vadd.f32 %v5809, %v5822
        %v5830 = vadd.f32 %v5810, %v5822
        %v5831 = vadd.f32 %v5811, %v5822
        %v5832 = vadd.f32 %v5812, %v5822
        %v5833 = vadd.f32 %v5813, %v5822
        %v5834 = vadd.f32 %v5814, %v5822
        %v5835 = vadd.f32 %v5815, %v5822
        %v5836 = vadd.f32 %v5816, %v5822
        %v5837 = vadd.f32 %v5817, %v5822
        %v5838 = vadd.f32 %v5818, %v5822
        %v5839 = vadd.f32 %v5819, %v5822
        %v5840 = vld [vmem:[%s843] sm:$0x1]
        %v5841 = vld [vmem:[%s846] sm:$0x1]
        %5842 = vadd.xlane.f32.xlu0 %v5824
        %v5843 = vpop.xlane.xlu0 %5842
        %5844 = vadd.xlane.f32.xlu0 %v5825
        %v5845 = vpop.xlane.xlu0 %5844
        %5846 = vadd.xlane.f32.xlu0 %v5826
        %v5847 = vpop.xlane.xlu0 %5846
        %5848 = vadd.xlane.f32.xlu0 %v5827
        %v5849 = vpop.xlane.xlu0 %5848
        %5850 = vadd.xlane.f32.xlu0 %v5828
        %v5851 = vpop.xlane.xlu0 %5850
        %5852 = vadd.xlane.f32.xlu0 %v5829
        %v5853 = vpop.xlane.xlu0 %5852
        %5854 = vadd.xlane.f32.xlu0 %v5830
        %v5855 = vpop.xlane.xlu0 %5854
        %5856 = vadd.xlane.f32.xlu0 %v5831
        %v5857 = vpop.xlane.xlu0 %5856
        %5858 = vadd.xlane.f32.xlu0 %v5832
        %v5859 = vpop.xlane.xlu0 %5858
        %5860 = vadd.xlane.f32.xlu0 %v5833
        %v5861 = vpop.xlane.xlu0 %5860
        %5862 = vadd.xlane.f32.xlu0 %v5834
        %v5863 = vpop.xlane.xlu0 %5862
        %5864 = vadd.xlane.f32.xlu0 %v5835
        %v5865 = vpop.xlane.xlu0 %5864
        %5866 = vadd.xlane.f32.xlu0 %v5836
        %v5867 = vpop.xlane.xlu0 %5866
        %5868 = vadd.xlane.f32.xlu0 %v5837
        %v5869 = vpop.xlane.xlu0 %5868
        %5870 = vadd.xlane.f32.xlu0 %v5838
        %v5871 = vpop.xlane.xlu0 %5870
        %5872 = vadd.xlane.f32.xlu0 %v5839
        %v5873 = vpop.xlane.xlu0 %5872
        %v5874 = vmul.f32 %v5843, %v1110
        %v5875 = vmul.f32 %v5845, %v1110
        %v5876 = vmul.f32 %v5847, %v1110
        %v5877 = vmul.f32 %v5849, %v1110
        %v5878 = vmul.f32 %v5851, %v1110
        %v5879 = vmul.f32 %v5853, %v1110
        %v5880 = vmul.f32 %v5855, %v1110
        %v5881 = vmul.f32 %v5857, %v1110
        %v5882 = vmul.f32 %v5859, %v1110
        %v5883 = vmul.f32 %v5861, %v1110
        %v5884 = vmul.f32 %v5863, %v1110
        %v5885 = vmul.f32 %v5865, %v1110
        %v5886 = vmul.f32 %v5867, %v1110
        %v5887 = vmul.f32 %v5869, %v1110
        %v5888 = vmul.f32 %v5871, %v1110
        %v5889 = vmul.f32 %v5873, %v1110
        %v5890 = vsub.f32 %v5824, %v5874
        %v5891 = vsub.f32 %v5825, %v5875
        %v5892 = vsub.f32 %v5826, %v5876
        %v5893 = vsub.f32 %v5827, %v5877
        %v5894 = vsub.f32 %v5828, %v5878
        %v5895 = vsub.f32 %v5829, %v5879
        %v5896 = vsub.f32 %v5830, %v5880
        %v5897 = vsub.f32 %v5831, %v5881
        %v5898 = vsub.f32 %v5832, %v5882
        %v5899 = vsub.f32 %v5833, %v5883
        %v5900 = vsub.f32 %v5834, %v5884
        %v5901 = vsub.f32 %v5835, %v5885
        %v5902 = vsub.f32 %v5836, %v5886
        %v5903 = vsub.f32 %v5837, %v5887
        %v5904 = vsub.f32 %v5838, %v5888
        %v5905 = vsub.f32 %v5839, %v5889
        %v5906 = vmul.f32 %v5890, %v5890
        %v5907 = vmul.f32 %v5891, %v5891
        %v5908 = vmul.f32 %v5892, %v5892
        %v5909 = vmul.f32 %v5893, %v5893
        %v5910 = vmul.f32 %v5894, %v5894
        %v5911 = vmul.f32 %v5895, %v5895
        %v5912 = vmul.f32 %v5896, %v5896
        %v5913 = vmul.f32 %v5897, %v5897
        %v5914 = vmul.f32 %v5898, %v5898
        %v5915 = vmul.f32 %v5899, %v5899
        %v5916 = vmul.f32 %v5900, %v5900
        %v5917 = vmul.f32 %v5901, %v5901
        %v5918 = vmul.f32 %v5902, %v5902
        %v5919 = vmul.f32 %v5903, %v5903
        %v5920 = vmul.f32 %v5904, %v5904
        %v5921 = vmul.f32 %v5905, %v5905
        %5922 = vadd.xlane.f32.xlu0 %v5906
        %v5923 = vpop.xlane.xlu0 %5922
        %5924 = vadd.xlane.f32.xlu0 %v5907
        %v5925 = vpop.xlane.xlu0 %5924
        %5926 = vadd.xlane.f32.xlu0 %v5908
        %v5927 = vpop.xlane.xlu0 %5926
        %5928 = vadd.xlane.f32.xlu0 %v5909
        %v5929 = vpop.xlane.xlu0 %5928
        %5930 = vadd.xlane.f32.xlu0 %v5910
        %v5931 = vpop.xlane.xlu0 %5930
        %5932 = vadd.xlane.f32.xlu0 %v5911
        %v5933 = vpop.xlane.xlu0 %5932
        %5934 = vadd.xlane.f32.xlu0 %v5912
        %v5935 = vpop.xlane.xlu0 %5934
        %5936 = vadd.xlane.f32.xlu0 %v5913
        %v5937 = vpop.xlane.xlu0 %5936
        %5938 = vadd.xlane.f32.xlu0 %v5914
        %v5939 = vpop.xlane.xlu0 %5938
        %5940 = vadd.xlane.f32.xlu0 %v5915
        %v5941 = vpop.xlane.xlu0 %5940
        %5942 = vadd.xlane.f32.xlu0 %v5916
        %v5943 = vpop.xlane.xlu0 %5942
        %5944 = vadd.xlane.f32.xlu0 %v5917
        %v5945 = vpop.xlane.xlu0 %5944
        %5946 = vadd.xlane.f32.xlu0 %v5918
        %v5947 = vpop.xlane.xlu0 %5946
        %5948 = vadd.xlane.f32.xlu0 %v5919
        %v5949 = vpop.xlane.xlu0 %5948
        %5950 = vadd.xlane.f32.xlu0 %v5920
        %v5951 = vpop.xlane.xlu0 %5950
        %5952 = vadd.xlane.f32.xlu0 %v5921
        %v5953 = vpop.xlane.xlu0 %5952
        %v5954 = vmul.f32 %v5923, %v1110
        %v5955 = vmul.f32 %v5925, %v1110
        %v5956 = vmul.f32 %v5927, %v1110
        %v5957 = vmul.f32 %v5929, %v1110
        %v5958 = vmul.f32 %v5931, %v1110
        %v5959 = vmul.f32 %v5933, %v1110
        %v5960 = vmul.f32 %v5935, %v1110
        %v5961 = vmul.f32 %v5937, %v1110
        %v5962 = vmul.f32 %v5939, %v1110
        %v5963 = vmul.f32 %v5941, %v1110
        %v5964 = vmul.f32 %v5943, %v1110
        %v5965 = vmul.f32 %v5945, %v1110
        %v5966 = vmul.f32 %v5947, %v1110
        %v5967 = vmul.f32 %v5949, %v1110
        %v5968 = vmul.f32 %v5951, %v1110
        %v5969 = vmul.f32 %v5953, %v1110
        %v5970 = vadd.f32 %v5954, 1e-05
        %v5971 = vadd.f32 %v5955, 1e-05
        %v5972 = vadd.f32 %v5956, 1e-05
        %v5973 = vadd.f32 %v5957, 1e-05
        %v5974 = vadd.f32 %v5958, 1e-05
        %v5975 = vadd.f32 %v5959, 1e-05
        %v5976 = vadd.f32 %v5960, 1e-05
        %v5977 = vadd.f32 %v5961, 1e-05
        %v5978 = vadd.f32 %v5962, 1e-05
        %v5979 = vadd.f32 %v5963, 1e-05
        %v5980 = vadd.f32 %v5964, 1e-05
        %v5981 = vadd.f32 %v5965, 1e-05
        %v5982 = vadd.f32 %v5966, 1e-05
        %v5983 = vadd.f32 %v5967, 1e-05
        %v5984 = vadd.f32 %v5968, 1e-05
        %v5985 = vadd.f32 %v5969, 1e-05
        %v5986 = vrsqrt.pop %v5970
        %v5987 = vmul.f32 %v5986, %v5970
        %v5988 = vmul.f32 %v5987, %v5986
        %v5989 = vmul.f32 0.5, %v5988
        %v5990 = vsub.f32 1.5, %v5989
        %v5991 = vmul.f32 %v5986, %v5990
        %vm5992 = vweird.f32 %v5970
        %vm5993 = vweird.f32 %v5986
        %vm5994 = vmor %vm5992, %vm5993
        %v5995 = vsel %vm5994, %v5986, %v5991
        %v5996 = vrsqrt.pop %v5971
        %v5997 = vmul.f32 %v5996, %v5971
        %v5998 = vmul.f32 %v5997, %v5996
        %v5999 = vmul.f32 0.5, %v5998
        %v6000 = vsub.f32 1.5, %v5999
        %v6001 = vmul.f32 %v5996, %v6000
        %vm6002 = vweird.f32 %v5971
        %vm6003 = vweird.f32 %v5996
        %vm6004 = vmor %vm6002, %vm6003
        %v6005 = vsel %vm6004, %v5996, %v6001
        %v6006 = vrsqrt.pop %v5972
        %v6007 = vmul.f32 %v6006, %v5972
        %v6008 = vmul.f32 %v6007, %v6006
        %v6009 = vmul.f32 0.5, %v6008
        %v6010 = vsub.f32 1.5, %v6009
        %v6011 = vmul.f32 %v6006, %v6010
        %vm6012 = vweird.f32 %v5972
        %vm6013 = vweird.f32 %v6006
        %vm6014 = vmor %vm6012, %vm6013
        %v6015 = vsel %vm6014, %v6006, %v6011
        %v6016 = vrsqrt.pop %v5973
        %v6017 = vmul.f32 %v6016, %v5973
        %v6018 = vmul.f32 %v6017, %v6016
        %v6019 = vmul.f32 0.5, %v6018
        %v6020 = vsub.f32 1.5, %v6019
        %v6021 = vmul.f32 %v6016, %v6020
        %vm6022 = vweird.f32 %v5973
        %vm6023 = vweird.f32 %v6016
        %vm6024 = vmor %vm6022, %vm6023
        %v6025 = vsel %vm6024, %v6016, %v6021
        %v6026 = vrsqrt.pop %v5974
        %v6027 = vmul.f32 %v6026, %v5974
        %v6028 = vmul.f32 %v6027, %v6026
        %v6029 = vmul.f32 0.5, %v6028
        %v6030 = vsub.f32 1.5, %v6029
        %v6031 = vmul.f32 %v6026, %v6030
        %vm6032 = vweird.f32 %v5974
        %vm6033 = vweird.f32 %v6026
        %vm6034 = vmor %vm6032, %vm6033
        %v6035 = vsel %vm6034, %v6026, %v6031
        %v6036 = vrsqrt.pop %v5975
        %v6037 = vmul.f32 %v6036, %v5975
        %v6038 = vmul.f32 %v6037, %v6036
        %v6039 = vmul.f32 0.5, %v6038
        %v6040 = vsub.f32 1.5, %v6039
        %v6041 = vmul.f32 %v6036, %v6040
        %vm6042 = vweird.f32 %v5975
        %vm6043 = vweird.f32 %v6036
        %vm6044 = vmor %vm6042, %vm6043
        %v6045 = vsel %vm6044, %v6036, %v6041
        %v6046 = vrsqrt.pop %v5976
        %v6047 = vmul.f32 %v6046, %v5976
        %v6048 = vmul.f32 %v6047, %v6046
        %v6049 = vmul.f32 0.5, %v6048
        %v6050 = vsub.f32 1.5, %v6049
        %v6051 = vmul.f32 %v6046, %v6050
        %vm6052 = vweird.f32 %v5976
        %vm6053 = vweird.f32 %v6046
        %vm6054 = vmor %vm6052, %vm6053
        %v6055 = vsel %vm6054, %v6046, %v6051
        %v6056 = vrsqrt.pop %v5977
        %v6057 = vmul.f32 %v6056, %v5977
        %v6058 = vmul.f32 %v6057, %v6056
        %v6059 = vmul.f32 0.5, %v6058
        %v6060 = vsub.f32 1.5, %v6059
        %v6061 = vmul.f32 %v6056, %v6060
        %vm6062 = vweird.f32 %v5977
        %vm6063 = vweird.f32 %v6056
        %vm6064 = vmor %vm6062, %vm6063
        %v6065 = vsel %vm6064, %v6056, %v6061
        %v6066 = vrsqrt.pop %v5978
        %v6067 = vmul.f32 %v6066, %v5978
        %v6068 = vmul.f32 %v6067, %v6066
        %v6069 = vmul.f32 0.5, %v6068
        %v6070 = vsub.f32 1.5, %v6069
        %v6071 = vmul.f32 %v6066, %v6070
        %vm6072 = vweird.f32 %v5978
        %vm6073 = vweird.f32 %v6066
        %vm6074 = vmor %vm6072, %vm6073
        %v6075 = vsel %vm6074, %v6066, %v6071
        %v6076 = vrsqrt.pop %v5979
        %v6077 = vmul.f32 %v6076, %v5979
        %v6078 = vmul.f32 %v6077, %v6076
        %v6079 = vmul.f32 0.5, %v6078
        %v6080 = vsub.f32 1.5, %v6079
        %v6081 = vmul.f32 %v6076, %v6080
        %vm6082 = vweird.f32 %v5979
        %vm6083 = vweird.f32 %v6076
        %vm6084 = vmor %vm6082, %vm6083
        %v6085 = vsel %vm6084, %v6076, %v6081
        %v6086 = vrsqrt.pop %v5980
        %v6087 = vmul.f32 %v6086, %v5980
        %v6088 = vmul.f32 %v6087, %v6086
        %v6089 = vmul.f32 0.5, %v6088
        %v6090 = vsub.f32 1.5, %v6089
        %v6091 = vmul.f32 %v6086, %v6090
        %vm6092 = vweird.f32 %v5980
        %vm6093 = vweird.f32 %v6086
        %vm6094 = vmor %vm6092, %vm6093
        %v6095 = vsel %vm6094, %v6086, %v6091
        %v6096 = vrsqrt.pop %v5981
        %v6097 = vmul.f32 %v6096, %v5981
        %v6098 = vmul.f32 %v6097, %v6096
        %v6099 = vmul.f32 0.5, %v6098
        %v6100 = vsub.f32 1.5, %v6099
        %v6101 = vmul.f32 %v6096, %v6100
        %vm6102 = vweird.f32 %v5981
        %vm6103 = vweird.f32 %v6096
        %vm6104 = vmor %vm6102, %vm6103
        %v6105 = vsel %vm6104, %v6096, %v6101
        %v6106 = vrsqrt.pop %v5982
        %v6107 = vmul.f32 %v6106, %v5982
        %v6108 = vmul.f32 %v6107, %v6106
        %v6109 = vmul.f32 0.5, %v6108
        %v6110 = vsub.f32 1.5, %v6109
        %v6111 = vmul.f32 %v6106, %v6110
        %vm6112 = vweird.f32 %v5982
        %vm6113 = vweird.f32 %v6106
        %vm6114 = vmor %vm6112, %vm6113
        %v6115 = vsel %vm6114, %v6106, %v6111
        %v6116 = vrsqrt.pop %v5983
        %v6117 = vmul.f32 %v6116, %v5983
        %v6118 = vmul.f32 %v6117, %v6116
        %v6119 = vmul.f32 0.5, %v6118
        %v6120 = vsub.f32 1.5, %v6119
        %v6121 = vmul.f32 %v6116, %v6120
        %vm6122 = vweird.f32 %v5983
        %vm6123 = vweird.f32 %v6116
        %vm6124 = vmor %vm6122, %vm6123
        %v6125 = vsel %vm6124, %v6116, %v6121
        %v6126 = vrsqrt.pop %v5984
        %v6127 = vmul.f32 %v6126, %v5984
        %v6128 = vmul.f32 %v6127, %v6126
        %v6129 = vmul.f32 0.5, %v6128
        %v6130 = vsub.f32 1.5, %v6129
        %v6131 = vmul.f32 %v6126, %v6130
        %vm6132 = vweird.f32 %v5984
        %vm6133 = vweird.f32 %v6126
        %vm6134 = vmor %vm6132, %vm6133
        %v6135 = vsel %vm6134, %v6126, %v6131
        %v6136 = vrsqrt.pop %v5985
        %v6137 = vmul.f32 %v6136, %v5985
        %v6138 = vmul.f32 %v6137, %v6136
        %v6139 = vmul.f32 0.5, %v6138
        %v6140 = vsub.f32 1.5, %v6139
        %v6141 = vmul.f32 %v6136, %v6140
        %vm6142 = vweird.f32 %v5985
        %vm6143 = vweird.f32 %v6136
        %vm6144 = vmor %vm6142, %vm6143
        %v6145 = vsel %vm6144, %v6136, %v6141
        %v6146 = vmul.f32 %v5890, %v5995
        %v6147 = vmul.f32 %v5891, %v6005
        %v6148 = vmul.f32 %v5892, %v6015
        %v6149 = vmul.f32 %v5893, %v6025
        %v6150 = vmul.f32 %v5894, %v6035
        %v6151 = vmul.f32 %v5895, %v6045
        %v6152 = vmul.f32 %v5896, %v6055
        %v6153 = vmul.f32 %v5897, %v6065
        %v6154 = vmul.f32 %v5898, %v6075
        %v6155 = vmul.f32 %v5899, %v6085
        %v6156 = vmul.f32 %v5900, %v6095
        %v6157 = vmul.f32 %v5901, %v6105
        %v6158 = vmul.f32 %v5902, %v6115
        %v6159 = vmul.f32 %v5903, %v6125
        %v6160 = vmul.f32 %v5904, %v6135
        %v6161 = vmul.f32 %v5905, %v6145
        %v6163 = vperm.slane %v5840, 0
        %v6165 = vmul.f32 %v6146, %v6163
        %v6166 = vmul.f32 %v6147, %v6163
        %v6167 = vmul.f32 %v6148, %v6163
        %v6168 = vmul.f32 %v6149, %v6163
        %v6169 = vmul.f32 %v6150, %v6163
        %v6170 = vmul.f32 %v6151, %v6163
        %v6171 = vmul.f32 %v6152, %v6163
        %v6172 = vmul.f32 %v6153, %v6163
        %v6173 = vmul.f32 %v6154, %v6163
        %v6174 = vmul.f32 %v6155, %v6163
        %v6175 = vmul.f32 %v6156, %v6163
        %v6176 = vmul.f32 %v6157, %v6163
        %v6177 = vmul.f32 %v6158, %v6163
        %v6178 = vmul.f32 %v6159, %v6163
        %v6179 = vmul.f32 %v6160, %v6163
        %v6180 = vmul.f32 %v6161, %v6163
        %v6182 = vperm.slane %v5841, 0
        %v6184 = vadd.f32 %v6165, %v6182
        %v6185 = vadd.f32 %v6166, %v6182
        %v6186 = vadd.f32 %v6167, %v6182
        %v6187 = vadd.f32 %v6168, %v6182
        %v6188 = vadd.f32 %v6169, %v6182
        %v6189 = vadd.f32 %v6170, %v6182
        %v6190 = vadd.f32 %v6171, %v6182
        %v6191 = vadd.f32 %v6172, %v6182
        %v6192 = vadd.f32 %v6173, %v6182
        %v6193 = vadd.f32 %v6174, %v6182
        %v6194 = vadd.f32 %v6175, %v6182
        %v6195 = vadd.f32 %v6176, %v6182
        %v6196 = vadd.f32 %v6177, %v6182
        %v6197 = vadd.f32 %v6178, %v6182
        %v6198 = vadd.f32 %v6179, %v6182
        %v6199 = vadd.f32 %v6180, %v6182
        %v6200 = vpack.c.bf16 %v6185, %v6184
        %v6201 = vpack.c.bf16 %v6187, %v6186
        %v6202 = vpack.c.bf16 %v6189, %v6188
        %v6203 = vpack.c.bf16 %v6191, %v6190
        %v6204 = vpack.c.bf16 %v6193, %v6192
        %v6205 = vpack.c.bf16 %v6195, %v6194
        %v6206 = vpack.c.bf16 %v6197, %v6196
        %v6207 = vpack.c.bf16 %v6199, %v6198
        %v6208 = vld [vmem:[%s712] sm:$0xff]
        %v6209 = vld [vmem:[%s712 + $0x8] sm:$0xff]
        %v6210 = vld [vmem:[%s712 + $0x10] sm:$0xff]
        %v6211 = vld [vmem:[%s712 + $0x18] sm:$0xff]
        %v6212 = vld [vmem:[%s712 + $0x20] sm:$0xff]
        %v6213 = vld [vmem:[%s712 + $0x28] sm:$0xff]
        %v6214 = vld [vmem:[%s712 + $0x30] sm:$0xff]
        %v6215 = vld [vmem:[%s712 + $0x38] sm:$0xff]
        %v6216 = vld [vmem:[%s712 + $0x40] sm:$0xff]
        %v6217 = vld [vmem:[%s712 + $0x48] sm:$0xff]
        %v6218 = vld [vmem:[%s712 + $0x50] sm:$0xff]
        %v6219 = vld [vmem:[%s712 + $0x58] sm:$0xff]
        %v6220 = vld [vmem:[%s712 + $0x60] sm:$0xff]
        %v6221 = vld [vmem:[%s712 + $0x68] sm:$0xff]
        %v6222 = vld [vmem:[%s712 + $0x70] sm:$0xff]
        %v6223 = vld [vmem:[%s712 + $0x78] sm:$0xff]
        %v6224 = vld [vmem:[%s850] sm:$0x3]
        %v6226 = vperm.slane %v6224, 0
        %v6227 = vperm.slane %v6224, 1
        %v6246 = vunpack.c.l.b16 %v6208
        %v6247 = vunpack.c.h.b16 %v6208
        %v6248 = vunpack.c.l.b16 %v6209
        %v6249 = vunpack.c.h.b16 %v6209
        %v6250 = vunpack.c.l.b16 %v6210
        %v6251 = vunpack.c.h.b16 %v6210
        %v6252 = vunpack.c.l.b16 %v6211
        %v6253 = vunpack.c.h.b16 %v6211
        %v6254 = vunpack.c.l.b16 %v6212
        %v6255 = vunpack.c.h.b16 %v6212
        %v6256 = vunpack.c.l.b16 %v6213
        %v6257 = vunpack.c.h.b16 %v6213
        %v6258 = vunpack.c.l.b16 %v6214
        %v6259 = vunpack.c.h.b16 %v6214
        %v6260 = vunpack.c.l.b16 %v6215
        %v6261 = vunpack.c.h.b16 %v6215
        %v6262 = vunpack.c.l.b16 %v6216
        %v6263 = vunpack.c.h.b16 %v6216
        %v6264 = vunpack.c.l.b16 %v6217
        %v6265 = vunpack.c.h.b16 %v6217
        %v6266 = vunpack.c.l.b16 %v6218
        %v6267 = vunpack.c.h.b16 %v6218
        %v6268 = vunpack.c.l.b16 %v6219
        %v6269 = vunpack.c.h.b16 %v6219
        %v6270 = vunpack.c.l.b16 %v6220
        %v6271 = vunpack.c.h.b16 %v6220
        %v6272 = vunpack.c.l.b16 %v6221
        %v6273 = vunpack.c.h.b16 %v6221
        %v6274 = vunpack.c.l.b16 %v6222
        %v6275 = vunpack.c.h.b16 %v6222
        %v6276 = vunpack.c.l.b16 %v6223
        %v6277 = vunpack.c.h.b16 %v6223
        %v6278 = vpack.c.b16 %v6248, %v6246
        %v6279 = vpack.c.b16 %v6249, %v6247
        %v6280 = vpack.c.b16 %v6252, %v6250
        %v6281 = vpack.c.b16 %v6253, %v6251
        %v6282 = vpack.c.b16 %v6256, %v6254
        %v6283 = vpack.c.b16 %v6257, %v6255
        %v6284 = vpack.c.b16 %v6260, %v6258
        %v6285 = vpack.c.b16 %v6261, %v6259
        %v6286 = vpack.c.b16 %v6264, %v6262
        %v6287 = vpack.c.b16 %v6265, %v6263
        %v6288 = vpack.c.b16 %v6268, %v6266
        %v6289 = vpack.c.b16 %v6269, %v6267
        %v6290 = vpack.c.b16 %v6272, %v6270
        %v6291 = vpack.c.b16 %v6273, %v6271
        %v6292 = vpack.c.b16 %v6276, %v6274
        %v6293 = vpack.c.b16 %v6277, %v6275
        %6310 = vmatpush.bf16.msra.mxu0 %v6292
        %6311 = vmatpush.bf16.msra.mxu0 %v6290
        %6312 = vmatpush.bf16.msra.mxu0 %v6288
        %6313 = vmatpush.bf16.msra.mxu0 %v6286
        %6314 = vmatpush.bf16.msra.mxu0 %v6284
        %6315 = vmatpush.bf16.msra.mxu0 %v6282
        %6316 = vmatpush.bf16.msra.mxu0 %v6280
        %6317 = vmatpush.bf16.msra.mxu0 %v6278
        %6318 = vmatmul.bf16.gmra.mxu0 %v6200
        %v6319 = vpop.f32.mrf.mxu0
        %v6320 = vadd.f32 %v6226, %v6319
        %v6321 = vpop.f32.mrf.mxu0
        %v6322 = vadd.f32 %v6226, %v6321
        %6323 = vmatmul.bf16.gmra.mxu0 %v6201
        %v6324 = vpop.f32.mrf.mxu0
        %v6325 = vadd.f32 %v6226, %v6324
        %v6326 = vpop.f32.mrf.mxu0
        %v6327 = vadd.f32 %v6226, %v6326
        %6328 = vmatmul.bf16.gmra.mxu0 %v6202
        %v6329 = vpop.f32.mrf.mxu0
        %v6330 = vadd.f32 %v6226, %v6329
        %v6331 = vpop.f32.mrf.mxu0
        %v6332 = vadd.f32 %v6226, %v6331
        %6333 = vmatmul.bf16.gmra.mxu0 %v6203
        %v6334 = vpop.f32.mrf.mxu0
        %v6335 = vadd.f32 %v6226, %v6334
        %v6336 = vpop.f32.mrf.mxu0
        %v6337 = vadd.f32 %v6226, %v6336
        %6338 = vmatmul.bf16.gmra.mxu0 %v6204
        %v6339 = vpop.f32.mrf.mxu0
        %v6340 = vadd.f32 %v6226, %v6339
        %v6341 = vpop.f32.mrf.mxu0
        %v6342 = vadd.f32 %v6226, %v6341
        %6343 = vmatmul.bf16.gmra.mxu0 %v6205
        %v6344 = vpop.f32.mrf.mxu0
        %v6345 = vadd.f32 %v6226, %v6344
        %v6346 = vpop.f32.mrf.mxu0
        %v6347 = vadd.f32 %v6226, %v6346
        %6348 = vmatmul.bf16.gmra.mxu0 %v6206
        %v6349 = vpop.f32.mrf.mxu0
        %v6350 = vadd.f32 %v6226, %v6349
        %v6351 = vpop.f32.mrf.mxu0
        %v6352 = vadd.f32 %v6226, %v6351
        %6353 = vmatmul.bf16.gmra.mxu0 %v6207
        %v6354 = vpop.f32.mrf.mxu0
        %v6355 = vadd.f32 %v6226, %v6354
        %v6356 = vpop.f32.mrf.mxu0
        %v6357 = vadd.f32 %v6226, %v6356
        %6358 = vdwg.mxu0
        %6359 = vmatpush.bf16.msra.mxu0 %v6293
        %6360 = vmatpush.bf16.msra.mxu0 %v6291
        %6361 = vmatpush.bf16.msra.mxu0 %v6289
        %6362 = vmatpush.bf16.msra.mxu0 %v6287
        %6363 = vmatpush.bf16.msra.mxu0 %v6285
        %6364 = vmatpush.bf16.msra.mxu0 %v6283
        %6365 = vmatpush.bf16.msra.mxu0 %v6281
        %6366 = vmatpush.bf16.msra.mxu0 %v6279
        %6367 = vmatmul.bf16.gmra.mxu0 %v6200
        %v6368 = vpop.f32.mrf.mxu0
        %v6369 = vadd.f32 %v6227, %v6368
        %v6370 = vpop.f32.mrf.mxu0
        %v6371 = vadd.f32 %v6227, %v6370
        %6372 = vmatmul.bf16.gmra.mxu0 %v6201
        %v6373 = vpop.f32.mrf.mxu0
        %v6374 = vadd.f32 %v6227, %v6373
        %v6375 = vpop.f32.mrf.mxu0
        %v6376 = vadd.f32 %v6227, %v6375
        %6377 = vmatmul.bf16.gmra.mxu0 %v6202
        %v6378 = vpop.f32.mrf.mxu0
        %v6379 = vadd.f32 %v6227, %v6378
        %v6380 = vpop.f32.mrf.mxu0
        %v6381 = vadd.f32 %v6227, %v6380
        %6382 = vmatmul.bf16.gmra.mxu0 %v6203
        %v6383 = vpop.f32.mrf.mxu0
        %v6384 = vadd.f32 %v6227, %v6383
        %v6385 = vpop.f32.mrf.mxu0
        %v6386 = vadd.f32 %v6227, %v6385
        %6387 = vmatmul.bf16.gmra.mxu0 %v6204
        %v6388 = vpop.f32.mrf.mxu0
        %v6389 = vadd.f32 %v6227, %v6388
        %v6390 = vpop.f32.mrf.mxu0
        %v6391 = vadd.f32 %v6227, %v6390
        %6392 = vmatmul.bf16.gmra.mxu0 %v6205
        %v6393 = vpop.f32.mrf.mxu0
        %v6394 = vadd.f32 %v6227, %v6393
        %v6395 = vpop.f32.mrf.mxu0
        %v6396 = vadd.f32 %v6227, %v6395
        %6397 = vmatmul.bf16.gmra.mxu0 %v6206
        %v6398 = vpop.f32.mrf.mxu0
        %v6399 = vadd.f32 %v6227, %v6398
        %v6400 = vpop.f32.mrf.mxu0
        %v6401 = vadd.f32 %v6227, %v6400
        %6402 = vmatmul.bf16.gmra.mxu0 %v6207
        %v6403 = vpop.f32.mrf.mxu0
        %v6404 = vadd.f32 %v6227, %v6403
        %v6405 = vpop.f32.mrf.mxu0
        %v6406 = vadd.f32 %v6227, %v6405
        %6407 = vdwg.mxu0
        %v6408 = vmul.f32 %v6320, 0.5
        %v6409 = vmul.f32 %v6369, 0.5
        %v6410 = vmul.f32 %v6322, 0.5
        %v6411 = vmul.f32 %v6371, 0.5
        %v6412 = vmul.f32 %v6325, 0.5
        %v6413 = vmul.f32 %v6374, 0.5
        %v6414 = vmul.f32 %v6327, 0.5
        %v6415 = vmul.f32 %v6376, 0.5
        %v6416 = vmul.f32 %v6330, 0.5
        %v6417 = vmul.f32 %v6379, 0.5
        %v6418 = vmul.f32 %v6332, 0.5
        %v6419 = vmul.f32 %v6381, 0.5
        %v6420 = vmul.f32 %v6335, 0.5
        %v6421 = vmul.f32 %v6384, 0.5
        %v6422 = vmul.f32 %v6337, 0.5
        %v6423 = vmul.f32 %v6386, 0.5
        %v6424 = vmul.f32 %v6340, 0.5
        %v6425 = vmul.f32 %v6389, 0.5
        %v6426 = vmul.f32 %v6342, 0.5
        %v6427 = vmul.f32 %v6391, 0.5
        %v6428 = vmul.f32 %v6345, 0.5
        %v6429 = vmul.f32 %v6394, 0.5
        %v6430 = vmul.f32 %v6347, 0.5
        %v6431 = vmul.f32 %v6396, 0.5
        %v6432 = vmul.f32 %v6350, 0.5
        %v6433 = vmul.f32 %v6399, 0.5
        %v6434 = vmul.f32 %v6352, 0.5
        %v6435 = vmul.f32 %v6401, 0.5
        %v6436 = vmul.f32 %v6355, 0.5
        %v6437 = vmul.f32 %v6404, 0.5
        %v6438 = vmul.f32 %v6357, 0.5
        %v6439 = vmul.f32 %v6406, 0.5
        %v6440 = vmul.f32 %v6320, 0.044715
        %v6441 = vmul.f32 %v6369, 0.044715
        %v6442 = vmul.f32 %v6322, 0.044715
        %v6443 = vmul.f32 %v6371, 0.044715
        %v6444 = vmul.f32 %v6325, 0.044715
        %v6445 = vmul.f32 %v6374, 0.044715
        %v6446 = vmul.f32 %v6327, 0.044715
        %v6447 = vmul.f32 %v6376, 0.044715
        %v6448 = vmul.f32 %v6330, 0.044715
        %v6449 = vmul.f32 %v6379, 0.044715
        %v6450 = vmul.f32 %v6332, 0.044715
        %v6451 = vmul.f32 %v6381, 0.044715
        %v6452 = vmul.f32 %v6335, 0.044715
        %v6453 = vmul.f32 %v6384, 0.044715
        %v6454 = vmul.f32 %v6337, 0.044715
        %v6455 = vmul.f32 %v6386, 0.044715
        %v6456 = vmul.f32 %v6340, 0.044715
        %v6457 = vmul.f32 %v6389, 0.044715
        %v6458 = vmul.f32 %v6342, 0.044715
        %v6459 = vmul.f32 %v6391, 0.044715
        %v6460 = vmul.f32 %v6345, 0.044715
        %v6461 = vmul.f32 %v6394, 0.044715
        %v6462 = vmul.f32 %v6347, 0.044715
        %v6463 = vmul.f32 %v6396, 0.044715
        %v6464 = vmul.f32 %v6350, 0.044715
        %v6465 = vmul.f32 %v6399, 0.044715
        %v6466 = vmul.f32 %v6352, 0.044715
        %v6467 = vmul.f32 %v6401, 0.044715
        %v6468 = vmul.f32 %v6355, 0.044715
        %v6469 = vmul.f32 %v6404, 0.044715
        %v6470 = vmul.f32 %v6357, 0.044715
        %v6471 = vmul.f32 %v6406, 0.044715
        %v6472 = vmul.f32 %v6440, %v6320
        %v6473 = vmul.f32 %v6441, %v6369
        %v6474 = vmul.f32 %v6442, %v6322
        %v6475 = vmul.f32 %v6443, %v6371
        %v6476 = vmul.f32 %v6444, %v6325
        %v6477 = vmul.f32 %v6445, %v6374
        %v6478 = vmul.f32 %v6446, %v6327
        %v6479 = vmul.f32 %v6447, %v6376
        %v6480 = vmul.f32 %v6448, %v6330
        %v6481 = vmul.f32 %v6449, %v6379
        %v6482 = vmul.f32 %v6450, %v6332
        %v6483 = vmul.f32 %v6451, %v6381
        %v6484 = vmul.f32 %v6452, %v6335
        %v6485 = vmul.f32 %v6453, %v6384
        %v6486 = vmul.f32 %v6454, %v6337
        %v6487 = vmul.f32 %v6455, %v6386
        %v6488 = vmul.f32 %v6456, %v6340
        %v6489 = vmul.f32 %v6457, %v6389
        %v6490 = vmul.f32 %v6458, %v6342
        %v6491 = vmul.f32 %v6459, %v6391
        %v6492 = vmul.f32 %v6460, %v6345
        %v6493 = vmul.f32 %v6461, %v6394
        %v6494 = vmul.f32 %v6462, %v6347
        %v6495 = vmul.f32 %v6463, %v6396
        %v6496 = vmul.f32 %v6464, %v6350
        %v6497 = vmul.f32 %v6465, %v6399
        %v6498 = vmul.f32 %v6466, %v6352
        %v6499 = vmul.f32 %v6467, %v6401
        %v6500 = vmul.f32 %v6468, %v6355
        %v6501 = vmul.f32 %v6469, %v6404
        %v6502 = vmul.f32 %v6470, %v6357
        %v6503 = vmul.f32 %v6471, %v6406
        %v6504 = vmul.f32 %v6472, %v6320
        %v6505 = vmul.f32 %v6473, %v6369
        %v6506 = vmul.f32 %v6474, %v6322
        %v6507 = vmul.f32 %v6475, %v6371
        %v6508 = vmul.f32 %v6476, %v6325
        %v6509 = vmul.f32 %v6477, %v6374
        %v6510 = vmul.f32 %v6478, %v6327
        %v6511 = vmul.f32 %v6479, %v6376
        %v6512 = vmul.f32 %v6480, %v6330
        %v6513 = vmul.f32 %v6481, %v6379
        %v6514 = vmul.f32 %v6482, %v6332
        %v6515 = vmul.f32 %v6483, %v6381
        %v6516 = vmul.f32 %v6484, %v6335
        %v6517 = vmul.f32 %v6485, %v6384
        %v6518 = vmul.f32 %v6486, %v6337
        %v6519 = vmul.f32 %v6487, %v6386
        %v6520 = vmul.f32 %v6488, %v6340
        %v6521 = vmul.f32 %v6489, %v6389
        %v6522 = vmul.f32 %v6490, %v6342
        %v6523 = vmul.f32 %v6491, %v6391
        %v6524 = vmul.f32 %v6492, %v6345
        %v6525 = vmul.f32 %v6493, %v6394
        %v6526 = vmul.f32 %v6494, %v6347
        %v6527 = vmul.f32 %v6495, %v6396
        %v6528 = vmul.f32 %v6496, %v6350
        %v6529 = vmul.f32 %v6497, %v6399
        %v6530 = vmul.f32 %v6498, %v6352
        %v6531 = vmul.f32 %v6499, %v6401
        %v6532 = vmul.f32 %v6500, %v6355
        %v6533 = vmul.f32 %v6501, %v6404
        %v6534 = vmul.f32 %v6502, %v6357
        %v6535 = vmul.f32 %v6503, %v6406
        %v6536 = vadd.f32 %v6320, %v6504
        %v6537 = vadd.f32 %v6369, %v6505
        %v6538 = vadd.f32 %v6322, %v6506
        %v6539 = vadd.f32 %v6371, %v6507
        %v6540 = vadd.f32 %v6325, %v6508
        %v6541 = vadd.f32 %v6374, %v6509
        %v6542 = vadd.f32 %v6327, %v6510
        %v6543 = vadd.f32 %v6376, %v6511
        %v6544 = vadd.f32 %v6330, %v6512
        %v6545 = vadd.f32 %v6379, %v6513
        %v6546 = vadd.f32 %v6332, %v6514
        %v6547 = vadd.f32 %v6381, %v6515
        %v6548 = vadd.f32 %v6335, %v6516
        %v6549 = vadd.f32 %v6384, %v6517
        %v6550 = vadd.f32 %v6337, %v6518
        %v6551 = vadd.f32 %v6386, %v6519
        %v6552 = vadd.f32 %v6340, %v6520
        %v6553 = vadd.f32 %v6389, %v6521
        %v6554 = vadd.f32 %v6342, %v6522
        %v6555 = vadd.f32 %v6391, %v6523
        %v6556 = vadd.f32 %v6345, %v6524
        %v6557 = vadd.f32 %v6394, %v6525
        %v6558 = vadd.f32 %v6347, %v6526
        %v6559 = vadd.f32 %v6396, %v6527
        %v6560 = vadd.f32 %v6350, %v6528
        %v6561 = vadd.f32 %v6399, %v6529
        %v6562 = vadd.f32 %v6352, %v6530
        %v6563 = vadd.f32 %v6401, %v6531
        %v6564 = vadd.f32 %v6355, %v6532
        %v6565 = vadd.f32 %v6404, %v6533
        %v6566 = vadd.f32 %v6357, %v6534
        %v6567 = vadd.f32 %v6406, %v6535
        %v6568 = vmul.f32 %v6536, 0.7978846
        %v6569 = vmul.f32 %v6537, 0.7978846
        %v6570 = vmul.f32 %v6538, 0.7978846
        %v6571 = vmul.f32 %v6539, 0.7978846
        %v6572 = vmul.f32 %v6540, 0.7978846
        %v6573 = vmul.f32 %v6541, 0.7978846
        %v6574 = vmul.f32 %v6542, 0.7978846
        %v6575 = vmul.f32 %v6543, 0.7978846
        %v6576 = vmul.f32 %v6544, 0.7978846
        %v6577 = vmul.f32 %v6545, 0.7978846
        %v6578 = vmul.f32 %v6546, 0.7978846
        %v6579 = vmul.f32 %v6547, 0.7978846
        %v6580 = vmul.f32 %v6548, 0.7978846
        %v6581 = vmul.f32 %v6549, 0.7978846
        %v6582 = vmul.f32 %v6550, 0.7978846
        %v6583 = vmul.f32 %v6551, 0.7978846
        %v6584 = vmul.f32 %v6552, 0.7978846
        %v6585 = vmul.f32 %v6553, 0.7978846
        %v6586 = vmul.f32 %v6554, 0.7978846
        %v6587 = vmul.f32 %v6555, 0.7978846
        %v6588 = vmul.f32 %v6556, 0.7978846
        %v6589 = vmul.f32 %v6557, 0.7978846
        %v6590 = vmul.f32 %v6558, 0.7978846
        %v6591 = vmul.f32 %v6559, 0.7978846
        %v6592 = vmul.f32 %v6560, 0.7978846
        %v6593 = vmul.f32 %v6561, 0.7978846
        %v6594 = vmul.f32 %v6562, 0.7978846
        %v6595 = vmul.f32 %v6563, 0.7978846
        %v6596 = vmul.f32 %v6564, 0.7978846
        %v6597 = vmul.f32 %v6565, 0.7978846
        %v6598 = vmul.f32 %v6566, 0.7978846
        %v6599 = vmul.f32 %v6567, 0.7978846
        %v6600 = vtanh.pop %v6568
        %v6601 = vtanh.pop %v6569
        %v6602 = vtanh.pop %v6570
        %v6603 = vtanh.pop %v6571
        %v6604 = vtanh.pop %v6572
        %v6605 = vtanh.pop %v6573
        %v6606 = vtanh.pop %v6574
        %v6607 = vtanh.pop %v6575
        %v6608 = vtanh.pop %v6576
        %v6609 = vtanh.pop %v6577
        %v6610 = vtanh.pop %v6578
        %v6611 = vtanh.pop %v6579
        %v6612 = vtanh.pop %v6580
        %v6613 = vtanh.pop %v6581
        %v6614 = vtanh.pop %v6582
        %v6615 = vtanh.pop %v6583
        %v6616 = vtanh.pop %v6584
        %v6617 = vtanh.pop %v6585
        %v6618 = vtanh.pop %v6586
        %v6619 = vtanh.pop %v6587
        %v6620 = vtanh.pop %v6588
        %v6621 = vtanh.pop %v6589
        %v6622 = vtanh.pop %v6590
        %v6623 = vtanh.pop %v6591
        %v6624 = vtanh.pop %v6592
        %v6625 = vtanh.pop %v6593
        %v6626 = vtanh.pop %v6594
        %v6627 = vtanh.pop %v6595
        %v6628 = vtanh.pop %v6596
        %v6629 = vtanh.pop %v6597
        %v6630 = vtanh.pop %v6598
        %v6631 = vtanh.pop %v6599
        %v6632 = vadd.f32 %v6600, 1.0
        %v6633 = vadd.f32 %v6601, 1.0
        %v6634 = vadd.f32 %v6602, 1.0
        %v6635 = vadd.f32 %v6603, 1.0
        %v6636 = vadd.f32 %v6604, 1.0
        %v6637 = vadd.f32 %v6605, 1.0
        %v6638 = vadd.f32 %v6606, 1.0
        %v6639 = vadd.f32 %v6607, 1.0
        %v6640 = vadd.f32 %v6608, 1.0
        %v6641 = vadd.f32 %v6609, 1.0
        %v6642 = vadd.f32 %v6610, 1.0
        %v6643 = vadd.f32 %v6611, 1.0
        %v6644 = vadd.f32 %v6612, 1.0
        %v6645 = vadd.f32 %v6613, 1.0
        %v6646 = vadd.f32 %v6614, 1.0
        %v6647 = vadd.f32 %v6615, 1.0
        %v6648 = vadd.f32 %v6616, 1.0
        %v6649 = vadd.f32 %v6617, 1.0
        %v6650 = vadd.f32 %v6618, 1.0
        %v6651 = vadd.f32 %v6619, 1.0
        %v6652 = vadd.f32 %v6620, 1.0
        %v6653 = vadd.f32 %v6621, 1.0
        %v6654 = vadd.f32 %v6622, 1.0
        %v6655 = vadd.f32 %v6623, 1.0
        %v6656 = vadd.f32 %v6624, 1.0
        %v6657 = vadd.f32 %v6625, 1.0
        %v6658 = vadd.f32 %v6626, 1.0
        %v6659 = vadd.f32 %v6627, 1.0
        %v6660 = vadd.f32 %v6628, 1.0
        %v6661 = vadd.f32 %v6629, 1.0
        %v6662 = vadd.f32 %v6630, 1.0
        %v6663 = vadd.f32 %v6631, 1.0
        %v6664 = vmul.f32 %v6408, %v6632
        %v6665 = vmul.f32 %v6409, %v6633
        %v6666 = vmul.f32 %v6410, %v6634
        %v6667 = vmul.f32 %v6411, %v6635
        %v6668 = vmul.f32 %v6412, %v6636
        %v6669 = vmul.f32 %v6413, %v6637
        %v6670 = vmul.f32 %v6414, %v6638
        %v6671 = vmul.f32 %v6415, %v6639
        %v6672 = vmul.f32 %v6416, %v6640
        %v6673 = vmul.f32 %v6417, %v6641
        %v6674 = vmul.f32 %v6418, %v6642
        %v6675 = vmul.f32 %v6419, %v6643
        %v6676 = vmul.f32 %v6420, %v6644
        %v6677 = vmul.f32 %v6421, %v6645
        %v6678 = vmul.f32 %v6422, %v6646
        %v6679 = vmul.f32 %v6423, %v6647
        %v6680 = vmul.f32 %v6424, %v6648
        %v6681 = vmul.f32 %v6425, %v6649
        %v6682 = vmul.f32 %v6426, %v6650
        %v6683 = vmul.f32 %v6427, %v6651
        %v6684 = vmul.f32 %v6428, %v6652
        %v6685 = vmul.f32 %v6429, %v6653
        %v6686 = vmul.f32 %v6430, %v6654
        %v6687 = vmul.f32 %v6431, %v6655
        %v6688 = vmul.f32 %v6432, %v6656
        %v6689 = vmul.f32 %v6433, %v6657
        %v6690 = vmul.f32 %v6434, %v6658
        %v6691 = vmul.f32 %v6435, %v6659
        %v6692 = vmul.f32 %v6436, %v6660
        %v6693 = vmul.f32 %v6437, %v6661
        %v6694 = vmul.f32 %v6438, %v6662
        %v6695 = vmul.f32 %v6439, %v6663
        %v6696 = vpack.c.bf16 %v6666, %v6664
        %v6697 = vpack.c.bf16 %v6667, %v6665
        %v6698 = vpack.c.bf16 %v6670, %v6668
        %v6699 = vpack.c.bf16 %v6671, %v6669
        %v6700 = vpack.c.bf16 %v6674, %v6672
        %v6701 = vpack.c.bf16 %v6675, %v6673
        %v6702 = vpack.c.bf16 %v6678, %v6676
        %v6703 = vpack.c.bf16 %v6679, %v6677
        %v6704 = vpack.c.bf16 %v6682, %v6680
        %v6705 = vpack.c.bf16 %v6683, %v6681
        %v6706 = vpack.c.bf16 %v6686, %v6684
        %v6707 = vpack.c.bf16 %v6687, %v6685
        %v6708 = vpack.c.bf16 %v6690, %v6688
        %v6709 = vpack.c.bf16 %v6691, %v6689
        %v6710 = vpack.c.bf16 %v6694, %v6692
        %v6711 = vpack.c.bf16 %v6695, %v6693
        %v6712 = vld [vmem:[%s722] sm:$0xf]
        %v6713 = vld [vmem:[%s722 + $0x4] sm:$0xf]
        %v6714 = vld [vmem:[%s722 + $0x8] sm:$0xf]
        %v6715 = vld [vmem:[%s722 + $0xc] sm:$0xf]
        %v6716 = vld [vmem:[%s722 + $0x10] sm:$0xf]
        %v6717 = vld [vmem:[%s722 + $0x14] sm:$0xf]
        %v6718 = vld [vmem:[%s722 + $0x18] sm:$0xf]
        %v6719 = vld [vmem:[%s722 + $0x1c] sm:$0xf]
        %v6720 = vld [vmem:[%s722 + $0x20] sm:$0xf]
        %v6721 = vld [vmem:[%s722 + $0x24] sm:$0xf]
        %v6722 = vld [vmem:[%s722 + $0x28] sm:$0xf]
        %v6723 = vld [vmem:[%s722 + $0x2c] sm:$0xf]
        %v6724 = vld [vmem:[%s722 + $0x30] sm:$0xf]
        %v6725 = vld [vmem:[%s722 + $0x34] sm:$0xf]
        %v6726 = vld [vmem:[%s722 + $0x38] sm:$0xf]
        %v6727 = vld [vmem:[%s722 + $0x3c] sm:$0xf]
        %v6728 = vld [vmem:[%s722 + $0x40] sm:$0xf]
        %v6729 = vld [vmem:[%s722 + $0x44] sm:$0xf]
        %v6730 = vld [vmem:[%s722 + $0x48] sm:$0xf]
        %v6731 = vld [vmem:[%s722 + $0x4c] sm:$0xf]
        %v6732 = vld [vmem:[%s722 + $0x50] sm:$0xf]
        %v6733 = vld [vmem:[%s722 + $0x54] sm:$0xf]
        %v6734 = vld [vmem:[%s722 + $0x58] sm:$0xf]
        %v6735 = vld [vmem:[%s722 + $0x5c] sm:$0xf]
        %v6736 = vld [vmem:[%s722 + $0x60] sm:$0xf]
        %v6737 = vld [vmem:[%s722 + $0x64] sm:$0xf]
        %v6738 = vld [vmem:[%s722 + $0x68] sm:$0xf]
        %v6739 = vld [vmem:[%s722 + $0x6c] sm:$0xf]
        %v6740 = vld [vmem:[%s722 + $0x70] sm:$0xf]
        %v6741 = vld [vmem:[%s722 + $0x74] sm:$0xf]
        %v6742 = vld [vmem:[%s722 + $0x78] sm:$0xf]
        %v6743 = vld [vmem:[%s722 + $0x7c] sm:$0xf]
        %v6744 = vld [vmem:[%s853] sm:$0x1]
        %v6746 = vperm.slane %v6744, 0
        %v6780 = vunpack.c.l.b16 %v6712
        %v6781 = vunpack.c.l.b16 %v6713
        %v6782 = vunpack.c.l.b16 %v6714
        %v6783 = vunpack.c.l.b16 %v6715
        %v6784 = vunpack.c.l.b16 %v6716
        %v6785 = vunpack.c.l.b16 %v6717
        %v6786 = vunpack.c.l.b16 %v6718
        %v6787 = vunpack.c.l.b16 %v6719
        %v6788 = vunpack.c.l.b16 %v6720
        %v6789 = vunpack.c.l.b16 %v6721
        %v6790 = vunpack.c.l.b16 %v6722
        %v6791 = vunpack.c.l.b16 %v6723
        %v6792 = vunpack.c.l.b16 %v6724
        %v6793 = vunpack.c.l.b16 %v6725
        %v6794 = vunpack.c.l.b16 %v6726
        %v6795 = vunpack.c.l.b16 %v6727
        %v6796 = vunpack.c.l.b16 %v6728
        %v6797 = vunpack.c.l.b16 %v6729
        %v6798 = vunpack.c.l.b16 %v6730
        %v6799 = vunpack.c.l.b16 %v6731
        %v6800 = vunpack.c.l.b16 %v6732
        %v6801 = vunpack.c.l.b16 %v6733
        %v6802 = vunpack.c.l.b16 %v6734
        %v6803 = vunpack.c.l.b16 %v6735
        %v6804 = vunpack.c.l.b16 %v6736
        %v6805 = vunpack.c.l.b16 %v6737
        %v6806 = vunpack.c.l.b16 %v6738
        %v6807 = vunpack.c.l.b16 %v6739
        %v6808 = vunpack.c.l.b16 %v6740
        %v6809 = vunpack.c.l.b16 %v6741
        %v6810 = vunpack.c.l.b16 %v6742
        %v6811 = vunpack.c.l.b16 %v6743
        %v6812 = vpack.c.b16 %v6781, %v6780
        %v6813 = vpack.c.b16 %v6783, %v6782
        %v6814 = vpack.c.b16 %v6785, %v6784
        %v6815 = vpack.c.b16 %v6787, %v6786
        %v6816 = vpack.c.b16 %v6789, %v6788
        %v6817 = vpack.c.b16 %v6791, %v6790
        %v6818 = vpack.c.b16 %v6793, %v6792
        %v6819 = vpack.c.b16 %v6795, %v6794
        %v6820 = vpack.c.b16 %v6797, %v6796
        %v6821 = vpack.c.b16 %v6799, %v6798
        %v6822 = vpack.c.b16 %v6801, %v6800
        %v6823 = vpack.c.b16 %v6803, %v6802
        %v6824 = vpack.c.b16 %v6805, %v6804
        %v6825 = vpack.c.b16 %v6807, %v6806
        %v6826 = vpack.c.b16 %v6809, %v6808
        %v6827 = vpack.c.b16 %v6811, %v6810
        %6844 = vmatpush.bf16.msra.mxu0 %v6819
        %6845 = vmatpush.bf16.msra.mxu0 %v6818
        %6846 = vmatpush.bf16.msra.mxu0 %v6817
        %6847 = vmatpush.bf16.msra.mxu0 %v6816
        %6848 = vmatpush.bf16.msra.mxu0 %v6815
        %6849 = vmatpush.bf16.msra.mxu0 %v6814
        %6850 = vmatpush.bf16.msra.mxu0 %v6813
        %6851 = vmatpush.bf16.msra.mxu0 %v6812
        %6852 = vmatmul.bf16.gmra.mxu0 %v6696
        %v6853 = vpop.f32.mrf.mxu0
        %v6854 = vadd.f32 %v6746, %v6853
        %v6855 = vpop.f32.mrf.mxu0
        %v6856 = vadd.f32 %v6746, %v6855
        %6857 = vmatmul.bf16.gmra.mxu0 %v6698
        %v6858 = vpop.f32.mrf.mxu0
        %v6859 = vadd.f32 %v6746, %v6858
        %v6860 = vpop.f32.mrf.mxu0
        %v6861 = vadd.f32 %v6746, %v6860
        %6862 = vmatmul.bf16.gmra.mxu0 %v6700
        %v6863 = vpop.f32.mrf.mxu0
        %v6864 = vadd.f32 %v6746, %v6863
        %v6865 = vpop.f32.mrf.mxu0
        %v6866 = vadd.f32 %v6746, %v6865
        %6867 = vmatmul.bf16.gmra.mxu0 %v6702
        %v6868 = vpop.f32.mrf.mxu0
        %v6869 = vadd.f32 %v6746, %v6868
        %v6870 = vpop.f32.mrf.mxu0
        %v6871 = vadd.f32 %v6746, %v6870
        %6872 = vmatmul.bf16.gmra.mxu0 %v6704
        %v6873 = vpop.f32.mrf.mxu0
        %v6874 = vadd.f32 %v6746, %v6873
        %v6875 = vpop.f32.mrf.mxu0
        %v6876 = vadd.f32 %v6746, %v6875
        %6877 = vmatmul.bf16.gmra.mxu0 %v6706
        %v6878 = vpop.f32.mrf.mxu0
        %v6879 = vadd.f32 %v6746, %v6878
        %v6880 = vpop.f32.mrf.mxu0
        %v6881 = vadd.f32 %v6746, %v6880
        %6882 = vmatmul.bf16.gmra.mxu0 %v6708
        %v6883 = vpop.f32.mrf.mxu0
        %v6884 = vadd.f32 %v6746, %v6883
        %v6885 = vpop.f32.mrf.mxu0
        %v6886 = vadd.f32 %v6746, %v6885
        %6887 = vmatmul.bf16.gmra.mxu0 %v6710
        %v6888 = vpop.f32.mrf.mxu0
        %v6889 = vadd.f32 %v6746, %v6888
        %v6890 = vpop.f32.mrf.mxu0
        %v6891 = vadd.f32 %v6746, %v6890
        %6892 = vdwg.mxu0
        %6893 = vmatpush.bf16.msra.mxu0 %v6827
        %6894 = vmatpush.bf16.msra.mxu0 %v6826
        %6895 = vmatpush.bf16.msra.mxu0 %v6825
        %6896 = vmatpush.bf16.msra.mxu0 %v6824
        %6897 = vmatpush.bf16.msra.mxu0 %v6823
        %6898 = vmatpush.bf16.msra.mxu0 %v6822
        %6899 = vmatpush.bf16.msra.mxu0 %v6821
        %6900 = vmatpush.bf16.msra.mxu0 %v6820
        %6901 = vmatmul.bf16.gmra.mxu0 %v6697
        %v6902 = vpop.f32.mrf.mxu0
        %v6903 = vadd.f32 %v6854, %v6902
        %v6904 = vpop.f32.mrf.mxu0
        %v6905 = vadd.f32 %v6856, %v6904
        %6906 = vmatmul.bf16.gmra.mxu0 %v6699
        %v6907 = vpop.f32.mrf.mxu0
        %v6908 = vadd.f32 %v6859, %v6907
        %v6909 = vpop.f32.mrf.mxu0
        %v6910 = vadd.f32 %v6861, %v6909
        %6911 = vmatmul.bf16.gmra.mxu0 %v6701
        %v6912 = vpop.f32.mrf.mxu0
        %v6913 = vadd.f32 %v6864, %v6912
        %v6914 = vpop.f32.mrf.mxu0
        %v6915 = vadd.f32 %v6866, %v6914
        %6916 = vmatmul.bf16.gmra.mxu0 %v6703
        %v6917 = vpop.f32.mrf.mxu0
        %v6918 = vadd.f32 %v6869, %v6917
        %v6919 = vpop.f32.mrf.mxu0
        %v6920 = vadd.f32 %v6871, %v6919
        %6921 = vmatmul.bf16.gmra.mxu0 %v6705
        %v6922 = vpop.f32.mrf.mxu0
        %v6923 = vadd.f32 %v6874, %v6922
        %v6924 = vpop.f32.mrf.mxu0
        %v6925 = vadd.f32 %v6876, %v6924
        %6926 = vmatmul.bf16.gmra.mxu0 %v6707
        %v6927 = vpop.f32.mrf.mxu0
        %v6928 = vadd.f32 %v6879, %v6927
        %v6929 = vpop.f32.mrf.mxu0
        %v6930 = vadd.f32 %v6881, %v6929
        %6931 = vmatmul.bf16.gmra.mxu0 %v6709
        %v6932 = vpop.f32.mrf.mxu0
        %v6933 = vadd.f32 %v6884, %v6932
        %v6934 = vpop.f32.mrf.mxu0
        %v6935 = vadd.f32 %v6886, %v6934
        %6936 = vmatmul.bf16.gmra.mxu0 %v6711
        %v6937 = vpop.f32.mrf.mxu0
        %v6938 = vadd.f32 %v6889, %v6937
        %v6939 = vpop.f32.mrf.mxu0
        %v6940 = vadd.f32 %v6891, %v6939
        %6941 = vdwg.mxu0
        %v6942 = vadd.f32 %v5824, %v6903
        %v6943 = vadd.f32 %v5825, %v6905
        %v6944 = vadd.f32 %v5826, %v6908
        %v6945 = vadd.f32 %v5827, %v6910
        %v6946 = vadd.f32 %v5828, %v6913
        %v6947 = vadd.f32 %v5829, %v6915
        %v6948 = vadd.f32 %v5830, %v6918
        %v6949 = vadd.f32 %v5831, %v6920
        %v6950 = vadd.f32 %v5832, %v6923
        %v6951 = vadd.f32 %v5833, %v6925
        %v6952 = vadd.f32 %v5834, %v6928
        %v6953 = vadd.f32 %v5835, %v6930
        %v6954 = vadd.f32 %v5836, %v6933
        %v6955 = vadd.f32 %v5837, %v6935
        %v6956 = vadd.f32 %v5838, %v6938
        %v6957 = vadd.f32 %v5839, %v6940
        %6958 = vst [vmem:[#allocation2] sm:$0xff] %v6942
        %6959 = vst [vmem:[#allocation2 + $0x8] sm:$0xff] %v6943
        %6960 = vst [vmem:[#allocation2 + $0x10] sm:$0xff] %v6944
        %6961 = vst [vmem:[#allocation2 + $0x18] sm:$0xff] %v6945
        %6962 = vst [vmem:[#allocation2 + $0x20] sm:$0xff] %v6946
        %6963 = vst [vmem:[#allocation2 + $0x28] sm:$0xff] %v6947
        %6964 = vst [vmem:[#allocation2 + $0x30] sm:$0xff] %v6948
        %6965 = vst [vmem:[#allocation2 + $0x38] sm:$0xff] %v6949
        %6966 = vst [vmem:[#allocation2 + $0x40] sm:$0xff] %v6950
        %6967 = vst [vmem:[#allocation2 + $0x48] sm:$0xff] %v6951
        %6968 = vst [vmem:[#allocation2 + $0x50] sm:$0xff] %v6952
        %6969 = vst [vmem:[#allocation2 + $0x58] sm:$0xff] %v6953
        %6970 = vst [vmem:[#allocation2 + $0x60] sm:$0xff] %v6954
        %6971 = vst [vmem:[#allocation2 + $0x68] sm:$0xff] %v6955
        %6972 = vst [vmem:[#allocation2 + $0x70] sm:$0xff] %v6956
        %6973 = vst [vmem:[#allocation2 + $0x78] sm:$0xff] %v6957
        %p6974 = scmp.eq.s32.totalorder %s44, 1
        // Predicated region
        $region109: #{tpu_custom_call.1} parent=83 // pred_check
          %p6975 = pneg %p6974
        $region110: #{tpu_custom_call.1} parent=83 // pred_check_branch
          %6977 = sbr.rel (%p6975) target = $region112
        $region111: #{tpu_custom_call.1} parent=83 // pred_region
          %v6978 = vld [vmem:[%s14] sm:$0x1]
          %v6979 = vld [vmem:[%s15] sm:$0x1]
          %6980 = vadd.xlane.f32.xlu0 %v6942
          %v6981 = vpop.xlane.xlu0 %6980
          %6982 = vadd.xlane.f32.xlu0 %v6943
          %v6983 = vpop.xlane.xlu0 %6982
          %6984 = vadd.xlane.f32.xlu0 %v6944
          %v6985 = vpop.xlane.xlu0 %6984
          %6986 = vadd.xlane.f32.xlu0 %v6945
          %v6987 = vpop.xlane.xlu0 %6986
          %6988 = vadd.xlane.f32.xlu0 %v6946
          %v6989 = vpop.xlane.xlu0 %6988
          %6990 = vadd.xlane.f32.xlu0 %v6947
          %v6991 = vpop.xlane.xlu0 %6990
          %6992 = vadd.xlane.f32.xlu0 %v6948
          %v6993 = vpop.xlane.xlu0 %6992
          %6994 = vadd.xlane.f32.xlu0 %v6949
          %v6995 = vpop.xlane.xlu0 %6994
          %6996 = vadd.xlane.f32.xlu0 %v6950
          %v6997 = vpop.xlane.xlu0 %6996
          %6998 = vadd.xlane.f32.xlu0 %v6951
          %v6999 = vpop.xlane.xlu0 %6998
          %7000 = vadd.xlane.f32.xlu0 %v6952
          %v7001 = vpop.xlane.xlu0 %7000
          %7002 = vadd.xlane.f32.xlu0 %v6953
          %v7003 = vpop.xlane.xlu0 %7002
          %7004 = vadd.xlane.f32.xlu0 %v6954
          %v7005 = vpop.xlane.xlu0 %7004
          %7006 = vadd.xlane.f32.xlu0 %v6955
          %v7007 = vpop.xlane.xlu0 %7006
          %7008 = vadd.xlane.f32.xlu0 %v6956
          %v7009 = vpop.xlane.xlu0 %7008
          %7010 = vadd.xlane.f32.xlu0 %v6957
          %v7011 = vpop.xlane.xlu0 %7010
          %v7012 = vmul.f32 %v6981, %v1110
          %v7013 = vmul.f32 %v6983, %v1110
          %v7014 = vmul.f32 %v6985, %v1110
          %v7015 = vmul.f32 %v6987, %v1110
          %v7016 = vmul.f32 %v6989, %v1110
          %v7017 = vmul.f32 %v6991, %v1110
          %v7018 = vmul.f32 %v6993, %v1110
          %v7019 = vmul.f32 %v6995, %v1110
          %v7020 = vmul.f32 %v6997, %v1110
          %v7021 = vmul.f32 %v6999, %v1110
          %v7022 = vmul.f32 %v7001, %v1110
          %v7023 = vmul.f32 %v7003, %v1110
          %v7024 = vmul.f32 %v7005, %v1110
          %v7025 = vmul.f32 %v7007, %v1110
          %v7026 = vmul.f32 %v7009, %v1110
          %v7027 = vmul.f32 %v7011, %v1110
          %v7028 = vsub.f32 %v6942, %v7012
          %v7029 = vsub.f32 %v6943, %v7013
          %v7030 = vsub.f32 %v6944, %v7014
          %v7031 = vsub.f32 %v6945, %v7015
          %v7032 = vsub.f32 %v6946, %v7016
          %v7033 = vsub.f32 %v6947, %v7017
          %v7034 = vsub.f32 %v6948, %v7018
          %v7035 = vsub.f32 %v6949, %v7019
          %v7036 = vsub.f32 %v6950, %v7020
          %v7037 = vsub.f32 %v6951, %v7021
          %v7038 = vsub.f32 %v6952, %v7022
          %v7039 = vsub.f32 %v6953, %v7023
          %v7040 = vsub.f32 %v6954, %v7024
          %v7041 = vsub.f32 %v6955, %v7025
          %v7042 = vsub.f32 %v6956, %v7026
          %v7043 = vsub.f32 %v6957, %v7027
          %v7044 = vmul.f32 %v7028, %v7028
          %v7045 = vmul.f32 %v7029, %v7029
          %v7046 = vmul.f32 %v7030, %v7030
          %v7047 = vmul.f32 %v7031, %v7031
          %v7048 = vmul.f32 %v7032, %v7032
          %v7049 = vmul.f32 %v7033, %v7033
          %v7050 = vmul.f32 %v7034, %v7034
          %v7051 = vmul.f32 %v7035, %v7035
          %v7052 = vmul.f32 %v7036, %v7036
          %v7053 = vmul.f32 %v7037, %v7037
          %v7054 = vmul.f32 %v7038, %v7038
          %v7055 = vmul.f32 %v7039, %v7039
          %v7056 = vmul.f32 %v7040, %v7040
          %v7057 = vmul.f32 %v7041, %v7041
          %v7058 = vmul.f32 %v7042, %v7042
          %v7059 = vmul.f32 %v7043, %v7043
          %7060 = vadd.xlane.f32.xlu0 %v7044
          %v7061 = vpop.xlane.xlu0 %7060
          %7062 = vadd.xlane.f32.xlu0 %v7045
          %v7063 = vpop.xlane.xlu0 %7062
          %7064 = vadd.xlane.f32.xlu0 %v7046
          %v7065 = vpop.xlane.xlu0 %7064
          %7066 = vadd.xlane.f32.xlu0 %v7047
          %v7067 = vpop.xlane.xlu0 %7066
          %7068 = vadd.xlane.f32.xlu0 %v7048
          %v7069 = vpop.xlane.xlu0 %7068
          %7070 = vadd.xlane.f32.xlu0 %v7049
          %v7071 = vpop.xlane.xlu0 %7070
          %7072 = vadd.xlane.f32.xlu0 %v7050
          %v7073 = vpop.xlane.xlu0 %7072
          %7074 = vadd.xlane.f32.xlu0 %v7051
          %v7075 = vpop.xlane.xlu0 %7074
          %7076 = vadd.xlane.f32.xlu0 %v7052
          %v7077 = vpop.xlane.xlu0 %7076
          %7078 = vadd.xlane.f32.xlu0 %v7053
          %v7079 = vpop.xlane.xlu0 %7078
          %7080 = vadd.xlane.f32.xlu0 %v7054
          %v7081 = vpop.xlane.xlu0 %7080
          %7082 = vadd.xlane.f32.xlu0 %v7055
          %v7083 = vpop.xlane.xlu0 %7082
          %7084 = vadd.xlane.f32.xlu0 %v7056
          %v7085 = vpop.xlane.xlu0 %7084
          %7086 = vadd.xlane.f32.xlu0 %v7057
          %v7087 = vpop.xlane.xlu0 %7086
          %7088 = vadd.xlane.f32.xlu0 %v7058
          %v7089 = vpop.xlane.xlu0 %7088
          %7090 = vadd.xlane.f32.xlu0 %v7059
          %v7091 = vpop.xlane.xlu0 %7090
          %v7092 = vmul.f32 %v7061, %v1110
          %v7093 = vmul.f32 %v7063, %v1110
          %v7094 = vmul.f32 %v7065, %v1110
          %v7095 = vmul.f32 %v7067, %v1110
          %v7096 = vmul.f32 %v7069, %v1110
          %v7097 = vmul.f32 %v7071, %v1110
          %v7098 = vmul.f32 %v7073, %v1110
          %v7099 = vmul.f32 %v7075, %v1110
          %v7100 = vmul.f32 %v7077, %v1110
          %v7101 = vmul.f32 %v7079, %v1110
          %v7102 = vmul.f32 %v7081, %v1110
          %v7103 = vmul.f32 %v7083, %v1110
          %v7104 = vmul.f32 %v7085, %v1110
          %v7105 = vmul.f32 %v7087, %v1110
          %v7106 = vmul.f32 %v7089, %v1110
          %v7107 = vmul.f32 %v7091, %v1110
          %v7108 = vadd.f32 %v7092, 1e-05
          %v7109 = vadd.f32 %v7093, 1e-05
          %v7110 = vadd.f32 %v7094, 1e-05
          %v7111 = vadd.f32 %v7095, 1e-05
          %v7112 = vadd.f32 %v7096, 1e-05
          %v7113 = vadd.f32 %v7097, 1e-05
          %v7114 = vadd.f32 %v7098, 1e-05
          %v7115 = vadd.f32 %v7099, 1e-05
          %v7116 = vadd.f32 %v7100, 1e-05
          %v7117 = vadd.f32 %v7101, 1e-05
          %v7118 = vadd.f32 %v7102, 1e-05
          %v7119 = vadd.f32 %v7103, 1e-05
          %v7120 = vadd.f32 %v7104, 1e-05
          %v7121 = vadd.f32 %v7105, 1e-05
          %v7122 = vadd.f32 %v7106, 1e-05
          %v7123 = vadd.f32 %v7107, 1e-05
          %v7124 = vrsqrt.pop %v7108
          %v7125 = vmul.f32 %v7124, %v7108
          %v7126 = vmul.f32 %v7125, %v7124
          %v7127 = vmul.f32 0.5, %v7126
          %v7128 = vsub.f32 1.5, %v7127
          %v7129 = vmul.f32 %v7124, %v7128
          %vm7130 = vweird.f32 %v7108
          %vm7131 = vweird.f32 %v7124
          %vm7132 = vmor %vm7130, %vm7131
          %v7133 = vsel %vm7132, %v7124, %v7129
          %v7134 = vrsqrt.pop %v7109
          %v7135 = vmul.f32 %v7134, %v7109
          %v7136 = vmul.f32 %v7135, %v7134
          %v7137 = vmul.f32 0.5, %v7136
          %v7138 = vsub.f32 1.5, %v7137
          %v7139 = vmul.f32 %v7134, %v7138
          %vm7140 = vweird.f32 %v7109
          %vm7141 = vweird.f32 %v7134
          %vm7142 = vmor %vm7140, %vm7141
          %v7143 = vsel %vm7142, %v7134, %v7139
          %v7144 = vrsqrt.pop %v7110
          %v7145 = vmul.f32 %v7144, %v7110
          %v7146 = vmul.f32 %v7145, %v7144
          %v7147 = vmul.f32 0.5, %v7146
          %v7148 = vsub.f32 1.5, %v7147
          %v7149 = vmul.f32 %v7144, %v7148
          %vm7150 = vweird.f32 %v7110
          %vm7151 = vweird.f32 %v7144
          %vm7152 = vmor %vm7150, %vm7151
          %v7153 = vsel %vm7152, %v7144, %v7149
          %v7154 = vrsqrt.pop %v7111
          %v7155 = vmul.f32 %v7154, %v7111
          %v7156 = vmul.f32 %v7155, %v7154
          %v7157 = vmul.f32 0.5, %v7156
          %v7158 = vsub.f32 1.5, %v7157
          %v7159 = vmul.f32 %v7154, %v7158
          %vm7160 = vweird.f32 %v7111
          %vm7161 = vweird.f32 %v7154
          %vm7162 = vmor %vm7160, %vm7161
          %v7163 = vsel %vm7162, %v7154, %v7159
          %v7164 = vrsqrt.pop %v7112
          %v7165 = vmul.f32 %v7164, %v7112
          %v7166 = vmul.f32 %v7165, %v7164
          %v7167 = vmul.f32 0.5, %v7166
          %v7168 = vsub.f32 1.5, %v7167
          %v7169 = vmul.f32 %v7164, %v7168
          %vm7170 = vweird.f32 %v7112
          %vm7171 = vweird.f32 %v7164
          %vm7172 = vmor %vm7170, %vm7171
          %v7173 = vsel %vm7172, %v7164, %v7169
          %v7174 = vrsqrt.pop %v7113
          %v7175 = vmul.f32 %v7174, %v7113
          %v7176 = vmul.f32 %v7175, %v7174
          %v7177 = vmul.f32 0.5, %v7176
          %v7178 = vsub.f32 1.5, %v7177
          %v7179 = vmul.f32 %v7174, %v7178
          %vm7180 = vweird.f32 %v7113
          %vm7181 = vweird.f32 %v7174
          %vm7182 = vmor %vm7180, %vm7181
          %v7183 = vsel %vm7182, %v7174, %v7179
          %v7184 = vrsqrt.pop %v7114
          %v7185 = vmul.f32 %v7184, %v7114
          %v7186 = vmul.f32 %v7185, %v7184
          %v7187 = vmul.f32 0.5, %v7186
          %v7188 = vsub.f32 1.5, %v7187
          %v7189 = vmul.f32 %v7184, %v7188
          %vm7190 = vweird.f32 %v7114
          %vm7191 = vweird.f32 %v7184
          %vm7192 = vmor %vm7190, %vm7191
          %v7193 = vsel %vm7192, %v7184, %v7189
          %v7194 = vrsqrt.pop %v7115
          %v7195 = vmul.f32 %v7194, %v7115
          %v7196 = vmul.f32 %v7195, %v7194
          %v7197 = vmul.f32 0.5, %v7196
          %v7198 = vsub.f32 1.5, %v7197
          %v7199 = vmul.f32 %v7194, %v7198
          %vm7200 = vweird.f32 %v7115
          %vm7201 = vweird.f32 %v7194
          %vm7202 = vmor %vm7200, %vm7201
          %v7203 = vsel %vm7202, %v7194, %v7199
          %v7204 = vrsqrt.pop %v7116
          %v7205 = vmul.f32 %v7204, %v7116
          %v7206 = vmul.f32 %v7205, %v7204
          %v7207 = vmul.f32 0.5, %v7206
          %v7208 = vsub.f32 1.5, %v7207
          %v7209 = vmul.f32 %v7204, %v7208
          %vm7210 = vweird.f32 %v7116
          %vm7211 = vweird.f32 %v7204
          %vm7212 = vmor %vm7210, %vm7211
          %v7213 = vsel %vm7212, %v7204, %v7209
          %v7214 = vrsqrt.pop %v7117
          %v7215 = vmul.f32 %v7214, %v7117
          %v7216 = vmul.f32 %v7215, %v7214
          %v7217 = vmul.f32 0.5, %v7216
          %v7218 = vsub.f32 1.5, %v7217
          %v7219 = vmul.f32 %v7214, %v7218
          %vm7220 = vweird.f32 %v7117
          %vm7221 = vweird.f32 %v7214
          %vm7222 = vmor %vm7220, %vm7221
          %v7223 = vsel %vm7222, %v7214, %v7219
          %v7224 = vrsqrt.pop %v7118
          %v7225 = vmul.f32 %v7224, %v7118
          %v7226 = vmul.f32 %v7225, %v7224
          %v7227 = vmul.f32 0.5, %v7226
          %v7228 = vsub.f32 1.5, %v7227
          %v7229 = vmul.f32 %v7224, %v7228
          %vm7230 = vweird.f32 %v7118
          %vm7231 = vweird.f32 %v7224
          %vm7232 = vmor %vm7230, %vm7231
          %v7233 = vsel %vm7232, %v7224, %v7229
          %v7234 = vrsqrt.pop %v7119
          %v7235 = vmul.f32 %v7234, %v7119
          %v7236 = vmul.f32 %v7235, %v7234
          %v7237 = vmul.f32 0.5, %v7236
          %v7238 = vsub.f32 1.5, %v7237
          %v7239 = vmul.f32 %v7234, %v7238
          %vm7240 = vweird.f32 %v7119
          %vm7241 = vweird.f32 %v7234
          %vm7242 = vmor %vm7240, %vm7241
          %v7243 = vsel %vm7242, %v7234, %v7239
          %v7244 = vrsqrt.pop %v7120
          %v7245 = vmul.f32 %v7244, %v7120
          %v7246 = vmul.f32 %v7245, %v7244
          %v7247 = vmul.f32 0.5, %v7246
          %v7248 = vsub.f32 1.5, %v7247
          %v7249 = vmul.f32 %v7244, %v7248
          %vm7250 = vweird.f32 %v7120
          %vm7251 = vweird.f32 %v7244
          %vm7252 = vmor %vm7250, %vm7251
          %v7253 = vsel %vm7252, %v7244, %v7249
          %v7254 = vrsqrt.pop %v7121
          %v7255 = vmul.f32 %v7254, %v7121
          %v7256 = vmul.f32 %v7255, %v7254
          %v7257 = vmul.f32 0.5, %v7256
          %v7258 = vsub.f32 1.5, %v7257
          %v7259 = vmul.f32 %v7254, %v7258
          %vm7260 = vweird.f32 %v7121
          %vm7261 = vweird.f32 %v7254
          %vm7262 = vmor %vm7260, %vm7261
          %v7263 = vsel %vm7262, %v7254, %v7259
          %v7264 = vrsqrt.pop %v7122
          %v7265 = vmul.f32 %v7264, %v7122
          %v7266 = vmul.f32 %v7265, %v7264
          %v7267 = vmul.f32 0.5, %v7266
          %v7268 = vsub.f32 1.5, %v7267
          %v7269 = vmul.f32 %v7264, %v7268
          %vm7270 = vweird.f32 %v7122
          %vm7271 = vweird.f32 %v7264
          %vm7272 = vmor %vm7270, %vm7271
          %v7273 = vsel %vm7272, %v7264, %v7269
          %v7274 = vrsqrt.pop %v7123
          %v7275 = vmul.f32 %v7274, %v7123
          %v7276 = vmul.f32 %v7275, %v7274
          %v7277 = vmul.f32 0.5, %v7276
          %v7278 = vsub.f32 1.5, %v7277
          %v7279 = vmul.f32 %v7274, %v7278
          %vm7280 = vweird.f32 %v7123
          %vm7281 = vweird.f32 %v7274
          %vm7282 = vmor %vm7280, %vm7281
          %v7283 = vsel %vm7282, %v7274, %v7279
          %v7284 = vmul.f32 %v7028, %v7133
          %v7285 = vmul.f32 %v7029, %v7143
          %v7286 = vmul.f32 %v7030, %v7153
          %v7287 = vmul.f32 %v7031, %v7163
          %v7288 = vmul.f32 %v7032, %v7173
          %v7289 = vmul.f32 %v7033, %v7183
          %v7290 = vmul.f32 %v7034, %v7193
          %v7291 = vmul.f32 %v7035, %v7203
          %v7292 = vmul.f32 %v7036, %v7213
          %v7293 = vmul.f32 %v7037, %v7223
          %v7294 = vmul.f32 %v7038, %v7233
          %v7295 = vmul.f32 %v7039, %v7243
          %v7296 = vmul.f32 %v7040, %v7253
          %v7297 = vmul.f32 %v7041, %v7263
          %v7298 = vmul.f32 %v7042, %v7273
          %v7299 = vmul.f32 %v7043, %v7283
          %v7301 = vperm.slane %v6978, 0
          %v7303 = vmul.f32 %v7284, %v7301
          %v7304 = vmul.f32 %v7285, %v7301
          %v7305 = vmul.f32 %v7286, %v7301
          %v7306 = vmul.f32 %v7287, %v7301
          %v7307 = vmul.f32 %v7288, %v7301
          %v7308 = vmul.f32 %v7289, %v7301
          %v7309 = vmul.f32 %v7290, %v7301
          %v7310 = vmul.f32 %v7291, %v7301
          %v7311 = vmul.f32 %v7292, %v7301
          %v7312 = vmul.f32 %v7293, %v7301
          %v7313 = vmul.f32 %v7294, %v7301
          %v7314 = vmul.f32 %v7295, %v7301
          %v7315 = vmul.f32 %v7296, %v7301
          %v7316 = vmul.f32 %v7297, %v7301
          %v7317 = vmul.f32 %v7298, %v7301
          %v7318 = vmul.f32 %v7299, %v7301
          %v7320 = vperm.slane %v6979, 0
          %v7322 = vadd.f32 %v7303, %v7320
          %v7323 = vadd.f32 %v7304, %v7320
          %v7324 = vadd.f32 %v7305, %v7320
          %v7325 = vadd.f32 %v7306, %v7320
          %v7326 = vadd.f32 %v7307, %v7320
          %v7327 = vadd.f32 %v7308, %v7320
          %v7328 = vadd.f32 %v7309, %v7320
          %v7329 = vadd.f32 %v7310, %v7320
          %v7330 = vadd.f32 %v7311, %v7320
          %v7331 = vadd.f32 %v7312, %v7320
          %v7332 = vadd.f32 %v7313, %v7320
          %v7333 = vadd.f32 %v7314, %v7320
          %v7334 = vadd.f32 %v7315, %v7320
          %v7335 = vadd.f32 %v7316, %v7320
          %v7336 = vadd.f32 %v7317, %v7320
          %v7337 = vadd.f32 %v7318, %v7320
          %v7338 = vlaneseq
          %v7339 = vshrl.u32 %v7338, 7
          %vm7340 = vcmp.ge.s32.totalorder %v7339, 1
          %v7341 = vsub.s32 %v856, 1
          %v7342 = vsub.s32 %v857, 1
          %v7343 = vsub.s32 %v858, 1
          %v7344 = vsub.s32 %v859, 1
          %v7345 = vsub.s32 %v860, 1
          %v7346 = vsub.s32 %v861, 1
          %v7347 = vsub.s32 %v862, 1
          %v7348 = vsub.s32 %v863, 1
          %v7349 = vsub.s32 %v864, 1
          %v7350 = vsub.s32 %v865, 1
          %v7351 = vsub.s32 %v866, 1
          %v7352 = vsub.s32 %v867, 1
          %v7353 = vsub.s32 %v868, 1
          %v7354 = vsub.s32 %v869, 1
          %v7355 = vsub.s32 %v870, 1
          %v7356 = vsub.s32 %v871, 1
          %v7357 = vperm.slane %v7341, 0
          %v7358 = vperm.slane %v7342, 0
          %v7359 = vperm.slane %v7343, 0
          %v7360 = vperm.slane %v7344, 0
          %v7361 = vperm.slane %v7345, 0
          %v7362 = vperm.slane %v7346, 0
          %v7363 = vperm.slane %v7347, 0
          %v7364 = vperm.slane %v7348, 0
          %v7365 = vperm.slane %v7349, 0
          %v7366 = vperm.slane %v7350, 0
          %v7367 = vperm.slane %v7351, 0
          %v7368 = vperm.slane %v7352, 0
          %v7369 = vperm.slane %v7353, 0
          %v7370 = vperm.slane %v7354, 0
          %v7371 = vperm.slane %v7355, 0
          %v7372 = vperm.slane %v7356, 0
          %vm7373 = vcmp.lt.s32.totalorder %v7339, %v7357
          %vm7374 = vcmp.lt.s32.totalorder %v7339, %v7358
          %vm7375 = vcmp.lt.s32.totalorder %v7339, %v7359
          %vm7376 = vcmp.lt.s32.totalorder %v7339, %v7360
          %vm7377 = vcmp.lt.s32.totalorder %v7339, %v7361
          %vm7378 = vcmp.lt.s32.totalorder %v7339, %v7362
          %vm7379 = vcmp.lt.s32.totalorder %v7339, %v7363
          %vm7380 = vcmp.lt.s32.totalorder %v7339, %v7364
          %vm7381 = vcmp.lt.s32.totalorder %v7339, %v7365
          %vm7382 = vcmp.lt.s32.totalorder %v7339, %v7366
          %vm7383 = vcmp.lt.s32.totalorder %v7339, %v7367
          %vm7384 = vcmp.lt.s32.totalorder %v7339, %v7368
          %vm7385 = vcmp.lt.s32.totalorder %v7339, %v7369
          %vm7386 = vcmp.lt.s32.totalorder %v7339, %v7370
          %vm7387 = vcmp.lt.s32.totalorder %v7339, %v7371
          %vm7388 = vcmp.lt.s32.totalorder %v7339, %v7372
          %v7389 = vsel %vm7340, 1, 0
          %vm7390 = vcmp.eq.s32.totalorder %v7389, 1
          %vm7391 = vmand %vm7390, %vm7373
          %vm7392 = vmand %vm7390, %vm7374
          %vm7393 = vmand %vm7390, %vm7375
          %vm7394 = vmand %vm7390, %vm7376
          %vm7395 = vmand %vm7390, %vm7377
          %vm7396 = vmand %vm7390, %vm7378
          %vm7397 = vmand %vm7390, %vm7379
          %vm7398 = vmand %vm7390, %vm7380
          %vm7399 = vmand %vm7390, %vm7381
          %vm7400 = vmand %vm7390, %vm7382
          %vm7401 = vmand %vm7390, %vm7383
          %vm7402 = vmand %vm7390, %vm7384
          %vm7403 = vmand %vm7390, %vm7385
          %vm7404 = vmand %vm7390, %vm7386
          %vm7405 = vmand %vm7390, %vm7387
          %vm7406 = vmand %vm7390, %vm7388
          %v7407 = vsel %vm7391, 1, 0
          %v7408 = vsel %vm7392, 1, 0
          %v7409 = vsel %vm7393, 1, 0
          %v7410 = vsel %vm7394, 1, 0
          %v7411 = vsel %vm7395, 1, 0
          %v7412 = vsel %vm7396, 1, 0
          %v7413 = vsel %vm7397, 1, 0
          %v7414 = vsel %vm7398, 1, 0
          %v7415 = vsel %vm7399, 1, 0
          %v7416 = vsel %vm7400, 1, 0
          %v7417 = vsel %vm7401, 1, 0
          %v7418 = vsel %vm7402, 1, 0
          %v7419 = vsel %vm7403, 1, 0
          %v7420 = vsel %vm7404, 1, 0
          %v7421 = vsel %vm7405, 1, 0
          %v7422 = vsel %vm7406, 1, 0
          %7423 = vset.pattern.permute.xlu0 0
          %7424 = vperm.xlu0 %7423, %v7407
          %v7425 = vpop.permute.xlu0 %7424
          %7426 = vset.pattern.permute.xlu0 0
          %7427 = vperm.xlu0 %7426, %v7408
          %v7428 = vpop.permute.xlu0 %7427
          %7429 = vset.pattern.permute.xlu0 0
          %7430 = vperm.xlu0 %7429, %v7409
          %v7431 = vpop.permute.xlu0 %7430
          %7432 = vset.pattern.permute.xlu0 0
          %7433 = vperm.xlu0 %7432, %v7410
          %v7434 = vpop.permute.xlu0 %7433
          %7435 = vset.pattern.permute.xlu0 0
          %7436 = vperm.xlu0 %7435, %v7411
          %v7437 = vpop.permute.xlu0 %7436
          %7438 = vset.pattern.permute.xlu0 0
          %7439 = vperm.xlu0 %7438, %v7412
          %v7440 = vpop.permute.xlu0 %7439
          %7441 = vset.pattern.permute.xlu0 0
          %7442 = vperm.xlu0 %7441, %v7413
          %v7443 = vpop.permute.xlu0 %7442
          %7444 = vset.pattern.permute.xlu0 0
          %7445 = vperm.xlu0 %7444, %v7414
          %v7446 = vpop.permute.xlu0 %7445
          %7447 = vset.pattern.permute.xlu0 0
          %7448 = vperm.xlu0 %7447, %v7415
          %v7449 = vpop.permute.xlu0 %7448
          %7450 = vset.pattern.permute.xlu0 0
          %7451 = vperm.xlu0 %7450, %v7416
          %v7452 = vpop.permute.xlu0 %7451
          %7453 = vset.pattern.permute.xlu0 0
          %7454 = vperm.xlu0 %7453, %v7417
          %v7455 = vpop.permute.xlu0 %7454
          %7456 = vset.pattern.permute.xlu0 0
          %7457 = vperm.xlu0 %7456, %v7418
          %v7458 = vpop.permute.xlu0 %7457
          %7459 = vset.pattern.permute.xlu0 0
          %7460 = vperm.xlu0 %7459, %v7419
          %v7461 = vpop.permute.xlu0 %7460
          %7462 = vset.pattern.permute.xlu0 0
          %7463 = vperm.xlu0 %7462, %v7420
          %v7464 = vpop.permute.xlu0 %7463
          %7465 = vset.pattern.permute.xlu0 0
          %7466 = vperm.xlu0 %7465, %v7421
          %v7467 = vpop.permute.xlu0 %7466
          %7468 = vset.pattern.permute.xlu0 0
          %7469 = vperm.xlu0 %7468, %v7422
          %v7470 = vpop.permute.xlu0 %7469
          %vm7471 = vcmp.eq.s32.totalorder %v7425, 1
          %vm7472 = vcmp.eq.s32.totalorder %v7428, 1
          %vm7473 = vcmp.eq.s32.totalorder %v7431, 1
          %vm7474 = vcmp.eq.s32.totalorder %v7434, 1
          %vm7475 = vcmp.eq.s32.totalorder %v7437, 1
          %vm7476 = vcmp.eq.s32.totalorder %v7440, 1
          %vm7477 = vcmp.eq.s32.totalorder %v7443, 1
          %vm7478 = vcmp.eq.s32.totalorder %v7446, 1
          %vm7479 = vcmp.eq.s32.totalorder %v7449, 1
          %vm7480 = vcmp.eq.s32.totalorder %v7452, 1
          %vm7481 = vcmp.eq.s32.totalorder %v7455, 1
          %vm7482 = vcmp.eq.s32.totalorder %v7458, 1
          %vm7483 = vcmp.eq.s32.totalorder %v7461, 1
          %vm7484 = vcmp.eq.s32.totalorder %v7464, 1
          %vm7485 = vcmp.eq.s32.totalorder %v7467, 1
          %vm7486 = vcmp.eq.s32.totalorder %v7470, 1
          %v7487 = vsel %vm7471, %v7322, 0.0
          %v7488 = vsel %vm7472, %v7323, 0.0
          %v7489 = vsel %vm7473, %v7324, 0.0
          %v7490 = vsel %vm7474, %v7325, 0.0
          %v7491 = vsel %vm7475, %v7326, 0.0
          %v7492 = vsel %vm7476, %v7327, 0.0
          %v7493 = vsel %vm7477, %v7328, 0.0
          %v7494 = vsel %vm7478, %v7329, 0.0
          %v7495 = vsel %vm7479, %v7330, 0.0
          %v7496 = vsel %vm7480, %v7331, 0.0
          %v7497 = vsel %vm7481, %v7332, 0.0
          %v7498 = vsel %vm7482, %v7333, 0.0
          %v7499 = vsel %vm7483, %v7334, 0.0
          %v7500 = vsel %vm7484, %v7335, 0.0
          %v7501 = vsel %vm7485, %v7336, 0.0
          %v7502 = vsel %vm7486, %v7337, 0.0
          %v7503 = vrot.slane %v7487, 4
          %v7504 = vadd.f32 %v7487, %v7503
          %v7505 = vrot.slane %v7504, 2
          %v7506 = vadd.f32 %v7504, %v7505
          %v7507 = vrot.slane %v7506, 1
          %v7508 = vadd.f32 %v7506, %v7507
          %v7509 = vrot.slane %v7488, 4
          %v7510 = vadd.f32 %v7488, %v7509
          %v7511 = vrot.slane %v7510, 2
          %v7512 = vadd.f32 %v7510, %v7511
          %v7513 = vrot.slane %v7512, 1
          %v7514 = vadd.f32 %v7512, %v7513
          %v7515 = vrot.slane %v7489, 4
          %v7516 = vadd.f32 %v7489, %v7515
          %v7517 = vrot.slane %v7516, 2
          %v7518 = vadd.f32 %v7516, %v7517
          %v7519 = vrot.slane %v7518, 1
          %v7520 = vadd.f32 %v7518, %v7519
          %v7521 = vrot.slane %v7490, 4
          %v7522 = vadd.f32 %v7490, %v7521
          %v7523 = vrot.slane %v7522, 2
          %v7524 = vadd.f32 %v7522, %v7523
          %v7525 = vrot.slane %v7524, 1
          %v7526 = vadd.f32 %v7524, %v7525
          %v7527 = vrot.slane %v7491, 4
          %v7528 = vadd.f32 %v7491, %v7527
          %v7529 = vrot.slane %v7528, 2
          %v7530 = vadd.f32 %v7528, %v7529
          %v7531 = vrot.slane %v7530, 1
          %v7532 = vadd.f32 %v7530, %v7531
          %v7533 = vrot.slane %v7492, 4
          %v7534 = vadd.f32 %v7492, %v7533
          %v7535 = vrot.slane %v7534, 2
          %v7536 = vadd.f32 %v7534, %v7535
          %v7537 = vrot.slane %v7536, 1
          %v7538 = vadd.f32 %v7536, %v7537
          %v7539 = vrot.slane %v7493, 4
          %v7540 = vadd.f32 %v7493, %v7539
          %v7541 = vrot.slane %v7540, 2
          %v7542 = vadd.f32 %v7540, %v7541
          %v7543 = vrot.slane %v7542, 1
          %v7544 = vadd.f32 %v7542, %v7543
          %v7545 = vrot.slane %v7494, 4
          %v7546 = vadd.f32 %v7494, %v7545
          %v7547 = vrot.slane %v7546, 2
          %v7548 = vadd.f32 %v7546, %v7547
          %v7549 = vrot.slane %v7548, 1
          %v7550 = vadd.f32 %v7548, %v7549
          %v7551 = vrot.slane %v7495, 4
          %v7552 = vadd.f32 %v7495, %v7551
          %v7553 = vrot.slane %v7552, 2
          %v7554 = vadd.f32 %v7552, %v7553
          %v7555 = vrot.slane %v7554, 1
          %v7556 = vadd.f32 %v7554, %v7555
          %v7557 = vrot.slane %v7496, 4
          %v7558 = vadd.f32 %v7496, %v7557
          %v7559 = vrot.slane %v7558, 2
          %v7560 = vadd.f32 %v7558, %v7559
          %v7561 = vrot.slane %v7560, 1
          %v7562 = vadd.f32 %v7560, %v7561
          %v7563 = vrot.slane %v7497, 4
          %v7564 = vadd.f32 %v7497, %v7563
          %v7565 = vrot.slane %v7564, 2
          %v7566 = vadd.f32 %v7564, %v7565
          %v7567 = vrot.slane %v7566, 1
          %v7568 = vadd.f32 %v7566, %v7567
          %v7569 = vrot.slane %v7498, 4
          %v7570 = vadd.f32 %v7498, %v7569
          %v7571 = vrot.slane %v7570, 2
          %v7572 = vadd.f32 %v7570, %v7571
          %v7573 = vrot.slane %v7572, 1
          %v7574 = vadd.f32 %v7572, %v7573
          %v7575 = vrot.slane %v7499, 4
          %v7576 = vadd.f32 %v7499, %v7575
          %v7577 = vrot.slane %v7576, 2
          %v7578 = vadd.f32 %v7576, %v7577
          %v7579 = vrot.slane %v7578, 1
          %v7580 = vadd.f32 %v7578, %v7579
          %v7581 = vrot.slane %v7500, 4
          %v7582 = vadd.f32 %v7500, %v7581
          %v7583 = vrot.slane %v7582, 2
          %v7584 = vadd.f32 %v7582, %v7583
          %v7585 = vrot.slane %v7584, 1
          %v7586 = vadd.f32 %v7584, %v7585
          %v7587 = vrot.slane %v7501, 4
          %v7588 = vadd.f32 %v7501, %v7587
          %v7589 = vrot.slane %v7588, 2
          %v7590 = vadd.f32 %v7588, %v7589
          %v7591 = vrot.slane %v7590, 1
          %v7592 = vadd.f32 %v7590, %v7591
          %v7593 = vrot.slane %v7502, 4
          %v7594 = vadd.f32 %v7502, %v7593
          %v7595 = vrot.slane %v7594, 2
          %v7596 = vadd.f32 %v7594, %v7595
          %v7597 = vrot.slane %v7596, 1
          %v7598 = vadd.f32 %v7596, %v7597
          %v7599 = vsub.s32 %v856, 2
          %v7600 = vsub.s32 %v857, 2
          %v7601 = vsub.s32 %v858, 2
          %v7602 = vsub.s32 %v859, 2
          %v7603 = vsub.s32 %v860, 2
          %v7604 = vsub.s32 %v861, 2
          %v7605 = vsub.s32 %v862, 2
          %v7606 = vsub.s32 %v863, 2
          %v7607 = vsub.s32 %v864, 2
          %v7608 = vsub.s32 %v865, 2
          %v7609 = vsub.s32 %v866, 2
          %v7610 = vsub.s32 %v867, 2
          %v7611 = vsub.s32 %v868, 2
          %v7612 = vsub.s32 %v869, 2
          %v7613 = vsub.s32 %v870, 2
          %v7614 = vsub.s32 %v871, 2
          %vm7615 = vcmp.gt.s32.totalorder %v7599, 1
          %v7616 = vsel %vm7615, %v7599, 1
          %vm7617 = vcmp.gt.s32.totalorder %v7600, 1
          %v7618 = vsel %vm7617, %v7600, 1
          %vm7619 = vcmp.gt.s32.totalorder %v7601, 1
          %v7620 = vsel %vm7619, %v7601, 1
          %vm7621 = vcmp.gt.s32.totalorder %v7602, 1
          %v7622 = vsel %vm7621, %v7602, 1
          %vm7623 = vcmp.gt.s32.totalorder %v7603, 1
          %v7624 = vsel %vm7623, %v7603, 1
          %vm7625 = vcmp.gt.s32.totalorder %v7604, 1
          %v7626 = vsel %vm7625, %v7604, 1
          %vm7627 = vcmp.gt.s32.totalorder %v7605, 1
          %v7628 = vsel %vm7627, %v7605, 1
          %vm7629 = vcmp.gt.s32.totalorder %v7606, 1
          %v7630 = vsel %vm7629, %v7606, 1
          %vm7631 = vcmp.gt.s32.totalorder %v7607, 1
          %v7632 = vsel %vm7631, %v7607, 1
          %vm7633 = vcmp.gt.s32.totalorder %v7608, 1
          %v7634 = vsel %vm7633, %v7608, 1
          %vm7635 = vcmp.gt.s32.totalorder %v7609, 1
          %v7636 = vsel %vm7635, %v7609, 1
          %vm7637 = vcmp.gt.s32.totalorder %v7610, 1
          %v7638 = vsel %vm7637, %v7610, 1
          %vm7639 = vcmp.gt.s32.totalorder %v7611, 1
          %v7640 = vsel %vm7639, %v7611, 1
          %vm7641 = vcmp.gt.s32.totalorder %v7612, 1
          %v7642 = vsel %vm7641, %v7612, 1
          %vm7643 = vcmp.gt.s32.totalorder %v7613, 1
          %v7644 = vsel %vm7643, %v7613, 1
          %vm7645 = vcmp.gt.s32.totalorder %v7614, 1
          %v7646 = vsel %vm7645, %v7614, 1
          %v7647 = vcvt.s32.f32 %v7616
          %v7648 = vcvt.s32.f32 %v7618
          %v7649 = vcvt.s32.f32 %v7620
          %v7650 = vcvt.s32.f32 %v7622
          %v7651 = vcvt.s32.f32 %v7624
          %v7652 = vcvt.s32.f32 %v7626
          %v7653 = vcvt.s32.f32 %v7628
          %v7654 = vcvt.s32.f32 %v7630
          %v7655 = vcvt.s32.f32 %v7632
          %v7656 = vcvt.s32.f32 %v7634
          %v7657 = vcvt.s32.f32 %v7636
          %v7658 = vcvt.s32.f32 %v7638
          %v7659 = vcvt.s32.f32 %v7640
          %v7660 = vcvt.s32.f32 %v7642
          %v7661 = vcvt.s32.f32 %v7644
          %v7662 = vcvt.s32.f32 %v7646
          %7664 = vset.pattern.permute.xlu0 0
          %7665 = vperm.xlu0 %7664, %v7647
          %v7666 = vpop.permute.xlu0 %7665
          %v7668 = vperm.slane %v7666, 0
          %7670 = vset.pattern.permute.xlu0 0
          %7671 = vperm.xlu0 %7670, %v7648
          %v7672 = vpop.permute.xlu0 %7671
          %v7674 = vperm.slane %v7672, 0
          %7676 = vset.pattern.permute.xlu0 0
          %7677 = vperm.xlu0 %7676, %v7649
          %v7678 = vpop.permute.xlu0 %7677
          %v7680 = vperm.slane %v7678, 0
          %7682 = vset.pattern.permute.xlu0 0
          %7683 = vperm.xlu0 %7682, %v7650
          %v7684 = vpop.permute.xlu0 %7683
          %v7686 = vperm.slane %v7684, 0
          %7688 = vset.pattern.permute.xlu0 0
          %7689 = vperm.xlu0 %7688, %v7651
          %v7690 = vpop.permute.xlu0 %7689
          %v7692 = vperm.slane %v7690, 0
          %7694 = vset.pattern.permute.xlu0 0
          %7695 = vperm.xlu0 %7694, %v7652
          %v7696 = vpop.permute.xlu0 %7695
          %v7698 = vperm.slane %v7696, 0
          %7700 = vset.pattern.permute.xlu0 0
          %7701 = vperm.xlu0 %7700, %v7653
          %v7702 = vpop.permute.xlu0 %7701
          %v7704 = vperm.slane %v7702, 0
          %7706 = vset.pattern.permute.xlu0 0
          %7707 = vperm.xlu0 %7706, %v7654
          %v7708 = vpop.permute.xlu0 %7707
          %v7710 = vperm.slane %v7708, 0
          %7712 = vset.pattern.permute.xlu0 0
          %7713 = vperm.xlu0 %7712, %v7655
          %v7714 = vpop.permute.xlu0 %7713
          %v7716 = vperm.slane %v7714, 0
          %7718 = vset.pattern.permute.xlu0 0
          %7719 = vperm.xlu0 %7718, %v7656
          %v7720 = vpop.permute.xlu0 %7719
          %v7722 = vperm.slane %v7720, 0
          %7724 = vset.pattern.permute.xlu0 0
          %7725 = vperm.xlu0 %7724, %v7657
          %v7726 = vpop.permute.xlu0 %7725
          %v7728 = vperm.slane %v7726, 0
          %7730 = vset.pattern.permute.xlu0 0
          %7731 = vperm.xlu0 %7730, %v7658
          %v7732 = vpop.permute.xlu0 %7731
          %v7734 = vperm.slane %v7732, 0
          %7736 = vset.pattern.permute.xlu0 0
          %7737 = vperm.xlu0 %7736, %v7659
          %v7738 = vpop.permute.xlu0 %7737
          %v7740 = vperm.slane %v7738, 0
          %7742 = vset.pattern.permute.xlu0 0
          %7743 = vperm.xlu0 %7742, %v7660
          %v7744 = vpop.permute.xlu0 %7743
          %v7746 = vperm.slane %v7744, 0
          %7748 = vset.pattern.permute.xlu0 0
          %7749 = vperm.xlu0 %7748, %v7661
          %v7750 = vpop.permute.xlu0 %7749
          %v7752 = vperm.slane %v7750, 0
          %7754 = vset.pattern.permute.xlu0 0
          %7755 = vperm.xlu0 %7754, %v7662
          %v7756 = vpop.permute.xlu0 %7755
          %v7758 = vperm.slane %v7756, 0
          %v7759 = vrcp.pop %v7668
          %v7760 = vmul.f32 %v7668, %v7759
          %v7761 = vsub.f32 1.0, %v7760
          %v7762 = vmul.f32 %v7759, %v7761
          %v7763 = vadd.f32 %v7759, %v7762
          %vm7764 = vweird.f32 %v7668
          %vm7765 = vweird.f32 %v7759
          %vm7766 = vmor %vm7764, %vm7765
          %v7767 = vsel %vm7766, %v7759, %v7763
          %v7768 = vand.u32 2147483647, %v7668
          %vm7769 = vcmp.eq.f32.partialorder %v7768, 8.507059e+37
          %v7770 = vand.u32 %v7668, 2147483648
          %v7771 = vor.u32 1.1754944e-38, %v7770
          %v7772 = vsel %vm7769, %v7771, %v7767
          %v7773 = vmul.f32 %v7508, %v7772
          %v7774 = vrcp.pop %v7674
          %v7775 = vmul.f32 %v7674, %v7774
          %v7776 = vsub.f32 1.0, %v7775
          %v7777 = vmul.f32 %v7774, %v7776
          %v7778 = vadd.f32 %v7774, %v7777
          %vm7779 = vweird.f32 %v7674
          %vm7780 = vweird.f32 %v7774
          %vm7781 = vmor %vm7779, %vm7780
          %v7782 = vsel %vm7781, %v7774, %v7778
          %v7783 = vand.u32 2147483647, %v7674
          %vm7784 = vcmp.eq.f32.partialorder %v7783, 8.507059e+37
          %v7785 = vand.u32 %v7674, 2147483648
          %v7786 = vor.u32 1.1754944e-38, %v7785
          %v7787 = vsel %vm7784, %v7786, %v7782
          %v7788 = vmul.f32 %v7514, %v7787
          %v7789 = vrcp.pop %v7680
          %v7790 = vmul.f32 %v7680, %v7789
          %v7791 = vsub.f32 1.0, %v7790
          %v7792 = vmul.f32 %v7789, %v7791
          %v7793 = vadd.f32 %v7789, %v7792
          %vm7794 = vweird.f32 %v7680
          %vm7795 = vweird.f32 %v7789
          %vm7796 = vmor %vm7794, %vm7795
          %v7797 = vsel %vm7796, %v7789, %v7793
          %v7798 = vand.u32 2147483647, %v7680
          %vm7799 = vcmp.eq.f32.partialorder %v7798, 8.507059e+37
          %v7800 = vand.u32 %v7680, 2147483648
          %v7801 = vor.u32 1.1754944e-38, %v7800
          %v7802 = vsel %vm7799, %v7801, %v7797
          %v7803 = vmul.f32 %v7520, %v7802
          %v7804 = vrcp.pop %v7686
          %v7805 = vmul.f32 %v7686, %v7804
          %v7806 = vsub.f32 1.0, %v7805
          %v7807 = vmul.f32 %v7804, %v7806
          %v7808 = vadd.f32 %v7804, %v7807
          %vm7809 = vweird.f32 %v7686
          %vm7810 = vweird.f32 %v7804
          %vm7811 = vmor %vm7809, %vm7810
          %v7812 = vsel %vm7811, %v7804, %v7808
          %v7813 = vand.u32 2147483647, %v7686
          %vm7814 = vcmp.eq.f32.partialorder %v7813, 8.507059e+37
          %v7815 = vand.u32 %v7686, 2147483648
          %v7816 = vor.u32 1.1754944e-38, %v7815
          %v7817 = vsel %vm7814, %v7816, %v7812
          %v7818 = vmul.f32 %v7526, %v7817
          %v7819 = vrcp.pop %v7692
          %v7820 = vmul.f32 %v7692, %v7819
          %v7821 = vsub.f32 1.0, %v7820
          %v7822 = vmul.f32 %v7819, %v7821
          %v7823 = vadd.f32 %v7819, %v7822
          %vm7824 = vweird.f32 %v7692
          %vm7825 = vweird.f32 %v7819
          %vm7826 = vmor %vm7824, %vm7825
          %v7827 = vsel %vm7826, %v7819, %v7823
          %v7828 = vand.u32 2147483647, %v7692
          %vm7829 = vcmp.eq.f32.partialorder %v7828, 8.507059e+37
          %v7830 = vand.u32 %v7692, 2147483648
          %v7831 = vor.u32 1.1754944e-38, %v7830
          %v7832 = vsel %vm7829, %v7831, %v7827
          %v7833 = vmul.f32 %v7532, %v7832
          %v7834 = vrcp.pop %v7698
          %v7835 = vmul.f32 %v7698, %v7834
          %v7836 = vsub.f32 1.0, %v7835
          %v7837 = vmul.f32 %v7834, %v7836
          %v7838 = vadd.f32 %v7834, %v7837
          %vm7839 = vweird.f32 %v7698
          %vm7840 = vweird.f32 %v7834
          %vm7841 = vmor %vm7839, %vm7840
          %v7842 = vsel %vm7841, %v7834, %v7838
          %v7843 = vand.u32 2147483647, %v7698
          %vm7844 = vcmp.eq.f32.partialorder %v7843, 8.507059e+37
          %v7845 = vand.u32 %v7698, 2147483648
          %v7846 = vor.u32 1.1754944e-38, %v7845
          %v7847 = vsel %vm7844, %v7846, %v7842
          %v7848 = vmul.f32 %v7538, %v7847
          %v7849 = vrcp.pop %v7704
          %v7850 = vmul.f32 %v7704, %v7849
          %v7851 = vsub.f32 1.0, %v7850
          %v7852 = vmul.f32 %v7849, %v7851
          %v7853 = vadd.f32 %v7849, %v7852
          %vm7854 = vweird.f32 %v7704
          %vm7855 = vweird.f32 %v7849
          %vm7856 = vmor %vm7854, %vm7855
          %v7857 = vsel %vm7856, %v7849, %v7853
          %v7858 = vand.u32 2147483647, %v7704
          %vm7859 = vcmp.eq.f32.partialorder %v7858, 8.507059e+37
          %v7860 = vand.u32 %v7704, 2147483648
          %v7861 = vor.u32 1.1754944e-38, %v7860
          %v7862 = vsel %vm7859, %v7861, %v7857
          %v7863 = vmul.f32 %v7544, %v7862
          %v7864 = vrcp.pop %v7710
          %v7865 = vmul.f32 %v7710, %v7864
          %v7866 = vsub.f32 1.0, %v7865
          %v7867 = vmul.f32 %v7864, %v7866
          %v7868 = vadd.f32 %v7864, %v7867
          %vm7869 = vweird.f32 %v7710
          %vm7870 = vweird.f32 %v7864
          %vm7871 = vmor %vm7869, %vm7870
          %v7872 = vsel %vm7871, %v7864, %v7868
          %v7873 = vand.u32 2147483647, %v7710
          %vm7874 = vcmp.eq.f32.partialorder %v7873, 8.507059e+37
          %v7875 = vand.u32 %v7710, 2147483648
          %v7876 = vor.u32 1.1754944e-38, %v7875
          %v7877 = vsel %vm7874, %v7876, %v7872
          %v7878 = vmul.f32 %v7550, %v7877
          %v7879 = vrcp.pop %v7716
          %v7880 = vmul.f32 %v7716, %v7879
          %v7881 = vsub.f32 1.0, %v7880
          %v7882 = vmul.f32 %v7879, %v7881
          %v7883 = vadd.f32 %v7879, %v7882
          %vm7884 = vweird.f32 %v7716
          %vm7885 = vweird.f32 %v7879
          %vm7886 = vmor %vm7884, %vm7885
          %v7887 = vsel %vm7886, %v7879, %v7883
          %v7888 = vand.u32 2147483647, %v7716
          %vm7889 = vcmp.eq.f32.partialorder %v7888, 8.507059e+37
          %v7890 = vand.u32 %v7716, 2147483648
          %v7891 = vor.u32 1.1754944e-38, %v7890
          %v7892 = vsel %vm7889, %v7891, %v7887
          %v7893 = vmul.f32 %v7556, %v7892
          %v7894 = vrcp.pop %v7722
          %v7895 = vmul.f32 %v7722, %v7894
          %v7896 = vsub.f32 1.0, %v7895
          %v7897 = vmul.f32 %v7894, %v7896
          %v7898 = vadd.f32 %v7894, %v7897
          %vm7899 = vweird.f32 %v7722
          %vm7900 = vweird.f32 %v7894
          %vm7901 = vmor %vm7899, %vm7900
          %v7902 = vsel %vm7901, %v7894, %v7898
          %v7903 = vand.u32 2147483647, %v7722
          %vm7904 = vcmp.eq.f32.partialorder %v7903, 8.507059e+37
          %v7905 = vand.u32 %v7722, 2147483648
          %v7906 = vor.u32 1.1754944e-38, %v7905
          %v7907 = vsel %vm7904, %v7906, %v7902
          %v7908 = vmul.f32 %v7562, %v7907
          %v7909 = vrcp.pop %v7728
          %v7910 = vmul.f32 %v7728, %v7909
          %v7911 = vsub.f32 1.0, %v7910
          %v7912 = vmul.f32 %v7909, %v7911
          %v7913 = vadd.f32 %v7909, %v7912
          %vm7914 = vweird.f32 %v7728
          %vm7915 = vweird.f32 %v7909
          %vm7916 = vmor %vm7914, %vm7915
          %v7917 = vsel %vm7916, %v7909, %v7913
          %v7918 = vand.u32 2147483647, %v7728
          %vm7919 = vcmp.eq.f32.partialorder %v7918, 8.507059e+37
          %v7920 = vand.u32 %v7728, 2147483648
          %v7921 = vor.u32 1.1754944e-38, %v7920
          %v7922 = vsel %vm7919, %v7921, %v7917
          %v7923 = vmul.f32 %v7568, %v7922
          %v7924 = vrcp.pop %v7734
          %v7925 = vmul.f32 %v7734, %v7924
          %v7926 = vsub.f32 1.0, %v7925
          %v7927 = vmul.f32 %v7924, %v7926
          %v7928 = vadd.f32 %v7924, %v7927
          %vm7929 = vweird.f32 %v7734
          %vm7930 = vweird.f32 %v7924
          %vm7931 = vmor %vm7929, %vm7930
          %v7932 = vsel %vm7931, %v7924, %v7928
          %v7933 = vand.u32 2147483647, %v7734
          %vm7934 = vcmp.eq.f32.partialorder %v7933, 8.507059e+37
          %v7935 = vand.u32 %v7734, 2147483648
          %v7936 = vor.u32 1.1754944e-38, %v7935
          %v7937 = vsel %vm7934, %v7936, %v7932
          %v7938 = vmul.f32 %v7574, %v7937
          %v7939 = vrcp.pop %v7740
          %v7940 = vmul.f32 %v7740, %v7939
          %v7941 = vsub.f32 1.0, %v7940
          %v7942 = vmul.f32 %v7939, %v7941
          %v7943 = vadd.f32 %v7939, %v7942
          %vm7944 = vweird.f32 %v7740
          %vm7945 = vweird.f32 %v7939
          %vm7946 = vmor %vm7944, %vm7945
          %v7947 = vsel %vm7946, %v7939, %v7943
          %v7948 = vand.u32 2147483647, %v7740
          %vm7949 = vcmp.eq.f32.partialorder %v7948, 8.507059e+37
          %v7950 = vand.u32 %v7740, 2147483648
          %v7951 = vor.u32 1.1754944e-38, %v7950
          %v7952 = vsel %vm7949, %v7951, %v7947
          %v7953 = vmul.f32 %v7580, %v7952
          %v7954 = vrcp.pop %v7746
          %v7955 = vmul.f32 %v7746, %v7954
          %v7956 = vsub.f32 1.0, %v7955
          %v7957 = vmul.f32 %v7954, %v7956
          %v7958 = vadd.f32 %v7954, %v7957
          %vm7959 = vweird.f32 %v7746
          %vm7960 = vweird.f32 %v7954
          %vm7961 = vmor %vm7959, %vm7960
          %v7962 = vsel %vm7961, %v7954, %v7958
          %v7963 = vand.u32 2147483647, %v7746
          %vm7964 = vcmp.eq.f32.partialorder %v7963, 8.507059e+37
          %v7965 = vand.u32 %v7746, 2147483648
          %v7966 = vor.u32 1.1754944e-38, %v7965
          %v7967 = vsel %vm7964, %v7966, %v7962
          %v7968 = vmul.f32 %v7586, %v7967
          %v7969 = vrcp.pop %v7752
          %v7970 = vmul.f32 %v7752, %v7969
          %v7971 = vsub.f32 1.0, %v7970
          %v7972 = vmul.f32 %v7969, %v7971
          %v7973 = vadd.f32 %v7969, %v7972
          %vm7974 = vweird.f32 %v7752
          %vm7975 = vweird.f32 %v7969
          %vm7976 = vmor %vm7974, %vm7975
          %v7977 = vsel %vm7976, %v7969, %v7973
          %v7978 = vand.u32 2147483647, %v7752
          %vm7979 = vcmp.eq.f32.partialorder %v7978, 8.507059e+37
          %v7980 = vand.u32 %v7752, 2147483648
          %v7981 = vor.u32 1.1754944e-38, %v7980
          %v7982 = vsel %vm7979, %v7981, %v7977
          %v7983 = vmul.f32 %v7592, %v7982
          %v7984 = vrcp.pop %v7758
          %v7985 = vmul.f32 %v7758, %v7984
          %v7986 = vsub.f32 1.0, %v7985
          %v7987 = vmul.f32 %v7984, %v7986
          %v7988 = vadd.f32 %v7984, %v7987
          %vm7989 = vweird.f32 %v7758
          %vm7990 = vweird.f32 %v7984
          %vm7991 = vmor %vm7989, %vm7990
          %v7992 = vsel %vm7991, %v7984, %v7988
          %v7993 = vand.u32 2147483647, %v7758
          %vm7994 = vcmp.eq.f32.partialorder %v7993, 8.507059e+37
          %v7995 = vand.u32 %v7758, 2147483648
          %v7996 = vor.u32 1.1754944e-38, %v7995
          %v7997 = vsel %vm7994, %v7996, %v7992
          %v7998 = vmul.f32 %v7598, %v7997
          %7999 = vst [vmem:[%s821] sm:$0x1] %v7773
          %8000 = vst [vmem:[%s821 + $0x1] sm:$0x1] %v7788
          %8001 = vst [vmem:[%s821 + $0x2] sm:$0x1] %v7803
          %8002 = vst [vmem:[%s821 + $0x3] sm:$0x1] %v7818
          %8003 = vst [vmem:[%s821 + $0x4] sm:$0x1] %v7833
          %8004 = vst [vmem:[%s821 + $0x5] sm:$0x1] %v7848
          %8005 = vst [vmem:[%s821 + $0x6] sm:$0x1] %v7863
          %8006 = vst [vmem:[%s821 + $0x7] sm:$0x1] %v7878
          %8007 = vst [vmem:[%s821 + $0x8] sm:$0x1] %v7893
          %8008 = vst [vmem:[%s821 + $0x9] sm:$0x1] %v7908
          %8009 = vst [vmem:[%s821 + $0xa] sm:$0x1] %v7923
          %8010 = vst [vmem:[%s821 + $0xb] sm:$0x1] %v7938
          %8011 = vst [vmem:[%s821 + $0xc] sm:$0x1] %v7953
          %8012 = vst [vmem:[%s821 + $0xd] sm:$0x1] %v7968
          %8013 = vst [vmem:[%s821 + $0xe] sm:$0x1] %v7983
          %8014 = vst [vmem:[%s821 + $0xf] sm:$0x1] %v7998
        $region112: #{tpu_custom_call.1} parent=83 // pred_fallthru
          _
        %s8015 = sand.u32 %s465, 1
        %s8016 = scalar_lea.sflag [#allocation5], %s8015
        %s8017 = sand.u32 %s465, 1
        %s8018 = smul.addr %s8017, 16
        %s8019 = scalar_lea.vmem [#allocation12], %s8018
        // Predicated region
        $region113: #{tpu_custom_call.1} parent=83 // pred_check
          %p8020 = pneg %p475
        $region114: #{tpu_custom_call.1} parent=83 // pred_check_branch
          %8022 = sbr.rel (%p8020) target = $region116
        $region115: #{tpu_custom_call.1} parent=83 // pred_region
          %s8023 = smul.u32 16, %s43
          %8025 = vsyncadd %s8016, 0
          %s8026 = scalar_lea.hbm %s16, %s8023
          %s8027 = sshll.u32 %s8019, 4
          %s8028 = int_to_ptr.vmem [resolvable:$true] %s8027
          %s8029 = sshll.u32 %s8026, 4
          %s8030 = int_to_ptr.hbm [resolvable:$true] %s8029
          %8035 = dma.vmem_to_hbm [thread:$0]  %s8028, 256, %s8030, %s8016, 16, 16, 1
        $region116: #{tpu_custom_call.1} parent=83 // pred_fallthru
          _
      $region84: #{tpu_custom_call.1} parent=5 // pred_fallthru
        _
      %p8036 = scmp.le.s32.totalorder 2, %s34
      // Predicated region
      $region117: #{tpu_custom_call.1} parent=5 // pred_check
        %p8037 = pneg %p8036
      $region118: #{tpu_custom_call.1} parent=5 // pred_check_branch
        %8039 = sbr.rel (%p8037) target = $region120
      $region119: #{tpu_custom_call.1} parent=5 // pred_region
        %s8040 = ssub.s32 %s34, 2
        // Predicated region
        $region121: #{tpu_custom_call.1} parent=119 // pred_check
          %p8041 = pneg %p481
        $region122: #{tpu_custom_call.1} parent=119 // pred_check_branch
          %8043 = sbr.rel (%p8041) target = $region124
        $region123: #{tpu_custom_call.1} parent=119 // pred_region
          %s8044 = sand.u32 %s466, 1
          %s8045 = scalar_lea.sflag [#allocation5], %s8044
          %s8046 = sand.u32 %s466, 1
          %s8047 = smul.addr %s8046, 16
          %s8048 = scalar_lea.vmem [#allocation12], %s8047
          %8050 = dma.done %s8045, 256
        $region124: #{tpu_custom_call.1} parent=119 // pred_fallthru
          _
      $region120: #{tpu_custom_call.1} parent=5 // pred_fallthru
        _
    $region6: #{tpu_custom_call.1} parent=1 // loop_footer
      %s38 = sadd.s32 1, %s34
    $region7: #{tpu_custom_call.1} parent=1 // loop_footer_branch
      %33 = sbr.rel target = $region3
    $region8: #{tpu_custom_call.1} parent=1 // loop_exit
      _
    %8051 = vsyncpa [#allocation4], 1
    %s8052 = scalar_lea.sflag [#allocation4], 1
    %8053 = vsyncpa %s8052, 1
    %8054 = vsyncpa [#allocation7], 1
    %s8055 = scalar_lea.sflag [#allocation7], 1
    %8056 = vsyncpa %s8055, 1
    %8057 = vsyncpa [#allocation10], 1
    %s8058 = scalar_lea.sflag [#allocation10], 1
    %8059 = vsyncpa %s8058, 1
    %8060 = vsyncpa [#allocation5], 1
    %s8061 = scalar_lea.sflag [#allocation5], 1
    %8062 = vsyncpa %s8061, 1

</llo_original>
